<compile_context>
chip_gen: v6e
topology: v6e:2x2x1
jax: 0.10.0
libtpu: 0.0.40
codegen_flags: <defaults>
</compile_context>

<pallas_src>
import numpy as np
import jax
import jax.numpy as jnp
from jax.experimental import pallas as pl
from jax.experimental.pallas import tpu as pltpu


def _gates_to_state(gates, c, H):
    i = jax.nn.sigmoid(gates[:, 0 * H:1 * H])
    f = jax.nn.sigmoid(gates[:, 1 * H:2 * H])
    g = jnp.tanh(gates[:, 2 * H:3 * H])
    o = jax.nn.sigmoid(gates[:, 3 * H:4 * H])
    c_new = f * c + i * g
    h_new = o * jnp.tanh(c_new)
    return h_new, c_new


def encdec_kernel(x_ref,
                  e0_ih, e0_hh, e0_b,
                  e1_w, e1_b,
                  d0_ih, d0_hh, d0_b,
                  d1_w, d1_b,
                  p_w, p_b,
                  out_ref):
    S, B, F = x_ref.shape
    H4 = e0_hh.shape[1]          # e0_hh is (H, 4H)
    H = H4 // 4

    # Load each weight exactly once (bf16) and hoist bias broadcasts out of loops.
    w_e0_hh = e0_hh[...]                                   # (H, 4H)  bf16
    w_e1 = e1_w[...]                                       # (2H, 4H) bf16 = [W_ihT; W_hhT]
    w_d0_hh = d0_hh[...]
    w_d1 = d1_w[...]
    w_p = p_w[...]                                         # (H, F)   bf16
    b_e1 = jnp.broadcast_to(e1_b[...], (B, H4))            # f32
    b_d1 = jnp.broadcast_to(d1_b[...], (B, H4))
    b_p = jnp.broadcast_to(p_b[...], (B, F))

    # ---- hoist input-side matmuls off the serial path -------------------------
    # All layer-0 inputs (encoder: x[t]; decoder: teacher-forced x[t]) are known
    # up front: one (S*B, F) @ (F, 4H) bf16 dot per stack, bias folded in.
    x_all = x_ref[...]                                     # (S, B, F) f32
    x_bf = x_all.reshape(S * B, F).astype(jnp.bfloat16)
    enc_pre = (jnp.dot(x_bf, e0_ih[...], preferred_element_type=jnp.float32)
               + e0_b[...]).reshape(S, B, H4)
    dec_pre = (jnp.dot(x_bf, d0_ih[...], preferred_element_type=jnp.float32)
               + d0_b[...]).reshape(S, B, H4)

    zeros = jnp.zeros((B, H), jnp.float32)
    h0, c0, h1, c1 = zeros, zeros, zeros, zeros

    # ---- encoder: 2-layer LSTM over the sequence (only final state kept) ------
    for t in range(S):
        g0 = enc_pre[t] + jnp.dot(h0.astype(jnp.bfloat16), w_e0_hh,
                                  preferred_element_type=jnp.float32)
        h0, c0 = _gates_to_state(g0, c0, H)
        hh = jnp.concatenate([h0, h1], axis=1).astype(jnp.bfloat16)   # (B, 2H)
        g1 = jnp.dot(hh, w_e1, preferred_element_type=jnp.float32) + b_e1
        h1, c1 = _gates_to_state(g1, c1, H)

    # flatten/cat/split/unflatten in the PyTorch module is an identity:
    dh0, dc0, dh1, dc1 = h0, c0, h1, c1

    # ---- decoder: teacher-forced; step 0 input = x[S-1], step i>=1 = x[i-1] ---
    outs = []
    for i in range(S):
        pre = dec_pre[(i + S - 1) % S]
        g0 = pre + jnp.dot(dh0.astype(jnp.bfloat16), w_d0_hh,
                           preferred_element_type=jnp.float32)
        dh0, dc0 = _gates_to_state(g0, dc0, H)
        hh = jnp.concatenate([dh0, dh1], axis=1).astype(jnp.bfloat16)
        g1 = jnp.dot(hh, w_d1, preferred_element_type=jnp.float32) + b_d1
        dh1, dc1 = _gates_to_state(g1, dc1, H)
        outs.append(jnp.dot(dh1.astype(jnp.bfloat16), w_p,
                            preferred_element_type=jnp.float32) + b_p)

    # One lane-dense writeback instead of S masked (B, F) partial stores.
    out_ref[...] = jnp.stack(outs, axis=0)


def hidden_lstm_encoder_decoder(x, params):
    """x: (B, S, F) float32.  Returns (B, S, F) float32 (batch_first, like PyTorch)."""
    B, S, F = x.shape
    BT = 8                                   # batch tile = 8 sublanes
    B_pad = ((B + BT - 1) // BT) * BT
    if B_pad != B:
        x = jnp.pad(x, ((0, B_pad - B), (0, 0), (0, 0)))
    x_tm = jnp.transpose(x, (1, 0, 2))       # time-major (S, B_pad, F)

    weight_args = (params["e0_ih"], params["e0_hh"], params["e0_b"],
                   params["e1_w"], params["e1_b"],
                   params["d0_ih"], params["d0_hh"], params["d0_b"],
                   params["d1_w"], params["d1_b"],
                   params["p_w"], params["p_b"])

    def full_spec(a):
        # Whole-array block, constant index map (weights shared by every batch block).
        return pl.BlockSpec(a.shape, lambda b, _nd=a.ndim: (0,) * _nd)

    nb = B_pad // BT
    out_tm = pl.pallas_call(
        encdec_kernel,
        out_shape=jax.ShapeDtypeStruct((S, B_pad, F), jnp.float32),
        grid=(nb,),
        in_specs=[pl.BlockSpec((S, BT, F), lambda b: (0, b, 0))]
                 + [full_spec(a) for a in weight_args],
        out_specs=pl.BlockSpec((S, BT, F), lambda b: (0, b, 0)),
        compiler_params=pltpu.CompilerParams(
            dimension_semantics=("parallel",)),   # v7x: shard batch blocks over 2 TCs
    )(x_tm, *weight_args)
    return jnp.transpose(out_tm, (1, 0, 2))[:B]


def init_params(key, F, H):
    """Deterministic init mimicking torch.nn.LSTM / nn.Linear uniform(-1/sqrt(H), 1/sqrt(H))."""
    scale = 1.0 / np.sqrt(H)
    keys = jax.random.split(key, 18)

    def u(k_, shape):
        return jax.random.uniform(k_, shape, jnp.float32, -scale, scale)

    raw = {}
    idx = 0
    for name, in_dim in [("e0", F), ("e1", H), ("d0", F), ("d1", H)]:
        w_ih = u(keys[idx], (4 * H, in_dim)); idx += 1    # torch W_ih: (4H, in)
        w_hh = u(keys[idx], (4 * H, H)); idx += 1         # torch W_hh: (4H, H)
        b_ih = u(keys[idx], (4 * H,)); idx += 1
        b_hh = u(keys[idx], (4 * H,)); idx += 1
        raw[name] = (jnp.transpose(w_ih),                 # (in, 4H)
                     jnp.transpose(w_hh),                 # (H, 4H)
                     (b_ih + b_hh).reshape(1, 4 * H))     # pre-summed bias
    p_w = u(keys[idx], (F, H)); idx += 1                   # torch Linear weight (F, H)
    p_b = u(keys[idx], (F,)); idx += 1

    params = {
        # Layer 0 of each stack: input-side matmul is hoisted in the kernel, so
        # W_ih / W_hh stay separate.  Layer 1: fuse [W_ihT; W_hhT] -> (2H, 4H).
        "e0_ih": raw["e0"][0].astype(jnp.bfloat16),
        "e0_hh": raw["e0"][1].astype(jnp.bfloat16),
        "e0_b":  raw["e0"][2],
        "e1_w":  jnp.concatenate([raw["e1"][0], raw["e1"][1]], axis=0).astype(jnp.bfloat16),
        "e1_b":  raw["e1"][2],
        "d0_ih": raw["d0"][0].astype(jnp.bfloat16),
        "d0_hh": raw["d0"][1].astype(jnp.bfloat16),
        "d0_b":  raw["d0"][2],
        "d1_w":  jnp.concatenate([raw["d1"][0], raw["d1"][1]], axis=0).astype(jnp.bfloat16),
        "d1_b":  raw["d1"][2],
        "p_w":   jnp.transpose(p_w).astype(jnp.bfloat16),  # (H, F)
        "p_b":   p_b.reshape(1, F),
    }
    return params


def reference(x, params):
    """Pure-JAX reference with the same math / bf16 cast policy as the kernel."""
    B, S, F = x.shape
    H4 = params["e0_hh"].shape[1]
    H = H4 // 4

    def bfc(a):     # emulate the kernel's bf16 matmul inputs
        return a.astype(jnp.bfloat16).astype(jnp.float32)

    e0_ih = params["e0_ih"].astype(jnp.float32); e0_hh = params["e0_hh"].astype(jnp.float32)
    e1_ih = params["e1_w"][:H].astype(jnp.float32); e1_hh = params["e1_w"][H:].astype(jnp.float32)
    d0_ih = params["d0_ih"].astype(jnp.float32); d0_hh = params["d0_hh"].astype(jnp.float32)
    d1_ih = params["d1_w"][:H].astype(jnp.float32); d1_hh = params["d1_w"][H:].astype(jnp.float32)
    p_w = params["p_w"].astype(jnp.float32)

    def cell(xv, h, c, w_ih, w_hh, b):
        gates = bfc(xv) @ w_ih + bfc(h) @ w_hh + b
        i = jax.nn.sigmoid(gates[:, :H]); f = jax.nn.sigmoid(gates[:, H:2 * H])
        g = jnp.tanh(gates[:, 2 * H:3 * H]); o = jax.nn.sigmoid(gates[:, 3 * H:])
        c = f * c + i * g
        return o * jnp.tanh(c), c

    z = jnp.zeros((B, H), jnp.float32)
    h0 = c0 = h1 = c1 = z
    for t in range(S):
        h0, c0 = cell(x[:, t], h0, c0, e0_ih, e0_hh, params["e0_b"])
        h1, c1 = cell(h0, h1, c1, e1_ih, e1_hh, params["e1_b"])
    dh0, dc0, dh1, dc1 = h0, c0, h1, c1
    inp = x[:, -1]
    outs = []
    for i in range(S):
        dh0, dc0 = cell(inp, dh0, dc0, d0_ih, d0_hh, params["d0_b"])
        dh1, dc1 = cell(dh0, dh1, dc1, d1_ih, d1_hh, params["d1_b"])
        outs.append(bfc(dh1) @ p_w + params["p_b"])
        inp = x[:, i]
    return jnp.stack(outs, axis=1)


if __name__ == "__main__":
    # Small shapes consistent with the module's forward: x is (batch, seq, features)
    B, S, F, H = 4, 8, 64, 128
    key = jax.random.PRNGKey(0)
    kx, kp = jax.random.split(key)
    x = jax.random.normal(kx, (B, S, F), jnp.float32)
    params = init_params(kp, F, H)

    out = hidden_lstm_encoder_decoder(x, params)
    jax.block_until_ready(out)

    ref = reference(x, params)
    np.testing.assert_allclose(np.asarray(out), np.asarray(ref), atol=2e-2, rtol=2e-2)
    print("KERNEL_OK")
</pallas_src>

<mosaic_0001>
module attributes {stable_mosaic.version = 11 : i64} {
  func.func @encdec_kernel(%arg0: i32, %arg1: memref<8x8x64xf32, #tpu.memory_space<vmem>>, %arg2: memref<64x512xbf16, #tpu.memory_space<vmem>>, %arg3: memref<128x512xbf16, #tpu.memory_space<vmem>>, %arg4: memref<1x512xf32, #tpu.memory_space<vmem>>, %arg5: memref<256x512xbf16, #tpu.memory_space<vmem>>, %arg6: memref<1x512xf32, #tpu.memory_space<vmem>>, %arg7: memref<64x512xbf16, #tpu.memory_space<vmem>>, %arg8: memref<128x512xbf16, #tpu.memory_space<vmem>>, %arg9: memref<1x512xf32, #tpu.memory_space<vmem>>, %arg10: memref<256x512xbf16, #tpu.memory_space<vmem>>, %arg11: memref<1x512xf32, #tpu.memory_space<vmem>>, %arg12: memref<128x64xbf16, #tpu.memory_space<vmem>>, %arg13: memref<1x64xf32, #tpu.memory_space<vmem>>, %arg14: memref<8x8x64xf32, #tpu.memory_space<vmem>>) attributes {dimension_semantics = [#tpu.dimension_semantics<parallel>], iteration_bounds = array<i64: 1>, scalar_prefetch = 0 : i64, scratch_operands = 0 : i64, tpu.core_type = #tpu.core_type<tc>, window_params = [{transform_indices = @transform_0, window_bounds = array<i64: 8, 8, 64>}, {pipeline_mode = #tpu.pipeline_mode<synchronous>, transform_indices = @transform_1, window_bounds = array<i64: 64, 512>}, {pipeline_mode = #tpu.pipeline_mode<synchronous>, transform_indices = @transform_2, window_bounds = array<i64: 128, 512>}, {pipeline_mode = #tpu.pipeline_mode<synchronous>, transform_indices = @transform_3, window_bounds = array<i64: 1, 512>}, {pipeline_mode = #tpu.pipeline_mode<synchronous>, transform_indices = @transform_4, window_bounds = array<i64: 256, 512>}, {pipeline_mode = #tpu.pipeline_mode<synchronous>, transform_indices = @transform_5, window_bounds = array<i64: 1, 512>}, {pipeline_mode = #tpu.pipeline_mode<synchronous>, transform_indices = @transform_6, window_bounds = array<i64: 64, 512>}, {pipeline_mode = #tpu.pipeline_mode<synchronous>, transform_indices = @transform_7, window_bounds = array<i64: 128, 512>}, {pipeline_mode = #tpu.pipeline_mode<synchronous>, transform_indices = @transform_8, window_bounds = array<i64: 1, 512>}, {pipeline_mode = #tpu.pipeline_mode<synchronous>, transform_indices = @transform_9, window_bounds = array<i64: 256, 512>}, {pipeline_mode = #tpu.pipeline_mode<synchronous>, transform_indices = @transform_10, window_bounds = array<i64: 1, 512>}, {pipeline_mode = #tpu.pipeline_mode<synchronous>, transform_indices = @transform_11, window_bounds = array<i64: 128, 64>}, {pipeline_mode = #tpu.pipeline_mode<synchronous>, transform_indices = @transform_12, window_bounds = array<i64: 1, 64>}, {transform_indices = @transform_13, window_bounds = array<i64: 8, 8, 64>}]} {
    %c0 = arith.constant 0 : index
    %c0_0 = arith.constant 0 : index
    %0 = vector.load %arg3[%c0, %c0_0] : memref<128x512xbf16, #tpu.memory_space<vmem>>, vector<128x512xbf16>
    %c0_1 = arith.constant 0 : index
    %c0_2 = arith.constant 0 : index
    %1 = vector.load %arg5[%c0_1, %c0_2] : memref<256x512xbf16, #tpu.memory_space<vmem>>, vector<256x512xbf16>
    %c0_3 = arith.constant 0 : index
    %c0_4 = arith.constant 0 : index
    %2 = vector.load %arg8[%c0_3, %c0_4] : memref<128x512xbf16, #tpu.memory_space<vmem>>, vector<128x512xbf16>
    %c0_5 = arith.constant 0 : index
    %c0_6 = arith.constant 0 : index
    %3 = vector.load %arg10[%c0_5, %c0_6] : memref<256x512xbf16, #tpu.memory_space<vmem>>, vector<256x512xbf16>
    %c0_7 = arith.constant 0 : index
    %c0_8 = arith.constant 0 : index
    %4 = vector.load %arg12[%c0_7, %c0_8] : memref<128x64xbf16, #tpu.memory_space<vmem>>, vector<128x64xbf16>
    %c0_9 = arith.constant 0 : index
    %c0_10 = arith.constant 0 : index
    %5 = vector.load %arg6[%c0_9, %c0_10] : memref<1x512xf32, #tpu.memory_space<vmem>>, vector<1x512xf32>
    %6 = vector.shape_cast %5 : vector<1x512xf32> to vector<1x512xf32>
    %7 = vector.broadcast %6 : vector<1x512xf32> to vector<8x512xf32>
    %c0_11 = arith.constant 0 : index
    %c0_12 = arith.constant 0 : index
    %8 = vector.load %arg11[%c0_11, %c0_12] : memref<1x512xf32, #tpu.memory_space<vmem>>, vector<1x512xf32>
    %9 = vector.shape_cast %8 : vector<1x512xf32> to vector<1x512xf32>
    %10 = vector.broadcast %9 : vector<1x512xf32> to vector<8x512xf32>
    %c0_13 = arith.constant 0 : index
    %c0_14 = arith.constant 0 : index
    %11 = vector.load %arg13[%c0_13, %c0_14] : memref<1x64xf32, #tpu.memory_space<vmem>>, vector<1x64xf32>
    %12 = vector.shape_cast %11 : vector<1x64xf32> to vector<1x64xf32>
    %13 = vector.broadcast %12 : vector<1x64xf32> to vector<8x64xf32>
    %c0_15 = arith.constant 0 : index
    %c0_16 = arith.constant 0 : index
    %c0_17 = arith.constant 0 : index
    %14 = vector.load %arg1[%c0_15, %c0_16, %c0_17] : memref<8x8x64xf32, #tpu.memory_space<vmem>>, vector<8x8x64xf32>
    %15 = vector.shape_cast %14 : vector<8x8x64xf32> to vector<64x64xf32>
    %16 = arith.truncf %15 : vector<64x64xf32> to vector<64x64xbf16>
    %c0_18 = arith.constant 0 : index
    %c0_19 = arith.constant 0 : index
    %17 = vector.load %arg2[%c0_18, %c0_19] : memref<64x512xbf16, #tpu.memory_space<vmem>>, vector<64x512xbf16>
    %cst = arith.constant dense<0.000000e+00> : vector<64x512xf32>
    %18 = tpu.matmul %16, %17, %cst {dimension_numbers = #tpu.dot_dimension_numbers<[1], [0], [0], [1], [0, 0, 1, 1], [], []>} : vector<64x64xbf16>, vector<64x512xbf16>, vector<64x512xf32> -> vector<64x512xf32>
    %c0_20 = arith.constant 0 : index
    %c0_21 = arith.constant 0 : index
    %19 = vector.load %arg4[%c0_20, %c0_21] : memref<1x512xf32, #tpu.memory_space<vmem>>, vector<1x512xf32>
    %20 = vector.broadcast %19 : vector<1x512xf32> to vector<64x512xf32>
    %21 = arith.addf %18, %20 : vector<64x512xf32>
    %22 = vector.shape_cast %21 : vector<64x512xf32> to vector<8x8x512xf32>
    %c0_22 = arith.constant 0 : index
    %c0_23 = arith.constant 0 : index
    %23 = vector.load %arg7[%c0_22, %c0_23] : memref<64x512xbf16, #tpu.memory_space<vmem>>, vector<64x512xbf16>
    %cst_24 = arith.constant dense<0.000000e+00> : vector<64x512xf32>
    %24 = tpu.matmul %16, %23, %cst_24 {dimension_numbers = #tpu.dot_dimension_numbers<[1], [0], [0], [1], [0, 0, 1, 1], [], []>} : vector<64x64xbf16>, vector<64x512xbf16>, vector<64x512xf32> -> vector<64x512xf32>
    %c0_25 = arith.constant 0 : index
    %c0_26 = arith.constant 0 : index
    %25 = vector.load %arg9[%c0_25, %c0_26] : memref<1x512xf32, #tpu.memory_space<vmem>>, vector<1x512xf32>
    %26 = vector.broadcast %25 : vector<1x512xf32> to vector<64x512xf32>
    %27 = arith.addf %24, %26 : vector<64x512xf32>
    %28 = vector.shape_cast %27 : vector<64x512xf32> to vector<8x8x512xf32>
    %cst_27 = arith.constant 0.000000e+00 : f32
    %29 = vector.broadcast %cst_27 : f32 to vector<8x128xf32>
    %30 = vector.extract_strided_slice %22 {offsets = [0, 0, 0], sizes = [1, 8, 512], strides = [1, 1, 1]} : vector<8x8x512xf32> to vector<1x8x512xf32>
    %31 = vector.shape_cast %30 : vector<1x8x512xf32> to vector<8x512xf32>
    %32 = arith.truncf %29 : vector<8x128xf32> to vector<8x128xbf16>
    %cst_28 = arith.constant dense<0.000000e+00> : vector<8x512xf32>
    %33 = tpu.matmul %32, %0, %cst_28 {dimension_numbers = #tpu.dot_dimension_numbers<[1], [0], [0], [1], [0, 0, 1, 1], [], []>} : vector<8x128xbf16>, vector<128x512xbf16>, vector<8x512xf32> -> vector<8x512xf32>
    %34 = arith.addf %31, %33 : vector<8x512xf32>
    %35 = vector.extract_strided_slice %34 {offsets = [0, 0], sizes = [8, 128], strides = [1, 1]} : vector<8x512xf32> to vector<8x128xf32>
    %36 = arith.negf %35 : vector<8x128xf32>
    %37 = math.exp %36 : vector<8x128xf32>
    %cst_29 = arith.constant 1.000000e+00 : f32
    %38 = vector.broadcast %cst_29 : f32 to vector<8x128xf32>
    %39 = arith.addf %38, %37 : vector<8x128xf32>
    %40 = arith.divf %38, %39 : vector<8x128xf32>
    %41 = vector.extract_strided_slice %34 {offsets = [0, 128], sizes = [8, 128], strides = [1, 1]} : vector<8x512xf32> to vector<8x128xf32>
    %42 = arith.negf %41 : vector<8x128xf32>
    %43 = math.exp %42 : vector<8x128xf32>
    %cst_30 = arith.constant 1.000000e+00 : f32
    %44 = vector.broadcast %cst_30 : f32 to vector<8x128xf32>
    %45 = arith.addf %44, %43 : vector<8x128xf32>
    %46 = arith.divf %44, %45 : vector<8x128xf32>
    %47 = vector.extract_strided_slice %34 {offsets = [0, 256], sizes = [8, 128], strides = [1, 1]} : vector<8x512xf32> to vector<8x128xf32>
    %48 = math.tanh %47 : vector<8x128xf32>
    %49 = vector.extract_strided_slice %34 {offsets = [0, 384], sizes = [8, 128], strides = [1, 1]} : vector<8x512xf32> to vector<8x128xf32>
    %50 = arith.negf %49 : vector<8x128xf32>
    %51 = math.exp %50 : vector<8x128xf32>
    %cst_31 = arith.constant 1.000000e+00 : f32
    %52 = vector.broadcast %cst_31 : f32 to vector<8x128xf32>
    %53 = arith.addf %52, %51 : vector<8x128xf32>
    %54 = arith.divf %52, %53 : vector<8x128xf32>
    %55 = arith.mulf %46, %29 : vector<8x128xf32>
    %56 = arith.mulf %40, %48 : vector<8x128xf32>
    %57 = arith.addf %55, %56 : vector<8x128xf32>
    %58 = math.tanh %57 : vector<8x128xf32>
    %59 = arith.mulf %54, %58 : vector<8x128xf32>
    %60 = tpu.concatenate %59, %29 in 1 : vector<8x128xf32>, vector<8x128xf32> -> vector<8x256xf32>
    %61 = arith.truncf %60 : vector<8x256xf32> to vector<8x256xbf16>
    %cst_32 = arith.constant dense<0.000000e+00> : vector<8x512xf32>
    %62 = tpu.matmul %61, %1, %cst_32 {dimension_numbers = #tpu.dot_dimension_numbers<[1], [0], [0], [1], [0, 0, 1, 1], [], []>} : vector<8x256xbf16>, vector<256x512xbf16>, vector<8x512xf32> -> vector<8x512xf32>
    %63 = arith.addf %62, %7 : vector<8x512xf32>
    %64 = vector.extract_strided_slice %63 {offsets = [0, 0], sizes = [8, 128], strides = [1, 1]} : vector<8x512xf32> to vector<8x128xf32>
    %65 = arith.negf %64 : vector<8x128xf32>
    %66 = math.exp %65 : vector<8x128xf32>
    %cst_33 = arith.constant 1.000000e+00 : f32
    %67 = vector.broadcast %cst_33 : f32 to vector<8x128xf32>
    %68 = arith.addf %67, %66 : vector<8x128xf32>
    %69 = arith.divf %67, %68 : vector<8x128xf32>
    %70 = vector.extract_strided_slice %63 {offsets = [0, 128], sizes = [8, 128], strides = [1, 1]} : vector<8x512xf32> to vector<8x128xf32>
    %71 = arith.negf %70 : vector<8x128xf32>
    %72 = math.exp %71 : vector<8x128xf32>
    %cst_34 = arith.constant 1.000000e+00 : f32
    %73 = vector.broadcast %cst_34 : f32 to vector<8x128xf32>
    %74 = arith.addf %73, %72 : vector<8x128xf32>
    %75 = arith.divf %73, %74 : vector<8x128xf32>
    %76 = vector.extract_strided_slice %63 {offsets = [0, 256], sizes = [8, 128], strides = [1, 1]} : vector<8x512xf32> to vector<8x128xf32>
    %77 = math.tanh %76 : vector<8x128xf32>
    %78 = vector.extract_strided_slice %63 {offsets = [0, 384], sizes = [8, 128], strides = [1, 1]} : vector<8x512xf32> to vector<8x128xf32>
    %79 = arith.negf %78 : vector<8x128xf32>
    %80 = math.exp %79 : vector<8x128xf32>
    %cst_35 = arith.constant 1.000000e+00 : f32
    %81 = vector.broadcast %cst_35 : f32 to vector<8x128xf32>
    %82 = arith.addf %81, %80 : vector<8x128xf32>
    %83 = arith.divf %81, %82 : vector<8x128xf32>
    %84 = arith.mulf %75, %29 : vector<8x128xf32>
    %85 = arith.mulf %69, %77 : vector<8x128xf32>
    %86 = arith.addf %84, %85 : vector<8x128xf32>
    %87 = math.tanh %86 : vector<8x128xf32>
    %88 = arith.mulf %83, %87 : vector<8x128xf32>
    %89 = vector.extract_strided_slice %22 {offsets = [1, 0, 0], sizes = [1, 8, 512], strides = [1, 1, 1]} : vector<8x8x512xf32> to vector<1x8x512xf32>
    %90 = vector.shape_cast %89 : vector<1x8x512xf32> to vector<8x512xf32>
    %91 = arith.truncf %59 : vector<8x128xf32> to vector<8x128xbf16>
    %cst_36 = arith.constant dense<0.000000e+00> : vector<8x512xf32>
    %92 = tpu.matmul %91, %0, %cst_36 {dimension_numbers = #tpu.dot_dimension_numbers<[1], [0], [0], [1], [0, 0, 1, 1], [], []>} : vector<8x128xbf16>, vector<128x512xbf16>, vector<8x512xf32> -> vector<8x512xf32>
    %93 = arith.addf %90, %92 : vector<8x512xf32>
    %94 = vector.extract_strided_slice %93 {offsets = [0, 0], sizes = [8, 128], strides = [1, 1]} : vector<8x512xf32> to vector<8x128xf32>
    %95 = arith.negf %94 : vector<8x128xf32>
    %96 = math.exp %95 : vector<8x128xf32>
    %cst_37 = arith.constant 1.000000e+00 : f32
    %97 = vector.broadcast %cst_37 : f32 to vector<8x128xf32>
    %98 = arith.addf %97, %96 : vector<8x128xf32>
    %99 = arith.divf %97, %98 : vector<8x128xf32>
    %100 = vector.extract_strided_slice %93 {offsets = [0, 128], sizes = [8, 128], strides = [1, 1]} : vector<8x512xf32> to vector<8x128xf32>
    %101 = arith.negf %100 : vector<8x128xf32>
    %102 = math.exp %101 : vector<8x128xf32>
    %cst_38 = arith.constant 1.000000e+00 : f32
    %103 = vector.broadcast %cst_38 : f32 to vector<8x128xf32>
    %104 = arith.addf %103, %102 : vector<8x128xf32>
    %105 = arith.divf %103, %104 : vector<8x128xf32>
    %106 = vector.extract_strided_slice %93 {offsets = [0, 256], sizes = [8, 128], strides = [1, 1]} : vector<8x512xf32> to vector<8x128xf32>
    %107 = math.tanh %106 : vector<8x128xf32>
    %108 = vector.extract_strided_slice %93 {offsets = [0, 384], sizes = [8, 128], strides = [1, 1]} : vector<8x512xf32> to vector<8x128xf32>
    %109 = arith.negf %108 : vector<8x128xf32>
    %110 = math.exp %109 : vector<8x128xf32>
    %cst_39 = arith.constant 1.000000e+00 : f32
    %111 = vector.broadcast %cst_39 : f32 to vector<8x128xf32>
    %112 = arith.addf %111, %110 : vector<8x128xf32>
    %113 = arith.divf %111, %112 : vector<8x128xf32>
    %114 = arith.mulf %105, %57 : vector<8x128xf32>
    %115 = arith.mulf %99, %107 : vector<8x128xf32>
    %116 = arith.addf %114, %115 : vector<8x128xf32>
    %117 = math.tanh %116 : vector<8x128xf32>
    %118 = arith.mulf %113, %117 : vector<8x128xf32>
    %119 = tpu.concatenate %118, %88 in 1 : vector<8x128xf32>, vector<8x128xf32> -> vector<8x256xf32>
    %120 = arith.truncf %119 : vector<8x256xf32> to vector<8x256xbf16>
    %cst_40 = arith.constant dense<0.000000e+00> : vector<8x512xf32>
    %121 = tpu.matmul %120, %1, %cst_40 {dimension_numbers = #tpu.dot_dimension_numbers<[1], [0], [0], [1], [0, 0, 1, 1], [], []>} : vector<8x256xbf16>, vector<256x512xbf16>, vector<8x512xf32> -> vector<8x512xf32>
    %122 = arith.addf %121, %7 : vector<8x512xf32>
    %123 = vector.extract_strided_slice %122 {offsets = [0, 0], sizes = [8, 128], strides = [1, 1]} : vector<8x512xf32> to vector<8x128xf32>
    %124 = arith.negf %123 : vector<8x128xf32>
    %125 = math.exp %124 : vector<8x128xf32>
    %cst_41 = arith.constant 1.000000e+00 : f32
    %126 = vector.broadcast %cst_41 : f32 to vector<8x128xf32>
    %127 = arith.addf %126, %125 : vector<8x128xf32>
    %128 = arith.divf %126, %127 : vector<8x128xf32>
    %129 = vector.extract_strided_slice %122 {offsets = [0, 128], sizes = [8, 128], strides = [1, 1]} : vector<8x512xf32> to vector<8x128xf32>
    %130 = arith.negf %129 : vector<8x128xf32>
    %131 = math.exp %130 : vector<8x128xf32>
    %cst_42 = arith.constant 1.000000e+00 : f32
    %132 = vector.broadcast %cst_42 : f32 to vector<8x128xf32>
    %133 = arith.addf %132, %131 : vector<8x128xf32>
    %134 = arith.divf %132, %133 : vector<8x128xf32>
    %135 = vector.extract_strided_slice %122 {offsets = [0, 256], sizes = [8, 128], strides = [1, 1]} : vector<8x512xf32> to vector<8x128xf32>
    %136 = math.tanh %135 : vector<8x128xf32>
    %137 = vector.extract_strided_slice %122 {offsets = [0, 384], sizes = [8, 128], strides = [1, 1]} : vector<8x512xf32> to vector<8x128xf32>
    %138 = arith.negf %137 : vector<8x128xf32>
    %139 = math.exp %138 : vector<8x128xf32>
    %cst_43 = arith.constant 1.000000e+00 : f32
    %140 = vector.broadcast %cst_43 : f32 to vector<8x128xf32>
    %141 = arith.addf %140, %139 : vector<8x128xf32>
    %142 = arith.divf %140, %141 : vector<8x128xf32>
    %143 = arith.mulf %134, %86 : vector<8x128xf32>
    %144 = arith.mulf %128, %136 : vector<8x128xf32>
    %145 = arith.addf %143, %144 : vector<8x128xf32>
    %146 = math.tanh %145 : vector<8x128xf32>
    %147 = arith.mulf %142, %146 : vector<8x128xf32>
    %148 = vector.extract_strided_slice %22 {offsets = [2, 0, 0], sizes = [1, 8, 512], strides = [1, 1, 1]} : vector<8x8x512xf32> to vector<1x8x512xf32>
    %149 = vector.shape_cast %148 : vector<1x8x512xf32> to vector<8x512xf32>
    %150 = arith.truncf %118 : vector<8x128xf32> to vector<8x128xbf16>
    %cst_44 = arith.constant dense<0.000000e+00> : vector<8x512xf32>
    %151 = tpu.matmul %150, %0, %cst_44 {dimension_numbers = #tpu.dot_dimension_numbers<[1], [0], [0], [1], [0, 0, 1, 1], [], []>} : vector<8x128xbf16>, vector<128x512xbf16>, vector<8x512xf32> -> vector<8x512xf32>
    %152 = arith.addf %149, %151 : vector<8x512xf32>
    %153 = vector.extract_strided_slice %152 {offsets = [0, 0], sizes = [8, 128], strides = [1, 1]} : vector<8x512xf32> to vector<8x128xf32>
    %154 = arith.negf %153 : vector<8x128xf32>
    %155 = math.exp %154 : vector<8x128xf32>
    %cst_45 = arith.constant 1.000000e+00 : f32
    %156 = vector.broadcast %cst_45 : f32 to vector<8x128xf32>
    %157 = arith.addf %156, %155 : vector<8x128xf32>
    %158 = arith.divf %156, %157 : vector<8x128xf32>
    %159 = vector.extract_strided_slice %152 {offsets = [0, 128], sizes = [8, 128], strides = [1, 1]} : vector<8x512xf32> to vector<8x128xf32>
    %160 = arith.negf %159 : vector<8x128xf32>
    %161 = math.exp %160 : vector<8x128xf32>
    %cst_46 = arith.constant 1.000000e+00 : f32
    %162 = vector.broadcast %cst_46 : f32 to vector<8x128xf32>
    %163 = arith.addf %162, %161 : vector<8x128xf32>
    %164 = arith.divf %162, %163 : vector<8x128xf32>
    %165 = vector.extract_strided_slice %152 {offsets = [0, 256], sizes = [8, 128], strides = [1, 1]} : vector<8x512xf32> to vector<8x128xf32>
    %166 = math.tanh %165 : vector<8x128xf32>
    %167 = vector.extract_strided_slice %152 {offsets = [0, 384], sizes = [8, 128], strides = [1, 1]} : vector<8x512xf32> to vector<8x128xf32>
    %168 = arith.negf %167 : vector<8x128xf32>
    %169 = math.exp %168 : vector<8x128xf32>
    %cst_47 = arith.constant 1.000000e+00 : f32
    %170 = vector.broadcast %cst_47 : f32 to vector<8x128xf32>
    %171 = arith.addf %170, %169 : vector<8x128xf32>
    %172 = arith.divf %170, %171 : vector<8x128xf32>
    %173 = arith.mulf %164, %116 : vector<8x128xf32>
    %174 = arith.mulf %158, %166 : vector<8x128xf32>
    %175 = arith.addf %173, %174 : vector<8x128xf32>
    %176 = math.tanh %175 : vector<8x128xf32>
    %177 = arith.mulf %172, %176 : vector<8x128xf32>
    %178 = tpu.concatenate %177, %147 in 1 : vector<8x128xf32>, vector<8x128xf32> -> vector<8x256xf32>
    %179 = arith.truncf %178 : vector<8x256xf32> to vector<8x256xbf16>
    %cst_48 = arith.constant dense<0.000000e+00> : vector<8x512xf32>
    %180 = tpu.matmul %179, %1, %cst_48 {dimension_numbers = #tpu.dot_dimension_numbers<[1], [0], [0], [1], [0, 0, 1, 1], [], []>} : vector<8x256xbf16>, vector<256x512xbf16>, vector<8x512xf32> -> vector<8x512xf32>
    %181 = arith.addf %180, %7 : vector<8x512xf32>
    %182 = vector.extract_strided_slice %181 {offsets = [0, 0], sizes = [8, 128], strides = [1, 1]} : vector<8x512xf32> to vector<8x128xf32>
    %183 = arith.negf %182 : vector<8x128xf32>
    %184 = math.exp %183 : vector<8x128xf32>
    %cst_49 = arith.constant 1.000000e+00 : f32
    %185 = vector.broadcast %cst_49 : f32 to vector<8x128xf32>
    %186 = arith.addf %185, %184 : vector<8x128xf32>
    %187 = arith.divf %185, %186 : vector<8x128xf32>
    %188 = vector.extract_strided_slice %181 {offsets = [0, 128], sizes = [8, 128], strides = [1, 1]} : vector<8x512xf32> to vector<8x128xf32>
    %189 = arith.negf %188 : vector<8x128xf32>
    %190 = math.exp %189 : vector<8x128xf32>
    %cst_50 = arith.constant 1.000000e+00 : f32
    %191 = vector.broadcast %cst_50 : f32 to vector<8x128xf32>
    %192 = arith.addf %191, %190 : vector<8x128xf32>
    %193 = arith.divf %191, %192 : vector<8x128xf32>
    %194 = vector.extract_strided_slice %181 {offsets = [0, 256], sizes = [8, 128], strides = [1, 1]} : vector<8x512xf32> to vector<8x128xf32>
    %195 = math.tanh %194 : vector<8x128xf32>
    %196 = vector.extract_strided_slice %181 {offsets = [0, 384], sizes = [8, 128], strides = [1, 1]} : vector<8x512xf32> to vector<8x128xf32>
    %197 = arith.negf %196 : vector<8x128xf32>
    %198 = math.exp %197 : vector<8x128xf32>
    %cst_51 = arith.constant 1.000000e+00 : f32
    %199 = vector.broadcast %cst_51 : f32 to vector<8x128xf32>
    %200 = arith.addf %199, %198 : vector<8x128xf32>
    %201 = arith.divf %199, %200 : vector<8x128xf32>
    %202 = arith.mulf %193, %145 : vector<8x128xf32>
    %203 = arith.mulf %187, %195 : vector<8x128xf32>
    %204 = arith.addf %202, %203 : vector<8x128xf32>
    %205 = math.tanh %204 : vector<8x128xf32>
    %206 = arith.mulf %201, %205 : vector<8x128xf32>
    %207 = vector.extract_strided_slice %22 {offsets = [3, 0, 0], sizes = [1, 8, 512], strides = [1, 1, 1]} : vector<8x8x512xf32> to vector<1x8x512xf32>
    %208 = vector.shape_cast %207 : vector<1x8x512xf32> to vector<8x512xf32>
    %209 = arith.truncf %177 : vector<8x128xf32> to vector<8x128xbf16>
    %cst_52 = arith.constant dense<0.000000e+00> : vector<8x512xf32>
    %210 = tpu.matmul %209, %0, %cst_52 {dimension_numbers = #tpu.dot_dimension_numbers<[1], [0], [0], [1], [0, 0, 1, 1], [], []>} : vector<8x128xbf16>, vector<128x512xbf16>, vector<8x512xf32> -> vector<8x512xf32>
    %211 = arith.addf %208, %210 : vector<8x512xf32>
    %212 = vector.extract_strided_slice %211 {offsets = [0, 0], sizes = [8, 128], strides = [1, 1]} : vector<8x512xf32> to vector<8x128xf32>
    %213 = arith.negf %212 : vector<8x128xf32>
    %214 = math.exp %213 : vector<8x128xf32>
    %cst_53 = arith.constant 1.000000e+00 : f32
    %215 = vector.broadcast %cst_53 : f32 to vector<8x128xf32>
    %216 = arith.addf %215, %214 : vector<8x128xf32>
    %217 = arith.divf %215, %216 : vector<8x128xf32>
    %218 = vector.extract_strided_slice %211 {offsets = [0, 128], sizes = [8, 128], strides = [1, 1]} : vector<8x512xf32> to vector<8x128xf32>
    %219 = arith.negf %218 : vector<8x128xf32>
    %220 = math.exp %219 : vector<8x128xf32>
    %cst_54 = arith.constant 1.000000e+00 : f32
    %221 = vector.broadcast %cst_54 : f32 to vector<8x128xf32>
    %222 = arith.addf %221, %220 : vector<8x128xf32>
    %223 = arith.divf %221, %222 : vector<8x128xf32>
    %224 = vector.extract_strided_slice %211 {offsets = [0, 256], sizes = [8, 128], strides = [1, 1]} : vector<8x512xf32> to vector<8x128xf32>
    %225 = math.tanh %224 : vector<8x128xf32>
    %226 = vector.extract_strided_slice %211 {offsets = [0, 384], sizes = [8, 128], strides = [1, 1]} : vector<8x512xf32> to vector<8x128xf32>
    %227 = arith.negf %226 : vector<8x128xf32>
    %228 = math.exp %227 : vector<8x128xf32>
    %cst_55 = arith.constant 1.000000e+00 : f32
    %229 = vector.broadcast %cst_55 : f32 to vector<8x128xf32>
    %230 = arith.addf %229, %228 : vector<8x128xf32>
    %231 = arith.divf %229, %230 : vector<8x128xf32>
    %232 = arith.mulf %223, %175 : vector<8x128xf32>
    %233 = arith.mulf %217, %225 : vector<8x128xf32>
    %234 = arith.addf %232, %233 : vector<8x128xf32>
    %235 = math.tanh %234 : vector<8x128xf32>
    %236 = arith.mulf %231, %235 : vector<8x128xf32>
    %237 = tpu.concatenate %236, %206 in 1 : vector<8x128xf32>, vector<8x128xf32> -> vector<8x256xf32>
    %238 = arith.truncf %237 : vector<8x256xf32> to vector<8x256xbf16>
    %cst_56 = arith.constant dense<0.000000e+00> : vector<8x512xf32>
    %239 = tpu.matmul %238, %1, %cst_56 {dimension_numbers = #tpu.dot_dimension_numbers<[1], [0], [0], [1], [0, 0, 1, 1], [], []>} : vector<8x256xbf16>, vector<256x512xbf16>, vector<8x512xf32> -> vector<8x512xf32>
    %240 = arith.addf %239, %7 : vector<8x512xf32>
    %241 = vector.extract_strided_slice %240 {offsets = [0, 0], sizes = [8, 128], strides = [1, 1]} : vector<8x512xf32> to vector<8x128xf32>
    %242 = arith.negf %241 : vector<8x128xf32>
    %243 = math.exp %242 : vector<8x128xf32>
    %cst_57 = arith.constant 1.000000e+00 : f32
    %244 = vector.broadcast %cst_57 : f32 to vector<8x128xf32>
    %245 = arith.addf %244, %243 : vector<8x128xf32>
    %246 = arith.divf %244, %245 : vector<8x128xf32>
    %247 = vector.extract_strided_slice %240 {offsets = [0, 128], sizes = [8, 128], strides = [1, 1]} : vector<8x512xf32> to vector<8x128xf32>
    %248 = arith.negf %247 : vector<8x128xf32>
    %249 = math.exp %248 : vector<8x128xf32>
    %cst_58 = arith.constant 1.000000e+00 : f32
    %250 = vector.broadcast %cst_58 : f32 to vector<8x128xf32>
    %251 = arith.addf %250, %249 : vector<8x128xf32>
    %252 = arith.divf %250, %251 : vector<8x128xf32>
    %253 = vector.extract_strided_slice %240 {offsets = [0, 256], sizes = [8, 128], strides = [1, 1]} : vector<8x512xf32> to vector<8x128xf32>
    %254 = math.tanh %253 : vector<8x128xf32>
    %255 = vector.extract_strided_slice %240 {offsets = [0, 384], sizes = [8, 128], strides = [1, 1]} : vector<8x512xf32> to vector<8x128xf32>
    %256 = arith.negf %255 : vector<8x128xf32>
    %257 = math.exp %256 : vector<8x128xf32>
    %cst_59 = arith.constant 1.000000e+00 : f32
    %258 = vector.broadcast %cst_59 : f32 to vector<8x128xf32>
    %259 = arith.addf %258, %257 : vector<8x128xf32>
    %260 = arith.divf %258, %259 : vector<8x128xf32>
    %261 = arith.mulf %252, %204 : vector<8x128xf32>
    %262 = arith.mulf %246, %254 : vector<8x128xf32>
    %263 = arith.addf %261, %262 : vector<8x128xf32>
    %264 = math.tanh %263 : vector<8x128xf32>
    %265 = arith.mulf %260, %264 : vector<8x128xf32>
    %266 = vector.extract_strided_slice %22 {offsets = [4, 0, 0], sizes = [1, 8, 512], strides = [1, 1, 1]} : vector<8x8x512xf32> to vector<1x8x512xf32>
    %267 = vector.shape_cast %266 : vector<1x8x512xf32> to vector<8x512xf32>
    %268 = arith.truncf %236 : vector<8x128xf32> to vector<8x128xbf16>
    %cst_60 = arith.constant dense<0.000000e+00> : vector<8x512xf32>
    %269 = tpu.matmul %268, %0, %cst_60 {dimension_numbers = #tpu.dot_dimension_numbers<[1], [0], [0], [1], [0, 0, 1, 1], [], []>} : vector<8x128xbf16>, vector<128x512xbf16>, vector<8x512xf32> -> vector<8x512xf32>
    %270 = arith.addf %267, %269 : vector<8x512xf32>
    %271 = vector.extract_strided_slice %270 {offsets = [0, 0], sizes = [8, 128], strides = [1, 1]} : vector<8x512xf32> to vector<8x128xf32>
    %272 = arith.negf %271 : vector<8x128xf32>
    %273 = math.exp %272 : vector<8x128xf32>
    %cst_61 = arith.constant 1.000000e+00 : f32
    %274 = vector.broadcast %cst_61 : f32 to vector<8x128xf32>
    %275 = arith.addf %274, %273 : vector<8x128xf32>
    %276 = arith.divf %274, %275 : vector<8x128xf32>
    %277 = vector.extract_strided_slice %270 {offsets = [0, 128], sizes = [8, 128], strides = [1, 1]} : vector<8x512xf32> to vector<8x128xf32>
    %278 = arith.negf %277 : vector<8x128xf32>
    %279 = math.exp %278 : vector<8x128xf32>
    %cst_62 = arith.constant 1.000000e+00 : f32
    %280 = vector.broadcast %cst_62 : f32 to vector<8x128xf32>
    %281 = arith.addf %280, %279 : vector<8x128xf32>
    %282 = arith.divf %280, %281 : vector<8x128xf32>
    %283 = vector.extract_strided_slice %270 {offsets = [0, 256], sizes = [8, 128], strides = [1, 1]} : vector<8x512xf32> to vector<8x128xf32>
    %284 = math.tanh %283 : vector<8x128xf32>
    %285 = vector.extract_strided_slice %270 {offsets = [0, 384], sizes = [8, 128], strides = [1, 1]} : vector<8x512xf32> to vector<8x128xf32>
    %286 = arith.negf %285 : vector<8x128xf32>
    %287 = math.exp %286 : vector<8x128xf32>
    %cst_63 = arith.constant 1.000000e+00 : f32
    %288 = vector.broadcast %cst_63 : f32 to vector<8x128xf32>
    %289 = arith.addf %288, %287 : vector<8x128xf32>
    %290 = arith.divf %288, %289 : vector<8x128xf32>
    %291 = arith.mulf %282, %234 : vector<8x128xf32>
    %292 = arith.mulf %276, %284 : vector<8x128xf32>
    %293 = arith.addf %291, %292 : vector<8x128xf32>
    %294 = math.tanh %293 : vector<8x128xf32>
    %295 = arith.mulf %290, %294 : vector<8x128xf32>
    %296 = tpu.concatenate %295, %265 in 1 : vector<8x128xf32>, vector<8x128xf32> -> vector<8x256xf32>
    %297 = arith.truncf %296 : vector<8x256xf32> to vector<8x256xbf16>
    %cst_64 = arith.constant dense<0.000000e+00> : vector<8x512xf32>
    %298 = tpu.matmul %297, %1, %cst_64 {dimension_numbers = #tpu.dot_dimension_numbers<[1], [0], [0], [1], [0, 0, 1, 1], [], []>} : vector<8x256xbf16>, vector<256x512xbf16>, vector<8x512xf32> -> vector<8x512xf32>
    %299 = arith.addf %298, %7 : vector<8x512xf32>
    %300 = vector.extract_strided_slice %299 {offsets = [0, 0], sizes = [8, 128], strides = [1, 1]} : vector<8x512xf32> to vector<8x128xf32>
    %301 = arith.negf %300 : vector<8x128xf32>
    %302 = math.exp %301 : vector<8x128xf32>
    %cst_65 = arith.constant 1.000000e+00 : f32
    %303 = vector.broadcast %cst_65 : f32 to vector<8x128xf32>
    %304 = arith.addf %303, %302 : vector<8x128xf32>
    %305 = arith.divf %303, %304 : vector<8x128xf32>
    %306 = vector.extract_strided_slice %299 {offsets = [0, 128], sizes = [8, 128], strides = [1, 1]} : vector<8x512xf32> to vector<8x128xf32>
    %307 = arith.negf %306 : vector<8x128xf32>
    %308 = math.exp %307 : vector<8x128xf32>
    %cst_66 = arith.constant 1.000000e+00 : f32
    %309 = vector.broadcast %cst_66 : f32 to vector<8x128xf32>
    %310 = arith.addf %309, %308 : vector<8x128xf32>
    %311 = arith.divf %309, %310 : vector<8x128xf32>
    %312 = vector.extract_strided_slice %299 {offsets = [0, 256], sizes = [8, 128], strides = [1, 1]} : vector<8x512xf32> to vector<8x128xf32>
    %313 = math.tanh %312 : vector<8x128xf32>
    %314 = vector.extract_strided_slice %299 {offsets = [0, 384], sizes = [8, 128], strides = [1, 1]} : vector<8x512xf32> to vector<8x128xf32>
    %315 = arith.negf %314 : vector<8x128xf32>
    %316 = math.exp %315 : vector<8x128xf32>
    %cst_67 = arith.constant 1.000000e+00 : f32
    %317 = vector.broadcast %cst_67 : f32 to vector<8x128xf32>
    %318 = arith.addf %317, %316 : vector<8x128xf32>
    %319 = arith.divf %317, %318 : vector<8x128xf32>
    %320 = arith.mulf %311, %263 : vector<8x128xf32>
    %321 = arith.mulf %305, %313 : vector<8x128xf32>
    %322 = arith.addf %320, %321 : vector<8x128xf32>
    %323 = math.tanh %322 : vector<8x128xf32>
    %324 = arith.mulf %319, %323 : vector<8x128xf32>
    %325 = vector.extract_strided_slice %22 {offsets = [5, 0, 0], sizes = [1, 8, 512], strides = [1, 1, 1]} : vector<8x8x512xf32> to vector<1x8x512xf32>
    %326 = vector.shape_cast %325 : vector<1x8x512xf32> to vector<8x512xf32>
    %327 = arith.truncf %295 : vector<8x128xf32> to vector<8x128xbf16>
    %cst_68 = arith.constant dense<0.000000e+00> : vector<8x512xf32>
    %328 = tpu.matmul %327, %0, %cst_68 {dimension_numbers = #tpu.dot_dimension_numbers<[1], [0], [0], [1], [0, 0, 1, 1], [], []>} : vector<8x128xbf16>, vector<128x512xbf16>, vector<8x512xf32> -> vector<8x512xf32>
    %329 = arith.addf %326, %328 : vector<8x512xf32>
    %330 = vector.extract_strided_slice %329 {offsets = [0, 0], sizes = [8, 128], strides = [1, 1]} : vector<8x512xf32> to vector<8x128xf32>
    %331 = arith.negf %330 : vector<8x128xf32>
    %332 = math.exp %331 : vector<8x128xf32>
    %cst_69 = arith.constant 1.000000e+00 : f32
    %333 = vector.broadcast %cst_69 : f32 to vector<8x128xf32>
    %334 = arith.addf %333, %332 : vector<8x128xf32>
    %335 = arith.divf %333, %334 : vector<8x128xf32>
    %336 = vector.extract_strided_slice %329 {offsets = [0, 128], sizes = [8, 128], strides = [1, 1]} : vector<8x512xf32> to vector<8x128xf32>
    %337 = arith.negf %336 : vector<8x128xf32>
    %338 = math.exp %337 : vector<8x128xf32>
    %cst_70 = arith.constant 1.000000e+00 : f32
    %339 = vector.broadcast %cst_70 : f32 to vector<8x128xf32>
    %340 = arith.addf %339, %338 : vector<8x128xf32>
    %341 = arith.divf %339, %340 : vector<8x128xf32>
    %342 = vector.extract_strided_slice %329 {offsets = [0, 256], sizes = [8, 128], strides = [1, 1]} : vector<8x512xf32> to vector<8x128xf32>
    %343 = math.tanh %342 : vector<8x128xf32>
    %344 = vector.extract_strided_slice %329 {offsets = [0, 384], sizes = [8, 128], strides = [1, 1]} : vector<8x512xf32> to vector<8x128xf32>
    %345 = arith.negf %344 : vector<8x128xf32>
    %346 = math.exp %345 : vector<8x128xf32>
    %cst_71 = arith.constant 1.000000e+00 : f32
    %347 = vector.broadcast %cst_71 : f32 to vector<8x128xf32>
    %348 = arith.addf %347, %346 : vector<8x128xf32>
    %349 = arith.divf %347, %348 : vector<8x128xf32>
    %350 = arith.mulf %341, %293 : vector<8x128xf32>
    %351 = arith.mulf %335, %343 : vector<8x128xf32>
    %352 = arith.addf %350, %351 : vector<8x128xf32>
    %353 = math.tanh %352 : vector<8x128xf32>
    %354 = arith.mulf %349, %353 : vector<8x128xf32>
    %355 = tpu.concatenate %354, %324 in 1 : vector<8x128xf32>, vector<8x128xf32> -> vector<8x256xf32>
    %356 = arith.truncf %355 : vector<8x256xf32> to vector<8x256xbf16>
    %cst_72 = arith.constant dense<0.000000e+00> : vector<8x512xf32>
    %357 = tpu.matmul %356, %1, %cst_72 {dimension_numbers = #tpu.dot_dimension_numbers<[1], [0], [0], [1], [0, 0, 1, 1], [], []>} : vector<8x256xbf16>, vector<256x512xbf16>, vector<8x512xf32> -> vector<8x512xf32>
    %358 = arith.addf %357, %7 : vector<8x512xf32>
    %359 = vector.extract_strided_slice %358 {offsets = [0, 0], sizes = [8, 128], strides = [1, 1]} : vector<8x512xf32> to vector<8x128xf32>
    %360 = arith.negf %359 : vector<8x128xf32>
    %361 = math.exp %360 : vector<8x128xf32>
    %cst_73 = arith.constant 1.000000e+00 : f32
    %362 = vector.broadcast %cst_73 : f32 to vector<8x128xf32>
    %363 = arith.addf %362, %361 : vector<8x128xf32>
    %364 = arith.divf %362, %363 : vector<8x128xf32>
    %365 = vector.extract_strided_slice %358 {offsets = [0, 128], sizes = [8, 128], strides = [1, 1]} : vector<8x512xf32> to vector<8x128xf32>
    %366 = arith.negf %365 : vector<8x128xf32>
    %367 = math.exp %366 : vector<8x128xf32>
    %cst_74 = arith.constant 1.000000e+00 : f32
    %368 = vector.broadcast %cst_74 : f32 to vector<8x128xf32>
    %369 = arith.addf %368, %367 : vector<8x128xf32>
    %370 = arith.divf %368, %369 : vector<8x128xf32>
    %371 = vector.extract_strided_slice %358 {offsets = [0, 256], sizes = [8, 128], strides = [1, 1]} : vector<8x512xf32> to vector<8x128xf32>
    %372 = math.tanh %371 : vector<8x128xf32>
    %373 = vector.extract_strided_slice %358 {offsets = [0, 384], sizes = [8, 128], strides = [1, 1]} : vector<8x512xf32> to vector<8x128xf32>
    %374 = arith.negf %373 : vector<8x128xf32>
    %375 = math.exp %374 : vector<8x128xf32>
    %cst_75 = arith.constant 1.000000e+00 : f32
    %376 = vector.broadcast %cst_75 : f32 to vector<8x128xf32>
    %377 = arith.addf %376, %375 : vector<8x128xf32>
    %378 = arith.divf %376, %377 : vector<8x128xf32>
    %379 = arith.mulf %370, %322 : vector<8x128xf32>
    %380 = arith.mulf %364, %372 : vector<8x128xf32>
    %381 = arith.addf %379, %380 : vector<8x128xf32>
    %382 = math.tanh %381 : vector<8x128xf32>
    %383 = arith.mulf %378, %382 : vector<8x128xf32>
    %384 = vector.extract_strided_slice %22 {offsets = [6, 0, 0], sizes = [1, 8, 512], strides = [1, 1, 1]} : vector<8x8x512xf32> to vector<1x8x512xf32>
    %385 = vector.shape_cast %384 : vector<1x8x512xf32> to vector<8x512xf32>
    %386 = arith.truncf %354 : vector<8x128xf32> to vector<8x128xbf16>
    %cst_76 = arith.constant dense<0.000000e+00> : vector<8x512xf32>
    %387 = tpu.matmul %386, %0, %cst_76 {dimension_numbers = #tpu.dot_dimension_numbers<[1], [0], [0], [1], [0, 0, 1, 1], [], []>} : vector<8x128xbf16>, vector<128x512xbf16>, vector<8x512xf32> -> vector<8x512xf32>
    %388 = arith.addf %385, %387 : vector<8x512xf32>
    %389 = vector.extract_strided_slice %388 {offsets = [0, 0], sizes = [8, 128], strides = [1, 1]} : vector<8x512xf32> to vector<8x128xf32>
    %390 = arith.negf %389 : vector<8x128xf32>
    %391 = math.exp %390 : vector<8x128xf32>
    %cst_77 = arith.constant 1.000000e+00 : f32
    %392 = vector.broadcast %cst_77 : f32 to vector<8x128xf32>
    %393 = arith.addf %392, %391 : vector<8x128xf32>
    %394 = arith.divf %392, %393 : vector<8x128xf32>
    %395 = vector.extract_strided_slice %388 {offsets = [0, 128], sizes = [8, 128], strides = [1, 1]} : vector<8x512xf32> to vector<8x128xf32>
    %396 = arith.negf %395 : vector<8x128xf32>
    %397 = math.exp %396 : vector<8x128xf32>
    %cst_78 = arith.constant 1.000000e+00 : f32
    %398 = vector.broadcast %cst_78 : f32 to vector<8x128xf32>
    %399 = arith.addf %398, %397 : vector<8x128xf32>
    %400 = arith.divf %398, %399 : vector<8x128xf32>
    %401 = vector.extract_strided_slice %388 {offsets = [0, 256], sizes = [8, 128], strides = [1, 1]} : vector<8x512xf32> to vector<8x128xf32>
    %402 = math.tanh %401 : vector<8x128xf32>
    %403 = vector.extract_strided_slice %388 {offsets = [0, 384], sizes = [8, 128], strides = [1, 1]} : vector<8x512xf32> to vector<8x128xf32>
    %404 = arith.negf %403 : vector<8x128xf32>
    %405 = math.exp %404 : vector<8x128xf32>
    %cst_79 = arith.constant 1.000000e+00 : f32
    %406 = vector.broadcast %cst_79 : f32 to vector<8x128xf32>
    %407 = arith.addf %406, %405 : vector<8x128xf32>
    %408 = arith.divf %406, %407 : vector<8x128xf32>
    %409 = arith.mulf %400, %352 : vector<8x128xf32>
    %410 = arith.mulf %394, %402 : vector<8x128xf32>
    %411 = arith.addf %409, %410 : vector<8x128xf32>
    %412 = math.tanh %411 : vector<8x128xf32>
    %413 = arith.mulf %408, %412 : vector<8x128xf32>
    %414 = tpu.concatenate %413, %383 in 1 : vector<8x128xf32>, vector<8x128xf32> -> vector<8x256xf32>
    %415 = arith.truncf %414 : vector<8x256xf32> to vector<8x256xbf16>
    %cst_80 = arith.constant dense<0.000000e+00> : vector<8x512xf32>
    %416 = tpu.matmul %415, %1, %cst_80 {dimension_numbers = #tpu.dot_dimension_numbers<[1], [0], [0], [1], [0, 0, 1, 1], [], []>} : vector<8x256xbf16>, vector<256x512xbf16>, vector<8x512xf32> -> vector<8x512xf32>
    %417 = arith.addf %416, %7 : vector<8x512xf32>
    %418 = vector.extract_strided_slice %417 {offsets = [0, 0], sizes = [8, 128], strides = [1, 1]} : vector<8x512xf32> to vector<8x128xf32>
    %419 = arith.negf %418 : vector<8x128xf32>
    %420 = math.exp %419 : vector<8x128xf32>
    %cst_81 = arith.constant 1.000000e+00 : f32
    %421 = vector.broadcast %cst_81 : f32 to vector<8x128xf32>
    %422 = arith.addf %421, %420 : vector<8x128xf32>
    %423 = arith.divf %421, %422 : vector<8x128xf32>
    %424 = vector.extract_strided_slice %417 {offsets = [0, 128], sizes = [8, 128], strides = [1, 1]} : vector<8x512xf32> to vector<8x128xf32>
    %425 = arith.negf %424 : vector<8x128xf32>
    %426 = math.exp %425 : vector<8x128xf32>
    %cst_82 = arith.constant 1.000000e+00 : f32
    %427 = vector.broadcast %cst_82 : f32 to vector<8x128xf32>
    %428 = arith.addf %427, %426 : vector<8x128xf32>
    %429 = arith.divf %427, %428 : vector<8x128xf32>
    %430 = vector.extract_strided_slice %417 {offsets = [0, 256], sizes = [8, 128], strides = [1, 1]} : vector<8x512xf32> to vector<8x128xf32>
    %431 = math.tanh %430 : vector<8x128xf32>
    %432 = vector.extract_strided_slice %417 {offsets = [0, 384], sizes = [8, 128], strides = [1, 1]} : vector<8x512xf32> to vector<8x128xf32>
    %433 = arith.negf %432 : vector<8x128xf32>
    %434 = math.exp %433 : vector<8x128xf32>
    %cst_83 = arith.constant 1.000000e+00 : f32
    %435 = vector.broadcast %cst_83 : f32 to vector<8x128xf32>
    %436 = arith.addf %435, %434 : vector<8x128xf32>
    %437 = arith.divf %435, %436 : vector<8x128xf32>
    %438 = arith.mulf %429, %381 : vector<8x128xf32>
    %439 = arith.mulf %423, %431 : vector<8x128xf32>
    %440 = arith.addf %438, %439 : vector<8x128xf32>
    %441 = math.tanh %440 : vector<8x128xf32>
    %442 = arith.mulf %437, %441 : vector<8x128xf32>
    %443 = vector.extract_strided_slice %22 {offsets = [7, 0, 0], sizes = [1, 8, 512], strides = [1, 1, 1]} : vector<8x8x512xf32> to vector<1x8x512xf32>
    %444 = vector.shape_cast %443 : vector<1x8x512xf32> to vector<8x512xf32>
    %445 = arith.truncf %413 : vector<8x128xf32> to vector<8x128xbf16>
    %cst_84 = arith.constant dense<0.000000e+00> : vector<8x512xf32>
    %446 = tpu.matmul %445, %0, %cst_84 {dimension_numbers = #tpu.dot_dimension_numbers<[1], [0], [0], [1], [0, 0, 1, 1], [], []>} : vector<8x128xbf16>, vector<128x512xbf16>, vector<8x512xf32> -> vector<8x512xf32>
    %447 = arith.addf %444, %446 : vector<8x512xf32>
    %448 = vector.extract_strided_slice %447 {offsets = [0, 0], sizes = [8, 128], strides = [1, 1]} : vector<8x512xf32> to vector<8x128xf32>
    %449 = arith.negf %448 : vector<8x128xf32>
    %450 = math.exp %449 : vector<8x128xf32>
    %cst_85 = arith.constant 1.000000e+00 : f32
    %451 = vector.broadcast %cst_85 : f32 to vector<8x128xf32>
    %452 = arith.addf %451, %450 : vector<8x128xf32>
    %453 = arith.divf %451, %452 : vector<8x128xf32>
    %454 = vector.extract_strided_slice %447 {offsets = [0, 128], sizes = [8, 128], strides = [1, 1]} : vector<8x512xf32> to vector<8x128xf32>
    %455 = arith.negf %454 : vector<8x128xf32>
    %456 = math.exp %455 : vector<8x128xf32>
    %cst_86 = arith.constant 1.000000e+00 : f32
    %457 = vector.broadcast %cst_86 : f32 to vector<8x128xf32>
    %458 = arith.addf %457, %456 : vector<8x128xf32>
    %459 = arith.divf %457, %458 : vector<8x128xf32>
    %460 = vector.extract_strided_slice %447 {offsets = [0, 256], sizes = [8, 128], strides = [1, 1]} : vector<8x512xf32> to vector<8x128xf32>
    %461 = math.tanh %460 : vector<8x128xf32>
    %462 = vector.extract_strided_slice %447 {offsets = [0, 384], sizes = [8, 128], strides = [1, 1]} : vector<8x512xf32> to vector<8x128xf32>
    %463 = arith.negf %462 : vector<8x128xf32>
    %464 = math.exp %463 : vector<8x128xf32>
    %cst_87 = arith.constant 1.000000e+00 : f32
    %465 = vector.broadcast %cst_87 : f32 to vector<8x128xf32>
    %466 = arith.addf %465, %464 : vector<8x128xf32>
    %467 = arith.divf %465, %466 : vector<8x128xf32>
    %468 = arith.mulf %459, %411 : vector<8x128xf32>
    %469 = arith.mulf %453, %461 : vector<8x128xf32>
    %470 = arith.addf %468, %469 : vector<8x128xf32>
    %471 = math.tanh %470 : vector<8x128xf32>
    %472 = arith.mulf %467, %471 : vector<8x128xf32>
    %473 = tpu.concatenate %472, %442 in 1 : vector<8x128xf32>, vector<8x128xf32> -> vector<8x256xf32>
    %474 = arith.truncf %473 : vector<8x256xf32> to vector<8x256xbf16>
    %cst_88 = arith.constant dense<0.000000e+00> : vector<8x512xf32>
    %475 = tpu.matmul %474, %1, %cst_88 {dimension_numbers = #tpu.dot_dimension_numbers<[1], [0], [0], [1], [0, 0, 1, 1], [], []>} : vector<8x256xbf16>, vector<256x512xbf16>, vector<8x512xf32> -> vector<8x512xf32>
    %476 = arith.addf %475, %7 : vector<8x512xf32>
    %477 = vector.extract_strided_slice %476 {offsets = [0, 0], sizes = [8, 128], strides = [1, 1]} : vector<8x512xf32> to vector<8x128xf32>
    %478 = arith.negf %477 : vector<8x128xf32>
    %479 = math.exp %478 : vector<8x128xf32>
    %cst_89 = arith.constant 1.000000e+00 : f32
    %480 = vector.broadcast %cst_89 : f32 to vector<8x128xf32>
    %481 = arith.addf %480, %479 : vector<8x128xf32>
    %482 = arith.divf %480, %481 : vector<8x128xf32>
    %483 = vector.extract_strided_slice %476 {offsets = [0, 128], sizes = [8, 128], strides = [1, 1]} : vector<8x512xf32> to vector<8x128xf32>
    %484 = arith.negf %483 : vector<8x128xf32>
    %485 = math.exp %484 : vector<8x128xf32>
    %cst_90 = arith.constant 1.000000e+00 : f32
    %486 = vector.broadcast %cst_90 : f32 to vector<8x128xf32>
    %487 = arith.addf %486, %485 : vector<8x128xf32>
    %488 = arith.divf %486, %487 : vector<8x128xf32>
    %489 = vector.extract_strided_slice %476 {offsets = [0, 256], sizes = [8, 128], strides = [1, 1]} : vector<8x512xf32> to vector<8x128xf32>
    %490 = math.tanh %489 : vector<8x128xf32>
    %491 = vector.extract_strided_slice %476 {offsets = [0, 384], sizes = [8, 128], strides = [1, 1]} : vector<8x512xf32> to vector<8x128xf32>
    %492 = arith.negf %491 : vector<8x128xf32>
    %493 = math.exp %492 : vector<8x128xf32>
    %cst_91 = arith.constant 1.000000e+00 : f32
    %494 = vector.broadcast %cst_91 : f32 to vector<8x128xf32>
    %495 = arith.addf %494, %493 : vector<8x128xf32>
    %496 = arith.divf %494, %495 : vector<8x128xf32>
    %497 = arith.mulf %488, %440 : vector<8x128xf32>
    %498 = arith.mulf %482, %490 : vector<8x128xf32>
    %499 = arith.addf %497, %498 : vector<8x128xf32>
    %500 = math.tanh %499 : vector<8x128xf32>
    %501 = arith.mulf %496, %500 : vector<8x128xf32>
    %502 = vector.extract_strided_slice %28 {offsets = [7, 0, 0], sizes = [1, 8, 512], strides = [1, 1, 1]} : vector<8x8x512xf32> to vector<1x8x512xf32>
    %503 = vector.shape_cast %502 : vector<1x8x512xf32> to vector<8x512xf32>
    %504 = arith.truncf %472 : vector<8x128xf32> to vector<8x128xbf16>
    %cst_92 = arith.constant dense<0.000000e+00> : vector<8x512xf32>
    %505 = tpu.matmul %504, %2, %cst_92 {dimension_numbers = #tpu.dot_dimension_numbers<[1], [0], [0], [1], [0, 0, 1, 1], [], []>} : vector<8x128xbf16>, vector<128x512xbf16>, vector<8x512xf32> -> vector<8x512xf32>
    %506 = arith.addf %503, %505 : vector<8x512xf32>
    %507 = vector.extract_strided_slice %506 {offsets = [0, 0], sizes = [8, 128], strides = [1, 1]} : vector<8x512xf32> to vector<8x128xf32>
    %508 = arith.negf %507 : vector<8x128xf32>
    %509 = math.exp %508 : vector<8x128xf32>
    %cst_93 = arith.constant 1.000000e+00 : f32
    %510 = vector.broadcast %cst_93 : f32 to vector<8x128xf32>
    %511 = arith.addf %510, %509 : vector<8x128xf32>
    %512 = arith.divf %510, %511 : vector<8x128xf32>
    %513 = vector.extract_strided_slice %506 {offsets = [0, 128], sizes = [8, 128], strides = [1, 1]} : vector<8x512xf32> to vector<8x128xf32>
    %514 = arith.negf %513 : vector<8x128xf32>
    %515 = math.exp %514 : vector<8x128xf32>
    %cst_94 = arith.constant 1.000000e+00 : f32
    %516 = vector.broadcast %cst_94 : f32 to vector<8x128xf32>
    %517 = arith.addf %516, %515 : vector<8x128xf32>
    %518 = arith.divf %516, %517 : vector<8x128xf32>
    %519 = vector.extract_strided_slice %506 {offsets = [0, 256], sizes = [8, 128], strides = [1, 1]} : vector<8x512xf32> to vector<8x128xf32>
    %520 = math.tanh %519 : vector<8x128xf32>
    %521 = vector.extract_strided_slice %506 {offsets = [0, 384], sizes = [8, 128], strides = [1, 1]} : vector<8x512xf32> to vector<8x128xf32>
    %522 = arith.negf %521 : vector<8x128xf32>
    %523 = math.exp %522 : vector<8x128xf32>
    %cst_95 = arith.constant 1.000000e+00 : f32
    %524 = vector.broadcast %cst_95 : f32 to vector<8x128xf32>
    %525 = arith.addf %524, %523 : vector<8x128xf32>
    %526 = arith.divf %524, %525 : vector<8x128xf32>
    %527 = arith.mulf %518, %470 : vector<8x128xf32>
    %528 = arith.mulf %512, %520 : vector<8x128xf32>
    %529 = arith.addf %527, %528 : vector<8x128xf32>
    %530 = math.tanh %529 : vector<8x128xf32>
    %531 = arith.mulf %526, %530 : vector<8x128xf32>
    %532 = tpu.concatenate %531, %501 in 1 : vector<8x128xf32>, vector<8x128xf32> -> vector<8x256xf32>
    %533 = arith.truncf %532 : vector<8x256xf32> to vector<8x256xbf16>
    %cst_96 = arith.constant dense<0.000000e+00> : vector<8x512xf32>
    %534 = tpu.matmul %533, %3, %cst_96 {dimension_numbers = #tpu.dot_dimension_numbers<[1], [0], [0], [1], [0, 0, 1, 1], [], []>} : vector<8x256xbf16>, vector<256x512xbf16>, vector<8x512xf32> -> vector<8x512xf32>
    %535 = arith.addf %534, %10 : vector<8x512xf32>
    %536 = vector.extract_strided_slice %535 {offsets = [0, 0], sizes = [8, 128], strides = [1, 1]} : vector<8x512xf32> to vector<8x128xf32>
    %537 = arith.negf %536 : vector<8x128xf32>
    %538 = math.exp %537 : vector<8x128xf32>
    %cst_97 = arith.constant 1.000000e+00 : f32
    %539 = vector.broadcast %cst_97 : f32 to vector<8x128xf32>
    %540 = arith.addf %539, %538 : vector<8x128xf32>
    %541 = arith.divf %539, %540 : vector<8x128xf32>
    %542 = vector.extract_strided_slice %535 {offsets = [0, 128], sizes = [8, 128], strides = [1, 1]} : vector<8x512xf32> to vector<8x128xf32>
    %543 = arith.negf %542 : vector<8x128xf32>
    %544 = math.exp %543 : vector<8x128xf32>
    %cst_98 = arith.constant 1.000000e+00 : f32
    %545 = vector.broadcast %cst_98 : f32 to vector<8x128xf32>
    %546 = arith.addf %545, %544 : vector<8x128xf32>
    %547 = arith.divf %545, %546 : vector<8x128xf32>
    %548 = vector.extract_strided_slice %535 {offsets = [0, 256], sizes = [8, 128], strides = [1, 1]} : vector<8x512xf32> to vector<8x128xf32>
    %549 = math.tanh %548 : vector<8x128xf32>
    %550 = vector.extract_strided_slice %535 {offsets = [0, 384], sizes = [8, 128], strides = [1, 1]} : vector<8x512xf32> to vector<8x128xf32>
    %551 = arith.negf %550 : vector<8x128xf32>
    %552 = math.exp %551 : vector<8x128xf32>
    %cst_99 = arith.constant 1.000000e+00 : f32
    %553 = vector.broadcast %cst_99 : f32 to vector<8x128xf32>
    %554 = arith.addf %553, %552 : vector<8x128xf32>
    %555 = arith.divf %553, %554 : vector<8x128xf32>
    %556 = arith.mulf %547, %499 : vector<8x128xf32>
    %557 = arith.mulf %541, %549 : vector<8x128xf32>
    %558 = arith.addf %556, %557 : vector<8x128xf32>
    %559 = math.tanh %558 : vector<8x128xf32>
    %560 = arith.mulf %555, %559 : vector<8x128xf32>
    %561 = arith.truncf %560 : vector<8x128xf32> to vector<8x128xbf16>
    %cst_100 = arith.constant dense<0.000000e+00> : vector<8x64xf32>
    %562 = tpu.matmul %561, %4, %cst_100 {dimension_numbers = #tpu.dot_dimension_numbers<[1], [0], [0], [1], [0, 0, 1, 1], [], []>} : vector<8x128xbf16>, vector<128x64xbf16>, vector<8x64xf32> -> vector<8x64xf32>
    %563 = arith.addf %562, %13 : vector<8x64xf32>
    %564 = vector.extract_strided_slice %28 {offsets = [0, 0, 0], sizes = [1, 8, 512], strides = [1, 1, 1]} : vector<8x8x512xf32> to vector<1x8x512xf32>
    %565 = vector.shape_cast %564 : vector<1x8x512xf32> to vector<8x512xf32>
    %566 = arith.truncf %531 : vector<8x128xf32> to vector<8x128xbf16>
    %cst_101 = arith.constant dense<0.000000e+00> : vector<8x512xf32>
    %567 = tpu.matmul %566, %2, %cst_101 {dimension_numbers = #tpu.dot_dimension_numbers<[1], [0], [0], [1], [0, 0, 1, 1], [], []>} : vector<8x128xbf16>, vector<128x512xbf16>, vector<8x512xf32> -> vector<8x512xf32>
    %568 = arith.addf %565, %567 : vector<8x512xf32>
    %569 = vector.extract_strided_slice %568 {offsets = [0, 0], sizes = [8, 128], strides = [1, 1]} : vector<8x512xf32> to vector<8x128xf32>
    %570 = arith.negf %569 : vector<8x128xf32>
    %571 = math.exp %570 : vector<8x128xf32>
    %cst_102 = arith.constant 1.000000e+00 : f32
    %572 = vector.broadcast %cst_102 : f32 to vector<8x128xf32>
    %573 = arith.addf %572, %571 : vector<8x128xf32>
    %574 = arith.divf %572, %573 : vector<8x128xf32>
    %575 = vector.extract_strided_slice %568 {offsets = [0, 128], sizes = [8, 128], strides = [1, 1]} : vector<8x512xf32> to vector<8x128xf32>
    %576 = arith.negf %575 : vector<8x128xf32>
    %577 = math.exp %576 : vector<8x128xf32>
    %cst_103 = arith.constant 1.000000e+00 : f32
    %578 = vector.broadcast %cst_103 : f32 to vector<8x128xf32>
    %579 = arith.addf %578, %577 : vector<8x128xf32>
    %580 = arith.divf %578, %579 : vector<8x128xf32>
    %581 = vector.extract_strided_slice %568 {offsets = [0, 256], sizes = [8, 128], strides = [1, 1]} : vector<8x512xf32> to vector<8x128xf32>
    %582 = math.tanh %581 : vector<8x128xf32>
    %583 = vector.extract_strided_slice %568 {offsets = [0, 384], sizes = [8, 128], strides = [1, 1]} : vector<8x512xf32> to vector<8x128xf32>
    %584 = arith.negf %583 : vector<8x128xf32>
    %585 = math.exp %584 : vector<8x128xf32>
    %cst_104 = arith.constant 1.000000e+00 : f32
    %586 = vector.broadcast %cst_104 : f32 to vector<8x128xf32>
    %587 = arith.addf %586, %585 : vector<8x128xf32>
    %588 = arith.divf %586, %587 : vector<8x128xf32>
    %589 = arith.mulf %580, %529 : vector<8x128xf32>
    %590 = arith.mulf %574, %582 : vector<8x128xf32>
    %591 = arith.addf %589, %590 : vector<8x128xf32>
    %592 = math.tanh %591 : vector<8x128xf32>
    %593 = arith.mulf %588, %592 : vector<8x128xf32>
    %594 = tpu.concatenate %593, %560 in 1 : vector<8x128xf32>, vector<8x128xf32> -> vector<8x256xf32>
    %595 = arith.truncf %594 : vector<8x256xf32> to vector<8x256xbf16>
    %cst_105 = arith.constant dense<0.000000e+00> : vector<8x512xf32>
    %596 = tpu.matmul %595, %3, %cst_105 {dimension_numbers = #tpu.dot_dimension_numbers<[1], [0], [0], [1], [0, 0, 1, 1], [], []>} : vector<8x256xbf16>, vector<256x512xbf16>, vector<8x512xf32> -> vector<8x512xf32>
    %597 = arith.addf %596, %10 : vector<8x512xf32>
    %598 = vector.extract_strided_slice %597 {offsets = [0, 0], sizes = [8, 128], strides = [1, 1]} : vector<8x512xf32> to vector<8x128xf32>
    %599 = arith.negf %598 : vector<8x128xf32>
    %600 = math.exp %599 : vector<8x128xf32>
    %cst_106 = arith.constant 1.000000e+00 : f32
    %601 = vector.broadcast %cst_106 : f32 to vector<8x128xf32>
    %602 = arith.addf %601, %600 : vector<8x128xf32>
    %603 = arith.divf %601, %602 : vector<8x128xf32>
    %604 = vector.extract_strided_slice %597 {offsets = [0, 128], sizes = [8, 128], strides = [1, 1]} : vector<8x512xf32> to vector<8x128xf32>
    %605 = arith.negf %604 : vector<8x128xf32>
    %606 = math.exp %605 : vector<8x128xf32>
    %cst_107 = arith.constant 1.000000e+00 : f32
    %607 = vector.broadcast %cst_107 : f32 to vector<8x128xf32>
    %608 = arith.addf %607, %606 : vector<8x128xf32>
    %609 = arith.divf %607, %608 : vector<8x128xf32>
    %610 = vector.extract_strided_slice %597 {offsets = [0, 256], sizes = [8, 128], strides = [1, 1]} : vector<8x512xf32> to vector<8x128xf32>
    %611 = math.tanh %610 : vector<8x128xf32>
    %612 = vector.extract_strided_slice %597 {offsets = [0, 384], sizes = [8, 128], strides = [1, 1]} : vector<8x512xf32> to vector<8x128xf32>
    %613 = arith.negf %612 : vector<8x128xf32>
    %614 = math.exp %613 : vector<8x128xf32>
    %cst_108 = arith.constant 1.000000e+00 : f32
    %615 = vector.broadcast %cst_108 : f32 to vector<8x128xf32>
    %616 = arith.addf %615, %614 : vector<8x128xf32>
    %617 = arith.divf %615, %616 : vector<8x128xf32>
    %618 = arith.mulf %609, %558 : vector<8x128xf32>
    %619 = arith.mulf %603, %611 : vector<8x128xf32>
    %620 = arith.addf %618, %619 : vector<8x128xf32>
    %621 = math.tanh %620 : vector<8x128xf32>
    %622 = arith.mulf %617, %621 : vector<8x128xf32>
    %623 = arith.truncf %622 : vector<8x128xf32> to vector<8x128xbf16>
    %cst_109 = arith.constant dense<0.000000e+00> : vector<8x64xf32>
    %624 = tpu.matmul %623, %4, %cst_109 {dimension_numbers = #tpu.dot_dimension_numbers<[1], [0], [0], [1], [0, 0, 1, 1], [], []>} : vector<8x128xbf16>, vector<128x64xbf16>, vector<8x64xf32> -> vector<8x64xf32>
    %625 = arith.addf %624, %13 : vector<8x64xf32>
    %626 = vector.extract_strided_slice %28 {offsets = [1, 0, 0], sizes = [1, 8, 512], strides = [1, 1, 1]} : vector<8x8x512xf32> to vector<1x8x512xf32>
    %627 = vector.shape_cast %626 : vector<1x8x512xf32> to vector<8x512xf32>
    %628 = arith.truncf %593 : vector<8x128xf32> to vector<8x128xbf16>
    %cst_110 = arith.constant dense<0.000000e+00> : vector<8x512xf32>
    %629 = tpu.matmul %628, %2, %cst_110 {dimension_numbers = #tpu.dot_dimension_numbers<[1], [0], [0], [1], [0, 0, 1, 1], [], []>} : vector<8x128xbf16>, vector<128x512xbf16>, vector<8x512xf32> -> vector<8x512xf32>
    %630 = arith.addf %627, %629 : vector<8x512xf32>
    %631 = vector.extract_strided_slice %630 {offsets = [0, 0], sizes = [8, 128], strides = [1, 1]} : vector<8x512xf32> to vector<8x128xf32>
    %632 = arith.negf %631 : vector<8x128xf32>
    %633 = math.exp %632 : vector<8x128xf32>
    %cst_111 = arith.constant 1.000000e+00 : f32
    %634 = vector.broadcast %cst_111 : f32 to vector<8x128xf32>
    %635 = arith.addf %634, %633 : vector<8x128xf32>
    %636 = arith.divf %634, %635 : vector<8x128xf32>
    %637 = vector.extract_strided_slice %630 {offsets = [0, 128], sizes = [8, 128], strides = [1, 1]} : vector<8x512xf32> to vector<8x128xf32>
    %638 = arith.negf %637 : vector<8x128xf32>
    %639 = math.exp %638 : vector<8x128xf32>
    %cst_112 = arith.constant 1.000000e+00 : f32
    %640 = vector.broadcast %cst_112 : f32 to vector<8x128xf32>
    %641 = arith.addf %640, %639 : vector<8x128xf32>
    %642 = arith.divf %640, %641 : vector<8x128xf32>
    %643 = vector.extract_strided_slice %630 {offsets = [0, 256], sizes = [8, 128], strides = [1, 1]} : vector<8x512xf32> to vector<8x128xf32>
    %644 = math.tanh %643 : vector<8x128xf32>
    %645 = vector.extract_strided_slice %630 {offsets = [0, 384], sizes = [8, 128], strides = [1, 1]} : vector<8x512xf32> to vector<8x128xf32>
    %646 = arith.negf %645 : vector<8x128xf32>
    %647 = math.exp %646 : vector<8x128xf32>
    %cst_113 = arith.constant 1.000000e+00 : f32
    %648 = vector.broadcast %cst_113 : f32 to vector<8x128xf32>
    %649 = arith.addf %648, %647 : vector<8x128xf32>
    %650 = arith.divf %648, %649 : vector<8x128xf32>
    %651 = arith.mulf %642, %591 : vector<8x128xf32>
    %652 = arith.mulf %636, %644 : vector<8x128xf32>
    %653 = arith.addf %651, %652 : vector<8x128xf32>
    %654 = math.tanh %653 : vector<8x128xf32>
    %655 = arith.mulf %650, %654 : vector<8x128xf32>
    %656 = tpu.concatenate %655, %622 in 1 : vector<8x128xf32>, vector<8x128xf32> -> vector<8x256xf32>
    %657 = arith.truncf %656 : vector<8x256xf32> to vector<8x256xbf16>
    %cst_114 = arith.constant dense<0.000000e+00> : vector<8x512xf32>
    %658 = tpu.matmul %657, %3, %cst_114 {dimension_numbers = #tpu.dot_dimension_numbers<[1], [0], [0], [1], [0, 0, 1, 1], [], []>} : vector<8x256xbf16>, vector<256x512xbf16>, vector<8x512xf32> -> vector<8x512xf32>
    %659 = arith.addf %658, %10 : vector<8x512xf32>
    %660 = vector.extract_strided_slice %659 {offsets = [0, 0], sizes = [8, 128], strides = [1, 1]} : vector<8x512xf32> to vector<8x128xf32>
    %661 = arith.negf %660 : vector<8x128xf32>
    %662 = math.exp %661 : vector<8x128xf32>
    %cst_115 = arith.constant 1.000000e+00 : f32
    %663 = vector.broadcast %cst_115 : f32 to vector<8x128xf32>
    %664 = arith.addf %663, %662 : vector<8x128xf32>
    %665 = arith.divf %663, %664 : vector<8x128xf32>
    %666 = vector.extract_strided_slice %659 {offsets = [0, 128], sizes = [8, 128], strides = [1, 1]} : vector<8x512xf32> to vector<8x128xf32>
    %667 = arith.negf %666 : vector<8x128xf32>
    %668 = math.exp %667 : vector<8x128xf32>
    %cst_116 = arith.constant 1.000000e+00 : f32
    %669 = vector.broadcast %cst_116 : f32 to vector<8x128xf32>
    %670 = arith.addf %669, %668 : vector<8x128xf32>
    %671 = arith.divf %669, %670 : vector<8x128xf32>
    %672 = vector.extract_strided_slice %659 {offsets = [0, 256], sizes = [8, 128], strides = [1, 1]} : vector<8x512xf32> to vector<8x128xf32>
    %673 = math.tanh %672 : vector<8x128xf32>
    %674 = vector.extract_strided_slice %659 {offsets = [0, 384], sizes = [8, 128], strides = [1, 1]} : vector<8x512xf32> to vector<8x128xf32>
    %675 = arith.negf %674 : vector<8x128xf32>
    %676 = math.exp %675 : vector<8x128xf32>
    %cst_117 = arith.constant 1.000000e+00 : f32
    %677 = vector.broadcast %cst_117 : f32 to vector<8x128xf32>
    %678 = arith.addf %677, %676 : vector<8x128xf32>
    %679 = arith.divf %677, %678 : vector<8x128xf32>
    %680 = arith.mulf %671, %620 : vector<8x128xf32>
    %681 = arith.mulf %665, %673 : vector<8x128xf32>
    %682 = arith.addf %680, %681 : vector<8x128xf32>
    %683 = math.tanh %682 : vector<8x128xf32>
    %684 = arith.mulf %679, %683 : vector<8x128xf32>
    %685 = arith.truncf %684 : vector<8x128xf32> to vector<8x128xbf16>
    %cst_118 = arith.constant dense<0.000000e+00> : vector<8x64xf32>
    %686 = tpu.matmul %685, %4, %cst_118 {dimension_numbers = #tpu.dot_dimension_numbers<[1], [0], [0], [1], [0, 0, 1, 1], [], []>} : vector<8x128xbf16>, vector<128x64xbf16>, vector<8x64xf32> -> vector<8x64xf32>
    %687 = arith.addf %686, %13 : vector<8x64xf32>
    %688 = vector.extract_strided_slice %28 {offsets = [2, 0, 0], sizes = [1, 8, 512], strides = [1, 1, 1]} : vector<8x8x512xf32> to vector<1x8x512xf32>
    %689 = vector.shape_cast %688 : vector<1x8x512xf32> to vector<8x512xf32>
    %690 = arith.truncf %655 : vector<8x128xf32> to vector<8x128xbf16>
    %cst_119 = arith.constant dense<0.000000e+00> : vector<8x512xf32>
    %691 = tpu.matmul %690, %2, %cst_119 {dimension_numbers = #tpu.dot_dimension_numbers<[1], [0], [0], [1], [0, 0, 1, 1], [], []>} : vector<8x128xbf16>, vector<128x512xbf16>, vector<8x512xf32> -> vector<8x512xf32>
    %692 = arith.addf %689, %691 : vector<8x512xf32>
    %693 = vector.extract_strided_slice %692 {offsets = [0, 0], sizes = [8, 128], strides = [1, 1]} : vector<8x512xf32> to vector<8x128xf32>
    %694 = arith.negf %693 : vector<8x128xf32>
    %695 = math.exp %694 : vector<8x128xf32>
    %cst_120 = arith.constant 1.000000e+00 : f32
    %696 = vector.broadcast %cst_120 : f32 to vector<8x128xf32>
    %697 = arith.addf %696, %695 : vector<8x128xf32>
    %698 = arith.divf %696, %697 : vector<8x128xf32>
    %699 = vector.extract_strided_slice %692 {offsets = [0, 128], sizes = [8, 128], strides = [1, 1]} : vector<8x512xf32> to vector<8x128xf32>
    %700 = arith.negf %699 : vector<8x128xf32>
    %701 = math.exp %700 : vector<8x128xf32>
    %cst_121 = arith.constant 1.000000e+00 : f32
    %702 = vector.broadcast %cst_121 : f32 to vector<8x128xf32>
    %703 = arith.addf %702, %701 : vector<8x128xf32>
    %704 = arith.divf %702, %703 : vector<8x128xf32>
    %705 = vector.extract_strided_slice %692 {offsets = [0, 256], sizes = [8, 128], strides = [1, 1]} : vector<8x512xf32> to vector<8x128xf32>
    %706 = math.tanh %705 : vector<8x128xf32>
    %707 = vector.extract_strided_slice %692 {offsets = [0, 384], sizes = [8, 128], strides = [1, 1]} : vector<8x512xf32> to vector<8x128xf32>
    %708 = arith.negf %707 : vector<8x128xf32>
    %709 = math.exp %708 : vector<8x128xf32>
    %cst_122 = arith.constant 1.000000e+00 : f32
    %710 = vector.broadcast %cst_122 : f32 to vector<8x128xf32>
    %711 = arith.addf %710, %709 : vector<8x128xf32>
    %712 = arith.divf %710, %711 : vector<8x128xf32>
    %713 = arith.mulf %704, %653 : vector<8x128xf32>
    %714 = arith.mulf %698, %706 : vector<8x128xf32>
    %715 = arith.addf %713, %714 : vector<8x128xf32>
    %716 = math.tanh %715 : vector<8x128xf32>
    %717 = arith.mulf %712, %716 : vector<8x128xf32>
    %718 = tpu.concatenate %717, %684 in 1 : vector<8x128xf32>, vector<8x128xf32> -> vector<8x256xf32>
    %719 = arith.truncf %718 : vector<8x256xf32> to vector<8x256xbf16>
    %cst_123 = arith.constant dense<0.000000e+00> : vector<8x512xf32>
    %720 = tpu.matmul %719, %3, %cst_123 {dimension_numbers = #tpu.dot_dimension_numbers<[1], [0], [0], [1], [0, 0, 1, 1], [], []>} : vector<8x256xbf16>, vector<256x512xbf16>, vector<8x512xf32> -> vector<8x512xf32>
    %721 = arith.addf %720, %10 : vector<8x512xf32>
    %722 = vector.extract_strided_slice %721 {offsets = [0, 0], sizes = [8, 128], strides = [1, 1]} : vector<8x512xf32> to vector<8x128xf32>
    %723 = arith.negf %722 : vector<8x128xf32>
    %724 = math.exp %723 : vector<8x128xf32>
    %cst_124 = arith.constant 1.000000e+00 : f32
    %725 = vector.broadcast %cst_124 : f32 to vector<8x128xf32>
    %726 = arith.addf %725, %724 : vector<8x128xf32>
    %727 = arith.divf %725, %726 : vector<8x128xf32>
    %728 = vector.extract_strided_slice %721 {offsets = [0, 128], sizes = [8, 128], strides = [1, 1]} : vector<8x512xf32> to vector<8x128xf32>
    %729 = arith.negf %728 : vector<8x128xf32>
    %730 = math.exp %729 : vector<8x128xf32>
    %cst_125 = arith.constant 1.000000e+00 : f32
    %731 = vector.broadcast %cst_125 : f32 to vector<8x128xf32>
    %732 = arith.addf %731, %730 : vector<8x128xf32>
    %733 = arith.divf %731, %732 : vector<8x128xf32>
    %734 = vector.extract_strided_slice %721 {offsets = [0, 256], sizes = [8, 128], strides = [1, 1]} : vector<8x512xf32> to vector<8x128xf32>
    %735 = math.tanh %734 : vector<8x128xf32>
    %736 = vector.extract_strided_slice %721 {offsets = [0, 384], sizes = [8, 128], strides = [1, 1]} : vector<8x512xf32> to vector<8x128xf32>
    %737 = arith.negf %736 : vector<8x128xf32>
    %738 = math.exp %737 : vector<8x128xf32>
    %cst_126 = arith.constant 1.000000e+00 : f32
    %739 = vector.broadcast %cst_126 : f32 to vector<8x128xf32>
    %740 = arith.addf %739, %738 : vector<8x128xf32>
    %741 = arith.divf %739, %740 : vector<8x128xf32>
    %742 = arith.mulf %733, %682 : vector<8x128xf32>
    %743 = arith.mulf %727, %735 : vector<8x128xf32>
    %744 = arith.addf %742, %743 : vector<8x128xf32>
    %745 = math.tanh %744 : vector<8x128xf32>
    %746 = arith.mulf %741, %745 : vector<8x128xf32>
    %747 = arith.truncf %746 : vector<8x128xf32> to vector<8x128xbf16>
    %cst_127 = arith.constant dense<0.000000e+00> : vector<8x64xf32>
    %748 = tpu.matmul %747, %4, %cst_127 {dimension_numbers = #tpu.dot_dimension_numbers<[1], [0], [0], [1], [0, 0, 1, 1], [], []>} : vector<8x128xbf16>, vector<128x64xbf16>, vector<8x64xf32> -> vector<8x64xf32>
    %749 = arith.addf %748, %13 : vector<8x64xf32>
    %750 = vector.extract_strided_slice %28 {offsets = [3, 0, 0], sizes = [1, 8, 512], strides = [1, 1, 1]} : vector<8x8x512xf32> to vector<1x8x512xf32>
    %751 = vector.shape_cast %750 : vector<1x8x512xf32> to vector<8x512xf32>
    %752 = arith.truncf %717 : vector<8x128xf32> to vector<8x128xbf16>
    %cst_128 = arith.constant dense<0.000000e+00> : vector<8x512xf32>
    %753 = tpu.matmul %752, %2, %cst_128 {dimension_numbers = #tpu.dot_dimension_numbers<[1], [0], [0], [1], [0, 0, 1, 1], [], []>} : vector<8x128xbf16>, vector<128x512xbf16>, vector<8x512xf32> -> vector<8x512xf32>
    %754 = arith.addf %751, %753 : vector<8x512xf32>
    %755 = vector.extract_strided_slice %754 {offsets = [0, 0], sizes = [8, 128], strides = [1, 1]} : vector<8x512xf32> to vector<8x128xf32>
    %756 = arith.negf %755 : vector<8x128xf32>
    %757 = math.exp %756 : vector<8x128xf32>
    %cst_129 = arith.constant 1.000000e+00 : f32
    %758 = vector.broadcast %cst_129 : f32 to vector<8x128xf32>
    %759 = arith.addf %758, %757 : vector<8x128xf32>
    %760 = arith.divf %758, %759 : vector<8x128xf32>
    %761 = vector.extract_strided_slice %754 {offsets = [0, 128], sizes = [8, 128], strides = [1, 1]} : vector<8x512xf32> to vector<8x128xf32>
    %762 = arith.negf %761 : vector<8x128xf32>
    %763 = math.exp %762 : vector<8x128xf32>
    %cst_130 = arith.constant 1.000000e+00 : f32
    %764 = vector.broadcast %cst_130 : f32 to vector<8x128xf32>
    %765 = arith.addf %764, %763 : vector<8x128xf32>
    %766 = arith.divf %764, %765 : vector<8x128xf32>
    %767 = vector.extract_strided_slice %754 {offsets = [0, 256], sizes = [8, 128], strides = [1, 1]} : vector<8x512xf32> to vector<8x128xf32>
    %768 = math.tanh %767 : vector<8x128xf32>
    %769 = vector.extract_strided_slice %754 {offsets = [0, 384], sizes = [8, 128], strides = [1, 1]} : vector<8x512xf32> to vector<8x128xf32>
    %770 = arith.negf %769 : vector<8x128xf32>
    %771 = math.exp %770 : vector<8x128xf32>
    %cst_131 = arith.constant 1.000000e+00 : f32
    %772 = vector.broadcast %cst_131 : f32 to vector<8x128xf32>
    %773 = arith.addf %772, %771 : vector<8x128xf32>
    %774 = arith.divf %772, %773 : vector<8x128xf32>
    %775 = arith.mulf %766, %715 : vector<8x128xf32>
    %776 = arith.mulf %760, %768 : vector<8x128xf32>
    %777 = arith.addf %775, %776 : vector<8x128xf32>
    %778 = math.tanh %777 : vector<8x128xf32>
    %779 = arith.mulf %774, %778 : vector<8x128xf32>
    %780 = tpu.concatenate %779, %746 in 1 : vector<8x128xf32>, vector<8x128xf32> -> vector<8x256xf32>
    %781 = arith.truncf %780 : vector<8x256xf32> to vector<8x256xbf16>
    %cst_132 = arith.constant dense<0.000000e+00> : vector<8x512xf32>
    %782 = tpu.matmul %781, %3, %cst_132 {dimension_numbers = #tpu.dot_dimension_numbers<[1], [0], [0], [1], [0, 0, 1, 1], [], []>} : vector<8x256xbf16>, vector<256x512xbf16>, vector<8x512xf32> -> vector<8x512xf32>
    %783 = arith.addf %782, %10 : vector<8x512xf32>
    %784 = vector.extract_strided_slice %783 {offsets = [0, 0], sizes = [8, 128], strides = [1, 1]} : vector<8x512xf32> to vector<8x128xf32>
    %785 = arith.negf %784 : vector<8x128xf32>
    %786 = math.exp %785 : vector<8x128xf32>
    %cst_133 = arith.constant 1.000000e+00 : f32
    %787 = vector.broadcast %cst_133 : f32 to vector<8x128xf32>
    %788 = arith.addf %787, %786 : vector<8x128xf32>
    %789 = arith.divf %787, %788 : vector<8x128xf32>
    %790 = vector.extract_strided_slice %783 {offsets = [0, 128], sizes = [8, 128], strides = [1, 1]} : vector<8x512xf32> to vector<8x128xf32>
    %791 = arith.negf %790 : vector<8x128xf32>
    %792 = math.exp %791 : vector<8x128xf32>
    %cst_134 = arith.constant 1.000000e+00 : f32
    %793 = vector.broadcast %cst_134 : f32 to vector<8x128xf32>
    %794 = arith.addf %793, %792 : vector<8x128xf32>
    %795 = arith.divf %793, %794 : vector<8x128xf32>
    %796 = vector.extract_strided_slice %783 {offsets = [0, 256], sizes = [8, 128], strides = [1, 1]} : vector<8x512xf32> to vector<8x128xf32>
    %797 = math.tanh %796 : vector<8x128xf32>
    %798 = vector.extract_strided_slice %783 {offsets = [0, 384], sizes = [8, 128], strides = [1, 1]} : vector<8x512xf32> to vector<8x128xf32>
    %799 = arith.negf %798 : vector<8x128xf32>
    %800 = math.exp %799 : vector<8x128xf32>
    %cst_135 = arith.constant 1.000000e+00 : f32
    %801 = vector.broadcast %cst_135 : f32 to vector<8x128xf32>
    %802 = arith.addf %801, %800 : vector<8x128xf32>
    %803 = arith.divf %801, %802 : vector<8x128xf32>
    %804 = arith.mulf %795, %744 : vector<8x128xf32>
    %805 = arith.mulf %789, %797 : vector<8x128xf32>
    %806 = arith.addf %804, %805 : vector<8x128xf32>
    %807 = math.tanh %806 : vector<8x128xf32>
    %808 = arith.mulf %803, %807 : vector<8x128xf32>
    %809 = arith.truncf %808 : vector<8x128xf32> to vector<8x128xbf16>
    %cst_136 = arith.constant dense<0.000000e+00> : vector<8x64xf32>
    %810 = tpu.matmul %809, %4, %cst_136 {dimension_numbers = #tpu.dot_dimension_numbers<[1], [0], [0], [1], [0, 0, 1, 1], [], []>} : vector<8x128xbf16>, vector<128x64xbf16>, vector<8x64xf32> -> vector<8x64xf32>
    %811 = arith.addf %810, %13 : vector<8x64xf32>
    %812 = vector.extract_strided_slice %28 {offsets = [4, 0, 0], sizes = [1, 8, 512], strides = [1, 1, 1]} : vector<8x8x512xf32> to vector<1x8x512xf32>
    %813 = vector.shape_cast %812 : vector<1x8x512xf32> to vector<8x512xf32>
    %814 = arith.truncf %779 : vector<8x128xf32> to vector<8x128xbf16>
    %cst_137 = arith.constant dense<0.000000e+00> : vector<8x512xf32>
    %815 = tpu.matmul %814, %2, %cst_137 {dimension_numbers = #tpu.dot_dimension_numbers<[1], [0], [0], [1], [0, 0, 1, 1], [], []>} : vector<8x128xbf16>, vector<128x512xbf16>, vector<8x512xf32> -> vector<8x512xf32>
    %816 = arith.addf %813, %815 : vector<8x512xf32>
    %817 = vector.extract_strided_slice %816 {offsets = [0, 0], sizes = [8, 128], strides = [1, 1]} : vector<8x512xf32> to vector<8x128xf32>
    %818 = arith.negf %817 : vector<8x128xf32>
    %819 = math.exp %818 : vector<8x128xf32>
    %cst_138 = arith.constant 1.000000e+00 : f32
    %820 = vector.broadcast %cst_138 : f32 to vector<8x128xf32>
    %821 = arith.addf %820, %819 : vector<8x128xf32>
    %822 = arith.divf %820, %821 : vector<8x128xf32>
    %823 = vector.extract_strided_slice %816 {offsets = [0, 128], sizes = [8, 128], strides = [1, 1]} : vector<8x512xf32> to vector<8x128xf32>
    %824 = arith.negf %823 : vector<8x128xf32>
    %825 = math.exp %824 : vector<8x128xf32>
    %cst_139 = arith.constant 1.000000e+00 : f32
    %826 = vector.broadcast %cst_139 : f32 to vector<8x128xf32>
    %827 = arith.addf %826, %825 : vector<8x128xf32>
    %828 = arith.divf %826, %827 : vector<8x128xf32>
    %829 = vector.extract_strided_slice %816 {offsets = [0, 256], sizes = [8, 128], strides = [1, 1]} : vector<8x512xf32> to vector<8x128xf32>
    %830 = math.tanh %829 : vector<8x128xf32>
    %831 = vector.extract_strided_slice %816 {offsets = [0, 384], sizes = [8, 128], strides = [1, 1]} : vector<8x512xf32> to vector<8x128xf32>
    %832 = arith.negf %831 : vector<8x128xf32>
    %833 = math.exp %832 : vector<8x128xf32>
    %cst_140 = arith.constant 1.000000e+00 : f32
    %834 = vector.broadcast %cst_140 : f32 to vector<8x128xf32>
    %835 = arith.addf %834, %833 : vector<8x128xf32>
    %836 = arith.divf %834, %835 : vector<8x128xf32>
    %837 = arith.mulf %828, %777 : vector<8x128xf32>
    %838 = arith.mulf %822, %830 : vector<8x128xf32>
    %839 = arith.addf %837, %838 : vector<8x128xf32>
    %840 = math.tanh %839 : vector<8x128xf32>
    %841 = arith.mulf %836, %840 : vector<8x128xf32>
    %842 = tpu.concatenate %841, %808 in 1 : vector<8x128xf32>, vector<8x128xf32> -> vector<8x256xf32>
    %843 = arith.truncf %842 : vector<8x256xf32> to vector<8x256xbf16>
    %cst_141 = arith.constant dense<0.000000e+00> : vector<8x512xf32>
    %844 = tpu.matmul %843, %3, %cst_141 {dimension_numbers = #tpu.dot_dimension_numbers<[1], [0], [0], [1], [0, 0, 1, 1], [], []>} : vector<8x256xbf16>, vector<256x512xbf16>, vector<8x512xf32> -> vector<8x512xf32>
    %845 = arith.addf %844, %10 : vector<8x512xf32>
    %846 = vector.extract_strided_slice %845 {offsets = [0, 0], sizes = [8, 128], strides = [1, 1]} : vector<8x512xf32> to vector<8x128xf32>
    %847 = arith.negf %846 : vector<8x128xf32>
    %848 = math.exp %847 : vector<8x128xf32>
    %cst_142 = arith.constant 1.000000e+00 : f32
    %849 = vector.broadcast %cst_142 : f32 to vector<8x128xf32>
    %850 = arith.addf %849, %848 : vector<8x128xf32>
    %851 = arith.divf %849, %850 : vector<8x128xf32>
    %852 = vector.extract_strided_slice %845 {offsets = [0, 128], sizes = [8, 128], strides = [1, 1]} : vector<8x512xf32> to vector<8x128xf32>
    %853 = arith.negf %852 : vector<8x128xf32>
    %854 = math.exp %853 : vector<8x128xf32>
    %cst_143 = arith.constant 1.000000e+00 : f32
    %855 = vector.broadcast %cst_143 : f32 to vector<8x128xf32>
    %856 = arith.addf %855, %854 : vector<8x128xf32>
    %857 = arith.divf %855, %856 : vector<8x128xf32>
    %858 = vector.extract_strided_slice %845 {offsets = [0, 256], sizes = [8, 128], strides = [1, 1]} : vector<8x512xf32> to vector<8x128xf32>
    %859 = math.tanh %858 : vector<8x128xf32>
    %860 = vector.extract_strided_slice %845 {offsets = [0, 384], sizes = [8, 128], strides = [1, 1]} : vector<8x512xf32> to vector<8x128xf32>
    %861 = arith.negf %860 : vector<8x128xf32>
    %862 = math.exp %861 : vector<8x128xf32>
    %cst_144 = arith.constant 1.000000e+00 : f32
    %863 = vector.broadcast %cst_144 : f32 to vector<8x128xf32>
    %864 = arith.addf %863, %862 : vector<8x128xf32>
    %865 = arith.divf %863, %864 : vector<8x128xf32>
    %866 = arith.mulf %857, %806 : vector<8x128xf32>
    %867 = arith.mulf %851, %859 : vector<8x128xf32>
    %868 = arith.addf %866, %867 : vector<8x128xf32>
    %869 = math.tanh %868 : vector<8x128xf32>
    %870 = arith.mulf %865, %869 : vector<8x128xf32>
    %871 = arith.truncf %870 : vector<8x128xf32> to vector<8x128xbf16>
    %cst_145 = arith.constant dense<0.000000e+00> : vector<8x64xf32>
    %872 = tpu.matmul %871, %4, %cst_145 {dimension_numbers = #tpu.dot_dimension_numbers<[1], [0], [0], [1], [0, 0, 1, 1], [], []>} : vector<8x128xbf16>, vector<128x64xbf16>, vector<8x64xf32> -> vector<8x64xf32>
    %873 = arith.addf %872, %13 : vector<8x64xf32>
    %874 = vector.extract_strided_slice %28 {offsets = [5, 0, 0], sizes = [1, 8, 512], strides = [1, 1, 1]} : vector<8x8x512xf32> to vector<1x8x512xf32>
    %875 = vector.shape_cast %874 : vector<1x8x512xf32> to vector<8x512xf32>
    %876 = arith.truncf %841 : vector<8x128xf32> to vector<8x128xbf16>
    %cst_146 = arith.constant dense<0.000000e+00> : vector<8x512xf32>
    %877 = tpu.matmul %876, %2, %cst_146 {dimension_numbers = #tpu.dot_dimension_numbers<[1], [0], [0], [1], [0, 0, 1, 1], [], []>} : vector<8x128xbf16>, vector<128x512xbf16>, vector<8x512xf32> -> vector<8x512xf32>
    %878 = arith.addf %875, %877 : vector<8x512xf32>
    %879 = vector.extract_strided_slice %878 {offsets = [0, 0], sizes = [8, 128], strides = [1, 1]} : vector<8x512xf32> to vector<8x128xf32>
    %880 = arith.negf %879 : vector<8x128xf32>
    %881 = math.exp %880 : vector<8x128xf32>
    %cst_147 = arith.constant 1.000000e+00 : f32
    %882 = vector.broadcast %cst_147 : f32 to vector<8x128xf32>
    %883 = arith.addf %882, %881 : vector<8x128xf32>
    %884 = arith.divf %882, %883 : vector<8x128xf32>
    %885 = vector.extract_strided_slice %878 {offsets = [0, 128], sizes = [8, 128], strides = [1, 1]} : vector<8x512xf32> to vector<8x128xf32>
    %886 = arith.negf %885 : vector<8x128xf32>
    %887 = math.exp %886 : vector<8x128xf32>
    %cst_148 = arith.constant 1.000000e+00 : f32
    %888 = vector.broadcast %cst_148 : f32 to vector<8x128xf32>
    %889 = arith.addf %888, %887 : vector<8x128xf32>
    %890 = arith.divf %888, %889 : vector<8x128xf32>
    %891 = vector.extract_strided_slice %878 {offsets = [0, 256], sizes = [8, 128], strides = [1, 1]} : vector<8x512xf32> to vector<8x128xf32>
    %892 = math.tanh %891 : vector<8x128xf32>
    %893 = vector.extract_strided_slice %878 {offsets = [0, 384], sizes = [8, 128], strides = [1, 1]} : vector<8x512xf32> to vector<8x128xf32>
    %894 = arith.negf %893 : vector<8x128xf32>
    %895 = math.exp %894 : vector<8x128xf32>
    %cst_149 = arith.constant 1.000000e+00 : f32
    %896 = vector.broadcast %cst_149 : f32 to vector<8x128xf32>
    %897 = arith.addf %896, %895 : vector<8x128xf32>
    %898 = arith.divf %896, %897 : vector<8x128xf32>
    %899 = arith.mulf %890, %839 : vector<8x128xf32>
    %900 = arith.mulf %884, %892 : vector<8x128xf32>
    %901 = arith.addf %899, %900 : vector<8x128xf32>
    %902 = math.tanh %901 : vector<8x128xf32>
    %903 = arith.mulf %898, %902 : vector<8x128xf32>
    %904 = tpu.concatenate %903, %870 in 1 : vector<8x128xf32>, vector<8x128xf32> -> vector<8x256xf32>
    %905 = arith.truncf %904 : vector<8x256xf32> to vector<8x256xbf16>
    %cst_150 = arith.constant dense<0.000000e+00> : vector<8x512xf32>
    %906 = tpu.matmul %905, %3, %cst_150 {dimension_numbers = #tpu.dot_dimension_numbers<[1], [0], [0], [1], [0, 0, 1, 1], [], []>} : vector<8x256xbf16>, vector<256x512xbf16>, vector<8x512xf32> -> vector<8x512xf32>
    %907 = arith.addf %906, %10 : vector<8x512xf32>
    %908 = vector.extract_strided_slice %907 {offsets = [0, 0], sizes = [8, 128], strides = [1, 1]} : vector<8x512xf32> to vector<8x128xf32>
    %909 = arith.negf %908 : vector<8x128xf32>
    %910 = math.exp %909 : vector<8x128xf32>
    %cst_151 = arith.constant 1.000000e+00 : f32
    %911 = vector.broadcast %cst_151 : f32 to vector<8x128xf32>
    %912 = arith.addf %911, %910 : vector<8x128xf32>
    %913 = arith.divf %911, %912 : vector<8x128xf32>
    %914 = vector.extract_strided_slice %907 {offsets = [0, 128], sizes = [8, 128], strides = [1, 1]} : vector<8x512xf32> to vector<8x128xf32>
    %915 = arith.negf %914 : vector<8x128xf32>
    %916 = math.exp %915 : vector<8x128xf32>
    %cst_152 = arith.constant 1.000000e+00 : f32
    %917 = vector.broadcast %cst_152 : f32 to vector<8x128xf32>
    %918 = arith.addf %917, %916 : vector<8x128xf32>
    %919 = arith.divf %917, %918 : vector<8x128xf32>
    %920 = vector.extract_strided_slice %907 {offsets = [0, 256], sizes = [8, 128], strides = [1, 1]} : vector<8x512xf32> to vector<8x128xf32>
    %921 = math.tanh %920 : vector<8x128xf32>
    %922 = vector.extract_strided_slice %907 {offsets = [0, 384], sizes = [8, 128], strides = [1, 1]} : vector<8x512xf32> to vector<8x128xf32>
    %923 = arith.negf %922 : vector<8x128xf32>
    %924 = math.exp %923 : vector<8x128xf32>
    %cst_153 = arith.constant 1.000000e+00 : f32
    %925 = vector.broadcast %cst_153 : f32 to vector<8x128xf32>
    %926 = arith.addf %925, %924 : vector<8x128xf32>
    %927 = arith.divf %925, %926 : vector<8x128xf32>
    %928 = arith.mulf %919, %868 : vector<8x128xf32>
    %929 = arith.mulf %913, %921 : vector<8x128xf32>
    %930 = arith.addf %928, %929 : vector<8x128xf32>
    %931 = math.tanh %930 : vector<8x128xf32>
    %932 = arith.mulf %927, %931 : vector<8x128xf32>
    %933 = arith.truncf %932 : vector<8x128xf32> to vector<8x128xbf16>
    %cst_154 = arith.constant dense<0.000000e+00> : vector<8x64xf32>
    %934 = tpu.matmul %933, %4, %cst_154 {dimension_numbers = #tpu.dot_dimension_numbers<[1], [0], [0], [1], [0, 0, 1, 1], [], []>} : vector<8x128xbf16>, vector<128x64xbf16>, vector<8x64xf32> -> vector<8x64xf32>
    %935 = arith.addf %934, %13 : vector<8x64xf32>
    %936 = vector.extract_strided_slice %28 {offsets = [6, 0, 0], sizes = [1, 8, 512], strides = [1, 1, 1]} : vector<8x8x512xf32> to vector<1x8x512xf32>
    %937 = vector.shape_cast %936 : vector<1x8x512xf32> to vector<8x512xf32>
    %938 = arith.truncf %903 : vector<8x128xf32> to vector<8x128xbf16>
    %cst_155 = arith.constant dense<0.000000e+00> : vector<8x512xf32>
    %939 = tpu.matmul %938, %2, %cst_155 {dimension_numbers = #tpu.dot_dimension_numbers<[1], [0], [0], [1], [0, 0, 1, 1], [], []>} : vector<8x128xbf16>, vector<128x512xbf16>, vector<8x512xf32> -> vector<8x512xf32>
    %940 = arith.addf %937, %939 : vector<8x512xf32>
    %941 = vector.extract_strided_slice %940 {offsets = [0, 0], sizes = [8, 128], strides = [1, 1]} : vector<8x512xf32> to vector<8x128xf32>
    %942 = arith.negf %941 : vector<8x128xf32>
    %943 = math.exp %942 : vector<8x128xf32>
    %cst_156 = arith.constant 1.000000e+00 : f32
    %944 = vector.broadcast %cst_156 : f32 to vector<8x128xf32>
    %945 = arith.addf %944, %943 : vector<8x128xf32>
    %946 = arith.divf %944, %945 : vector<8x128xf32>
    %947 = vector.extract_strided_slice %940 {offsets = [0, 128], sizes = [8, 128], strides = [1, 1]} : vector<8x512xf32> to vector<8x128xf32>
    %948 = arith.negf %947 : vector<8x128xf32>
    %949 = math.exp %948 : vector<8x128xf32>
    %cst_157 = arith.constant 1.000000e+00 : f32
    %950 = vector.broadcast %cst_157 : f32 to vector<8x128xf32>
    %951 = arith.addf %950, %949 : vector<8x128xf32>
    %952 = arith.divf %950, %951 : vector<8x128xf32>
    %953 = vector.extract_strided_slice %940 {offsets = [0, 256], sizes = [8, 128], strides = [1, 1]} : vector<8x512xf32> to vector<8x128xf32>
    %954 = math.tanh %953 : vector<8x128xf32>
    %955 = vector.extract_strided_slice %940 {offsets = [0, 384], sizes = [8, 128], strides = [1, 1]} : vector<8x512xf32> to vector<8x128xf32>
    %956 = arith.negf %955 : vector<8x128xf32>
    %957 = math.exp %956 : vector<8x128xf32>
    %cst_158 = arith.constant 1.000000e+00 : f32
    %958 = vector.broadcast %cst_158 : f32 to vector<8x128xf32>
    %959 = arith.addf %958, %957 : vector<8x128xf32>
    %960 = arith.divf %958, %959 : vector<8x128xf32>
    %961 = arith.mulf %952, %901 : vector<8x128xf32>
    %962 = arith.mulf %946, %954 : vector<8x128xf32>
    %963 = arith.addf %961, %962 : vector<8x128xf32>
    %964 = math.tanh %963 : vector<8x128xf32>
    %965 = arith.mulf %960, %964 : vector<8x128xf32>
    %966 = tpu.concatenate %965, %932 in 1 : vector<8x128xf32>, vector<8x128xf32> -> vector<8x256xf32>
    %967 = arith.truncf %966 : vector<8x256xf32> to vector<8x256xbf16>
    %cst_159 = arith.constant dense<0.000000e+00> : vector<8x512xf32>
    %968 = tpu.matmul %967, %3, %cst_159 {dimension_numbers = #tpu.dot_dimension_numbers<[1], [0], [0], [1], [0, 0, 1, 1], [], []>} : vector<8x256xbf16>, vector<256x512xbf16>, vector<8x512xf32> -> vector<8x512xf32>
    %969 = arith.addf %968, %10 : vector<8x512xf32>
    %970 = vector.extract_strided_slice %969 {offsets = [0, 0], sizes = [8, 128], strides = [1, 1]} : vector<8x512xf32> to vector<8x128xf32>
    %971 = arith.negf %970 : vector<8x128xf32>
    %972 = math.exp %971 : vector<8x128xf32>
    %cst_160 = arith.constant 1.000000e+00 : f32
    %973 = vector.broadcast %cst_160 : f32 to vector<8x128xf32>
    %974 = arith.addf %973, %972 : vector<8x128xf32>
    %975 = arith.divf %973, %974 : vector<8x128xf32>
    %976 = vector.extract_strided_slice %969 {offsets = [0, 128], sizes = [8, 128], strides = [1, 1]} : vector<8x512xf32> to vector<8x128xf32>
    %977 = arith.negf %976 : vector<8x128xf32>
    %978 = math.exp %977 : vector<8x128xf32>
    %cst_161 = arith.constant 1.000000e+00 : f32
    %979 = vector.broadcast %cst_161 : f32 to vector<8x128xf32>
    %980 = arith.addf %979, %978 : vector<8x128xf32>
    %981 = arith.divf %979, %980 : vector<8x128xf32>
    %982 = vector.extract_strided_slice %969 {offsets = [0, 256], sizes = [8, 128], strides = [1, 1]} : vector<8x512xf32> to vector<8x128xf32>
    %983 = math.tanh %982 : vector<8x128xf32>
    %984 = vector.extract_strided_slice %969 {offsets = [0, 384], sizes = [8, 128], strides = [1, 1]} : vector<8x512xf32> to vector<8x128xf32>
    %985 = arith.negf %984 : vector<8x128xf32>
    %986 = math.exp %985 : vector<8x128xf32>
    %cst_162 = arith.constant 1.000000e+00 : f32
    %987 = vector.broadcast %cst_162 : f32 to vector<8x128xf32>
    %988 = arith.addf %987, %986 : vector<8x128xf32>
    %989 = arith.divf %987, %988 : vector<8x128xf32>
    %990 = arith.mulf %981, %930 : vector<8x128xf32>
    %991 = arith.mulf %975, %983 : vector<8x128xf32>
    %992 = arith.addf %990, %991 : vector<8x128xf32>
    %993 = math.tanh %992 : vector<8x128xf32>
    %994 = arith.mulf %989, %993 : vector<8x128xf32>
    %995 = arith.truncf %994 : vector<8x128xf32> to vector<8x128xbf16>
    %cst_163 = arith.constant dense<0.000000e+00> : vector<8x64xf32>
    %996 = tpu.matmul %995, %4, %cst_163 {dimension_numbers = #tpu.dot_dimension_numbers<[1], [0], [0], [1], [0, 0, 1, 1], [], []>} : vector<8x128xbf16>, vector<128x64xbf16>, vector<8x64xf32> -> vector<8x64xf32>
    %997 = arith.addf %996, %13 : vector<8x64xf32>
    %998 = vector.shape_cast %563 : vector<8x64xf32> to vector<1x8x64xf32>
    %999 = vector.shape_cast %625 : vector<8x64xf32> to vector<1x8x64xf32>
    %1000 = vector.shape_cast %687 : vector<8x64xf32> to vector<1x8x64xf32>
    %1001 = vector.shape_cast %749 : vector<8x64xf32> to vector<1x8x64xf32>
    %1002 = vector.shape_cast %811 : vector<8x64xf32> to vector<1x8x64xf32>
    %1003 = vector.shape_cast %873 : vector<8x64xf32> to vector<1x8x64xf32>
    %1004 = vector.shape_cast %935 : vector<8x64xf32> to vector<1x8x64xf32>
    %1005 = vector.shape_cast %997 : vector<8x64xf32> to vector<1x8x64xf32>
    %1006 = tpu.concatenate %998, %999, %1000, %1001, %1002, %1003, %1004, %1005 in 0 : vector<1x8x64xf32>, vector<1x8x64xf32>, vector<1x8x64xf32>, vector<1x8x64xf32>, vector<1x8x64xf32>, vector<1x8x64xf32>, vector<1x8x64xf32>, vector<1x8x64xf32> -> vector<8x8x64xf32>
    %c0_164 = arith.constant 0 : index
    %c0_165 = arith.constant 0 : index
    %c0_166 = arith.constant 0 : index
    %1007 = vector.load %arg14[%c0_164, %c0_165, %c0_166] : memref<8x8x64xf32, #tpu.memory_space<vmem>>, vector<8x8x64xf32>
    tpu.vector_store %arg14[%c0_164, %c0_165, %c0_166], %1006 {strides = array<i32>} : memref<8x8x64xf32, #tpu.memory_space<vmem>>, vector<8x8x64xf32>,
    return
  }
  func.func @transform_0(%arg0: i32) -> (i32, i32, i32) {
    %c0_i32 = arith.constant 0 : i32
    %c0_i32_0 = arith.constant 0 : i32
    %c0_i32_1 = arith.constant 0 : i32
    return %c0_i32, %arg0, %c0_i32_0 : i32, i32, i32
  }
  func.func @transform_1(%arg0: i32) -> (i32, i32) {
    %c0_i32 = arith.constant 0 : i32
    %c0_i32_0 = arith.constant 0 : i32
    %c0_i32_1 = arith.constant 0 : i32
    return %c0_i32, %c0_i32_0 : i32, i32
  }
  func.func @transform_2(%arg0: i32) -> (i32, i32) {
    %c0_i32 = arith.constant 0 : i32
    %c0_i32_0 = arith.constant 0 : i32
    %c0_i32_1 = arith.constant 0 : i32
    return %c0_i32, %c0_i32_0 : i32, i32
  }
  func.func @transform_3(%arg0: i32) -> (i32, i32) {
    %c0_i32 = arith.constant 0 : i32
    %c0_i32_0 = arith.constant 0 : i32
    %c0_i32_1 = arith.constant 0 : i32
    return %c0_i32, %c0_i32_0 : i32, i32
  }
  func.func @transform_4(%arg0: i32) -> (i32, i32) {
    %c0_i32 = arith.constant 0 : i32
    %c0_i32_0 = arith.constant 0 : i32
    %c0_i32_1 = arith.constant 0 : i32
    return %c0_i32, %c0_i32_0 : i32, i32
  }
  func.func @transform_5(%arg0: i32) -> (i32, i32) {
    %c0_i32 = arith.constant 0 : i32
    %c0_i32_0 = arith.constant 0 : i32
    %c0_i32_1 = arith.constant 0 : i32
    return %c0_i32, %c0_i32_0 : i32, i32
  }
  func.func @transform_6(%arg0: i32) -> (i32, i32) {
    %c0_i32 = arith.constant 0 : i32
    %c0_i32_0 = arith.constant 0 : i32
    %c0_i32_1 = arith.constant 0 : i32
    return %c0_i32, %c0_i32_0 : i32, i32
  }
  func.func @transform_7(%arg0: i32) -> (i32, i32) {
    %c0_i32 = arith.constant 0 : i32
    %c0_i32_0 = arith.constant 0 : i32
    %c0_i32_1 = arith.constant 0 : i32
    return %c0_i32, %c0_i32_0 : i32, i32
  }
  func.func @transform_8(%arg0: i32) -> (i32, i32) {
    %c0_i32 = arith.constant 0 : i32
    %c0_i32_0 = arith.constant 0 : i32
    %c0_i32_1 = arith.constant 0 : i32
    return %c0_i32, %c0_i32_0 : i32, i32
  }
  func.func @transform_9(%arg0: i32) -> (i32, i32) {
    %c0_i32 = arith.constant 0 : i32
    %c0_i32_0 = arith.constant 0 : i32
    %c0_i32_1 = arith.constant 0 : i32
    return %c0_i32, %c0_i32_0 : i32, i32
  }
  func.func @transform_10(%arg0: i32) -> (i32, i32) {
    %c0_i32 = arith.constant 0 : i32
    %c0_i32_0 = arith.constant 0 : i32
    %c0_i32_1 = arith.constant 0 : i32
    return %c0_i32, %c0_i32_0 : i32, i32
  }
  func.func @transform_11(%arg0: i32) -> (i32, i32) {
    %c0_i32 = arith.constant 0 : i32
    %c0_i32_0 = arith.constant 0 : i32
    %c0_i32_1 = arith.constant 0 : i32
    return %c0_i32, %c0_i32_0 : i32, i32
  }
  func.func @transform_12(%arg0: i32) -> (i32, i32) {
    %c0_i32 = arith.constant 0 : i32
    %c0_i32_0 = arith.constant 0 : i32
    %c0_i32_1 = arith.constant 0 : i32
    return %c0_i32, %c0_i32_0 : i32, i32
  }
  func.func @transform_13(%arg0: i32) -> (i32, i32, i32) {
    %c0_i32 = arith.constant 0 : i32
    %c0_i32_0 = arith.constant 0 : i32
    %c0_i32_1 = arith.constant 0 : i32
    return %c0_i32, %arg0, %c0_i32_0 : i32, i32, i32
  }
}

</mosaic_0001>

<llo_original>
// kernel: tpu_custom_call.1
$region0: #{tpu_custom_call.1}
  #allocation0 [shape = 'u32[]', space=smem, size = 0x4, offset = 0x4, fixed_abs, tag = 'smem constant byte address 0x4 - core index']
  #allocation1 [shape = 'u32[144,128]{1,0:T(1,128)}', space=vmem, size = 0x12000, scoped, tag = 'internal scratch']
  %s0 = inlined_call_operand.vmem [shape: f32[8,8,64], index: 0, kind: input, shape index: {}]
  %s1 = inlined_call_operand.hbm [shape: bf16[64,512], index: 1, kind: input, shape index: {}]
  %s2 = inlined_call_operand.hbm [shape: bf16[128,512], index: 2, kind: input, shape index: {}]
  %s3 = inlined_call_operand.vmem [shape: f32[1,512], index: 3, kind: input, shape index: {}]
  %s4 = inlined_call_operand.hbm [shape: bf16[256,512], index: 4, kind: input, shape index: {}]
  %s5 = inlined_call_operand.vmem [shape: f32[1,512], index: 5, kind: input, shape index: {}]
  %s6 = inlined_call_operand.hbm [shape: bf16[64,512], index: 6, kind: input, shape index: {}]
  %s7 = inlined_call_operand.hbm [shape: bf16[128,512], index: 7, kind: input, shape index: {}]
  %s8 = inlined_call_operand.vmem [shape: f32[1,512], index: 8, kind: input, shape index: {}]
  %s9 = inlined_call_operand.hbm [shape: bf16[256,512], index: 9, kind: input, shape index: {}]
  %s10 = inlined_call_operand.vmem [shape: f32[1,512], index: 10, kind: input, shape index: {}]
  %s11 = inlined_call_operand.vmem [shape: bf16[128,64], index: 11, kind: input, shape index: {}]
  %s12 = inlined_call_operand.vmem [shape: f32[1,64], index: 12, kind: input, shape index: {}]
  %s13 = inlined_call_operand.hbm [shape: f32[8,8,64], index: 13, kind: output, shape index: {}]
  %s14 = sld [smem:[#allocation0]]
  $region86: #{tpu_custom_call.1} parent=0
    _
  %s16 = ssub.s32 1, %s14
  %s17 = scalar_select 0, %s16, %s14
  $region1: #{tpu_custom_call.1} parent=0
    #allocation2 [shape = 'u8[65536]{0}', space=vmem, size = 0x10000, scoped, tag = 'input window, operand 1, single buffered']
    #allocation3 [shape = 's32[1]{0}', space=sflag, size = 0x4, scoped, tag = 'scoped memory for tpu_custom_call.1']
    #allocation4 [shape = 's32[1]{0}', space=sflag, size = 0x4, scoped, tag = 'scoped memory for tpu_custom_call.1']
    #allocation5 [shape = 'u8[131072]{0}', space=vmem, size = 0x20000, scoped, tag = 'input window, operand 2, single buffered']
    #allocation6 [shape = 's32[1]{0}', space=sflag, size = 0x4, scoped, tag = 'scoped memory for tpu_custom_call.1']
    #allocation7 [shape = 'u8[262144]{0}', space=vmem, size = 0x40000, scoped, tag = 'input window, operand 4, single buffered']
    #allocation8 [shape = 'u8[65536]{0}', space=vmem, size = 0x10000, scoped, tag = 'input window, operand 6, single buffered']
    #allocation9 [shape = 's32[1]{0}', space=sflag, size = 0x4, scoped, tag = 'scoped memory for tpu_custom_call.1']
    #allocation10 [shape = 'u8[131072]{0}', space=vmem, size = 0x20000, scoped, tag = 'input window, operand 7, single buffered']
    #allocation11 [shape = 'u8[262144]{0}', space=vmem, size = 0x40000, scoped, tag = 'input window, operand 9, single buffered']
    #allocation12 [shape = 's32[1]{0}', space=sflag, size = 0x4, scoped, tag = 'scoped memory for tpu_custom_call.1']
    #allocation13 [shape = 'u8[32768]{0}', space=vmem, size = 0x8000, scoped, tag = 'output window, operand 0, single buffered']
    %18 = vsyncpa [#allocation3], 0
    %19 = vsyncpa [#allocation6], 0
    %20 = vsyncpa [#allocation9], 0
    %21 = vsyncpa [#allocation12], 0
    %22 = vsyncpa [#allocation4], 0
    // Predicated region
    $region2: #{tpu_custom_call.1} parent=1 // pred_check
      _
    $region3: #{tpu_custom_call.1} parent=1 // pred_check_branch
      %24 = sbr.rel (0) target = $region5
    $region4: #{tpu_custom_call.1} parent=1 // pred_region
      _
    $region5: #{tpu_custom_call.1} parent=1 // pred_fallthru
      _
    // Predicated region
    $region6: #{tpu_custom_call.1} parent=1 // pred_check
      _
    $region7: #{tpu_custom_call.1} parent=1 // pred_check_branch
      %26 = sbr.rel (0) target = $region9
    $region8: #{tpu_custom_call.1} parent=1 // pred_region
      %s28 = ssub.s32 2048, 2048
      %29 = vsyncadd [#allocation3], %s28
      %s30 = sshll.u32 [#allocation2], 4
      %s31 = int_to_ptr.vmem [resolvable:$true] %s30
      %36 = dma.hbm_to_vmem [thread:$0]  %s1, 2048, %s31, [#allocation3], 256, 256, 16
    $region9: #{tpu_custom_call.1} parent=1 // pred_fallthru
      _
    // Predicated region
    $region10: #{tpu_custom_call.1} parent=1 // pred_check
      _
    $region11: #{tpu_custom_call.1} parent=1 // pred_check_branch
      %38 = sbr.rel (0) target = $region13
    $region12: #{tpu_custom_call.1} parent=1 // pred_region
      %s40 = ssub.s32 4096, 4096
      %41 = vsyncadd [#allocation6], %s40
      %s42 = sshll.u32 [#allocation5], 4
      %s43 = int_to_ptr.vmem [resolvable:$true] %s42
      %48 = dma.hbm_to_vmem [thread:$0]  %s2, 4096, %s43, [#allocation6], 256, 256, 16
    $region13: #{tpu_custom_call.1} parent=1 // pred_fallthru
      _
    // Predicated region
    $region14: #{tpu_custom_call.1} parent=1 // pred_check
      _
    $region15: #{tpu_custom_call.1} parent=1 // pred_check_branch
      %50 = sbr.rel (0) target = $region17
    $region16: #{tpu_custom_call.1} parent=1 // pred_region
      _
    $region17: #{tpu_custom_call.1} parent=1 // pred_fallthru
      _
    // Predicated region
    $region18: #{tpu_custom_call.1} parent=1 // pred_check
      _
    $region19: #{tpu_custom_call.1} parent=1 // pred_check_branch
      %52 = sbr.rel (0) target = $region21
    $region20: #{tpu_custom_call.1} parent=1 // pred_region
      %s54 = ssub.s32 8192, 8192
      %55 = vsyncadd [#allocation6], %s54
      %s56 = sshll.u32 [#allocation7], 4
      %s57 = int_to_ptr.vmem [resolvable:$true] %s56
      %62 = dma.hbm_to_vmem [thread:$0]  %s4, 8192, %s57, [#allocation6], 256, 256, 16
    $region21: #{tpu_custom_call.1} parent=1 // pred_fallthru
      _
    // Predicated region
    $region22: #{tpu_custom_call.1} parent=1 // pred_check
      _
    $region23: #{tpu_custom_call.1} parent=1 // pred_check_branch
      %64 = sbr.rel (0) target = $region25
    $region24: #{tpu_custom_call.1} parent=1 // pred_region
      _
    $region25: #{tpu_custom_call.1} parent=1 // pred_fallthru
      _
    // Predicated region
    $region26: #{tpu_custom_call.1} parent=1 // pred_check
      _
    $region27: #{tpu_custom_call.1} parent=1 // pred_check_branch
      %66 = sbr.rel (0) target = $region29
    $region28: #{tpu_custom_call.1} parent=1 // pred_region
      %s68 = ssub.s32 2048, 2048
      %69 = vsyncadd [#allocation9], %s68
      %s70 = sshll.u32 [#allocation8], 4
      %s71 = int_to_ptr.vmem [resolvable:$true] %s70
      %76 = dma.hbm_to_vmem [thread:$0]  %s6, 2048, %s71, [#allocation9], 256, 256, 16
    $region29: #{tpu_custom_call.1} parent=1 // pred_fallthru
      _
    // Predicated region
    $region30: #{tpu_custom_call.1} parent=1 // pred_check
      _
    $region31: #{tpu_custom_call.1} parent=1 // pred_check_branch
      %78 = sbr.rel (0) target = $region33
    $region32: #{tpu_custom_call.1} parent=1 // pred_region
      %s80 = ssub.s32 4096, 4096
      %81 = vsyncadd [#allocation9], %s80
      %s82 = sshll.u32 [#allocation10], 4
      %s83 = int_to_ptr.vmem [resolvable:$true] %s82
      %88 = dma.hbm_to_vmem [thread:$0]  %s7, 4096, %s83, [#allocation9], 256, 256, 16
    $region33: #{tpu_custom_call.1} parent=1 // pred_fallthru
      _
    // Predicated region
    $region34: #{tpu_custom_call.1} parent=1 // pred_check
      _
    $region35: #{tpu_custom_call.1} parent=1 // pred_check_branch
      %90 = sbr.rel (0) target = $region37
    $region36: #{tpu_custom_call.1} parent=1 // pred_region
      _
    $region37: #{tpu_custom_call.1} parent=1 // pred_fallthru
      _
    // Predicated region
    $region38: #{tpu_custom_call.1} parent=1 // pred_check
      _
    $region39: #{tpu_custom_call.1} parent=1 // pred_check_branch
      %92 = sbr.rel (0) target = $region41
    $region40: #{tpu_custom_call.1} parent=1 // pred_region
      %s94 = ssub.s32 8192, 8192
      %95 = vsyncadd [#allocation12], %s94
      %s96 = sshll.u32 [#allocation11], 4
      %s97 = int_to_ptr.vmem [resolvable:$true] %s96
      %102 = dma.hbm_to_vmem [thread:$0]  %s9, 8192, %s97, [#allocation12], 256, 256, 16
    $region41: #{tpu_custom_call.1} parent=1 // pred_fallthru
      _
    // Predicated region
    $region42: #{tpu_custom_call.1} parent=1 // pred_check
      _
    $region43: #{tpu_custom_call.1} parent=1 // pred_check_branch
      %104 = sbr.rel (0) target = $region45
    $region44: #{tpu_custom_call.1} parent=1 // pred_region
      _
    $region45: #{tpu_custom_call.1} parent=1 // pred_fallthru
      _
    // Predicated region
    $region46: #{tpu_custom_call.1} parent=1 // pred_check
      _
    $region47: #{tpu_custom_call.1} parent=1 // pred_check_branch
      %106 = sbr.rel (0) target = $region49
    $region48: #{tpu_custom_call.1} parent=1 // pred_region
      _
    $region49: #{tpu_custom_call.1} parent=1 // pred_fallthru
      _
    // Predicated region
    $region50: #{tpu_custom_call.1} parent=1 // pred_check
      _
    $region51: #{tpu_custom_call.1} parent=1 // pred_check_branch
      %108 = sbr.rel (0) target = $region53
    $region52: #{tpu_custom_call.1} parent=1 // pred_region
      _
    $region53: #{tpu_custom_call.1} parent=1 // pred_fallthru
      _
    // Predicated region
    $region54: #{tpu_custom_call.1} parent=1 // pred_check
      _
    $region55: #{tpu_custom_call.1} parent=1 // pred_check_branch
      %110 = sbr.rel (0) target = $region57
    $region56: #{tpu_custom_call.1} parent=1 // pred_region
      %111 = dma.done [#allocation3], 2048
    $region57: #{tpu_custom_call.1} parent=1 // pred_fallthru
      _
    // Predicated region
    $region58: #{tpu_custom_call.1} parent=1 // pred_check
      _
    $region59: #{tpu_custom_call.1} parent=1 // pred_check_branch
      %113 = sbr.rel (0) target = $region61
    $region60: #{tpu_custom_call.1} parent=1 // pred_region
      %114 = dma.done [#allocation6], 4096
    $region61: #{tpu_custom_call.1} parent=1 // pred_fallthru
      _
    // Predicated region
    $region62: #{tpu_custom_call.1} parent=1 // pred_check
      _
    $region63: #{tpu_custom_call.1} parent=1 // pred_check_branch
      %116 = sbr.rel (0) target = $region65
    $region64: #{tpu_custom_call.1} parent=1 // pred_region
      %117 = dma.done [#allocation6], 8192
    $region65: #{tpu_custom_call.1} parent=1 // pred_fallthru
      _
    // Predicated region
    $region66: #{tpu_custom_call.1} parent=1 // pred_check
      _
    $region67: #{tpu_custom_call.1} parent=1 // pred_check_branch
      %119 = sbr.rel (0) target = $region69
    $region68: #{tpu_custom_call.1} parent=1 // pred_region
      %120 = dma.done [#allocation9], 2048
    $region69: #{tpu_custom_call.1} parent=1 // pred_fallthru
      _
    // Predicated region
    $region70: #{tpu_custom_call.1} parent=1 // pred_check
      _
    $region71: #{tpu_custom_call.1} parent=1 // pred_check_branch
      %122 = sbr.rel (0) target = $region73
    $region72: #{tpu_custom_call.1} parent=1 // pred_region
      %123 = dma.done [#allocation9], 4096
    $region73: #{tpu_custom_call.1} parent=1 // pred_fallthru
      _
    // Predicated region
    $region74: #{tpu_custom_call.1} parent=1 // pred_check
      _
    $region75: #{tpu_custom_call.1} parent=1 // pred_check_branch
      %125 = sbr.rel (0) target = $region77
    $region76: #{tpu_custom_call.1} parent=1 // pred_region
      %126 = dma.done [#allocation12], 8192
    $region77: #{tpu_custom_call.1} parent=1 // pred_fallthru
      _
    %v128 = vld [vmem:[#allocation5] sm:$0xff]
    %v129 = vld [vmem:[#allocation5 + $0x8] sm:$0xff]
    %v130 = vld [vmem:[#allocation5 + $0x10] sm:$0xff]
    %v131 = vld [vmem:[#allocation5 + $0x18] sm:$0xff]
    %v132 = vld [vmem:[#allocation5 + $0x20] sm:$0xff]
    %v133 = vld [vmem:[#allocation5 + $0x28] sm:$0xff]
    %v134 = vld [vmem:[#allocation5 + $0x30] sm:$0xff]
    %v135 = vld [vmem:[#allocation5 + $0x38] sm:$0xff]
    %v136 = vld [vmem:[#allocation5 + $0x40] sm:$0xff]
    %v137 = vld [vmem:[#allocation5 + $0x48] sm:$0xff]
    %v138 = vld [vmem:[#allocation5 + $0x50] sm:$0xff]
    %v139 = vld [vmem:[#allocation5 + $0x58] sm:$0xff]
    %v140 = vld [vmem:[#allocation5 + $0x60] sm:$0xff]
    %v141 = vld [vmem:[#allocation5 + $0x68] sm:$0xff]
    %v142 = vld [vmem:[#allocation5 + $0x70] sm:$0xff]
    %v143 = vld [vmem:[#allocation5 + $0x78] sm:$0xff]
    %v144 = vld [vmem:[#allocation5 + $0x80] sm:$0xff]
    %v145 = vld [vmem:[#allocation5 + $0x88] sm:$0xff]
    %v146 = vld [vmem:[#allocation5 + $0x90] sm:$0xff]
    %v147 = vld [vmem:[#allocation5 + $0x98] sm:$0xff]
    %v148 = vld [vmem:[#allocation5 + $0xa0] sm:$0xff]
    %v149 = vld [vmem:[#allocation5 + $0xa8] sm:$0xff]
    %v150 = vld [vmem:[#allocation5 + $0xb0] sm:$0xff]
    %v151 = vld [vmem:[#allocation5 + $0xb8] sm:$0xff]
    %v152 = vld [vmem:[#allocation5 + $0xc0] sm:$0xff]
    %v153 = vld [vmem:[#allocation5 + $0xc8] sm:$0xff]
    %v154 = vld [vmem:[#allocation5 + $0xd0] sm:$0xff]
    %v155 = vld [vmem:[#allocation5 + $0xd8] sm:$0xff]
    %v156 = vld [vmem:[#allocation5 + $0xe0] sm:$0xff]
    %v157 = vld [vmem:[#allocation5 + $0xe8] sm:$0xff]
    %v158 = vld [vmem:[#allocation5 + $0xf0] sm:$0xff]
    %v159 = vld [vmem:[#allocation5 + $0xf8] sm:$0xff]
    %v160 = vld [vmem:[#allocation7] sm:$0xff]
    %v161 = vld [vmem:[#allocation7 + $0x8] sm:$0xff]
    %v162 = vld [vmem:[#allocation7 + $0x10] sm:$0xff]
    %v163 = vld [vmem:[#allocation7 + $0x18] sm:$0xff]
    %v164 = vld [vmem:[#allocation7 + $0x20] sm:$0xff]
    %v165 = vld [vmem:[#allocation7 + $0x28] sm:$0xff]
    %v166 = vld [vmem:[#allocation7 + $0x30] sm:$0xff]
    %v167 = vld [vmem:[#allocation7 + $0x38] sm:$0xff]
    %v168 = vld [vmem:[#allocation7 + $0x40] sm:$0xff]
    %v169 = vld [vmem:[#allocation7 + $0x48] sm:$0xff]
    %v170 = vld [vmem:[#allocation7 + $0x50] sm:$0xff]
    %v171 = vld [vmem:[#allocation7 + $0x58] sm:$0xff]
    %v172 = vld [vmem:[#allocation7 + $0x60] sm:$0xff]
    %v173 = vld [vmem:[#allocation7 + $0x68] sm:$0xff]
    %v174 = vld [vmem:[#allocation7 + $0x70] sm:$0xff]
    %v175 = vld [vmem:[#allocation7 + $0x78] sm:$0xff]
    %v176 = vld [vmem:[#allocation7 + $0x80] sm:$0xff]
    %v177 = vld [vmem:[#allocation7 + $0x88] sm:$0xff]
    %v178 = vld [vmem:[#allocation7 + $0x90] sm:$0xff]
    %v179 = vld [vmem:[#allocation7 + $0x98] sm:$0xff]
    %v180 = vld [vmem:[#allocation7 + $0xa0] sm:$0xff]
    %v181 = vld [vmem:[#allocation7 + $0xa8] sm:$0xff]
    %v182 = vld [vmem:[#allocation7 + $0xb0] sm:$0xff]
    %v183 = vld [vmem:[#allocation7 + $0xb8] sm:$0xff]
    %v184 = vld [vmem:[#allocation7 + $0xc0] sm:$0xff]
    %v185 = vld [vmem:[#allocation7 + $0xc8] sm:$0xff]
    %v186 = vld [vmem:[#allocation7 + $0xd0] sm:$0xff]
    %v187 = vld [vmem:[#allocation7 + $0xd8] sm:$0xff]
    %v188 = vld [vmem:[#allocation7 + $0xe0] sm:$0xff]
    %v189 = vld [vmem:[#allocation7 + $0xe8] sm:$0xff]
    %v190 = vld [vmem:[#allocation7 + $0xf0] sm:$0xff]
    %v191 = vld [vmem:[#allocation7 + $0xf8] sm:$0xff]
    %v192 = vld [vmem:[#allocation7 + $0x100] sm:$0xff]
    %v193 = vld [vmem:[#allocation7 + $0x108] sm:$0xff]
    %v194 = vld [vmem:[#allocation7 + $0x110] sm:$0xff]
    %v195 = vld [vmem:[#allocation7 + $0x118] sm:$0xff]
    %v196 = vld [vmem:[#allocation7 + $0x120] sm:$0xff]
    %v197 = vld [vmem:[#allocation7 + $0x128] sm:$0xff]
    %v198 = vld [vmem:[#allocation7 + $0x130] sm:$0xff]
    %v199 = vld [vmem:[#allocation7 + $0x138] sm:$0xff]
    %v200 = vld [vmem:[#allocation7 + $0x140] sm:$0xff]
    %v201 = vld [vmem:[#allocation7 + $0x148] sm:$0xff]
    %v202 = vld [vmem:[#allocation7 + $0x150] sm:$0xff]
    %v203 = vld [vmem:[#allocation7 + $0x158] sm:$0xff]
    %v204 = vld [vmem:[#allocation7 + $0x160] sm:$0xff]
    %v205 = vld [vmem:[#allocation7 + $0x168] sm:$0xff]
    %v206 = vld [vmem:[#allocation7 + $0x170] sm:$0xff]
    %v207 = vld [vmem:[#allocation7 + $0x178] sm:$0xff]
    %v208 = vld [vmem:[#allocation7 + $0x180] sm:$0xff]
    %v209 = vld [vmem:[#allocation7 + $0x188] sm:$0xff]
    %v210 = vld [vmem:[#allocation7 + $0x190] sm:$0xff]
    %v211 = vld [vmem:[#allocation7 + $0x198] sm:$0xff]
    %v212 = vld [vmem:[#allocation7 + $0x1a0] sm:$0xff]
    %v213 = vld [vmem:[#allocation7 + $0x1a8] sm:$0xff]
    %v214 = vld [vmem:[#allocation7 + $0x1b0] sm:$0xff]
    %v215 = vld [vmem:[#allocation7 + $0x1b8] sm:$0xff]
    %v216 = vld [vmem:[#allocation7 + $0x1c0] sm:$0xff]
    %v217 = vld [vmem:[#allocation7 + $0x1c8] sm:$0xff]
    %v218 = vld [vmem:[#allocation7 + $0x1d0] sm:$0xff]
    %v219 = vld [vmem:[#allocation7 + $0x1d8] sm:$0xff]
    %v220 = vld [vmem:[#allocation7 + $0x1e0] sm:$0xff]
    %v221 = vld [vmem:[#allocation7 + $0x1e8] sm:$0xff]
    %v222 = vld [vmem:[#allocation7 + $0x1f0] sm:$0xff]
    %v223 = vld [vmem:[#allocation7 + $0x1f8] sm:$0xff]
    %v224 = vld [vmem:[#allocation10] sm:$0xff]
    %v225 = vld [vmem:[#allocation10 + $0x8] sm:$0xff]
    %v226 = vld [vmem:[#allocation10 + $0x10] sm:$0xff]
    %v227 = vld [vmem:[#allocation10 + $0x18] sm:$0xff]
    %v228 = vld [vmem:[#allocation10 + $0x20] sm:$0xff]
    %v229 = vld [vmem:[#allocation10 + $0x28] sm:$0xff]
    %v230 = vld [vmem:[#allocation10 + $0x30] sm:$0xff]
    %v231 = vld [vmem:[#allocation10 + $0x38] sm:$0xff]
    %v232 = vld [vmem:[#allocation10 + $0x40] sm:$0xff]
    %v233 = vld [vmem:[#allocation10 + $0x48] sm:$0xff]
    %v234 = vld [vmem:[#allocation10 + $0x50] sm:$0xff]
    %v235 = vld [vmem:[#allocation10 + $0x58] sm:$0xff]
    %v236 = vld [vmem:[#allocation10 + $0x60] sm:$0xff]
    %v237 = vld [vmem:[#allocation10 + $0x68] sm:$0xff]
    %v238 = vld [vmem:[#allocation10 + $0x70] sm:$0xff]
    %v239 = vld [vmem:[#allocation10 + $0x78] sm:$0xff]
    %v240 = vld [vmem:[#allocation10 + $0x80] sm:$0xff]
    %v241 = vld [vmem:[#allocation10 + $0x88] sm:$0xff]
    %v242 = vld [vmem:[#allocation10 + $0x90] sm:$0xff]
    %v243 = vld [vmem:[#allocation10 + $0x98] sm:$0xff]
    %v244 = vld [vmem:[#allocation10 + $0xa0] sm:$0xff]
    %v245 = vld [vmem:[#allocation10 + $0xa8] sm:$0xff]
    %v246 = vld [vmem:[#allocation10 + $0xb0] sm:$0xff]
    %v247 = vld [vmem:[#allocation10 + $0xb8] sm:$0xff]
    %v248 = vld [vmem:[#allocation10 + $0xc0] sm:$0xff]
    %v249 = vld [vmem:[#allocation10 + $0xc8] sm:$0xff]
    %v250 = vld [vmem:[#allocation10 + $0xd0] sm:$0xff]
    %v251 = vld [vmem:[#allocation10 + $0xd8] sm:$0xff]
    %v252 = vld [vmem:[#allocation10 + $0xe0] sm:$0xff]
    %v253 = vld [vmem:[#allocation10 + $0xe8] sm:$0xff]
    %v254 = vld [vmem:[#allocation10 + $0xf0] sm:$0xff]
    %v255 = vld [vmem:[#allocation10 + $0xf8] sm:$0xff]
    %v256 = vld [vmem:[#allocation11] sm:$0xff]
    %v257 = vld [vmem:[#allocation11 + $0x8] sm:$0xff]
    %v258 = vld [vmem:[#allocation11 + $0x10] sm:$0xff]
    %v259 = vld [vmem:[#allocation11 + $0x18] sm:$0xff]
    %v260 = vld [vmem:[#allocation11 + $0x20] sm:$0xff]
    %v261 = vld [vmem:[#allocation11 + $0x28] sm:$0xff]
    %v262 = vld [vmem:[#allocation11 + $0x30] sm:$0xff]
    %v263 = vld [vmem:[#allocation11 + $0x38] sm:$0xff]
    %v264 = vld [vmem:[#allocation11 + $0x40] sm:$0xff]
    %v265 = vld [vmem:[#allocation11 + $0x48] sm:$0xff]
    %v266 = vld [vmem:[#allocation11 + $0x50] sm:$0xff]
    %v267 = vld [vmem:[#allocation11 + $0x58] sm:$0xff]
    %v268 = vld [vmem:[#allocation11 + $0x60] sm:$0xff]
    %v269 = vld [vmem:[#allocation11 + $0x68] sm:$0xff]
    %v270 = vld [vmem:[#allocation11 + $0x70] sm:$0xff]
    %v271 = vld [vmem:[#allocation11 + $0x78] sm:$0xff]
    %v272 = vld [vmem:[#allocation11 + $0x80] sm:$0xff]
    %v273 = vld [vmem:[#allocation11 + $0x88] sm:$0xff]
    %v274 = vld [vmem:[#allocation11 + $0x90] sm:$0xff]
    %v275 = vld [vmem:[#allocation11 + $0x98] sm:$0xff]
    %v276 = vld [vmem:[#allocation11 + $0xa0] sm:$0xff]
    %v277 = vld [vmem:[#allocation11 + $0xa8] sm:$0xff]
    %v278 = vld [vmem:[#allocation11 + $0xb0] sm:$0xff]
    %v279 = vld [vmem:[#allocation11 + $0xb8] sm:$0xff]
    %v280 = vld [vmem:[#allocation11 + $0xc0] sm:$0xff]
    %v281 = vld [vmem:[#allocation11 + $0xc8] sm:$0xff]
    %v282 = vld [vmem:[#allocation11 + $0xd0] sm:$0xff]
    %v283 = vld [vmem:[#allocation11 + $0xd8] sm:$0xff]
    %v284 = vld [vmem:[#allocation11 + $0xe0] sm:$0xff]
    %v285 = vld [vmem:[#allocation11 + $0xe8] sm:$0xff]
    %v286 = vld [vmem:[#allocation11 + $0xf0] sm:$0xff]
    %v287 = vld [vmem:[#allocation11 + $0xf8] sm:$0xff]
    %v288 = vld [vmem:[#allocation11 + $0x100] sm:$0xff]
    %v289 = vld [vmem:[#allocation11 + $0x108] sm:$0xff]
    %v290 = vld [vmem:[#allocation11 + $0x110] sm:$0xff]
    %v291 = vld [vmem:[#allocation11 + $0x118] sm:$0xff]
    %v292 = vld [vmem:[#allocation11 + $0x120] sm:$0xff]
    %v293 = vld [vmem:[#allocation11 + $0x128] sm:$0xff]
    %v294 = vld [vmem:[#allocation11 + $0x130] sm:$0xff]
    %v295 = vld [vmem:[#allocation11 + $0x138] sm:$0xff]
    %v296 = vld [vmem:[#allocation11 + $0x140] sm:$0xff]
    %v297 = vld [vmem:[#allocation11 + $0x148] sm:$0xff]
    %v298 = vld [vmem:[#allocation11 + $0x150] sm:$0xff]
    %v299 = vld [vmem:[#allocation11 + $0x158] sm:$0xff]
    %v300 = vld [vmem:[#allocation11 + $0x160] sm:$0xff]
    %v301 = vld [vmem:[#allocation11 + $0x168] sm:$0xff]
    %v302 = vld [vmem:[#allocation11 + $0x170] sm:$0xff]
    %v303 = vld [vmem:[#allocation11 + $0x178] sm:$0xff]
    %v304 = vld [vmem:[#allocation11 + $0x180] sm:$0xff]
    %v305 = vld [vmem:[#allocation11 + $0x188] sm:$0xff]
    %v306 = vld [vmem:[#allocation11 + $0x190] sm:$0xff]
    %v307 = vld [vmem:[#allocation11 + $0x198] sm:$0xff]
    %v308 = vld [vmem:[#allocation11 + $0x1a0] sm:$0xff]
    %v309 = vld [vmem:[#allocation11 + $0x1a8] sm:$0xff]
    %v310 = vld [vmem:[#allocation11 + $0x1b0] sm:$0xff]
    %v311 = vld [vmem:[#allocation11 + $0x1b8] sm:$0xff]
    %v312 = vld [vmem:[#allocation11 + $0x1c0] sm:$0xff]
    %v313 = vld [vmem:[#allocation11 + $0x1c8] sm:$0xff]
    %v314 = vld [vmem:[#allocation11 + $0x1d0] sm:$0xff]
    %v315 = vld [vmem:[#allocation11 + $0x1d8] sm:$0xff]
    %v316 = vld [vmem:[#allocation11 + $0x1e0] sm:$0xff]
    %v317 = vld [vmem:[#allocation11 + $0x1e8] sm:$0xff]
    %v318 = vld [vmem:[#allocation11 + $0x1f0] sm:$0xff]
    %v319 = vld [vmem:[#allocation11 + $0x1f8] sm:$0xff]
    %v320 = vld [vmem:[%s11] sm:$0xf]
    %v321 = vld [vmem:[%s11 + $0x4] sm:$0xf]
    %v322 = vld [vmem:[%s11 + $0x8] sm:$0xf]
    %v323 = vld [vmem:[%s11 + $0xc] sm:$0xf]
    %v324 = vld [vmem:[%s11 + $0x10] sm:$0xf]
    %v325 = vld [vmem:[%s11 + $0x14] sm:$0xf]
    %v326 = vld [vmem:[%s11 + $0x18] sm:$0xf]
    %v327 = vld [vmem:[%s11 + $0x1c] sm:$0xf]
    %v328 = vld [vmem:[%s11 + $0x20] sm:$0xf]
    %v329 = vld [vmem:[%s11 + $0x24] sm:$0xf]
    %v330 = vld [vmem:[%s11 + $0x28] sm:$0xf]
    %v331 = vld [vmem:[%s11 + $0x2c] sm:$0xf]
    %v332 = vld [vmem:[%s11 + $0x30] sm:$0xf]
    %v333 = vld [vmem:[%s11 + $0x34] sm:$0xf]
    %v334 = vld [vmem:[%s11 + $0x38] sm:$0xf]
    %v335 = vld [vmem:[%s11 + $0x3c] sm:$0xf]
    %v336 = vld [vmem:[%s5] sm:$0xf]
    %v338 = vlaneseq
    %v339 = vshrl.u32 %v338, 7
    %v340 = vsub.s32 0, %v339
    %v341 = vrot.slane %v336, %v340
    %v342 = vlaneseq
    %v343 = vshrl.u32 %v342, 7
    %v344 = vsub.s32 1, %v343
    %v345 = vrot.slane %v336, %v344
    %v346 = vlaneseq
    %v347 = vshrl.u32 %v346, 7
    %v348 = vsub.s32 2, %v347
    %v349 = vrot.slane %v336, %v348
    %v350 = vlaneseq
    %v351 = vshrl.u32 %v350, 7
    %v352 = vsub.s32 3, %v351
    %v353 = vrot.slane %v336, %v352
    %v358 = vld [vmem:[%s10] sm:$0xf]
    %v360 = vlaneseq
    %v361 = vshrl.u32 %v360, 7
    %v362 = vsub.s32 0, %v361
    %v363 = vrot.slane %v358, %v362
    %v364 = vlaneseq
    %v365 = vshrl.u32 %v364, 7
    %v366 = vsub.s32 1, %v365
    %v367 = vrot.slane %v358, %v366
    %v368 = vlaneseq
    %v369 = vshrl.u32 %v368, 7
    %v370 = vsub.s32 2, %v369
    %v371 = vrot.slane %v358, %v370
    %v372 = vlaneseq
    %v373 = vshrl.u32 %v372, 7
    %v374 = vsub.s32 3, %v373
    %v375 = vrot.slane %v358, %v374
    %v380 = vld [vmem:[%s12] sm:$0x1]
    %v382 = vlaneseq
    %v383 = vshrl.u32 %v382, 7
    %v384 = vsub.s32 0, %v383
    %v385 = vrot.slane %v380, %v384
    %v387 = vld [vmem:[%s0] sm:$0xff]
    %v388 = vld [vmem:[%s0 + $0x8] sm:$0xff]
    %v389 = vld [vmem:[%s0 + $0x10] sm:$0xff]
    %v390 = vld [vmem:[%s0 + $0x18] sm:$0xff]
    %v391 = vld [vmem:[%s0 + $0x20] sm:$0xff]
    %v392 = vld [vmem:[%s0 + $0x28] sm:$0xff]
    %v393 = vld [vmem:[%s0 + $0x30] sm:$0xff]
    %v394 = vld [vmem:[%s0 + $0x38] sm:$0xff]
    %v395 = vpack.c.bf16 %v388, %v387
    %v396 = vpack.c.bf16 %v390, %v389
    %v397 = vpack.c.bf16 %v392, %v391
    %v398 = vpack.c.bf16 %v394, %v393
    %v399 = vld [vmem:[#allocation2] sm:$0xff]
    %v400 = vld [vmem:[#allocation2 + $0x8] sm:$0xff]
    %v401 = vld [vmem:[#allocation2 + $0x10] sm:$0xff]
    %v402 = vld [vmem:[#allocation2 + $0x18] sm:$0xff]
    %v403 = vld [vmem:[#allocation2 + $0x20] sm:$0xff]
    %v404 = vld [vmem:[#allocation2 + $0x28] sm:$0xff]
    %v405 = vld [vmem:[#allocation2 + $0x30] sm:$0xff]
    %v406 = vld [vmem:[#allocation2 + $0x38] sm:$0xff]
    %v407 = vld [vmem:[#allocation2 + $0x40] sm:$0xff]
    %v408 = vld [vmem:[#allocation2 + $0x48] sm:$0xff]
    %v409 = vld [vmem:[#allocation2 + $0x50] sm:$0xff]
    %v410 = vld [vmem:[#allocation2 + $0x58] sm:$0xff]
    %v411 = vld [vmem:[#allocation2 + $0x60] sm:$0xff]
    %v412 = vld [vmem:[#allocation2 + $0x68] sm:$0xff]
    %v413 = vld [vmem:[#allocation2 + $0x70] sm:$0xff]
    %v414 = vld [vmem:[#allocation2 + $0x78] sm:$0xff]
    %v415 = vld [vmem:[%s3] sm:$0xf]
    %v417 = vlaneseq
    %v418 = vshrl.u32 %v417, 7
    %v419 = vsub.s32 0, %v418
    %v420 = vrot.slane %v415, %v419
    %v421 = vlaneseq
    %v422 = vshrl.u32 %v421, 7
    %v423 = vsub.s32 1, %v422
    %v424 = vrot.slane %v415, %v423
    %v425 = vlaneseq
    %v426 = vshrl.u32 %v425, 7
    %v427 = vsub.s32 2, %v426
    %v428 = vrot.slane %v415, %v427
    %v429 = vlaneseq
    %v430 = vshrl.u32 %v429, 7
    %v431 = vsub.s32 3, %v430
    %v432 = vrot.slane %v415, %v431
    %v453 = vunpack.c.l.b16 %v399
    %v454 = vunpack.c.h.b16 %v399
    %v455 = vunpack.c.l.b16 %v400
    %v456 = vunpack.c.h.b16 %v400
    %v457 = vunpack.c.l.b16 %v401
    %v458 = vunpack.c.h.b16 %v401
    %v459 = vunpack.c.l.b16 %v402
    %v460 = vunpack.c.h.b16 %v402
    %v461 = vunpack.c.l.b16 %v403
    %v462 = vunpack.c.h.b16 %v403
    %v463 = vunpack.c.l.b16 %v404
    %v464 = vunpack.c.h.b16 %v404
    %v465 = vunpack.c.l.b16 %v405
    %v466 = vunpack.c.h.b16 %v405
    %v467 = vunpack.c.l.b16 %v406
    %v468 = vunpack.c.h.b16 %v406
    %v469 = vunpack.c.l.b16 %v407
    %v470 = vunpack.c.h.b16 %v407
    %v471 = vunpack.c.l.b16 %v408
    %v472 = vunpack.c.h.b16 %v408
    %v473 = vunpack.c.l.b16 %v409
    %v474 = vunpack.c.h.b16 %v409
    %v475 = vunpack.c.l.b16 %v410
    %v476 = vunpack.c.h.b16 %v410
    %v477 = vunpack.c.l.b16 %v411
    %v478 = vunpack.c.h.b16 %v411
    %v479 = vunpack.c.l.b16 %v412
    %v480 = vunpack.c.h.b16 %v412
    %v481 = vunpack.c.l.b16 %v413
    %v482 = vunpack.c.h.b16 %v413
    %v483 = vunpack.c.l.b16 %v414
    %v484 = vunpack.c.h.b16 %v414
    %v485 = vpack.c.b16 %v457, %v453
    %v486 = vpack.c.b16 %v458, %v454
    %v487 = vpack.c.b16 %v459, %v455
    %v488 = vpack.c.b16 %v460, %v456
    %v489 = vpack.c.b16 %v465, %v461
    %v490 = vpack.c.b16 %v466, %v462
    %v491 = vpack.c.b16 %v467, %v463
    %v492 = vpack.c.b16 %v468, %v464
    %v493 = vpack.c.b16 %v473, %v469
    %v494 = vpack.c.b16 %v474, %v470
    %v495 = vpack.c.b16 %v475, %v471
    %v496 = vpack.c.b16 %v476, %v472
    %v497 = vpack.c.b16 %v481, %v477
    %v498 = vpack.c.b16 %v482, %v478
    %v499 = vpack.c.b16 %v483, %v479
    %v500 = vpack.c.b16 %v484, %v480
    %vm517 = vcmask 523264
    %v519 = vsel %vm517, %v395, 0
    %v522 = vsel %vm517, %v396, 0
    %v525 = vsel %vm517, %v397, 0
    %v528 = vsel %vm517, %v398, 0
    %530 = vmatprep.subr.bf16.mxu0 0
    %531 = vmatpush1.bf16.msra.mxu0 0
    %532 = vmatprep.subr.bf16.mxu0 0
    %533 = vmatpush1.bf16.msra.mxu0 0
    %534 = vmatprep.subr.bf16.mxu0 0
    %535 = vmatpush1.bf16.msra.mxu0 0
    %536 = vmatprep.subr.bf16.mxu0 0
    %537 = vmatpush1.bf16.msra.mxu0 0
    %538 = vmatprep.subr.bf16.mxu0 %v498
    %539 = vmatpush1.bf16.msra.mxu0 %v497
    %540 = vmatprep.subr.bf16.mxu0 %v494
    %541 = vmatpush1.bf16.msra.mxu0 %v493
    %542 = vmatprep.subr.bf16.mxu0 %v490
    %543 = vmatpush1.bf16.msra.mxu0 %v489
    %544 = vmatprep.subr.bf16.mxu0 %v486
    %545 = vmatpush1.bf16.msra.mxu0 %v485
    %546 = vmatprep.subr.bf16.mxu0 0
    %547 = vmatpush2.bf16.msra.mxu0 0
    %548 = vmatprep.subr.bf16.mxu0 0
    %549 = vmatpush2.bf16.msra.mxu0 0
    %550 = vmatprep.subr.bf16.mxu0 0
    %551 = vmatpush2.bf16.msra.mxu0 0
    %552 = vmatprep.subr.bf16.mxu0 0
    %553 = vmatpush2.bf16.msra.mxu0 0
    %554 = vmatprep.subr.bf16.mxu0 0
    %555 = vmatpush2.bf16.msra.mxu0 0
    %556 = vmatprep.subr.bf16.mxu0 0
    %557 = vmatpush2.bf16.msra.mxu0 0
    %558 = vmatprep.subr.bf16.mxu0 0
    %559 = vmatpush2.bf16.msra.mxu0 0
    %560 = vmatprep.subr.bf16.mxu0 0
    %561 = vmatpush2.bf16.msra.mxu0 0
    %562 = vmatprep.mubr.bf16.mxu0 0
    %563 = vmatmul.mubr.bf16.gmra.mxu0 %v519
    %v564 = vpop.f32.mrf.mxu0
    %v565 = vadd.f32 %v420, %v564
    %v566 = vpop.f32.mrf.mxu0
    %v567 = vadd.f32 %v424, %v566
    %v568 = vpop.f32.mrf.mxu0
    %v569 = vadd.f32 %v420, %v568
    %v570 = vpop.f32.mrf.mxu0
    %v571 = vadd.f32 %v424, %v570
    %572 = vmatprep.mubr.bf16.mxu0 0
    %573 = vmatmul.mubr.bf16.gmra.mxu0 %v522
    %v574 = vpop.f32.mrf.mxu0
    %v575 = vadd.f32 %v420, %v574
    %v576 = vpop.f32.mrf.mxu0
    %v577 = vadd.f32 %v424, %v576
    %v578 = vpop.f32.mrf.mxu0
    %v579 = vadd.f32 %v420, %v578
    %v580 = vpop.f32.mrf.mxu0
    %v581 = vadd.f32 %v424, %v580
    %582 = vmatprep.mubr.bf16.mxu0 0
    %583 = vmatmul.mubr.bf16.gmra.mxu0 %v525
    %v584 = vpop.f32.mrf.mxu0
    %v585 = vadd.f32 %v420, %v584
    %v586 = vpop.f32.mrf.mxu0
    %v587 = vadd.f32 %v424, %v586
    %v588 = vpop.f32.mrf.mxu0
    %v589 = vadd.f32 %v420, %v588
    %v590 = vpop.f32.mrf.mxu0
    %v591 = vadd.f32 %v424, %v590
    %592 = vmatprep.mubr.bf16.mxu0 0
    %593 = vmatmul.mubr.bf16.gmra.mxu0 %v528
    %v594 = vpop.f32.mrf.mxu0
    %v595 = vadd.f32 %v420, %v594
    %v596 = vpop.f32.mrf.mxu0
    %v597 = vadd.f32 %v424, %v596
    %v598 = vpop.f32.mrf.mxu0
    %v599 = vadd.f32 %v420, %v598
    %v600 = vpop.f32.mrf.mxu0
    %v601 = vadd.f32 %v424, %v600
    %602 = vdwg.mxu0
    %603 = vmatprep.subr.bf16.mxu0 0
    %604 = vmatpush1.bf16.msra.mxu0 0
    %605 = vmatprep.subr.bf16.mxu0 0
    %606 = vmatpush1.bf16.msra.mxu0 0
    %607 = vmatprep.subr.bf16.mxu0 0
    %608 = vmatpush1.bf16.msra.mxu0 0
    %609 = vmatprep.subr.bf16.mxu0 0
    %610 = vmatpush1.bf16.msra.mxu0 0
    %611 = vmatprep.subr.bf16.mxu0 %v500
    %612 = vmatpush1.bf16.msra.mxu0 %v499
    %613 = vmatprep.subr.bf16.mxu0 %v496
    %614 = vmatpush1.bf16.msra.mxu0 %v495
    %615 = vmatprep.subr.bf16.mxu0 %v492
    %616 = vmatpush1.bf16.msra.mxu0 %v491
    %617 = vmatprep.subr.bf16.mxu0 %v488
    %618 = vmatpush1.bf16.msra.mxu0 %v487
    %619 = vmatprep.subr.bf16.mxu0 0
    %620 = vmatpush2.bf16.msra.mxu0 0
    %621 = vmatprep.subr.bf16.mxu0 0
    %622 = vmatpush2.bf16.msra.mxu0 0
    %623 = vmatprep.subr.bf16.mxu0 0
    %624 = vmatpush2.bf16.msra.mxu0 0
    %625 = vmatprep.subr.bf16.mxu0 0
    %626 = vmatpush2.bf16.msra.mxu0 0
    %627 = vmatprep.subr.bf16.mxu0 0
    %628 = vmatpush2.bf16.msra.mxu0 0
    %629 = vmatprep.subr.bf16.mxu0 0
    %630 = vmatpush2.bf16.msra.mxu0 0
    %631 = vmatprep.subr.bf16.mxu0 0
    %632 = vmatpush2.bf16.msra.mxu0 0
    %633 = vmatprep.subr.bf16.mxu0 0
    %634 = vmatpush2.bf16.msra.mxu0 0
    %635 = vmatprep.mubr.bf16.mxu0 0
    %636 = vmatmul.mubr.bf16.gmra.mxu0 %v519
    %v637 = vpop.f32.mrf.mxu0
    %v638 = vadd.f32 %v428, %v637
    %v639 = vpop.f32.mrf.mxu0
    %v640 = vadd.f32 %v432, %v639
    %v641 = vpop.f32.mrf.mxu0
    %v642 = vadd.f32 %v428, %v641
    %v643 = vpop.f32.mrf.mxu0
    %v644 = vadd.f32 %v432, %v643
    %645 = vmatprep.mubr.bf16.mxu0 0
    %646 = vmatmul.mubr.bf16.gmra.mxu0 %v522
    %v647 = vpop.f32.mrf.mxu0
    %v648 = vadd.f32 %v428, %v647
    %v649 = vpop.f32.mrf.mxu0
    %v650 = vadd.f32 %v432, %v649
    %v651 = vpop.f32.mrf.mxu0
    %v652 = vadd.f32 %v428, %v651
    %v653 = vpop.f32.mrf.mxu0
    %v654 = vadd.f32 %v432, %v653
    %655 = vmatprep.mubr.bf16.mxu0 0
    %656 = vmatmul.mubr.bf16.gmra.mxu0 %v525
    %v657 = vpop.f32.mrf.mxu0
    %v658 = vadd.f32 %v428, %v657
    %v659 = vpop.f32.mrf.mxu0
    %v660 = vadd.f32 %v432, %v659
    %v661 = vpop.f32.mrf.mxu0
    %v662 = vadd.f32 %v428, %v661
    %v663 = vpop.f32.mrf.mxu0
    %v664 = vadd.f32 %v432, %v663
    %665 = vmatprep.mubr.bf16.mxu0 0
    %666 = vmatmul.mubr.bf16.gmra.mxu0 %v528
    %v667 = vpop.f32.mrf.mxu0
    %v668 = vadd.f32 %v428, %v667
    %v669 = vpop.f32.mrf.mxu0
    %v670 = vadd.f32 %v432, %v669
    %v671 = vpop.f32.mrf.mxu0
    %v672 = vadd.f32 %v428, %v671
    %v673 = vpop.f32.mrf.mxu0
    %v674 = vadd.f32 %v432, %v673
    %675 = vdwg.mxu0
    %v676 = vld [vmem:[#allocation8] sm:$0xff]
    %v677 = vld [vmem:[#allocation8 + $0x8] sm:$0xff]
    %v678 = vld [vmem:[#allocation8 + $0x10] sm:$0xff]
    %v679 = vld [vmem:[#allocation8 + $0x18] sm:$0xff]
    %v680 = vld [vmem:[#allocation8 + $0x20] sm:$0xff]
    %v681 = vld [vmem:[#allocation8 + $0x28] sm:$0xff]
    %v682 = vld [vmem:[#allocation8 + $0x30] sm:$0xff]
    %v683 = vld [vmem:[#allocation8 + $0x38] sm:$0xff]
    %v684 = vld [vmem:[#allocation8 + $0x40] sm:$0xff]
    %v685 = vld [vmem:[#allocation8 + $0x48] sm:$0xff]
    %v686 = vld [vmem:[#allocation8 + $0x50] sm:$0xff]
    %v687 = vld [vmem:[#allocation8 + $0x58] sm:$0xff]
    %v688 = vld [vmem:[#allocation8 + $0x60] sm:$0xff]
    %v689 = vld [vmem:[#allocation8 + $0x68] sm:$0xff]
    %v690 = vld [vmem:[#allocation8 + $0x70] sm:$0xff]
    %v691 = vld [vmem:[#allocation8 + $0x78] sm:$0xff]
    %v692 = vld [vmem:[%s8] sm:$0xf]
    %v694 = vlaneseq
    %v695 = vshrl.u32 %v694, 7
    %v696 = vsub.s32 0, %v695
    %v697 = vrot.slane %v692, %v696
    %v698 = vlaneseq
    %v699 = vshrl.u32 %v698, 7
    %v700 = vsub.s32 1, %v699
    %v701 = vrot.slane %v692, %v700
    %v702 = vlaneseq
    %v703 = vshrl.u32 %v702, 7
    %v704 = vsub.s32 2, %v703
    %v705 = vrot.slane %v692, %v704
    %v706 = vlaneseq
    %v707 = vshrl.u32 %v706, 7
    %v708 = vsub.s32 3, %v707
    %v709 = vrot.slane %v692, %v708
    %v730 = vunpack.c.l.b16 %v676
    %v731 = vunpack.c.h.b16 %v676
    %v732 = vunpack.c.l.b16 %v677
    %v733 = vunpack.c.h.b16 %v677
    %v734 = vunpack.c.l.b16 %v678
    %v735 = vunpack.c.h.b16 %v678
    %v736 = vunpack.c.l.b16 %v679
    %v737 = vunpack.c.h.b16 %v679
    %v738 = vunpack.c.l.b16 %v680
    %v739 = vunpack.c.h.b16 %v680
    %v740 = vunpack.c.l.b16 %v681
    %v741 = vunpack.c.h.b16 %v681
    %v742 = vunpack.c.l.b16 %v682
    %v743 = vunpack.c.h.b16 %v682
    %v744 = vunpack.c.l.b16 %v683
    %v745 = vunpack.c.h.b16 %v683
    %v746 = vunpack.c.l.b16 %v684
    %v747 = vunpack.c.h.b16 %v684
    %v748 = vunpack.c.l.b16 %v685
    %v749 = vunpack.c.h.b16 %v685
    %v750 = vunpack.c.l.b16 %v686
    %v751 = vunpack.c.h.b16 %v686
    %v752 = vunpack.c.l.b16 %v687
    %v753 = vunpack.c.h.b16 %v687
    %v754 = vunpack.c.l.b16 %v688
    %v755 = vunpack.c.h.b16 %v688
    %v756 = vunpack.c.l.b16 %v689
    %v757 = vunpack.c.h.b16 %v689
    %v758 = vunpack.c.l.b16 %v690
    %v759 = vunpack.c.h.b16 %v690
    %v760 = vunpack.c.l.b16 %v691
    %v761 = vunpack.c.h.b16 %v691
    %v762 = vpack.c.b16 %v734, %v730
    %v763 = vpack.c.b16 %v735, %v731
    %v764 = vpack.c.b16 %v736, %v732
    %v765 = vpack.c.b16 %v737, %v733
    %v766 = vpack.c.b16 %v742, %v738
    %v767 = vpack.c.b16 %v743, %v739
    %v768 = vpack.c.b16 %v744, %v740
    %v769 = vpack.c.b16 %v745, %v741
    %v770 = vpack.c.b16 %v750, %v746
    %v771 = vpack.c.b16 %v751, %v747
    %v772 = vpack.c.b16 %v752, %v748
    %v773 = vpack.c.b16 %v753, %v749
    %v774 = vpack.c.b16 %v758, %v754
    %v775 = vpack.c.b16 %v759, %v755
    %v776 = vpack.c.b16 %v760, %v756
    %v777 = vpack.c.b16 %v761, %v757
    %794 = vmatprep.subr.bf16.mxu0 0
    %795 = vmatpush1.bf16.msra.mxu0 0
    %796 = vmatprep.subr.bf16.mxu0 0
    %797 = vmatpush1.bf16.msra.mxu0 0
    %798 = vmatprep.subr.bf16.mxu0 0
    %799 = vmatpush1.bf16.msra.mxu0 0
    %800 = vmatprep.subr.bf16.mxu0 0
    %801 = vmatpush1.bf16.msra.mxu0 0
    %802 = vmatprep.subr.bf16.mxu0 %v775
    %803 = vmatpush1.bf16.msra.mxu0 %v774
    %804 = vmatprep.subr.bf16.mxu0 %v771
    %805 = vmatpush1.bf16.msra.mxu0 %v770
    %806 = vmatprep.subr.bf16.mxu0 %v767
    %807 = vmatpush1.bf16.msra.mxu0 %v766
    %808 = vmatprep.subr.bf16.mxu0 %v763
    %809 = vmatpush1.bf16.msra.mxu0 %v762
    %810 = vmatprep.subr.bf16.mxu0 0
    %811 = vmatpush2.bf16.msra.mxu0 0
    %812 = vmatprep.subr.bf16.mxu0 0
    %813 = vmatpush2.bf16.msra.mxu0 0
    %814 = vmatprep.subr.bf16.mxu0 0
    %815 = vmatpush2.bf16.msra.mxu0 0
    %816 = vmatprep.subr.bf16.mxu0 0
    %817 = vmatpush2.bf16.msra.mxu0 0
    %818 = vmatprep.subr.bf16.mxu0 0
    %819 = vmatpush2.bf16.msra.mxu0 0
    %820 = vmatprep.subr.bf16.mxu0 0
    %821 = vmatpush2.bf16.msra.mxu0 0
    %822 = vmatprep.subr.bf16.mxu0 0
    %823 = vmatpush2.bf16.msra.mxu0 0
    %824 = vmatprep.subr.bf16.mxu0 0
    %825 = vmatpush2.bf16.msra.mxu0 0
    %826 = vmatprep.mubr.bf16.mxu0 0
    %827 = vmatmul.mubr.bf16.gmra.mxu0 %v519
    %v828 = vpop.f32.mrf.mxu0
    %v829 = vadd.f32 %v697, %v828
    %v830 = vpop.f32.mrf.mxu0
    %v831 = vadd.f32 %v701, %v830
    %v832 = vpop.f32.mrf.mxu0
    %v833 = vadd.f32 %v697, %v832
    %v834 = vpop.f32.mrf.mxu0
    %v835 = vadd.f32 %v701, %v834
    %836 = vmatprep.mubr.bf16.mxu0 0
    %837 = vmatmul.mubr.bf16.gmra.mxu0 %v522
    %v838 = vpop.f32.mrf.mxu0
    %v839 = vadd.f32 %v697, %v838
    %v840 = vpop.f32.mrf.mxu0
    %v841 = vadd.f32 %v701, %v840
    %v842 = vpop.f32.mrf.mxu0
    %v843 = vadd.f32 %v697, %v842
    %v844 = vpop.f32.mrf.mxu0
    %v845 = vadd.f32 %v701, %v844
    %846 = vmatprep.mubr.bf16.mxu0 0
    %847 = vmatmul.mubr.bf16.gmra.mxu0 %v525
    %v848 = vpop.f32.mrf.mxu0
    %v849 = vadd.f32 %v697, %v848
    %v850 = vpop.f32.mrf.mxu0
    %v851 = vadd.f32 %v701, %v850
    %v852 = vpop.f32.mrf.mxu0
    %v853 = vadd.f32 %v697, %v852
    %v854 = vpop.f32.mrf.mxu0
    %v855 = vadd.f32 %v701, %v854
    %856 = vmatprep.mubr.bf16.mxu0 0
    %857 = vmatmul.mubr.bf16.gmra.mxu0 %v528
    %v858 = vpop.f32.mrf.mxu0
    %v859 = vadd.f32 %v697, %v858
    %v860 = vpop.f32.mrf.mxu0
    %v861 = vadd.f32 %v701, %v860
    %v862 = vpop.f32.mrf.mxu0
    %v863 = vadd.f32 %v697, %v862
    %v864 = vpop.f32.mrf.mxu0
    %v865 = vadd.f32 %v701, %v864
    %866 = vdwg.mxu0
    %867 = vmatprep.subr.bf16.mxu0 0
    %868 = vmatpush1.bf16.msra.mxu0 0
    %869 = vmatprep.subr.bf16.mxu0 0
    %870 = vmatpush1.bf16.msra.mxu0 0
    %871 = vmatprep.subr.bf16.mxu0 0
    %872 = vmatpush1.bf16.msra.mxu0 0
    %873 = vmatprep.subr.bf16.mxu0 0
    %874 = vmatpush1.bf16.msra.mxu0 0
    %875 = vmatprep.subr.bf16.mxu0 %v777
    %876 = vmatpush1.bf16.msra.mxu0 %v776
    %877 = vmatprep.subr.bf16.mxu0 %v773
    %878 = vmatpush1.bf16.msra.mxu0 %v772
    %879 = vmatprep.subr.bf16.mxu0 %v769
    %880 = vmatpush1.bf16.msra.mxu0 %v768
    %881 = vmatprep.subr.bf16.mxu0 %v765
    %882 = vmatpush1.bf16.msra.mxu0 %v764
    %883 = vmatprep.subr.bf16.mxu0 0
    %884 = vmatpush2.bf16.msra.mxu0 0
    %885 = vmatprep.subr.bf16.mxu0 0
    %886 = vmatpush2.bf16.msra.mxu0 0
    %887 = vmatprep.subr.bf16.mxu0 0
    %888 = vmatpush2.bf16.msra.mxu0 0
    %889 = vmatprep.subr.bf16.mxu0 0
    %890 = vmatpush2.bf16.msra.mxu0 0
    %891 = vmatprep.subr.bf16.mxu0 0
    %892 = vmatpush2.bf16.msra.mxu0 0
    %893 = vmatprep.subr.bf16.mxu0 0
    %894 = vmatpush2.bf16.msra.mxu0 0
    %895 = vmatprep.subr.bf16.mxu0 0
    %896 = vmatpush2.bf16.msra.mxu0 0
    %897 = vmatprep.subr.bf16.mxu0 0
    %898 = vmatpush2.bf16.msra.mxu0 0
    %899 = vmatprep.mubr.bf16.mxu0 0
    %900 = vmatmul.mubr.bf16.gmra.mxu0 %v519
    %v901 = vpop.f32.mrf.mxu0
    %v902 = vadd.f32 %v705, %v901
    %v903 = vpop.f32.mrf.mxu0
    %v904 = vadd.f32 %v709, %v903
    %v905 = vpop.f32.mrf.mxu0
    %v906 = vadd.f32 %v705, %v905
    %v907 = vpop.f32.mrf.mxu0
    %v908 = vadd.f32 %v709, %v907
    %909 = vmatprep.mubr.bf16.mxu0 0
    %910 = vmatmul.mubr.bf16.gmra.mxu0 %v522
    %v911 = vpop.f32.mrf.mxu0
    %v912 = vadd.f32 %v705, %v911
    %v913 = vpop.f32.mrf.mxu0
    %v914 = vadd.f32 %v709, %v913
    %v915 = vpop.f32.mrf.mxu0
    %v916 = vadd.f32 %v705, %v915
    %v917 = vpop.f32.mrf.mxu0
    %v918 = vadd.f32 %v709, %v917
    %919 = vmatprep.mubr.bf16.mxu0 0
    %920 = vmatmul.mubr.bf16.gmra.mxu0 %v525
    %v921 = vpop.f32.mrf.mxu0
    %v922 = vadd.f32 %v705, %v921
    %v923 = vpop.f32.mrf.mxu0
    %v924 = vadd.f32 %v709, %v923
    %v925 = vpop.f32.mrf.mxu0
    %v926 = vadd.f32 %v705, %v925
    %v927 = vpop.f32.mrf.mxu0
    %v928 = vadd.f32 %v709, %v927
    %929 = vmatprep.mubr.bf16.mxu0 0
    %930 = vmatmul.mubr.bf16.gmra.mxu0 %v528
    %v931 = vpop.f32.mrf.mxu0
    %v932 = vadd.f32 %v705, %v931
    %v933 = vpop.f32.mrf.mxu0
    %v934 = vadd.f32 %v709, %v933
    %v935 = vpop.f32.mrf.mxu0
    %v936 = vadd.f32 %v705, %v935
    %v937 = vpop.f32.mrf.mxu0
    %v938 = vadd.f32 %v709, %v937
    %939 = vdwg.mxu0
    %v972 = vunpack.c.l.b16 %v128
    %v973 = vunpack.c.h.b16 %v128
    %v974 = vunpack.c.l.b16 %v129
    %v975 = vunpack.c.h.b16 %v129
    %v976 = vunpack.c.l.b16 %v130
    %v977 = vunpack.c.h.b16 %v130
    %v978 = vunpack.c.l.b16 %v131
    %v979 = vunpack.c.h.b16 %v131
    %v980 = vunpack.c.l.b16 %v132
    %v981 = vunpack.c.h.b16 %v132
    %v982 = vunpack.c.l.b16 %v133
    %v983 = vunpack.c.h.b16 %v133
    %v984 = vunpack.c.l.b16 %v134
    %v985 = vunpack.c.h.b16 %v134
    %v986 = vunpack.c.l.b16 %v135
    %v987 = vunpack.c.h.b16 %v135
    %v988 = vunpack.c.l.b16 %v136
    %v989 = vunpack.c.h.b16 %v136
    %v990 = vunpack.c.l.b16 %v137
    %v991 = vunpack.c.h.b16 %v137
    %v992 = vunpack.c.l.b16 %v138
    %v993 = vunpack.c.h.b16 %v138
    %v994 = vunpack.c.l.b16 %v139
    %v995 = vunpack.c.h.b16 %v139
    %v996 = vunpack.c.l.b16 %v140
    %v997 = vunpack.c.h.b16 %v140
    %v998 = vunpack.c.l.b16 %v141
    %v999 = vunpack.c.h.b16 %v141
    %v1000 = vunpack.c.l.b16 %v142
    %v1001 = vunpack.c.h.b16 %v142
    %v1002 = vunpack.c.l.b16 %v143
    %v1003 = vunpack.c.h.b16 %v143
    %v1004 = vunpack.c.l.b16 %v144
    %v1005 = vunpack.c.h.b16 %v144
    %v1006 = vunpack.c.l.b16 %v145
    %v1007 = vunpack.c.h.b16 %v145
    %v1008 = vunpack.c.l.b16 %v146
    %v1009 = vunpack.c.h.b16 %v146
    %v1010 = vunpack.c.l.b16 %v147
    %v1011 = vunpack.c.h.b16 %v147
    %v1012 = vunpack.c.l.b16 %v148
    %v1013 = vunpack.c.h.b16 %v148
    %v1014 = vunpack.c.l.b16 %v149
    %v1015 = vunpack.c.h.b16 %v149
    %v1016 = vunpack.c.l.b16 %v150
    %v1017 = vunpack.c.h.b16 %v150
    %v1018 = vunpack.c.l.b16 %v151
    %v1019 = vunpack.c.h.b16 %v151
    %v1020 = vunpack.c.l.b16 %v152
    %v1021 = vunpack.c.h.b16 %v152
    %v1022 = vunpack.c.l.b16 %v153
    %v1023 = vunpack.c.h.b16 %v153
    %v1024 = vunpack.c.l.b16 %v154
    %v1025 = vunpack.c.h.b16 %v154
    %v1026 = vunpack.c.l.b16 %v155
    %v1027 = vunpack.c.h.b16 %v155
    %v1028 = vunpack.c.l.b16 %v156
    %v1029 = vunpack.c.h.b16 %v156
    %v1030 = vunpack.c.l.b16 %v157
    %v1031 = vunpack.c.h.b16 %v157
    %v1032 = vunpack.c.l.b16 %v158
    %v1033 = vunpack.c.h.b16 %v158
    %v1034 = vunpack.c.l.b16 %v159
    %v1035 = vunpack.c.h.b16 %v159
    %v1036 = vpack.c.b16 %v976, %v972
    %v1037 = vpack.c.b16 %v977, %v973
    %v1038 = vpack.c.b16 %v978, %v974
    %v1039 = vpack.c.b16 %v979, %v975
    %v1040 = vpack.c.b16 %v984, %v980
    %v1041 = vpack.c.b16 %v985, %v981
    %v1042 = vpack.c.b16 %v986, %v982
    %v1043 = vpack.c.b16 %v987, %v983
    %v1044 = vpack.c.b16 %v992, %v988
    %v1045 = vpack.c.b16 %v993, %v989
    %v1046 = vpack.c.b16 %v994, %v990
    %v1047 = vpack.c.b16 %v995, %v991
    %v1048 = vpack.c.b16 %v1000, %v996
    %v1049 = vpack.c.b16 %v1001, %v997
    %v1050 = vpack.c.b16 %v1002, %v998
    %v1051 = vpack.c.b16 %v1003, %v999
    %v1052 = vpack.c.b16 %v1008, %v1004
    %v1053 = vpack.c.b16 %v1009, %v1005
    %v1054 = vpack.c.b16 %v1010, %v1006
    %v1055 = vpack.c.b16 %v1011, %v1007
    %v1056 = vpack.c.b16 %v1016, %v1012
    %v1057 = vpack.c.b16 %v1017, %v1013
    %v1058 = vpack.c.b16 %v1018, %v1014
    %v1059 = vpack.c.b16 %v1019, %v1015
    %v1060 = vpack.c.b16 %v1024, %v1020
    %v1061 = vpack.c.b16 %v1025, %v1021
    %v1062 = vpack.c.b16 %v1026, %v1022
    %v1063 = vpack.c.b16 %v1027, %v1023
    %v1064 = vpack.c.b16 %v1032, %v1028
    %v1065 = vpack.c.b16 %v1033, %v1029
    %v1066 = vpack.c.b16 %v1034, %v1030
    %v1067 = vpack.c.b16 %v1035, %v1031
    %1100 = vmatprep.subr.bf16.mxu0 %v1065
    %1101 = vmatpush1.bf16.msra.mxu0 %v1064
    %1102 = vmatprep.subr.bf16.mxu0 %v1061
    %1103 = vmatpush1.bf16.msra.mxu0 %v1060
    %1104 = vmatprep.subr.bf16.mxu0 %v1057
    %1105 = vmatpush1.bf16.msra.mxu0 %v1056
    %1106 = vmatprep.subr.bf16.mxu0 %v1053
    %1107 = vmatpush1.bf16.msra.mxu0 %v1052
    %1108 = vmatprep.subr.bf16.mxu0 %v1049
    %1109 = vmatpush1.bf16.msra.mxu0 %v1048
    %1110 = vmatprep.subr.bf16.mxu0 %v1045
    %1111 = vmatpush1.bf16.msra.mxu0 %v1044
    %1112 = vmatprep.subr.bf16.mxu0 %v1041
    %1113 = vmatpush1.bf16.msra.mxu0 %v1040
    %1114 = vmatprep.subr.bf16.mxu0 %v1037
    %1115 = vmatpush1.bf16.msra.mxu0 %v1036
    %1116 = vmatprep.subr.bf16.mxu0 0
    %1117 = vmatpush2.bf16.msra.mxu0 0
    %1118 = vmatprep.subr.bf16.mxu0 0
    %1119 = vmatpush2.bf16.msra.mxu0 0
    %1120 = vmatprep.subr.bf16.mxu0 0
    %1121 = vmatpush2.bf16.msra.mxu0 0
    %1122 = vmatprep.subr.bf16.mxu0 0
    %1123 = vmatpush2.bf16.msra.mxu0 0
    %1124 = vmatprep.subr.bf16.mxu0 0
    %1125 = vmatpush2.bf16.msra.mxu0 0
    %1126 = vmatprep.subr.bf16.mxu0 0
    %1127 = vmatpush2.bf16.msra.mxu0 0
    %1128 = vmatprep.subr.bf16.mxu0 0
    %1129 = vmatpush2.bf16.msra.mxu0 0
    %1130 = vmatprep.subr.bf16.mxu0 0
    %1131 = vmatpush2.bf16.msra.mxu0 0
    %1132 = vmatprep.mubr.bf16.mxu0 0
    %1133 = vmatmul.mubr.bf16.gmra.mxu0 0
    %v1134 = vpop.f32.mrf.mxu0
    %v1135 = vadd.f32 0.0, %v1134
    %v1136 = vpop.f32.mrf.mxu0
    %v1137 = vadd.f32 0.0, %v1136
    %v1138 = vpop.f32.mrf.mxu0
    %v1139 = vpop.f32.mrf.mxu0
    %1140 = vdwg.mxu0
    %1141 = vmatprep.subr.bf16.mxu0 %v1067
    %1142 = vmatpush1.bf16.msra.mxu0 %v1066
    %1143 = vmatprep.subr.bf16.mxu0 %v1063
    %1144 = vmatpush1.bf16.msra.mxu0 %v1062
    %1145 = vmatprep.subr.bf16.mxu0 %v1059
    %1146 = vmatpush1.bf16.msra.mxu0 %v1058
    %1147 = vmatprep.subr.bf16.mxu0 %v1055
    %1148 = vmatpush1.bf16.msra.mxu0 %v1054
    %1149 = vmatprep.subr.bf16.mxu0 %v1051
    %1150 = vmatpush1.bf16.msra.mxu0 %v1050
    %1151 = vmatprep.subr.bf16.mxu0 %v1047
    %1152 = vmatpush1.bf16.msra.mxu0 %v1046
    %1153 = vmatprep.subr.bf16.mxu0 %v1043
    %1154 = vmatpush1.bf16.msra.mxu0 %v1042
    %1155 = vmatprep.subr.bf16.mxu0 %v1039
    %1156 = vmatpush1.bf16.msra.mxu0 %v1038
    %1157 = vmatprep.subr.bf16.mxu0 0
    %1158 = vmatpush2.bf16.msra.mxu0 0
    %1159 = vmatprep.subr.bf16.mxu0 0
    %1160 = vmatpush2.bf16.msra.mxu0 0
    %1161 = vmatprep.subr.bf16.mxu0 0
    %1162 = vmatpush2.bf16.msra.mxu0 0
    %1163 = vmatprep.subr.bf16.mxu0 0
    %1164 = vmatpush2.bf16.msra.mxu0 0
    %1165 = vmatprep.subr.bf16.mxu0 0
    %1166 = vmatpush2.bf16.msra.mxu0 0
    %1167 = vmatprep.subr.bf16.mxu0 0
    %1168 = vmatpush2.bf16.msra.mxu0 0
    %1169 = vmatprep.subr.bf16.mxu0 0
    %1170 = vmatpush2.bf16.msra.mxu0 0
    %1171 = vmatprep.subr.bf16.mxu0 0
    %1172 = vmatpush2.bf16.msra.mxu0 0
    %1173 = vmatprep.mubr.bf16.mxu0 0
    %1174 = vmatmul.mubr.bf16.gmra.mxu0 0
    %v1175 = vpop.f32.mrf.mxu0
    %v1176 = vadd.f32 0.0, %v1175
    %v1177 = vpop.f32.mrf.mxu0
    %v1178 = vadd.f32 0.0, %v1177
    %v1179 = vpop.f32.mrf.mxu0
    %v1180 = vpop.f32.mrf.mxu0
    %1181 = vdwg.mxu0
    %v1182 = vadd.f32 %v565, %v1135
    %v1183 = vadd.f32 %v567, %v1137
    %v1184 = vadd.f32 %v638, %v1176
    %v1185 = vadd.f32 %v640, %v1178
    %v1186 = vxor.u32 %v1182, 2147483648
    %v1187 = vmul.f32 %v1186, 1.442695
    %v1188 = vpow.pop %v1187
    %v1189 = vadd.f32 %v1188, 1.0
    %v1190 = vrcp.pop %v1189
    %v1191 = vmul.f32 1.0, %v1190
    %v1192 = vxor.u32 %v1183, 2147483648
    %v1193 = vmul.f32 %v1192, 1.442695
    %v1194 = vpow.pop %v1193
    %v1195 = vadd.f32 %v1194, 1.0
    %v1196 = vrcp.pop %v1195
    %v1197 = vmul.f32 1.0, %v1196
    %v1198 = vtanh.pop %v1184
    %v1199 = vxor.u32 %v1185, 2147483648
    %v1200 = vmul.f32 %v1199, 1.442695
    %v1201 = vpow.pop %v1200
    %v1202 = vadd.f32 %v1201, 1.0
    %v1203 = vrcp.pop %v1202
    %v1204 = vmul.f32 1.0, %v1203
    %v1205 = vmul.f32 %v1197, 0.0
    %v1206 = vmul.f32 %v1191, %v1198
    %v1207 = vadd.f32 %v1205, %v1206
    %v1208 = vtanh.pop %v1207
    %v1209 = vmul.f32 %v1204, %v1208
    %v1210 = vpack.c.bf16 %v1209, %v1209
    %v1211 = vpack.c.bf16 0.0, 0.0
    %v1276 = vunpack.c.l.b16 %v160
    %v1277 = vunpack.c.h.b16 %v160
    %v1278 = vunpack.c.l.b16 %v161
    %v1279 = vunpack.c.h.b16 %v161
    %v1280 = vunpack.c.l.b16 %v162
    %v1281 = vunpack.c.h.b16 %v162
    %v1282 = vunpack.c.l.b16 %v163
    %v1283 = vunpack.c.h.b16 %v163
    %v1284 = vunpack.c.l.b16 %v164
    %v1285 = vunpack.c.h.b16 %v164
    %v1286 = vunpack.c.l.b16 %v165
    %v1287 = vunpack.c.h.b16 %v165
    %v1288 = vunpack.c.l.b16 %v166
    %v1289 = vunpack.c.h.b16 %v166
    %v1290 = vunpack.c.l.b16 %v167
    %v1291 = vunpack.c.h.b16 %v167
    %v1292 = vunpack.c.l.b16 %v168
    %v1293 = vunpack.c.h.b16 %v168
    %v1294 = vunpack.c.l.b16 %v169
    %v1295 = vunpack.c.h.b16 %v169
    %v1296 = vunpack.c.l.b16 %v170
    %v1297 = vunpack.c.h.b16 %v170
    %v1298 = vunpack.c.l.b16 %v171
    %v1299 = vunpack.c.h.b16 %v171
    %v1300 = vunpack.c.l.b16 %v172
    %v1301 = vunpack.c.h.b16 %v172
    %v1302 = vunpack.c.l.b16 %v173
    %v1303 = vunpack.c.h.b16 %v173
    %v1304 = vunpack.c.l.b16 %v174
    %v1305 = vunpack.c.h.b16 %v174
    %v1306 = vunpack.c.l.b16 %v175
    %v1307 = vunpack.c.h.b16 %v175
    %v1308 = vunpack.c.l.b16 %v176
    %v1309 = vunpack.c.h.b16 %v176
    %v1310 = vunpack.c.l.b16 %v177
    %v1311 = vunpack.c.h.b16 %v177
    %v1312 = vunpack.c.l.b16 %v178
    %v1313 = vunpack.c.h.b16 %v178
    %v1314 = vunpack.c.l.b16 %v179
    %v1315 = vunpack.c.h.b16 %v179
    %v1316 = vunpack.c.l.b16 %v180
    %v1317 = vunpack.c.h.b16 %v180
    %v1318 = vunpack.c.l.b16 %v181
    %v1319 = vunpack.c.h.b16 %v181
    %v1320 = vunpack.c.l.b16 %v182
    %v1321 = vunpack.c.h.b16 %v182
    %v1322 = vunpack.c.l.b16 %v183
    %v1323 = vunpack.c.h.b16 %v183
    %v1324 = vunpack.c.l.b16 %v184
    %v1325 = vunpack.c.h.b16 %v184
    %v1326 = vunpack.c.l.b16 %v185
    %v1327 = vunpack.c.h.b16 %v185
    %v1328 = vunpack.c.l.b16 %v186
    %v1329 = vunpack.c.h.b16 %v186
    %v1330 = vunpack.c.l.b16 %v187
    %v1331 = vunpack.c.h.b16 %v187
    %v1332 = vunpack.c.l.b16 %v188
    %v1333 = vunpack.c.h.b16 %v188
    %v1334 = vunpack.c.l.b16 %v189
    %v1335 = vunpack.c.h.b16 %v189
    %v1336 = vunpack.c.l.b16 %v190
    %v1337 = vunpack.c.h.b16 %v190
    %v1338 = vunpack.c.l.b16 %v191
    %v1339 = vunpack.c.h.b16 %v191
    %v1340 = vunpack.c.l.b16 %v192
    %v1341 = vunpack.c.h.b16 %v192
    %v1342 = vunpack.c.l.b16 %v193
    %v1343 = vunpack.c.h.b16 %v193
    %v1344 = vunpack.c.l.b16 %v194
    %v1345 = vunpack.c.h.b16 %v194
    %v1346 = vunpack.c.l.b16 %v195
    %v1347 = vunpack.c.h.b16 %v195
    %v1348 = vunpack.c.l.b16 %v196
    %v1349 = vunpack.c.h.b16 %v196
    %v1350 = vunpack.c.l.b16 %v197
    %v1351 = vunpack.c.h.b16 %v197
    %v1352 = vunpack.c.l.b16 %v198
    %v1353 = vunpack.c.h.b16 %v198
    %v1354 = vunpack.c.l.b16 %v199
    %v1355 = vunpack.c.h.b16 %v199
    %v1356 = vunpack.c.l.b16 %v200
    %v1357 = vunpack.c.h.b16 %v200
    %v1358 = vunpack.c.l.b16 %v201
    %v1359 = vunpack.c.h.b16 %v201
    %v1360 = vunpack.c.l.b16 %v202
    %v1361 = vunpack.c.h.b16 %v202
    %v1362 = vunpack.c.l.b16 %v203
    %v1363 = vunpack.c.h.b16 %v203
    %v1364 = vunpack.c.l.b16 %v204
    %v1365 = vunpack.c.h.b16 %v204
    %v1366 = vunpack.c.l.b16 %v205
    %v1367 = vunpack.c.h.b16 %v205
    %v1368 = vunpack.c.l.b16 %v206
    %v1369 = vunpack.c.h.b16 %v206
    %v1370 = vunpack.c.l.b16 %v207
    %v1371 = vunpack.c.h.b16 %v207
    %v1372 = vunpack.c.l.b16 %v208
    %v1373 = vunpack.c.h.b16 %v208
    %v1374 = vunpack.c.l.b16 %v209
    %v1375 = vunpack.c.h.b16 %v209
    %v1376 = vunpack.c.l.b16 %v210
    %v1377 = vunpack.c.h.b16 %v210
    %v1378 = vunpack.c.l.b16 %v211
    %v1379 = vunpack.c.h.b16 %v211
    %v1380 = vunpack.c.l.b16 %v212
    %v1381 = vunpack.c.h.b16 %v212
    %v1382 = vunpack.c.l.b16 %v213
    %v1383 = vunpack.c.h.b16 %v213
    %v1384 = vunpack.c.l.b16 %v214
    %v1385 = vunpack.c.h.b16 %v214
    %v1386 = vunpack.c.l.b16 %v215
    %v1387 = vunpack.c.h.b16 %v215
    %v1388 = vunpack.c.l.b16 %v216
    %v1389 = vunpack.c.h.b16 %v216
    %v1390 = vunpack.c.l.b16 %v217
    %v1391 = vunpack.c.h.b16 %v217
    %v1392 = vunpack.c.l.b16 %v218
    %v1393 = vunpack.c.h.b16 %v218
    %v1394 = vunpack.c.l.b16 %v219
    %v1395 = vunpack.c.h.b16 %v219
    %v1396 = vunpack.c.l.b16 %v220
    %v1397 = vunpack.c.h.b16 %v220
    %v1398 = vunpack.c.l.b16 %v221
    %v1399 = vunpack.c.h.b16 %v221
    %v1400 = vunpack.c.l.b16 %v222
    %v1401 = vunpack.c.h.b16 %v222
    %v1402 = vunpack.c.l.b16 %v223
    %v1403 = vunpack.c.h.b16 %v223
    %v1404 = vpack.c.b16 %v1280, %v1276
    %v1405 = vpack.c.b16 %v1281, %v1277
    %v1406 = vpack.c.b16 %v1282, %v1278
    %v1407 = vpack.c.b16 %v1283, %v1279
    %v1408 = vpack.c.b16 %v1288, %v1284
    %v1409 = vpack.c.b16 %v1289, %v1285
    %v1410 = vpack.c.b16 %v1290, %v1286
    %v1411 = vpack.c.b16 %v1291, %v1287
    %v1412 = vpack.c.b16 %v1296, %v1292
    %v1413 = vpack.c.b16 %v1297, %v1293
    %v1414 = vpack.c.b16 %v1298, %v1294
    %v1415 = vpack.c.b16 %v1299, %v1295
    %v1416 = vpack.c.b16 %v1304, %v1300
    %v1417 = vpack.c.b16 %v1305, %v1301
    %v1418 = vpack.c.b16 %v1306, %v1302
    %v1419 = vpack.c.b16 %v1307, %v1303
    %v1420 = vpack.c.b16 %v1312, %v1308
    %v1421 = vpack.c.b16 %v1313, %v1309
    %v1422 = vpack.c.b16 %v1314, %v1310
    %v1423 = vpack.c.b16 %v1315, %v1311
    %v1424 = vpack.c.b16 %v1320, %v1316
    %v1425 = vpack.c.b16 %v1321, %v1317
    %v1426 = vpack.c.b16 %v1322, %v1318
    %v1427 = vpack.c.b16 %v1323, %v1319
    %v1428 = vpack.c.b16 %v1328, %v1324
    %v1429 = vpack.c.b16 %v1329, %v1325
    %v1430 = vpack.c.b16 %v1330, %v1326
    %v1431 = vpack.c.b16 %v1331, %v1327
    %v1432 = vpack.c.b16 %v1336, %v1332
    %v1433 = vpack.c.b16 %v1337, %v1333
    %v1434 = vpack.c.b16 %v1338, %v1334
    %v1435 = vpack.c.b16 %v1339, %v1335
    %v1436 = vpack.c.b16 %v1344, %v1340
    %v1437 = vpack.c.b16 %v1345, %v1341
    %v1438 = vpack.c.b16 %v1346, %v1342
    %v1439 = vpack.c.b16 %v1347, %v1343
    %v1440 = vpack.c.b16 %v1352, %v1348
    %v1441 = vpack.c.b16 %v1353, %v1349
    %v1442 = vpack.c.b16 %v1354, %v1350
    %v1443 = vpack.c.b16 %v1355, %v1351
    %v1444 = vpack.c.b16 %v1360, %v1356
    %v1445 = vpack.c.b16 %v1361, %v1357
    %v1446 = vpack.c.b16 %v1362, %v1358
    %v1447 = vpack.c.b16 %v1363, %v1359
    %v1448 = vpack.c.b16 %v1368, %v1364
    %v1449 = vpack.c.b16 %v1369, %v1365
    %v1450 = vpack.c.b16 %v1370, %v1366
    %v1451 = vpack.c.b16 %v1371, %v1367
    %v1452 = vpack.c.b16 %v1376, %v1372
    %v1453 = vpack.c.b16 %v1377, %v1373
    %v1454 = vpack.c.b16 %v1378, %v1374
    %v1455 = vpack.c.b16 %v1379, %v1375
    %v1456 = vpack.c.b16 %v1384, %v1380
    %v1457 = vpack.c.b16 %v1385, %v1381
    %v1458 = vpack.c.b16 %v1386, %v1382
    %v1459 = vpack.c.b16 %v1387, %v1383
    %v1460 = vpack.c.b16 %v1392, %v1388
    %v1461 = vpack.c.b16 %v1393, %v1389
    %v1462 = vpack.c.b16 %v1394, %v1390
    %v1463 = vpack.c.b16 %v1395, %v1391
    %v1464 = vpack.c.b16 %v1400, %v1396
    %v1465 = vpack.c.b16 %v1401, %v1397
    %v1466 = vpack.c.b16 %v1402, %v1398
    %v1467 = vpack.c.b16 %v1403, %v1399
    %1532 = vmatprep.subr.bf16.mxu0 %v1433
    %1533 = vmatpush1.bf16.msra.mxu0 %v1432
    %1534 = vmatprep.subr.bf16.mxu0 %v1429
    %1535 = vmatpush1.bf16.msra.mxu0 %v1428
    %1536 = vmatprep.subr.bf16.mxu0 %v1425
    %1537 = vmatpush1.bf16.msra.mxu0 %v1424
    %1538 = vmatprep.subr.bf16.mxu0 %v1421
    %1539 = vmatpush1.bf16.msra.mxu0 %v1420
    %1540 = vmatprep.subr.bf16.mxu0 %v1417
    %1541 = vmatpush1.bf16.msra.mxu0 %v1416
    %1542 = vmatprep.subr.bf16.mxu0 %v1413
    %1543 = vmatpush1.bf16.msra.mxu0 %v1412
    %1544 = vmatprep.subr.bf16.mxu0 %v1409
    %1545 = vmatpush1.bf16.msra.mxu0 %v1408
    %1546 = vmatprep.subr.bf16.mxu0 %v1405
    %1547 = vmatpush1.bf16.msra.mxu0 %v1404
    %1548 = vmatprep.subr.bf16.mxu0 %v1465
    %1549 = vmatpush2.bf16.msra.mxu0 %v1464
    %1550 = vmatprep.subr.bf16.mxu0 %v1461
    %1551 = vmatpush2.bf16.msra.mxu0 %v1460
    %1552 = vmatprep.subr.bf16.mxu0 %v1457
    %1553 = vmatpush2.bf16.msra.mxu0 %v1456
    %1554 = vmatprep.subr.bf16.mxu0 %v1453
    %1555 = vmatpush2.bf16.msra.mxu0 %v1452
    %1556 = vmatprep.subr.bf16.mxu0 %v1449
    %1557 = vmatpush2.bf16.msra.mxu0 %v1448
    %1558 = vmatprep.subr.bf16.mxu0 %v1445
    %1559 = vmatpush2.bf16.msra.mxu0 %v1444
    %1560 = vmatprep.subr.bf16.mxu0 %v1441
    %1561 = vmatpush2.bf16.msra.mxu0 %v1440
    %1562 = vmatprep.subr.bf16.mxu0 %v1437
    %1563 = vmatpush2.bf16.msra.mxu0 %v1436
    %1564 = vmatprep.mubr.bf16.mxu0 %v1211
    %1565 = vmatmul.mubr.bf16.gmra.mxu0 %v1210
    %v1566 = vpop.f32.mrf.mxu0
    %v1567 = vadd.f32 %v341, %v1566
    %v1568 = vpop.f32.mrf.mxu0
    %v1569 = vadd.f32 %v345, %v1568
    %v1570 = vpop.f32.mrf.mxu0
    %v1571 = vpop.f32.mrf.mxu0
    %1572 = vdwg.mxu0
    %1573 = vmatprep.subr.bf16.mxu0 %v1435
    %1574 = vmatpush1.bf16.msra.mxu0 %v1434
    %1575 = vmatprep.subr.bf16.mxu0 %v1431
    %1576 = vmatpush1.bf16.msra.mxu0 %v1430
    %1577 = vmatprep.subr.bf16.mxu0 %v1427
    %1578 = vmatpush1.bf16.msra.mxu0 %v1426
    %1579 = vmatprep.subr.bf16.mxu0 %v1423
    %1580 = vmatpush1.bf16.msra.mxu0 %v1422
    %1581 = vmatprep.subr.bf16.mxu0 %v1419
    %1582 = vmatpush1.bf16.msra.mxu0 %v1418
    %1583 = vmatprep.subr.bf16.mxu0 %v1415
    %1584 = vmatpush1.bf16.msra.mxu0 %v1414
    %1585 = vmatprep.subr.bf16.mxu0 %v1411
    %1586 = vmatpush1.bf16.msra.mxu0 %v1410
    %1587 = vmatprep.subr.bf16.mxu0 %v1407
    %1588 = vmatpush1.bf16.msra.mxu0 %v1406
    %1589 = vmatprep.subr.bf16.mxu0 %v1467
    %1590 = vmatpush2.bf16.msra.mxu0 %v1466
    %1591 = vmatprep.subr.bf16.mxu0 %v1463
    %1592 = vmatpush2.bf16.msra.mxu0 %v1462
    %1593 = vmatprep.subr.bf16.mxu0 %v1459
    %1594 = vmatpush2.bf16.msra.mxu0 %v1458
    %1595 = vmatprep.subr.bf16.mxu0 %v1455
    %1596 = vmatpush2.bf16.msra.mxu0 %v1454
    %1597 = vmatprep.subr.bf16.mxu0 %v1451
    %1598 = vmatpush2.bf16.msra.mxu0 %v1450
    %1599 = vmatprep.subr.bf16.mxu0 %v1447
    %1600 = vmatpush2.bf16.msra.mxu0 %v1446
    %1601 = vmatprep.subr.bf16.mxu0 %v1443
    %1602 = vmatpush2.bf16.msra.mxu0 %v1442
    %1603 = vmatprep.subr.bf16.mxu0 %v1439
    %1604 = vmatpush2.bf16.msra.mxu0 %v1438
    %1605 = vmatprep.mubr.bf16.mxu0 %v1211
    %1606 = vmatmul.mubr.bf16.gmra.mxu0 %v1210
    %v1607 = vpop.f32.mrf.mxu0
    %v1608 = vadd.f32 %v349, %v1607
    %v1609 = vpop.f32.mrf.mxu0
    %v1610 = vadd.f32 %v353, %v1609
    %v1611 = vpop.f32.mrf.mxu0
    %v1612 = vpop.f32.mrf.mxu0
    %1613 = vdwg.mxu0
    %v1614 = vxor.u32 %v1567, 2147483648
    %v1615 = vmul.f32 %v1614, 1.442695
    %v1616 = vpow.pop %v1615
    %v1617 = vadd.f32 %v1616, 1.0
    %v1618 = vrcp.pop %v1617
    %v1619 = vmul.f32 1.0, %v1618
    %v1620 = vxor.u32 %v1569, 2147483648
    %v1621 = vmul.f32 %v1620, 1.442695
    %v1622 = vpow.pop %v1621
    %v1623 = vadd.f32 %v1622, 1.0
    %v1624 = vrcp.pop %v1623
    %v1625 = vmul.f32 1.0, %v1624
    %v1626 = vtanh.pop %v1608
    %v1627 = vxor.u32 %v1610, 2147483648
    %v1628 = vmul.f32 %v1627, 1.442695
    %v1629 = vpow.pop %v1628
    %v1630 = vadd.f32 %v1629, 1.0
    %v1631 = vrcp.pop %v1630
    %v1632 = vmul.f32 1.0, %v1631
    %v1633 = vmul.f32 %v1625, 0.0
    %v1634 = vmul.f32 %v1619, %v1626
    %v1635 = vadd.f32 %v1633, %v1634
    %v1636 = vtanh.pop %v1635
    %v1637 = vmul.f32 %v1632, %v1636
    %1638 = vmatprep.subr.bf16.mxu0 %v1065
    %1639 = vmatpush1.bf16.msra.mxu0 %v1064
    %1640 = vmatprep.subr.bf16.mxu0 %v1061
    %1641 = vmatpush1.bf16.msra.mxu0 %v1060
    %1642 = vmatprep.subr.bf16.mxu0 %v1057
    %1643 = vmatpush1.bf16.msra.mxu0 %v1056
    %1644 = vmatprep.subr.bf16.mxu0 %v1053
    %1645 = vmatpush1.bf16.msra.mxu0 %v1052
    %1646 = vmatprep.subr.bf16.mxu0 %v1049
    %1647 = vmatpush1.bf16.msra.mxu0 %v1048
    %1648 = vmatprep.subr.bf16.mxu0 %v1045
    %1649 = vmatpush1.bf16.msra.mxu0 %v1044
    %1650 = vmatprep.subr.bf16.mxu0 %v1041
    %1651 = vmatpush1.bf16.msra.mxu0 %v1040
    %1652 = vmatprep.subr.bf16.mxu0 %v1037
    %1653 = vmatpush1.bf16.msra.mxu0 %v1036
    %1654 = vmatprep.subr.bf16.mxu0 0
    %1655 = vmatpush2.bf16.msra.mxu0 0
    %1656 = vmatprep.subr.bf16.mxu0 0
    %1657 = vmatpush2.bf16.msra.mxu0 0
    %1658 = vmatprep.subr.bf16.mxu0 0
    %1659 = vmatpush2.bf16.msra.mxu0 0
    %1660 = vmatprep.subr.bf16.mxu0 0
    %1661 = vmatpush2.bf16.msra.mxu0 0
    %1662 = vmatprep.subr.bf16.mxu0 0
    %1663 = vmatpush2.bf16.msra.mxu0 0
    %1664 = vmatprep.subr.bf16.mxu0 0
    %1665 = vmatpush2.bf16.msra.mxu0 0
    %1666 = vmatprep.subr.bf16.mxu0 0
    %1667 = vmatpush2.bf16.msra.mxu0 0
    %1668 = vmatprep.subr.bf16.mxu0 0
    %1669 = vmatpush2.bf16.msra.mxu0 0
    %1670 = vmatprep.mubr.bf16.mxu0 0
    %1671 = vmatmul.mubr.bf16.gmra.mxu0 %v1210
    %v1672 = vpop.f32.mrf.mxu0
    %v1673 = vadd.f32 0.0, %v1672
    %v1674 = vpop.f32.mrf.mxu0
    %v1675 = vadd.f32 0.0, %v1674
    %v1676 = vpop.f32.mrf.mxu0
    %v1677 = vpop.f32.mrf.mxu0
    %1678 = vdwg.mxu0
    %1679 = vmatprep.subr.bf16.mxu0 %v1067
    %1680 = vmatpush1.bf16.msra.mxu0 %v1066
    %1681 = vmatprep.subr.bf16.mxu0 %v1063
    %1682 = vmatpush1.bf16.msra.mxu0 %v1062
    %1683 = vmatprep.subr.bf16.mxu0 %v1059
    %1684 = vmatpush1.bf16.msra.mxu0 %v1058
    %1685 = vmatprep.subr.bf16.mxu0 %v1055
    %1686 = vmatpush1.bf16.msra.mxu0 %v1054
    %1687 = vmatprep.subr.bf16.mxu0 %v1051
    %1688 = vmatpush1.bf16.msra.mxu0 %v1050
    %1689 = vmatprep.subr.bf16.mxu0 %v1047
    %1690 = vmatpush1.bf16.msra.mxu0 %v1046
    %1691 = vmatprep.subr.bf16.mxu0 %v1043
    %1692 = vmatpush1.bf16.msra.mxu0 %v1042
    %1693 = vmatprep.subr.bf16.mxu0 %v1039
    %1694 = vmatpush1.bf16.msra.mxu0 %v1038
    %1695 = vmatprep.subr.bf16.mxu0 0
    %1696 = vmatpush2.bf16.msra.mxu0 0
    %1697 = vmatprep.subr.bf16.mxu0 0
    %1698 = vmatpush2.bf16.msra.mxu0 0
    %1699 = vmatprep.subr.bf16.mxu0 0
    %1700 = vmatpush2.bf16.msra.mxu0 0
    %1701 = vmatprep.subr.bf16.mxu0 0
    %1702 = vmatpush2.bf16.msra.mxu0 0
    %1703 = vmatprep.subr.bf16.mxu0 0
    %1704 = vmatpush2.bf16.msra.mxu0 0
    %1705 = vmatprep.subr.bf16.mxu0 0
    %1706 = vmatpush2.bf16.msra.mxu0 0
    %1707 = vmatprep.subr.bf16.mxu0 0
    %1708 = vmatpush2.bf16.msra.mxu0 0
    %1709 = vmatprep.subr.bf16.mxu0 0
    %1710 = vmatpush2.bf16.msra.mxu0 0
    %1711 = vmatprep.mubr.bf16.mxu0 0
    %1712 = vmatmul.mubr.bf16.gmra.mxu0 %v1210
    %v1713 = vpop.f32.mrf.mxu0
    %v1714 = vadd.f32 0.0, %v1713
    %v1715 = vpop.f32.mrf.mxu0
    %v1716 = vadd.f32 0.0, %v1715
    %v1717 = vpop.f32.mrf.mxu0
    %v1718 = vpop.f32.mrf.mxu0
    %1719 = vdwg.mxu0
    %v1720 = vadd.f32 %v569, %v1673
    %v1721 = vadd.f32 %v571, %v1675
    %v1722 = vadd.f32 %v642, %v1714
    %v1723 = vadd.f32 %v644, %v1716
    %v1724 = vxor.u32 %v1720, 2147483648
    %v1725 = vmul.f32 %v1724, 1.442695
    %v1726 = vpow.pop %v1725
    %v1727 = vadd.f32 %v1726, 1.0
    %v1728 = vrcp.pop %v1727
    %v1729 = vmul.f32 1.0, %v1728
    %v1730 = vxor.u32 %v1721, 2147483648
    %v1731 = vmul.f32 %v1730, 1.442695
    %v1732 = vpow.pop %v1731
    %v1733 = vadd.f32 %v1732, 1.0
    %v1734 = vrcp.pop %v1733
    %v1735 = vmul.f32 1.0, %v1734
    %v1736 = vtanh.pop %v1722
    %v1737 = vxor.u32 %v1723, 2147483648
    %v1738 = vmul.f32 %v1737, 1.442695
    %v1739 = vpow.pop %v1738
    %v1740 = vadd.f32 %v1739, 1.0
    %v1741 = vrcp.pop %v1740
    %v1742 = vmul.f32 1.0, %v1741
    %v1743 = vmul.f32 %v1735, %v1207
    %v1744 = vmul.f32 %v1729, %v1736
    %v1745 = vadd.f32 %v1743, %v1744
    %v1746 = vtanh.pop %v1745
    %v1747 = vmul.f32 %v1742, %v1746
    %v1748 = vpack.c.bf16 %v1747, %v1747
    %v1749 = vpack.c.bf16 %v1637, %v1637
    %1750 = vmatprep.subr.bf16.mxu0 %v1433
    %1751 = vmatpush1.bf16.msra.mxu0 %v1432
    %1752 = vmatprep.subr.bf16.mxu0 %v1429
    %1753 = vmatpush1.bf16.msra.mxu0 %v1428
    %1754 = vmatprep.subr.bf16.mxu0 %v1425
    %1755 = vmatpush1.bf16.msra.mxu0 %v1424
    %1756 = vmatprep.subr.bf16.mxu0 %v1421
    %1757 = vmatpush1.bf16.msra.mxu0 %v1420
    %1758 = vmatprep.subr.bf16.mxu0 %v1417
    %1759 = vmatpush1.bf16.msra.mxu0 %v1416
    %1760 = vmatprep.subr.bf16.mxu0 %v1413
    %1761 = vmatpush1.bf16.msra.mxu0 %v1412
    %1762 = vmatprep.subr.bf16.mxu0 %v1409
    %1763 = vmatpush1.bf16.msra.mxu0 %v1408
    %1764 = vmatprep.subr.bf16.mxu0 %v1405
    %1765 = vmatpush1.bf16.msra.mxu0 %v1404
    %1766 = vmatprep.subr.bf16.mxu0 %v1465
    %1767 = vmatpush2.bf16.msra.mxu0 %v1464
    %1768 = vmatprep.subr.bf16.mxu0 %v1461
    %1769 = vmatpush2.bf16.msra.mxu0 %v1460
    %1770 = vmatprep.subr.bf16.mxu0 %v1457
    %1771 = vmatpush2.bf16.msra.mxu0 %v1456
    %1772 = vmatprep.subr.bf16.mxu0 %v1453
    %1773 = vmatpush2.bf16.msra.mxu0 %v1452
    %1774 = vmatprep.subr.bf16.mxu0 %v1449
    %1775 = vmatpush2.bf16.msra.mxu0 %v1448
    %1776 = vmatprep.subr.bf16.mxu0 %v1445
    %1777 = vmatpush2.bf16.msra.mxu0 %v1444
    %1778 = vmatprep.subr.bf16.mxu0 %v1441
    %1779 = vmatpush2.bf16.msra.mxu0 %v1440
    %1780 = vmatprep.subr.bf16.mxu0 %v1437
    %1781 = vmatpush2.bf16.msra.mxu0 %v1436
    %1782 = vmatprep.mubr.bf16.mxu0 %v1749
    %1783 = vmatmul.mubr.bf16.gmra.mxu0 %v1748
    %v1784 = vpop.f32.mrf.mxu0
    %v1785 = vadd.f32 %v341, %v1784
    %v1786 = vpop.f32.mrf.mxu0
    %v1787 = vadd.f32 %v345, %v1786
    %v1788 = vpop.f32.mrf.mxu0
    %v1789 = vpop.f32.mrf.mxu0
    %1790 = vdwg.mxu0
    %1791 = vmatprep.subr.bf16.mxu0 %v1435
    %1792 = vmatpush1.bf16.msra.mxu0 %v1434
    %1793 = vmatprep.subr.bf16.mxu0 %v1431
    %1794 = vmatpush1.bf16.msra.mxu0 %v1430
    %1795 = vmatprep.subr.bf16.mxu0 %v1427
    %1796 = vmatpush1.bf16.msra.mxu0 %v1426
    %1797 = vmatprep.subr.bf16.mxu0 %v1423
    %1798 = vmatpush1.bf16.msra.mxu0 %v1422
    %1799 = vmatprep.subr.bf16.mxu0 %v1419
    %1800 = vmatpush1.bf16.msra.mxu0 %v1418
    %1801 = vmatprep.subr.bf16.mxu0 %v1415
    %1802 = vmatpush1.bf16.msra.mxu0 %v1414
    %1803 = vmatprep.subr.bf16.mxu0 %v1411
    %1804 = vmatpush1.bf16.msra.mxu0 %v1410
    %1805 = vmatprep.subr.bf16.mxu0 %v1407
    %1806 = vmatpush1.bf16.msra.mxu0 %v1406
    %1807 = vmatprep.subr.bf16.mxu0 %v1467
    %1808 = vmatpush2.bf16.msra.mxu0 %v1466
    %1809 = vmatprep.subr.bf16.mxu0 %v1463
    %1810 = vmatpush2.bf16.msra.mxu0 %v1462
    %1811 = vmatprep.subr.bf16.mxu0 %v1459
    %1812 = vmatpush2.bf16.msra.mxu0 %v1458
    %1813 = vmatprep.subr.bf16.mxu0 %v1455
    %1814 = vmatpush2.bf16.msra.mxu0 %v1454
    %1815 = vmatprep.subr.bf16.mxu0 %v1451
    %1816 = vmatpush2.bf16.msra.mxu0 %v1450
    %1817 = vmatprep.subr.bf16.mxu0 %v1447
    %1818 = vmatpush2.bf16.msra.mxu0 %v1446
    %1819 = vmatprep.subr.bf16.mxu0 %v1443
    %1820 = vmatpush2.bf16.msra.mxu0 %v1442
    %1821 = vmatprep.subr.bf16.mxu0 %v1439
    %1822 = vmatpush2.bf16.msra.mxu0 %v1438
    %1823 = vmatprep.mubr.bf16.mxu0 %v1749
    %1824 = vmatmul.mubr.bf16.gmra.mxu0 %v1748
    %v1825 = vpop.f32.mrf.mxu0
    %v1826 = vadd.f32 %v349, %v1825
    %v1827 = vpop.f32.mrf.mxu0
    %v1828 = vadd.f32 %v353, %v1827
    %v1829 = vpop.f32.mrf.mxu0
    %v1830 = vpop.f32.mrf.mxu0
    %1831 = vdwg.mxu0
    %v1832 = vxor.u32 %v1785, 2147483648
    %v1833 = vmul.f32 %v1832, 1.442695
    %v1834 = vpow.pop %v1833
    %v1835 = vadd.f32 %v1834, 1.0
    %v1836 = vrcp.pop %v1835
    %v1837 = vmul.f32 1.0, %v1836
    %v1838 = vxor.u32 %v1787, 2147483648
    %v1839 = vmul.f32 %v1838, 1.442695
    %v1840 = vpow.pop %v1839
    %v1841 = vadd.f32 %v1840, 1.0
    %v1842 = vrcp.pop %v1841
    %v1843 = vmul.f32 1.0, %v1842
    %v1844 = vtanh.pop %v1826
    %v1845 = vxor.u32 %v1828, 2147483648
    %v1846 = vmul.f32 %v1845, 1.442695
    %v1847 = vpow.pop %v1846
    %v1848 = vadd.f32 %v1847, 1.0
    %v1849 = vrcp.pop %v1848
    %v1850 = vmul.f32 1.0, %v1849
    %v1851 = vmul.f32 %v1843, %v1635
    %v1852 = vmul.f32 %v1837, %v1844
    %v1853 = vadd.f32 %v1851, %v1852
    %v1854 = vtanh.pop %v1853
    %v1855 = vmul.f32 %v1850, %v1854
    %1856 = vmatprep.subr.bf16.mxu0 %v1065
    %1857 = vmatpush1.bf16.msra.mxu0 %v1064
    %1858 = vmatprep.subr.bf16.mxu0 %v1061
    %1859 = vmatpush1.bf16.msra.mxu0 %v1060
    %1860 = vmatprep.subr.bf16.mxu0 %v1057
    %1861 = vmatpush1.bf16.msra.mxu0 %v1056
    %1862 = vmatprep.subr.bf16.mxu0 %v1053
    %1863 = vmatpush1.bf16.msra.mxu0 %v1052
    %1864 = vmatprep.subr.bf16.mxu0 %v1049
    %1865 = vmatpush1.bf16.msra.mxu0 %v1048
    %1866 = vmatprep.subr.bf16.mxu0 %v1045
    %1867 = vmatpush1.bf16.msra.mxu0 %v1044
    %1868 = vmatprep.subr.bf16.mxu0 %v1041
    %1869 = vmatpush1.bf16.msra.mxu0 %v1040
    %1870 = vmatprep.subr.bf16.mxu0 %v1037
    %1871 = vmatpush1.bf16.msra.mxu0 %v1036
    %1872 = vmatprep.subr.bf16.mxu0 0
    %1873 = vmatpush2.bf16.msra.mxu0 0
    %1874 = vmatprep.subr.bf16.mxu0 0
    %1875 = vmatpush2.bf16.msra.mxu0 0
    %1876 = vmatprep.subr.bf16.mxu0 0
    %1877 = vmatpush2.bf16.msra.mxu0 0
    %1878 = vmatprep.subr.bf16.mxu0 0
    %1879 = vmatpush2.bf16.msra.mxu0 0
    %1880 = vmatprep.subr.bf16.mxu0 0
    %1881 = vmatpush2.bf16.msra.mxu0 0
    %1882 = vmatprep.subr.bf16.mxu0 0
    %1883 = vmatpush2.bf16.msra.mxu0 0
    %1884 = vmatprep.subr.bf16.mxu0 0
    %1885 = vmatpush2.bf16.msra.mxu0 0
    %1886 = vmatprep.subr.bf16.mxu0 0
    %1887 = vmatpush2.bf16.msra.mxu0 0
    %1888 = vmatprep.mubr.bf16.mxu0 0
    %1889 = vmatmul.mubr.bf16.gmra.mxu0 %v1748
    %v1890 = vpop.f32.mrf.mxu0
    %v1891 = vadd.f32 0.0, %v1890
    %v1892 = vpop.f32.mrf.mxu0
    %v1893 = vadd.f32 0.0, %v1892
    %v1894 = vpop.f32.mrf.mxu0
    %v1895 = vpop.f32.mrf.mxu0
    %1896 = vdwg.mxu0
    %1897 = vmatprep.subr.bf16.mxu0 %v1067
    %1898 = vmatpush1.bf16.msra.mxu0 %v1066
    %1899 = vmatprep.subr.bf16.mxu0 %v1063
    %1900 = vmatpush1.bf16.msra.mxu0 %v1062
    %1901 = vmatprep.subr.bf16.mxu0 %v1059
    %1902 = vmatpush1.bf16.msra.mxu0 %v1058
    %1903 = vmatprep.subr.bf16.mxu0 %v1055
    %1904 = vmatpush1.bf16.msra.mxu0 %v1054
    %1905 = vmatprep.subr.bf16.mxu0 %v1051
    %1906 = vmatpush1.bf16.msra.mxu0 %v1050
    %1907 = vmatprep.subr.bf16.mxu0 %v1047
    %1908 = vmatpush1.bf16.msra.mxu0 %v1046
    %1909 = vmatprep.subr.bf16.mxu0 %v1043
    %1910 = vmatpush1.bf16.msra.mxu0 %v1042
    %1911 = vmatprep.subr.bf16.mxu0 %v1039
    %1912 = vmatpush1.bf16.msra.mxu0 %v1038
    %1913 = vmatprep.subr.bf16.mxu0 0
    %1914 = vmatpush2.bf16.msra.mxu0 0
    %1915 = vmatprep.subr.bf16.mxu0 0
    %1916 = vmatpush2.bf16.msra.mxu0 0
    %1917 = vmatprep.subr.bf16.mxu0 0
    %1918 = vmatpush2.bf16.msra.mxu0 0
    %1919 = vmatprep.subr.bf16.mxu0 0
    %1920 = vmatpush2.bf16.msra.mxu0 0
    %1921 = vmatprep.subr.bf16.mxu0 0
    %1922 = vmatpush2.bf16.msra.mxu0 0
    %1923 = vmatprep.subr.bf16.mxu0 0
    %1924 = vmatpush2.bf16.msra.mxu0 0
    %1925 = vmatprep.subr.bf16.mxu0 0
    %1926 = vmatpush2.bf16.msra.mxu0 0
    %1927 = vmatprep.subr.bf16.mxu0 0
    %1928 = vmatpush2.bf16.msra.mxu0 0
    %1929 = vmatprep.mubr.bf16.mxu0 0
    %1930 = vmatmul.mubr.bf16.gmra.mxu0 %v1748
    %v1931 = vpop.f32.mrf.mxu0
    %v1932 = vadd.f32 0.0, %v1931
    %v1933 = vpop.f32.mrf.mxu0
    %v1934 = vadd.f32 0.0, %v1933
    %v1935 = vpop.f32.mrf.mxu0
    %v1936 = vpop.f32.mrf.mxu0
    %1937 = vdwg.mxu0
    %v1938 = vadd.f32 %v575, %v1891
    %v1939 = vadd.f32 %v577, %v1893
    %v1940 = vadd.f32 %v648, %v1932
    %v1941 = vadd.f32 %v650, %v1934
    %v1942 = vxor.u32 %v1938, 2147483648
    %v1943 = vmul.f32 %v1942, 1.442695
    %v1944 = vpow.pop %v1943
    %v1945 = vadd.f32 %v1944, 1.0
    %v1946 = vrcp.pop %v1945
    %v1947 = vmul.f32 1.0, %v1946
    %v1948 = vxor.u32 %v1939, 2147483648
    %v1949 = vmul.f32 %v1948, 1.442695
    %v1950 = vpow.pop %v1949
    %v1951 = vadd.f32 %v1950, 1.0
    %v1952 = vrcp.pop %v1951
    %v1953 = vmul.f32 1.0, %v1952
    %v1954 = vtanh.pop %v1940
    %v1955 = vxor.u32 %v1941, 2147483648
    %v1956 = vmul.f32 %v1955, 1.442695
    %v1957 = vpow.pop %v1956
    %v1958 = vadd.f32 %v1957, 1.0
    %v1959 = vrcp.pop %v1958
    %v1960 = vmul.f32 1.0, %v1959
    %v1961 = vmul.f32 %v1953, %v1745
    %v1962 = vmul.f32 %v1947, %v1954
    %v1963 = vadd.f32 %v1961, %v1962
    %v1964 = vtanh.pop %v1963
    %v1965 = vmul.f32 %v1960, %v1964
    %v1966 = vpack.c.bf16 %v1965, %v1965
    %v1967 = vpack.c.bf16 %v1855, %v1855
    %1968 = vmatprep.subr.bf16.mxu0 %v1433
    %1969 = vmatpush1.bf16.msra.mxu0 %v1432
    %1970 = vmatprep.subr.bf16.mxu0 %v1429
    %1971 = vmatpush1.bf16.msra.mxu0 %v1428
    %1972 = vmatprep.subr.bf16.mxu0 %v1425
    %1973 = vmatpush1.bf16.msra.mxu0 %v1424
    %1974 = vmatprep.subr.bf16.mxu0 %v1421
    %1975 = vmatpush1.bf16.msra.mxu0 %v1420
    %1976 = vmatprep.subr.bf16.mxu0 %v1417
    %1977 = vmatpush1.bf16.msra.mxu0 %v1416
    %1978 = vmatprep.subr.bf16.mxu0 %v1413
    %1979 = vmatpush1.bf16.msra.mxu0 %v1412
    %1980 = vmatprep.subr.bf16.mxu0 %v1409
    %1981 = vmatpush1.bf16.msra.mxu0 %v1408
    %1982 = vmatprep.subr.bf16.mxu0 %v1405
    %1983 = vmatpush1.bf16.msra.mxu0 %v1404
    %1984 = vmatprep.subr.bf16.mxu0 %v1465
    %1985 = vmatpush2.bf16.msra.mxu0 %v1464
    %1986 = vmatprep.subr.bf16.mxu0 %v1461
    %1987 = vmatpush2.bf16.msra.mxu0 %v1460
    %1988 = vmatprep.subr.bf16.mxu0 %v1457
    %1989 = vmatpush2.bf16.msra.mxu0 %v1456
    %1990 = vmatprep.subr.bf16.mxu0 %v1453
    %1991 = vmatpush2.bf16.msra.mxu0 %v1452
    %1992 = vmatprep.subr.bf16.mxu0 %v1449
    %1993 = vmatpush2.bf16.msra.mxu0 %v1448
    %1994 = vmatprep.subr.bf16.mxu0 %v1445
    %1995 = vmatpush2.bf16.msra.mxu0 %v1444
    %1996 = vmatprep.subr.bf16.mxu0 %v1441
    %1997 = vmatpush2.bf16.msra.mxu0 %v1440
    %1998 = vmatprep.subr.bf16.mxu0 %v1437
    %1999 = vmatpush2.bf16.msra.mxu0 %v1436
    %2000 = vmatprep.mubr.bf16.mxu0 %v1967
    %2001 = vmatmul.mubr.bf16.gmra.mxu0 %v1966
    %v2002 = vpop.f32.mrf.mxu0
    %v2003 = vadd.f32 %v341, %v2002
    %v2004 = vpop.f32.mrf.mxu0
    %v2005 = vadd.f32 %v345, %v2004
    %v2006 = vpop.f32.mrf.mxu0
    %v2007 = vpop.f32.mrf.mxu0
    %2008 = vdwg.mxu0
    %2009 = vmatprep.subr.bf16.mxu0 %v1435
    %2010 = vmatpush1.bf16.msra.mxu0 %v1434
    %2011 = vmatprep.subr.bf16.mxu0 %v1431
    %2012 = vmatpush1.bf16.msra.mxu0 %v1430
    %2013 = vmatprep.subr.bf16.mxu0 %v1427
    %2014 = vmatpush1.bf16.msra.mxu0 %v1426
    %2015 = vmatprep.subr.bf16.mxu0 %v1423
    %2016 = vmatpush1.bf16.msra.mxu0 %v1422
    %2017 = vmatprep.subr.bf16.mxu0 %v1419
    %2018 = vmatpush1.bf16.msra.mxu0 %v1418
    %2019 = vmatprep.subr.bf16.mxu0 %v1415
    %2020 = vmatpush1.bf16.msra.mxu0 %v1414
    %2021 = vmatprep.subr.bf16.mxu0 %v1411
    %2022 = vmatpush1.bf16.msra.mxu0 %v1410
    %2023 = vmatprep.subr.bf16.mxu0 %v1407
    %2024 = vmatpush1.bf16.msra.mxu0 %v1406
    %2025 = vmatprep.subr.bf16.mxu0 %v1467
    %2026 = vmatpush2.bf16.msra.mxu0 %v1466
    %2027 = vmatprep.subr.bf16.mxu0 %v1463
    %2028 = vmatpush2.bf16.msra.mxu0 %v1462
    %2029 = vmatprep.subr.bf16.mxu0 %v1459
    %2030 = vmatpush2.bf16.msra.mxu0 %v1458
    %2031 = vmatprep.subr.bf16.mxu0 %v1455
    %2032 = vmatpush2.bf16.msra.mxu0 %v1454
    %2033 = vmatprep.subr.bf16.mxu0 %v1451
    %2034 = vmatpush2.bf16.msra.mxu0 %v1450
    %2035 = vmatprep.subr.bf16.mxu0 %v1447
    %2036 = vmatpush2.bf16.msra.mxu0 %v1446
    %2037 = vmatprep.subr.bf16.mxu0 %v1443
    %2038 = vmatpush2.bf16.msra.mxu0 %v1442
    %2039 = vmatprep.subr.bf16.mxu0 %v1439
    %2040 = vmatpush2.bf16.msra.mxu0 %v1438
    %2041 = vmatprep.mubr.bf16.mxu0 %v1967
    %2042 = vmatmul.mubr.bf16.gmra.mxu0 %v1966
    %v2043 = vpop.f32.mrf.mxu0
    %v2044 = vadd.f32 %v349, %v2043
    %v2045 = vpop.f32.mrf.mxu0
    %v2046 = vadd.f32 %v353, %v2045
    %v2047 = vpop.f32.mrf.mxu0
    %v2048 = vpop.f32.mrf.mxu0
    %2049 = vdwg.mxu0
    %v2050 = vxor.u32 %v2003, 2147483648
    %v2051 = vmul.f32 %v2050, 1.442695
    %v2052 = vpow.pop %v2051
    %v2053 = vadd.f32 %v2052, 1.0
    %v2054 = vrcp.pop %v2053
    %v2055 = vmul.f32 1.0, %v2054
    %v2056 = vxor.u32 %v2005, 2147483648
    %v2057 = vmul.f32 %v2056, 1.442695
    %v2058 = vpow.pop %v2057
    %v2059 = vadd.f32 %v2058, 1.0
    %v2060 = vrcp.pop %v2059
    %v2061 = vmul.f32 1.0, %v2060
    %v2062 = vtanh.pop %v2044
    %v2063 = vxor.u32 %v2046, 2147483648
    %v2064 = vmul.f32 %v2063, 1.442695
    %v2065 = vpow.pop %v2064
    %v2066 = vadd.f32 %v2065, 1.0
    %v2067 = vrcp.pop %v2066
    %v2068 = vmul.f32 1.0, %v2067
    %v2069 = vmul.f32 %v2061, %v1853
    %v2070 = vmul.f32 %v2055, %v2062
    %v2071 = vadd.f32 %v2069, %v2070
    %v2072 = vtanh.pop %v2071
    %v2073 = vmul.f32 %v2068, %v2072
    %2074 = vmatprep.subr.bf16.mxu0 %v1065
    %2075 = vmatpush1.bf16.msra.mxu0 %v1064
    %2076 = vmatprep.subr.bf16.mxu0 %v1061
    %2077 = vmatpush1.bf16.msra.mxu0 %v1060
    %2078 = vmatprep.subr.bf16.mxu0 %v1057
    %2079 = vmatpush1.bf16.msra.mxu0 %v1056
    %2080 = vmatprep.subr.bf16.mxu0 %v1053
    %2081 = vmatpush1.bf16.msra.mxu0 %v1052
    %2082 = vmatprep.subr.bf16.mxu0 %v1049
    %2083 = vmatpush1.bf16.msra.mxu0 %v1048
    %2084 = vmatprep.subr.bf16.mxu0 %v1045
    %2085 = vmatpush1.bf16.msra.mxu0 %v1044
    %2086 = vmatprep.subr.bf16.mxu0 %v1041
    %2087 = vmatpush1.bf16.msra.mxu0 %v1040
    %2088 = vmatprep.subr.bf16.mxu0 %v1037
    %2089 = vmatpush1.bf16.msra.mxu0 %v1036
    %2090 = vmatprep.subr.bf16.mxu0 0
    %2091 = vmatpush2.bf16.msra.mxu0 0
    %2092 = vmatprep.subr.bf16.mxu0 0
    %2093 = vmatpush2.bf16.msra.mxu0 0
    %2094 = vmatprep.subr.bf16.mxu0 0
    %2095 = vmatpush2.bf16.msra.mxu0 0
    %2096 = vmatprep.subr.bf16.mxu0 0
    %2097 = vmatpush2.bf16.msra.mxu0 0
    %2098 = vmatprep.subr.bf16.mxu0 0
    %2099 = vmatpush2.bf16.msra.mxu0 0
    %2100 = vmatprep.subr.bf16.mxu0 0
    %2101 = vmatpush2.bf16.msra.mxu0 0
    %2102 = vmatprep.subr.bf16.mxu0 0
    %2103 = vmatpush2.bf16.msra.mxu0 0
    %2104 = vmatprep.subr.bf16.mxu0 0
    %2105 = vmatpush2.bf16.msra.mxu0 0
    %2106 = vmatprep.mubr.bf16.mxu0 0
    %2107 = vmatmul.mubr.bf16.gmra.mxu0 %v1966
    %v2108 = vpop.f32.mrf.mxu0
    %v2109 = vadd.f32 0.0, %v2108
    %v2110 = vpop.f32.mrf.mxu0
    %v2111 = vadd.f32 0.0, %v2110
    %v2112 = vpop.f32.mrf.mxu0
    %v2113 = vpop.f32.mrf.mxu0
    %2114 = vdwg.mxu0
    %2115 = vmatprep.subr.bf16.mxu0 %v1067
    %2116 = vmatpush1.bf16.msra.mxu0 %v1066
    %2117 = vmatprep.subr.bf16.mxu0 %v1063
    %2118 = vmatpush1.bf16.msra.mxu0 %v1062
    %2119 = vmatprep.subr.bf16.mxu0 %v1059
    %2120 = vmatpush1.bf16.msra.mxu0 %v1058
    %2121 = vmatprep.subr.bf16.mxu0 %v1055
    %2122 = vmatpush1.bf16.msra.mxu0 %v1054
    %2123 = vmatprep.subr.bf16.mxu0 %v1051
    %2124 = vmatpush1.bf16.msra.mxu0 %v1050
    %2125 = vmatprep.subr.bf16.mxu0 %v1047
    %2126 = vmatpush1.bf16.msra.mxu0 %v1046
    %2127 = vmatprep.subr.bf16.mxu0 %v1043
    %2128 = vmatpush1.bf16.msra.mxu0 %v1042
    %2129 = vmatprep.subr.bf16.mxu0 %v1039
    %2130 = vmatpush1.bf16.msra.mxu0 %v1038
    %2131 = vmatprep.subr.bf16.mxu0 0
    %2132 = vmatpush2.bf16.msra.mxu0 0
    %2133 = vmatprep.subr.bf16.mxu0 0
    %2134 = vmatpush2.bf16.msra.mxu0 0
    %2135 = vmatprep.subr.bf16.mxu0 0
    %2136 = vmatpush2.bf16.msra.mxu0 0
    %2137 = vmatprep.subr.bf16.mxu0 0
    %2138 = vmatpush2.bf16.msra.mxu0 0
    %2139 = vmatprep.subr.bf16.mxu0 0
    %2140 = vmatpush2.bf16.msra.mxu0 0
    %2141 = vmatprep.subr.bf16.mxu0 0
    %2142 = vmatpush2.bf16.msra.mxu0 0
    %2143 = vmatprep.subr.bf16.mxu0 0
    %2144 = vmatpush2.bf16.msra.mxu0 0
    %2145 = vmatprep.subr.bf16.mxu0 0
    %2146 = vmatpush2.bf16.msra.mxu0 0
    %2147 = vmatprep.mubr.bf16.mxu0 0
    %2148 = vmatmul.mubr.bf16.gmra.mxu0 %v1966
    %v2149 = vpop.f32.mrf.mxu0
    %v2150 = vadd.f32 0.0, %v2149
    %v2151 = vpop.f32.mrf.mxu0
    %v2152 = vadd.f32 0.0, %v2151
    %v2153 = vpop.f32.mrf.mxu0
    %v2154 = vpop.f32.mrf.mxu0
    %2155 = vdwg.mxu0
    %v2156 = vadd.f32 %v579, %v2109
    %v2157 = vadd.f32 %v581, %v2111
    %v2158 = vadd.f32 %v652, %v2150
    %v2159 = vadd.f32 %v654, %v2152
    %v2160 = vxor.u32 %v2156, 2147483648
    %v2161 = vmul.f32 %v2160, 1.442695
    %v2162 = vpow.pop %v2161
    %v2163 = vadd.f32 %v2162, 1.0
    %v2164 = vrcp.pop %v2163
    %v2165 = vmul.f32 1.0, %v2164
    %v2166 = vxor.u32 %v2157, 2147483648
    %v2167 = vmul.f32 %v2166, 1.442695
    %v2168 = vpow.pop %v2167
    %v2169 = vadd.f32 %v2168, 1.0
    %v2170 = vrcp.pop %v2169
    %v2171 = vmul.f32 1.0, %v2170
    %v2172 = vtanh.pop %v2158
    %v2173 = vxor.u32 %v2159, 2147483648
    %v2174 = vmul.f32 %v2173, 1.442695
    %v2175 = vpow.pop %v2174
    %v2176 = vadd.f32 %v2175, 1.0
    %v2177 = vrcp.pop %v2176
    %v2178 = vmul.f32 1.0, %v2177
    %v2179 = vmul.f32 %v2171, %v1963
    %v2180 = vmul.f32 %v2165, %v2172
    %v2181 = vadd.f32 %v2179, %v2180
    %v2182 = vtanh.pop %v2181
    %v2183 = vmul.f32 %v2178, %v2182
    %v2184 = vpack.c.bf16 %v2183, %v2183
    %v2185 = vpack.c.bf16 %v2073, %v2073
    %2186 = vmatprep.subr.bf16.mxu0 %v1433
    %2187 = vmatpush1.bf16.msra.mxu0 %v1432
    %2188 = vmatprep.subr.bf16.mxu0 %v1429
    %2189 = vmatpush1.bf16.msra.mxu0 %v1428
    %2190 = vmatprep.subr.bf16.mxu0 %v1425
    %2191 = vmatpush1.bf16.msra.mxu0 %v1424
    %2192 = vmatprep.subr.bf16.mxu0 %v1421
    %2193 = vmatpush1.bf16.msra.mxu0 %v1420
    %2194 = vmatprep.subr.bf16.mxu0 %v1417
    %2195 = vmatpush1.bf16.msra.mxu0 %v1416
    %2196 = vmatprep.subr.bf16.mxu0 %v1413
    %2197 = vmatpush1.bf16.msra.mxu0 %v1412
    %2198 = vmatprep.subr.bf16.mxu0 %v1409
    %2199 = vmatpush1.bf16.msra.mxu0 %v1408
    %2200 = vmatprep.subr.bf16.mxu0 %v1405
    %2201 = vmatpush1.bf16.msra.mxu0 %v1404
    %2202 = vmatprep.subr.bf16.mxu0 %v1465
    %2203 = vmatpush2.bf16.msra.mxu0 %v1464
    %2204 = vmatprep.subr.bf16.mxu0 %v1461
    %2205 = vmatpush2.bf16.msra.mxu0 %v1460
    %2206 = vmatprep.subr.bf16.mxu0 %v1457
    %2207 = vmatpush2.bf16.msra.mxu0 %v1456
    %2208 = vmatprep.subr.bf16.mxu0 %v1453
    %2209 = vmatpush2.bf16.msra.mxu0 %v1452
    %2210 = vmatprep.subr.bf16.mxu0 %v1449
    %2211 = vmatpush2.bf16.msra.mxu0 %v1448
    %2212 = vmatprep.subr.bf16.mxu0 %v1445
    %2213 = vmatpush2.bf16.msra.mxu0 %v1444
    %2214 = vmatprep.subr.bf16.mxu0 %v1441
    %2215 = vmatpush2.bf16.msra.mxu0 %v1440
    %2216 = vmatprep.subr.bf16.mxu0 %v1437
    %2217 = vmatpush2.bf16.msra.mxu0 %v1436
    %2218 = vmatprep.mubr.bf16.mxu0 %v2185
    %2219 = vmatmul.mubr.bf16.gmra.mxu0 %v2184
    %v2220 = vpop.f32.mrf.mxu0
    %v2221 = vadd.f32 %v341, %v2220
    %v2222 = vpop.f32.mrf.mxu0
    %v2223 = vadd.f32 %v345, %v2222
    %v2224 = vpop.f32.mrf.mxu0
    %v2225 = vpop.f32.mrf.mxu0
    %2226 = vdwg.mxu0
    %2227 = vmatprep.subr.bf16.mxu0 %v1435
    %2228 = vmatpush1.bf16.msra.mxu0 %v1434
    %2229 = vmatprep.subr.bf16.mxu0 %v1431
    %2230 = vmatpush1.bf16.msra.mxu0 %v1430
    %2231 = vmatprep.subr.bf16.mxu0 %v1427
    %2232 = vmatpush1.bf16.msra.mxu0 %v1426
    %2233 = vmatprep.subr.bf16.mxu0 %v1423
    %2234 = vmatpush1.bf16.msra.mxu0 %v1422
    %2235 = vmatprep.subr.bf16.mxu0 %v1419
    %2236 = vmatpush1.bf16.msra.mxu0 %v1418
    %2237 = vmatprep.subr.bf16.mxu0 %v1415
    %2238 = vmatpush1.bf16.msra.mxu0 %v1414
    %2239 = vmatprep.subr.bf16.mxu0 %v1411
    %2240 = vmatpush1.bf16.msra.mxu0 %v1410
    %2241 = vmatprep.subr.bf16.mxu0 %v1407
    %2242 = vmatpush1.bf16.msra.mxu0 %v1406
    %2243 = vmatprep.subr.bf16.mxu0 %v1467
    %2244 = vmatpush2.bf16.msra.mxu0 %v1466
    %2245 = vmatprep.subr.bf16.mxu0 %v1463
    %2246 = vmatpush2.bf16.msra.mxu0 %v1462
    %2247 = vmatprep.subr.bf16.mxu0 %v1459
    %2248 = vmatpush2.bf16.msra.mxu0 %v1458
    %2249 = vmatprep.subr.bf16.mxu0 %v1455
    %2250 = vmatpush2.bf16.msra.mxu0 %v1454
    %2251 = vmatprep.subr.bf16.mxu0 %v1451
    %2252 = vmatpush2.bf16.msra.mxu0 %v1450
    %2253 = vmatprep.subr.bf16.mxu0 %v1447
    %2254 = vmatpush2.bf16.msra.mxu0 %v1446
    %2255 = vmatprep.subr.bf16.mxu0 %v1443
    %2256 = vmatpush2.bf16.msra.mxu0 %v1442
    %2257 = vmatprep.subr.bf16.mxu0 %v1439
    %2258 = vmatpush2.bf16.msra.mxu0 %v1438
    %2259 = vmatprep.mubr.bf16.mxu0 %v2185
    %2260 = vmatmul.mubr.bf16.gmra.mxu0 %v2184
    %v2261 = vpop.f32.mrf.mxu0
    %v2262 = vadd.f32 %v349, %v2261
    %v2263 = vpop.f32.mrf.mxu0
    %v2264 = vadd.f32 %v353, %v2263
    %v2265 = vpop.f32.mrf.mxu0
    %v2266 = vpop.f32.mrf.mxu0
    %2267 = vdwg.mxu0
    %v2268 = vxor.u32 %v2221, 2147483648
    %v2269 = vmul.f32 %v2268, 1.442695
    %v2270 = vpow.pop %v2269
    %v2271 = vadd.f32 %v2270, 1.0
    %v2272 = vrcp.pop %v2271
    %v2273 = vmul.f32 1.0, %v2272
    %v2274 = vxor.u32 %v2223, 2147483648
    %v2275 = vmul.f32 %v2274, 1.442695
    %v2276 = vpow.pop %v2275
    %v2277 = vadd.f32 %v2276, 1.0
    %v2278 = vrcp.pop %v2277
    %v2279 = vmul.f32 1.0, %v2278
    %v2280 = vtanh.pop %v2262
    %v2281 = vxor.u32 %v2264, 2147483648
    %v2282 = vmul.f32 %v2281, 1.442695
    %v2283 = vpow.pop %v2282
    %v2284 = vadd.f32 %v2283, 1.0
    %v2285 = vrcp.pop %v2284
    %v2286 = vmul.f32 1.0, %v2285
    %v2287 = vmul.f32 %v2279, %v2071
    %v2288 = vmul.f32 %v2273, %v2280
    %v2289 = vadd.f32 %v2287, %v2288
    %v2290 = vtanh.pop %v2289
    %v2291 = vmul.f32 %v2286, %v2290
    %2292 = vmatprep.subr.bf16.mxu0 %v1065
    %2293 = vmatpush1.bf16.msra.mxu0 %v1064
    %2294 = vmatprep.subr.bf16.mxu0 %v1061
    %2295 = vmatpush1.bf16.msra.mxu0 %v1060
    %2296 = vmatprep.subr.bf16.mxu0 %v1057
    %2297 = vmatpush1.bf16.msra.mxu0 %v1056
    %2298 = vmatprep.subr.bf16.mxu0 %v1053
    %2299 = vmatpush1.bf16.msra.mxu0 %v1052
    %2300 = vmatprep.subr.bf16.mxu0 %v1049
    %2301 = vmatpush1.bf16.msra.mxu0 %v1048
    %2302 = vmatprep.subr.bf16.mxu0 %v1045
    %2303 = vmatpush1.bf16.msra.mxu0 %v1044
    %2304 = vmatprep.subr.bf16.mxu0 %v1041
    %2305 = vmatpush1.bf16.msra.mxu0 %v1040
    %2306 = vmatprep.subr.bf16.mxu0 %v1037
    %2307 = vmatpush1.bf16.msra.mxu0 %v1036
    %2308 = vmatprep.subr.bf16.mxu0 0
    %2309 = vmatpush2.bf16.msra.mxu0 0
    %2310 = vmatprep.subr.bf16.mxu0 0
    %2311 = vmatpush2.bf16.msra.mxu0 0
    %2312 = vmatprep.subr.bf16.mxu0 0
    %2313 = vmatpush2.bf16.msra.mxu0 0
    %2314 = vmatprep.subr.bf16.mxu0 0
    %2315 = vmatpush2.bf16.msra.mxu0 0
    %2316 = vmatprep.subr.bf16.mxu0 0
    %2317 = vmatpush2.bf16.msra.mxu0 0
    %2318 = vmatprep.subr.bf16.mxu0 0
    %2319 = vmatpush2.bf16.msra.mxu0 0
    %2320 = vmatprep.subr.bf16.mxu0 0
    %2321 = vmatpush2.bf16.msra.mxu0 0
    %2322 = vmatprep.subr.bf16.mxu0 0
    %2323 = vmatpush2.bf16.msra.mxu0 0
    %2324 = vmatprep.mubr.bf16.mxu0 0
    %2325 = vmatmul.mubr.bf16.gmra.mxu0 %v2184
    %v2326 = vpop.f32.mrf.mxu0
    %v2327 = vadd.f32 0.0, %v2326
    %v2328 = vpop.f32.mrf.mxu0
    %v2329 = vadd.f32 0.0, %v2328
    %v2330 = vpop.f32.mrf.mxu0
    %v2331 = vpop.f32.mrf.mxu0
    %2332 = vdwg.mxu0
    %2333 = vmatprep.subr.bf16.mxu0 %v1067
    %2334 = vmatpush1.bf16.msra.mxu0 %v1066
    %2335 = vmatprep.subr.bf16.mxu0 %v1063
    %2336 = vmatpush1.bf16.msra.mxu0 %v1062
    %2337 = vmatprep.subr.bf16.mxu0 %v1059
    %2338 = vmatpush1.bf16.msra.mxu0 %v1058
    %2339 = vmatprep.subr.bf16.mxu0 %v1055
    %2340 = vmatpush1.bf16.msra.mxu0 %v1054
    %2341 = vmatprep.subr.bf16.mxu0 %v1051
    %2342 = vmatpush1.bf16.msra.mxu0 %v1050
    %2343 = vmatprep.subr.bf16.mxu0 %v1047
    %2344 = vmatpush1.bf16.msra.mxu0 %v1046
    %2345 = vmatprep.subr.bf16.mxu0 %v1043
    %2346 = vmatpush1.bf16.msra.mxu0 %v1042
    %2347 = vmatprep.subr.bf16.mxu0 %v1039
    %2348 = vmatpush1.bf16.msra.mxu0 %v1038
    %2349 = vmatprep.subr.bf16.mxu0 0
    %2350 = vmatpush2.bf16.msra.mxu0 0
    %2351 = vmatprep.subr.bf16.mxu0 0
    %2352 = vmatpush2.bf16.msra.mxu0 0
    %2353 = vmatprep.subr.bf16.mxu0 0
    %2354 = vmatpush2.bf16.msra.mxu0 0
    %2355 = vmatprep.subr.bf16.mxu0 0
    %2356 = vmatpush2.bf16.msra.mxu0 0
    %2357 = vmatprep.subr.bf16.mxu0 0
    %2358 = vmatpush2.bf16.msra.mxu0 0
    %2359 = vmatprep.subr.bf16.mxu0 0
    %2360 = vmatpush2.bf16.msra.mxu0 0
    %2361 = vmatprep.subr.bf16.mxu0 0
    %2362 = vmatpush2.bf16.msra.mxu0 0
    %2363 = vmatprep.subr.bf16.mxu0 0
    %2364 = vmatpush2.bf16.msra.mxu0 0
    %2365 = vmatprep.mubr.bf16.mxu0 0
    %2366 = vmatmul.mubr.bf16.gmra.mxu0 %v2184
    %v2367 = vpop.f32.mrf.mxu0
    %v2368 = vadd.f32 0.0, %v2367
    %v2369 = vpop.f32.mrf.mxu0
    %v2370 = vadd.f32 0.0, %v2369
    %v2371 = vpop.f32.mrf.mxu0
    %v2372 = vpop.f32.mrf.mxu0
    %2373 = vdwg.mxu0
    %v2374 = vadd.f32 %v585, %v2327
    %v2375 = vadd.f32 %v587, %v2329
    %v2376 = vadd.f32 %v658, %v2368
    %v2377 = vadd.f32 %v660, %v2370
    %v2378 = vxor.u32 %v2374, 2147483648
    %v2379 = vmul.f32 %v2378, 1.442695
    %v2380 = vpow.pop %v2379
    %v2381 = vadd.f32 %v2380, 1.0
    %v2382 = vrcp.pop %v2381
    %v2383 = vmul.f32 1.0, %v2382
    %v2384 = vxor.u32 %v2375, 2147483648
    %v2385 = vmul.f32 %v2384, 1.442695
    %v2386 = vpow.pop %v2385
    %v2387 = vadd.f32 %v2386, 1.0
    %v2388 = vrcp.pop %v2387
    %v2389 = vmul.f32 1.0, %v2388
    %v2390 = vtanh.pop %v2376
    %v2391 = vxor.u32 %v2377, 2147483648
    %v2392 = vmul.f32 %v2391, 1.442695
    %v2393 = vpow.pop %v2392
    %v2394 = vadd.f32 %v2393, 1.0
    %v2395 = vrcp.pop %v2394
    %v2396 = vmul.f32 1.0, %v2395
    %v2397 = vmul.f32 %v2389, %v2181
    %v2398 = vmul.f32 %v2383, %v2390
    %v2399 = vadd.f32 %v2397, %v2398
    %v2400 = vtanh.pop %v2399
    %v2401 = vmul.f32 %v2396, %v2400
    %v2402 = vpack.c.bf16 %v2401, %v2401
    %v2403 = vpack.c.bf16 %v2291, %v2291
    %2404 = vmatprep.subr.bf16.mxu0 %v1433
    %2405 = vmatpush1.bf16.msra.mxu0 %v1432
    %2406 = vmatprep.subr.bf16.mxu0 %v1429
    %2407 = vmatpush1.bf16.msra.mxu0 %v1428
    %2408 = vmatprep.subr.bf16.mxu0 %v1425
    %2409 = vmatpush1.bf16.msra.mxu0 %v1424
    %2410 = vmatprep.subr.bf16.mxu0 %v1421
    %2411 = vmatpush1.bf16.msra.mxu0 %v1420
    %2412 = vmatprep.subr.bf16.mxu0 %v1417
    %2413 = vmatpush1.bf16.msra.mxu0 %v1416
    %2414 = vmatprep.subr.bf16.mxu0 %v1413
    %2415 = vmatpush1.bf16.msra.mxu0 %v1412
    %2416 = vmatprep.subr.bf16.mxu0 %v1409
    %2417 = vmatpush1.bf16.msra.mxu0 %v1408
    %2418 = vmatprep.subr.bf16.mxu0 %v1405
    %2419 = vmatpush1.bf16.msra.mxu0 %v1404
    %2420 = vmatprep.subr.bf16.mxu0 %v1465
    %2421 = vmatpush2.bf16.msra.mxu0 %v1464
    %2422 = vmatprep.subr.bf16.mxu0 %v1461
    %2423 = vmatpush2.bf16.msra.mxu0 %v1460
    %2424 = vmatprep.subr.bf16.mxu0 %v1457
    %2425 = vmatpush2.bf16.msra.mxu0 %v1456
    %2426 = vmatprep.subr.bf16.mxu0 %v1453
    %2427 = vmatpush2.bf16.msra.mxu0 %v1452
    %2428 = vmatprep.subr.bf16.mxu0 %v1449
    %2429 = vmatpush2.bf16.msra.mxu0 %v1448
    %2430 = vmatprep.subr.bf16.mxu0 %v1445
    %2431 = vmatpush2.bf16.msra.mxu0 %v1444
    %2432 = vmatprep.subr.bf16.mxu0 %v1441
    %2433 = vmatpush2.bf16.msra.mxu0 %v1440
    %2434 = vmatprep.subr.bf16.mxu0 %v1437
    %2435 = vmatpush2.bf16.msra.mxu0 %v1436
    %2436 = vmatprep.mubr.bf16.mxu0 %v2403
    %2437 = vmatmul.mubr.bf16.gmra.mxu0 %v2402
    %v2438 = vpop.f32.mrf.mxu0
    %v2439 = vadd.f32 %v341, %v2438
    %v2440 = vpop.f32.mrf.mxu0
    %v2441 = vadd.f32 %v345, %v2440
    %v2442 = vpop.f32.mrf.mxu0
    %v2443 = vpop.f32.mrf.mxu0
    %2444 = vdwg.mxu0
    %2445 = vmatprep.subr.bf16.mxu0 %v1435
    %2446 = vmatpush1.bf16.msra.mxu0 %v1434
    %2447 = vmatprep.subr.bf16.mxu0 %v1431
    %2448 = vmatpush1.bf16.msra.mxu0 %v1430
    %2449 = vmatprep.subr.bf16.mxu0 %v1427
    %2450 = vmatpush1.bf16.msra.mxu0 %v1426
    %2451 = vmatprep.subr.bf16.mxu0 %v1423
    %2452 = vmatpush1.bf16.msra.mxu0 %v1422
    %2453 = vmatprep.subr.bf16.mxu0 %v1419
    %2454 = vmatpush1.bf16.msra.mxu0 %v1418
    %2455 = vmatprep.subr.bf16.mxu0 %v1415
    %2456 = vmatpush1.bf16.msra.mxu0 %v1414
    %2457 = vmatprep.subr.bf16.mxu0 %v1411
    %2458 = vmatpush1.bf16.msra.mxu0 %v1410
    %2459 = vmatprep.subr.bf16.mxu0 %v1407
    %2460 = vmatpush1.bf16.msra.mxu0 %v1406
    %2461 = vmatprep.subr.bf16.mxu0 %v1467
    %2462 = vmatpush2.bf16.msra.mxu0 %v1466
    %2463 = vmatprep.subr.bf16.mxu0 %v1463
    %2464 = vmatpush2.bf16.msra.mxu0 %v1462
    %2465 = vmatprep.subr.bf16.mxu0 %v1459
    %2466 = vmatpush2.bf16.msra.mxu0 %v1458
    %2467 = vmatprep.subr.bf16.mxu0 %v1455
    %2468 = vmatpush2.bf16.msra.mxu0 %v1454
    %2469 = vmatprep.subr.bf16.mxu0 %v1451
    %2470 = vmatpush2.bf16.msra.mxu0 %v1450
    %2471 = vmatprep.subr.bf16.mxu0 %v1447
    %2472 = vmatpush2.bf16.msra.mxu0 %v1446
    %2473 = vmatprep.subr.bf16.mxu0 %v1443
    %2474 = vmatpush2.bf16.msra.mxu0 %v1442
    %2475 = vmatprep.subr.bf16.mxu0 %v1439
    %2476 = vmatpush2.bf16.msra.mxu0 %v1438
    %2477 = vmatprep.mubr.bf16.mxu0 %v2403
    %2478 = vmatmul.mubr.bf16.gmra.mxu0 %v2402
    %v2479 = vpop.f32.mrf.mxu0
    %v2480 = vadd.f32 %v349, %v2479
    %v2481 = vpop.f32.mrf.mxu0
    %v2482 = vadd.f32 %v353, %v2481
    %v2483 = vpop.f32.mrf.mxu0
    %v2484 = vpop.f32.mrf.mxu0
    %2485 = vdwg.mxu0
    %v2486 = vxor.u32 %v2439, 2147483648
    %v2487 = vmul.f32 %v2486, 1.442695
    %v2488 = vpow.pop %v2487
    %v2489 = vadd.f32 %v2488, 1.0
    %v2490 = vrcp.pop %v2489
    %v2491 = vmul.f32 1.0, %v2490
    %v2492 = vxor.u32 %v2441, 2147483648
    %v2493 = vmul.f32 %v2492, 1.442695
    %v2494 = vpow.pop %v2493
    %v2495 = vadd.f32 %v2494, 1.0
    %v2496 = vrcp.pop %v2495
    %v2497 = vmul.f32 1.0, %v2496
    %v2498 = vtanh.pop %v2480
    %v2499 = vxor.u32 %v2482, 2147483648
    %v2500 = vmul.f32 %v2499, 1.442695
    %v2501 = vpow.pop %v2500
    %v2502 = vadd.f32 %v2501, 1.0
    %v2503 = vrcp.pop %v2502
    %v2504 = vmul.f32 1.0, %v2503
    %v2505 = vmul.f32 %v2497, %v2289
    %v2506 = vmul.f32 %v2491, %v2498
    %v2507 = vadd.f32 %v2505, %v2506
    %v2508 = vtanh.pop %v2507
    %v2509 = vmul.f32 %v2504, %v2508
    %2510 = vmatprep.subr.bf16.mxu0 %v1065
    %2511 = vmatpush1.bf16.msra.mxu0 %v1064
    %2512 = vmatprep.subr.bf16.mxu0 %v1061
    %2513 = vmatpush1.bf16.msra.mxu0 %v1060
    %2514 = vmatprep.subr.bf16.mxu0 %v1057
    %2515 = vmatpush1.bf16.msra.mxu0 %v1056
    %2516 = vmatprep.subr.bf16.mxu0 %v1053
    %2517 = vmatpush1.bf16.msra.mxu0 %v1052
    %2518 = vmatprep.subr.bf16.mxu0 %v1049
    %2519 = vmatpush1.bf16.msra.mxu0 %v1048
    %2520 = vmatprep.subr.bf16.mxu0 %v1045
    %2521 = vmatpush1.bf16.msra.mxu0 %v1044
    %2522 = vmatprep.subr.bf16.mxu0 %v1041
    %2523 = vmatpush1.bf16.msra.mxu0 %v1040
    %2524 = vmatprep.subr.bf16.mxu0 %v1037
    %2525 = vmatpush1.bf16.msra.mxu0 %v1036
    %2526 = vmatprep.subr.bf16.mxu0 0
    %2527 = vmatpush2.bf16.msra.mxu0 0
    %2528 = vmatprep.subr.bf16.mxu0 0
    %2529 = vmatpush2.bf16.msra.mxu0 0
    %2530 = vmatprep.subr.bf16.mxu0 0
    %2531 = vmatpush2.bf16.msra.mxu0 0
    %2532 = vmatprep.subr.bf16.mxu0 0
    %2533 = vmatpush2.bf16.msra.mxu0 0
    %2534 = vmatprep.subr.bf16.mxu0 0
    %2535 = vmatpush2.bf16.msra.mxu0 0
    %2536 = vmatprep.subr.bf16.mxu0 0
    %2537 = vmatpush2.bf16.msra.mxu0 0
    %2538 = vmatprep.subr.bf16.mxu0 0
    %2539 = vmatpush2.bf16.msra.mxu0 0
    %2540 = vmatprep.subr.bf16.mxu0 0
    %2541 = vmatpush2.bf16.msra.mxu0 0
    %2542 = vmatprep.mubr.bf16.mxu0 0
    %2543 = vmatmul.mubr.bf16.gmra.mxu0 %v2402
    %v2544 = vpop.f32.mrf.mxu0
    %v2545 = vadd.f32 0.0, %v2544
    %v2546 = vpop.f32.mrf.mxu0
    %v2547 = vadd.f32 0.0, %v2546
    %v2548 = vpop.f32.mrf.mxu0
    %v2549 = vpop.f32.mrf.mxu0
    %2550 = vdwg.mxu0
    %2551 = vmatprep.subr.bf16.mxu0 %v1067
    %2552 = vmatpush1.bf16.msra.mxu0 %v1066
    %2553 = vmatprep.subr.bf16.mxu0 %v1063
    %2554 = vmatpush1.bf16.msra.mxu0 %v1062
    %2555 = vmatprep.subr.bf16.mxu0 %v1059
    %2556 = vmatpush1.bf16.msra.mxu0 %v1058
    %2557 = vmatprep.subr.bf16.mxu0 %v1055
    %2558 = vmatpush1.bf16.msra.mxu0 %v1054
    %2559 = vmatprep.subr.bf16.mxu0 %v1051
    %2560 = vmatpush1.bf16.msra.mxu0 %v1050
    %2561 = vmatprep.subr.bf16.mxu0 %v1047
    %2562 = vmatpush1.bf16.msra.mxu0 %v1046
    %2563 = vmatprep.subr.bf16.mxu0 %v1043
    %2564 = vmatpush1.bf16.msra.mxu0 %v1042
    %2565 = vmatprep.subr.bf16.mxu0 %v1039
    %2566 = vmatpush1.bf16.msra.mxu0 %v1038
    %2567 = vmatprep.subr.bf16.mxu0 0
    %2568 = vmatpush2.bf16.msra.mxu0 0
    %2569 = vmatprep.subr.bf16.mxu0 0
    %2570 = vmatpush2.bf16.msra.mxu0 0
    %2571 = vmatprep.subr.bf16.mxu0 0
    %2572 = vmatpush2.bf16.msra.mxu0 0
    %2573 = vmatprep.subr.bf16.mxu0 0
    %2574 = vmatpush2.bf16.msra.mxu0 0
    %2575 = vmatprep.subr.bf16.mxu0 0
    %2576 = vmatpush2.bf16.msra.mxu0 0
    %2577 = vmatprep.subr.bf16.mxu0 0
    %2578 = vmatpush2.bf16.msra.mxu0 0
    %2579 = vmatprep.subr.bf16.mxu0 0
    %2580 = vmatpush2.bf16.msra.mxu0 0
    %2581 = vmatprep.subr.bf16.mxu0 0
    %2582 = vmatpush2.bf16.msra.mxu0 0
    %2583 = vmatprep.mubr.bf16.mxu0 0
    %2584 = vmatmul.mubr.bf16.gmra.mxu0 %v2402
    %v2585 = vpop.f32.mrf.mxu0
    %v2586 = vadd.f32 0.0, %v2585
    %v2587 = vpop.f32.mrf.mxu0
    %v2588 = vadd.f32 0.0, %v2587
    %v2589 = vpop.f32.mrf.mxu0
    %v2590 = vpop.f32.mrf.mxu0
    %2591 = vdwg.mxu0
    %v2592 = vadd.f32 %v589, %v2545
    %v2593 = vadd.f32 %v591, %v2547
    %v2594 = vadd.f32 %v662, %v2586
    %v2595 = vadd.f32 %v664, %v2588
    %v2596 = vxor.u32 %v2592, 2147483648
    %v2597 = vmul.f32 %v2596, 1.442695
    %v2598 = vpow.pop %v2597
    %v2599 = vadd.f32 %v2598, 1.0
    %v2600 = vrcp.pop %v2599
    %v2601 = vmul.f32 1.0, %v2600
    %v2602 = vxor.u32 %v2593, 2147483648
    %v2603 = vmul.f32 %v2602, 1.442695
    %v2604 = vpow.pop %v2603
    %v2605 = vadd.f32 %v2604, 1.0
    %v2606 = vrcp.pop %v2605
    %v2607 = vmul.f32 1.0, %v2606
    %v2608 = vtanh.pop %v2594
    %v2609 = vxor.u32 %v2595, 2147483648
    %v2610 = vmul.f32 %v2609, 1.442695
    %v2611 = vpow.pop %v2610
    %v2612 = vadd.f32 %v2611, 1.0
    %v2613 = vrcp.pop %v2612
    %v2614 = vmul.f32 1.0, %v2613
    %v2615 = vmul.f32 %v2607, %v2399
    %v2616 = vmul.f32 %v2601, %v2608
    %v2617 = vadd.f32 %v2615, %v2616
    %v2618 = vtanh.pop %v2617
    %v2619 = vmul.f32 %v2614, %v2618
    %v2620 = vpack.c.bf16 %v2619, %v2619
    %v2621 = vpack.c.bf16 %v2509, %v2509
    %2622 = vmatprep.subr.bf16.mxu0 %v1433
    %2623 = vmatpush1.bf16.msra.mxu0 %v1432
    %2624 = vmatprep.subr.bf16.mxu0 %v1429
    %2625 = vmatpush1.bf16.msra.mxu0 %v1428
    %2626 = vmatprep.subr.bf16.mxu0 %v1425
    %2627 = vmatpush1.bf16.msra.mxu0 %v1424
    %2628 = vmatprep.subr.bf16.mxu0 %v1421
    %2629 = vmatpush1.bf16.msra.mxu0 %v1420
    %2630 = vmatprep.subr.bf16.mxu0 %v1417
    %2631 = vmatpush1.bf16.msra.mxu0 %v1416
    %2632 = vmatprep.subr.bf16.mxu0 %v1413
    %2633 = vmatpush1.bf16.msra.mxu0 %v1412
    %2634 = vmatprep.subr.bf16.mxu0 %v1409
    %2635 = vmatpush1.bf16.msra.mxu0 %v1408
    %2636 = vmatprep.subr.bf16.mxu0 %v1405
    %2637 = vmatpush1.bf16.msra.mxu0 %v1404
    %2638 = vmatprep.subr.bf16.mxu0 %v1465
    %2639 = vmatpush2.bf16.msra.mxu0 %v1464
    %2640 = vmatprep.subr.bf16.mxu0 %v1461
    %2641 = vmatpush2.bf16.msra.mxu0 %v1460
    %2642 = vmatprep.subr.bf16.mxu0 %v1457
    %2643 = vmatpush2.bf16.msra.mxu0 %v1456
    %2644 = vmatprep.subr.bf16.mxu0 %v1453
    %2645 = vmatpush2.bf16.msra.mxu0 %v1452
    %2646 = vmatprep.subr.bf16.mxu0 %v1449
    %2647 = vmatpush2.bf16.msra.mxu0 %v1448
    %2648 = vmatprep.subr.bf16.mxu0 %v1445
    %2649 = vmatpush2.bf16.msra.mxu0 %v1444
    %2650 = vmatprep.subr.bf16.mxu0 %v1441
    %2651 = vmatpush2.bf16.msra.mxu0 %v1440
    %2652 = vmatprep.subr.bf16.mxu0 %v1437
    %2653 = vmatpush2.bf16.msra.mxu0 %v1436
    %2654 = vmatprep.mubr.bf16.mxu0 %v2621
    %2655 = vmatmul.mubr.bf16.gmra.mxu0 %v2620
    %v2656 = vpop.f32.mrf.mxu0
    %v2657 = vadd.f32 %v341, %v2656
    %v2658 = vpop.f32.mrf.mxu0
    %v2659 = vadd.f32 %v345, %v2658
    %v2660 = vpop.f32.mrf.mxu0
    %v2661 = vpop.f32.mrf.mxu0
    %2662 = vdwg.mxu0
    %2663 = vmatprep.subr.bf16.mxu0 %v1435
    %2664 = vmatpush1.bf16.msra.mxu0 %v1434
    %2665 = vmatprep.subr.bf16.mxu0 %v1431
    %2666 = vmatpush1.bf16.msra.mxu0 %v1430
    %2667 = vmatprep.subr.bf16.mxu0 %v1427
    %2668 = vmatpush1.bf16.msra.mxu0 %v1426
    %2669 = vmatprep.subr.bf16.mxu0 %v1423
    %2670 = vmatpush1.bf16.msra.mxu0 %v1422
    %2671 = vmatprep.subr.bf16.mxu0 %v1419
    %2672 = vmatpush1.bf16.msra.mxu0 %v1418
    %2673 = vmatprep.subr.bf16.mxu0 %v1415
    %2674 = vmatpush1.bf16.msra.mxu0 %v1414
    %2675 = vmatprep.subr.bf16.mxu0 %v1411
    %2676 = vmatpush1.bf16.msra.mxu0 %v1410
    %2677 = vmatprep.subr.bf16.mxu0 %v1407
    %2678 = vmatpush1.bf16.msra.mxu0 %v1406
    %2679 = vmatprep.subr.bf16.mxu0 %v1467
    %2680 = vmatpush2.bf16.msra.mxu0 %v1466
    %2681 = vmatprep.subr.bf16.mxu0 %v1463
    %2682 = vmatpush2.bf16.msra.mxu0 %v1462
    %2683 = vmatprep.subr.bf16.mxu0 %v1459
    %2684 = vmatpush2.bf16.msra.mxu0 %v1458
    %2685 = vmatprep.subr.bf16.mxu0 %v1455
    %2686 = vmatpush2.bf16.msra.mxu0 %v1454
    %2687 = vmatprep.subr.bf16.mxu0 %v1451
    %2688 = vmatpush2.bf16.msra.mxu0 %v1450
    %2689 = vmatprep.subr.bf16.mxu0 %v1447
    %2690 = vmatpush2.bf16.msra.mxu0 %v1446
    %2691 = vmatprep.subr.bf16.mxu0 %v1443
    %2692 = vmatpush2.bf16.msra.mxu0 %v1442
    %2693 = vmatprep.subr.bf16.mxu0 %v1439
    %2694 = vmatpush2.bf16.msra.mxu0 %v1438
    %2695 = vmatprep.mubr.bf16.mxu0 %v2621
    %2696 = vmatmul.mubr.bf16.gmra.mxu0 %v2620
    %v2697 = vpop.f32.mrf.mxu0
    %v2698 = vadd.f32 %v349, %v2697
    %v2699 = vpop.f32.mrf.mxu0
    %v2700 = vadd.f32 %v353, %v2699
    %v2701 = vpop.f32.mrf.mxu0
    %v2702 = vpop.f32.mrf.mxu0
    %2703 = vdwg.mxu0
    %v2704 = vxor.u32 %v2657, 2147483648
    %v2705 = vmul.f32 %v2704, 1.442695
    %v2706 = vpow.pop %v2705
    %v2707 = vadd.f32 %v2706, 1.0
    %v2708 = vrcp.pop %v2707
    %v2709 = vmul.f32 1.0, %v2708
    %v2710 = vxor.u32 %v2659, 2147483648
    %v2711 = vmul.f32 %v2710, 1.442695
    %v2712 = vpow.pop %v2711
    %v2713 = vadd.f32 %v2712, 1.0
    %v2714 = vrcp.pop %v2713
    %v2715 = vmul.f32 1.0, %v2714
    %v2716 = vtanh.pop %v2698
    %v2717 = vxor.u32 %v2700, 2147483648
    %v2718 = vmul.f32 %v2717, 1.442695
    %v2719 = vpow.pop %v2718
    %v2720 = vadd.f32 %v2719, 1.0
    %v2721 = vrcp.pop %v2720
    %v2722 = vmul.f32 1.0, %v2721
    %v2723 = vmul.f32 %v2715, %v2507
    %v2724 = vmul.f32 %v2709, %v2716
    %v2725 = vadd.f32 %v2723, %v2724
    %v2726 = vtanh.pop %v2725
    %v2727 = vmul.f32 %v2722, %v2726
    %2728 = vmatprep.subr.bf16.mxu0 %v1065
    %2729 = vmatpush1.bf16.msra.mxu0 %v1064
    %2730 = vmatprep.subr.bf16.mxu0 %v1061
    %2731 = vmatpush1.bf16.msra.mxu0 %v1060
    %2732 = vmatprep.subr.bf16.mxu0 %v1057
    %2733 = vmatpush1.bf16.msra.mxu0 %v1056
    %2734 = vmatprep.subr.bf16.mxu0 %v1053
    %2735 = vmatpush1.bf16.msra.mxu0 %v1052
    %2736 = vmatprep.subr.bf16.mxu0 %v1049
    %2737 = vmatpush1.bf16.msra.mxu0 %v1048
    %2738 = vmatprep.subr.bf16.mxu0 %v1045
    %2739 = vmatpush1.bf16.msra.mxu0 %v1044
    %2740 = vmatprep.subr.bf16.mxu0 %v1041
    %2741 = vmatpush1.bf16.msra.mxu0 %v1040
    %2742 = vmatprep.subr.bf16.mxu0 %v1037
    %2743 = vmatpush1.bf16.msra.mxu0 %v1036
    %2744 = vmatprep.subr.bf16.mxu0 0
    %2745 = vmatpush2.bf16.msra.mxu0 0
    %2746 = vmatprep.subr.bf16.mxu0 0
    %2747 = vmatpush2.bf16.msra.mxu0 0
    %2748 = vmatprep.subr.bf16.mxu0 0
    %2749 = vmatpush2.bf16.msra.mxu0 0
    %2750 = vmatprep.subr.bf16.mxu0 0
    %2751 = vmatpush2.bf16.msra.mxu0 0
    %2752 = vmatprep.subr.bf16.mxu0 0
    %2753 = vmatpush2.bf16.msra.mxu0 0
    %2754 = vmatprep.subr.bf16.mxu0 0
    %2755 = vmatpush2.bf16.msra.mxu0 0
    %2756 = vmatprep.subr.bf16.mxu0 0
    %2757 = vmatpush2.bf16.msra.mxu0 0
    %2758 = vmatprep.subr.bf16.mxu0 0
    %2759 = vmatpush2.bf16.msra.mxu0 0
    %2760 = vmatprep.mubr.bf16.mxu0 0
    %2761 = vmatmul.mubr.bf16.gmra.mxu0 %v2620
    %v2762 = vpop.f32.mrf.mxu0
    %v2763 = vadd.f32 0.0, %v2762
    %v2764 = vpop.f32.mrf.mxu0
    %v2765 = vadd.f32 0.0, %v2764
    %v2766 = vpop.f32.mrf.mxu0
    %v2767 = vpop.f32.mrf.mxu0
    %2768 = vdwg.mxu0
    %2769 = vmatprep.subr.bf16.mxu0 %v1067
    %2770 = vmatpush1.bf16.msra.mxu0 %v1066
    %2771 = vmatprep.subr.bf16.mxu0 %v1063
    %2772 = vmatpush1.bf16.msra.mxu0 %v1062
    %2773 = vmatprep.subr.bf16.mxu0 %v1059
    %2774 = vmatpush1.bf16.msra.mxu0 %v1058
    %2775 = vmatprep.subr.bf16.mxu0 %v1055
    %2776 = vmatpush1.bf16.msra.mxu0 %v1054
    %2777 = vmatprep.subr.bf16.mxu0 %v1051
    %2778 = vmatpush1.bf16.msra.mxu0 %v1050
    %2779 = vmatprep.subr.bf16.mxu0 %v1047
    %2780 = vmatpush1.bf16.msra.mxu0 %v1046
    %2781 = vmatprep.subr.bf16.mxu0 %v1043
    %2782 = vmatpush1.bf16.msra.mxu0 %v1042
    %2783 = vmatprep.subr.bf16.mxu0 %v1039
    %2784 = vmatpush1.bf16.msra.mxu0 %v1038
    %2785 = vmatprep.subr.bf16.mxu0 0
    %2786 = vmatpush2.bf16.msra.mxu0 0
    %2787 = vmatprep.subr.bf16.mxu0 0
    %2788 = vmatpush2.bf16.msra.mxu0 0
    %2789 = vmatprep.subr.bf16.mxu0 0
    %2790 = vmatpush2.bf16.msra.mxu0 0
    %2791 = vmatprep.subr.bf16.mxu0 0
    %2792 = vmatpush2.bf16.msra.mxu0 0
    %2793 = vmatprep.subr.bf16.mxu0 0
    %2794 = vmatpush2.bf16.msra.mxu0 0
    %2795 = vmatprep.subr.bf16.mxu0 0
    %2796 = vmatpush2.bf16.msra.mxu0 0
    %2797 = vmatprep.subr.bf16.mxu0 0
    %2798 = vmatpush2.bf16.msra.mxu0 0
    %2799 = vmatprep.subr.bf16.mxu0 0
    %2800 = vmatpush2.bf16.msra.mxu0 0
    %2801 = vmatprep.mubr.bf16.mxu0 0
    %2802 = vmatmul.mubr.bf16.gmra.mxu0 %v2620
    %v2803 = vpop.f32.mrf.mxu0
    %v2804 = vadd.f32 0.0, %v2803
    %v2805 = vpop.f32.mrf.mxu0
    %v2806 = vadd.f32 0.0, %v2805
    %v2807 = vpop.f32.mrf.mxu0
    %v2808 = vpop.f32.mrf.mxu0
    %2809 = vdwg.mxu0
    %v2810 = vadd.f32 %v595, %v2763
    %v2811 = vadd.f32 %v597, %v2765
    %v2812 = vadd.f32 %v668, %v2804
    %v2813 = vadd.f32 %v670, %v2806
    %v2814 = vxor.u32 %v2810, 2147483648
    %v2815 = vmul.f32 %v2814, 1.442695
    %v2816 = vpow.pop %v2815
    %v2817 = vadd.f32 %v2816, 1.0
    %v2818 = vrcp.pop %v2817
    %v2819 = vmul.f32 1.0, %v2818
    %v2820 = vxor.u32 %v2811, 2147483648
    %v2821 = vmul.f32 %v2820, 1.442695
    %v2822 = vpow.pop %v2821
    %v2823 = vadd.f32 %v2822, 1.0
    %v2824 = vrcp.pop %v2823
    %v2825 = vmul.f32 1.0, %v2824
    %v2826 = vtanh.pop %v2812
    %v2827 = vxor.u32 %v2813, 2147483648
    %v2828 = vmul.f32 %v2827, 1.442695
    %v2829 = vpow.pop %v2828
    %v2830 = vadd.f32 %v2829, 1.0
    %v2831 = vrcp.pop %v2830
    %v2832 = vmul.f32 1.0, %v2831
    %v2833 = vmul.f32 %v2825, %v2617
    %v2834 = vmul.f32 %v2819, %v2826
    %v2835 = vadd.f32 %v2833, %v2834
    %v2836 = vtanh.pop %v2835
    %v2837 = vmul.f32 %v2832, %v2836
    %v2838 = vpack.c.bf16 %v2837, %v2837
    %v2839 = vpack.c.bf16 %v2727, %v2727
    %2840 = vmatprep.subr.bf16.mxu0 %v1433
    %2841 = vmatpush1.bf16.msra.mxu0 %v1432
    %2842 = vmatprep.subr.bf16.mxu0 %v1429
    %2843 = vmatpush1.bf16.msra.mxu0 %v1428
    %2844 = vmatprep.subr.bf16.mxu0 %v1425
    %2845 = vmatpush1.bf16.msra.mxu0 %v1424
    %2846 = vmatprep.subr.bf16.mxu0 %v1421
    %2847 = vmatpush1.bf16.msra.mxu0 %v1420
    %2848 = vmatprep.subr.bf16.mxu0 %v1417
    %2849 = vmatpush1.bf16.msra.mxu0 %v1416
    %2850 = vmatprep.subr.bf16.mxu0 %v1413
    %2851 = vmatpush1.bf16.msra.mxu0 %v1412
    %2852 = vmatprep.subr.bf16.mxu0 %v1409
    %2853 = vmatpush1.bf16.msra.mxu0 %v1408
    %2854 = vmatprep.subr.bf16.mxu0 %v1405
    %2855 = vmatpush1.bf16.msra.mxu0 %v1404
    %2856 = vmatprep.subr.bf16.mxu0 %v1465
    %2857 = vmatpush2.bf16.msra.mxu0 %v1464
    %2858 = vmatprep.subr.bf16.mxu0 %v1461
    %2859 = vmatpush2.bf16.msra.mxu0 %v1460
    %2860 = vmatprep.subr.bf16.mxu0 %v1457
    %2861 = vmatpush2.bf16.msra.mxu0 %v1456
    %2862 = vmatprep.subr.bf16.mxu0 %v1453
    %2863 = vmatpush2.bf16.msra.mxu0 %v1452
    %2864 = vmatprep.subr.bf16.mxu0 %v1449
    %2865 = vmatpush2.bf16.msra.mxu0 %v1448
    %2866 = vmatprep.subr.bf16.mxu0 %v1445
    %2867 = vmatpush2.bf16.msra.mxu0 %v1444
    %2868 = vmatprep.subr.bf16.mxu0 %v1441
    %2869 = vmatpush2.bf16.msra.mxu0 %v1440
    %2870 = vmatprep.subr.bf16.mxu0 %v1437
    %2871 = vmatpush2.bf16.msra.mxu0 %v1436
    %2872 = vmatprep.mubr.bf16.mxu0 %v2839
    %2873 = vmatmul.mubr.bf16.gmra.mxu0 %v2838
    %v2874 = vpop.f32.mrf.mxu0
    %v2875 = vadd.f32 %v341, %v2874
    %v2876 = vpop.f32.mrf.mxu0
    %v2877 = vadd.f32 %v345, %v2876
    %v2878 = vpop.f32.mrf.mxu0
    %v2879 = vpop.f32.mrf.mxu0
    %2880 = vdwg.mxu0
    %2881 = vmatprep.subr.bf16.mxu0 %v1435
    %2882 = vmatpush1.bf16.msra.mxu0 %v1434
    %2883 = vmatprep.subr.bf16.mxu0 %v1431
    %2884 = vmatpush1.bf16.msra.mxu0 %v1430
    %2885 = vmatprep.subr.bf16.mxu0 %v1427
    %2886 = vmatpush1.bf16.msra.mxu0 %v1426
    %2887 = vmatprep.subr.bf16.mxu0 %v1423
    %2888 = vmatpush1.bf16.msra.mxu0 %v1422
    %2889 = vmatprep.subr.bf16.mxu0 %v1419
    %2890 = vmatpush1.bf16.msra.mxu0 %v1418
    %2891 = vmatprep.subr.bf16.mxu0 %v1415
    %2892 = vmatpush1.bf16.msra.mxu0 %v1414
    %2893 = vmatprep.subr.bf16.mxu0 %v1411
    %2894 = vmatpush1.bf16.msra.mxu0 %v1410
    %2895 = vmatprep.subr.bf16.mxu0 %v1407
    %2896 = vmatpush1.bf16.msra.mxu0 %v1406
    %2897 = vmatprep.subr.bf16.mxu0 %v1467
    %2898 = vmatpush2.bf16.msra.mxu0 %v1466
    %2899 = vmatprep.subr.bf16.mxu0 %v1463
    %2900 = vmatpush2.bf16.msra.mxu0 %v1462
    %2901 = vmatprep.subr.bf16.mxu0 %v1459
    %2902 = vmatpush2.bf16.msra.mxu0 %v1458
    %2903 = vmatprep.subr.bf16.mxu0 %v1455
    %2904 = vmatpush2.bf16.msra.mxu0 %v1454
    %2905 = vmatprep.subr.bf16.mxu0 %v1451
    %2906 = vmatpush2.bf16.msra.mxu0 %v1450
    %2907 = vmatprep.subr.bf16.mxu0 %v1447
    %2908 = vmatpush2.bf16.msra.mxu0 %v1446
    %2909 = vmatprep.subr.bf16.mxu0 %v1443
    %2910 = vmatpush2.bf16.msra.mxu0 %v1442
    %2911 = vmatprep.subr.bf16.mxu0 %v1439
    %2912 = vmatpush2.bf16.msra.mxu0 %v1438
    %2913 = vmatprep.mubr.bf16.mxu0 %v2839
    %2914 = vmatmul.mubr.bf16.gmra.mxu0 %v2838
    %v2915 = vpop.f32.mrf.mxu0
    %v2916 = vadd.f32 %v349, %v2915
    %v2917 = vpop.f32.mrf.mxu0
    %v2918 = vadd.f32 %v353, %v2917
    %v2919 = vpop.f32.mrf.mxu0
    %v2920 = vpop.f32.mrf.mxu0
    %2921 = vdwg.mxu0
    %v2922 = vxor.u32 %v2875, 2147483648
    %v2923 = vmul.f32 %v2922, 1.442695
    %v2924 = vpow.pop %v2923
    %v2925 = vadd.f32 %v2924, 1.0
    %v2926 = vrcp.pop %v2925
    %v2927 = vmul.f32 1.0, %v2926
    %v2928 = vxor.u32 %v2877, 2147483648
    %v2929 = vmul.f32 %v2928, 1.442695
    %v2930 = vpow.pop %v2929
    %v2931 = vadd.f32 %v2930, 1.0
    %v2932 = vrcp.pop %v2931
    %v2933 = vmul.f32 1.0, %v2932
    %v2934 = vtanh.pop %v2916
    %v2935 = vxor.u32 %v2918, 2147483648
    %v2936 = vmul.f32 %v2935, 1.442695
    %v2937 = vpow.pop %v2936
    %v2938 = vadd.f32 %v2937, 1.0
    %v2939 = vrcp.pop %v2938
    %v2940 = vmul.f32 1.0, %v2939
    %v2941 = vmul.f32 %v2933, %v2725
    %v2942 = vmul.f32 %v2927, %v2934
    %v2943 = vadd.f32 %v2941, %v2942
    %v2944 = vtanh.pop %v2943
    %v2945 = vmul.f32 %v2940, %v2944
    %2946 = vmatprep.subr.bf16.mxu0 %v1065
    %2947 = vmatpush1.bf16.msra.mxu0 %v1064
    %2948 = vmatprep.subr.bf16.mxu0 %v1061
    %2949 = vmatpush1.bf16.msra.mxu0 %v1060
    %2950 = vmatprep.subr.bf16.mxu0 %v1057
    %2951 = vmatpush1.bf16.msra.mxu0 %v1056
    %2952 = vmatprep.subr.bf16.mxu0 %v1053
    %2953 = vmatpush1.bf16.msra.mxu0 %v1052
    %2954 = vmatprep.subr.bf16.mxu0 %v1049
    %2955 = vmatpush1.bf16.msra.mxu0 %v1048
    %2956 = vmatprep.subr.bf16.mxu0 %v1045
    %2957 = vmatpush1.bf16.msra.mxu0 %v1044
    %2958 = vmatprep.subr.bf16.mxu0 %v1041
    %2959 = vmatpush1.bf16.msra.mxu0 %v1040
    %2960 = vmatprep.subr.bf16.mxu0 %v1037
    %2961 = vmatpush1.bf16.msra.mxu0 %v1036
    %2962 = vmatprep.subr.bf16.mxu0 0
    %2963 = vmatpush2.bf16.msra.mxu0 0
    %2964 = vmatprep.subr.bf16.mxu0 0
    %2965 = vmatpush2.bf16.msra.mxu0 0
    %2966 = vmatprep.subr.bf16.mxu0 0
    %2967 = vmatpush2.bf16.msra.mxu0 0
    %2968 = vmatprep.subr.bf16.mxu0 0
    %2969 = vmatpush2.bf16.msra.mxu0 0
    %2970 = vmatprep.subr.bf16.mxu0 0
    %2971 = vmatpush2.bf16.msra.mxu0 0
    %2972 = vmatprep.subr.bf16.mxu0 0
    %2973 = vmatpush2.bf16.msra.mxu0 0
    %2974 = vmatprep.subr.bf16.mxu0 0
    %2975 = vmatpush2.bf16.msra.mxu0 0
    %2976 = vmatprep.subr.bf16.mxu0 0
    %2977 = vmatpush2.bf16.msra.mxu0 0
    %2978 = vmatprep.mubr.bf16.mxu0 0
    %2979 = vmatmul.mubr.bf16.gmra.mxu0 %v2838
    %v2980 = vpop.f32.mrf.mxu0
    %v2981 = vadd.f32 0.0, %v2980
    %v2982 = vpop.f32.mrf.mxu0
    %v2983 = vadd.f32 0.0, %v2982
    %v2984 = vpop.f32.mrf.mxu0
    %v2985 = vpop.f32.mrf.mxu0
    %2986 = vdwg.mxu0
    %2987 = vmatprep.subr.bf16.mxu0 %v1067
    %2988 = vmatpush1.bf16.msra.mxu0 %v1066
    %2989 = vmatprep.subr.bf16.mxu0 %v1063
    %2990 = vmatpush1.bf16.msra.mxu0 %v1062
    %2991 = vmatprep.subr.bf16.mxu0 %v1059
    %2992 = vmatpush1.bf16.msra.mxu0 %v1058
    %2993 = vmatprep.subr.bf16.mxu0 %v1055
    %2994 = vmatpush1.bf16.msra.mxu0 %v1054
    %2995 = vmatprep.subr.bf16.mxu0 %v1051
    %2996 = vmatpush1.bf16.msra.mxu0 %v1050
    %2997 = vmatprep.subr.bf16.mxu0 %v1047
    %2998 = vmatpush1.bf16.msra.mxu0 %v1046
    %2999 = vmatprep.subr.bf16.mxu0 %v1043
    %3000 = vmatpush1.bf16.msra.mxu0 %v1042
    %3001 = vmatprep.subr.bf16.mxu0 %v1039
    %3002 = vmatpush1.bf16.msra.mxu0 %v1038
    %3003 = vmatprep.subr.bf16.mxu0 0
    %3004 = vmatpush2.bf16.msra.mxu0 0
    %3005 = vmatprep.subr.bf16.mxu0 0
    %3006 = vmatpush2.bf16.msra.mxu0 0
    %3007 = vmatprep.subr.bf16.mxu0 0
    %3008 = vmatpush2.bf16.msra.mxu0 0
    %3009 = vmatprep.subr.bf16.mxu0 0
    %3010 = vmatpush2.bf16.msra.mxu0 0
    %3011 = vmatprep.subr.bf16.mxu0 0
    %3012 = vmatpush2.bf16.msra.mxu0 0
    %3013 = vmatprep.subr.bf16.mxu0 0
    %3014 = vmatpush2.bf16.msra.mxu0 0
    %3015 = vmatprep.subr.bf16.mxu0 0
    %3016 = vmatpush2.bf16.msra.mxu0 0
    %3017 = vmatprep.subr.bf16.mxu0 0
    %3018 = vmatpush2.bf16.msra.mxu0 0
    %3019 = vmatprep.mubr.bf16.mxu0 0
    %3020 = vmatmul.mubr.bf16.gmra.mxu0 %v2838
    %v3021 = vpop.f32.mrf.mxu0
    %v3022 = vadd.f32 0.0, %v3021
    %v3023 = vpop.f32.mrf.mxu0
    %v3024 = vadd.f32 0.0, %v3023
    %v3025 = vpop.f32.mrf.mxu0
    %v3026 = vpop.f32.mrf.mxu0
    %3027 = vdwg.mxu0
    %v3028 = vadd.f32 %v599, %v2981
    %v3029 = vadd.f32 %v601, %v2983
    %v3030 = vadd.f32 %v672, %v3022
    %v3031 = vadd.f32 %v674, %v3024
    %v3032 = vxor.u32 %v3028, 2147483648
    %v3033 = vmul.f32 %v3032, 1.442695
    %v3034 = vpow.pop %v3033
    %v3035 = vadd.f32 %v3034, 1.0
    %v3036 = vrcp.pop %v3035
    %v3037 = vmul.f32 1.0, %v3036
    %v3038 = vxor.u32 %v3029, 2147483648
    %v3039 = vmul.f32 %v3038, 1.442695
    %v3040 = vpow.pop %v3039
    %v3041 = vadd.f32 %v3040, 1.0
    %v3042 = vrcp.pop %v3041
    %v3043 = vmul.f32 1.0, %v3042
    %v3044 = vtanh.pop %v3030
    %v3045 = vxor.u32 %v3031, 2147483648
    %v3046 = vmul.f32 %v3045, 1.442695
    %v3047 = vpow.pop %v3046
    %v3048 = vadd.f32 %v3047, 1.0
    %v3049 = vrcp.pop %v3048
    %v3050 = vmul.f32 1.0, %v3049
    %v3051 = vmul.f32 %v3043, %v2835
    %v3052 = vmul.f32 %v3037, %v3044
    %v3053 = vadd.f32 %v3051, %v3052
    %v3054 = vtanh.pop %v3053
    %v3055 = vmul.f32 %v3050, %v3054
    %v3056 = vpack.c.bf16 %v3055, %v3055
    %v3057 = vpack.c.bf16 %v2945, %v2945
    %3058 = vmatprep.subr.bf16.mxu0 %v1433
    %3059 = vmatpush1.bf16.msra.mxu0 %v1432
    %3060 = vmatprep.subr.bf16.mxu0 %v1429
    %3061 = vmatpush1.bf16.msra.mxu0 %v1428
    %3062 = vmatprep.subr.bf16.mxu0 %v1425
    %3063 = vmatpush1.bf16.msra.mxu0 %v1424
    %3064 = vmatprep.subr.bf16.mxu0 %v1421
    %3065 = vmatpush1.bf16.msra.mxu0 %v1420
    %3066 = vmatprep.subr.bf16.mxu0 %v1417
    %3067 = vmatpush1.bf16.msra.mxu0 %v1416
    %3068 = vmatprep.subr.bf16.mxu0 %v1413
    %3069 = vmatpush1.bf16.msra.mxu0 %v1412
    %3070 = vmatprep.subr.bf16.mxu0 %v1409
    %3071 = vmatpush1.bf16.msra.mxu0 %v1408
    %3072 = vmatprep.subr.bf16.mxu0 %v1405
    %3073 = vmatpush1.bf16.msra.mxu0 %v1404
    %3074 = vmatprep.subr.bf16.mxu0 %v1465
    %3075 = vmatpush2.bf16.msra.mxu0 %v1464
    %3076 = vmatprep.subr.bf16.mxu0 %v1461
    %3077 = vmatpush2.bf16.msra.mxu0 %v1460
    %3078 = vmatprep.subr.bf16.mxu0 %v1457
    %3079 = vmatpush2.bf16.msra.mxu0 %v1456
    %3080 = vmatprep.subr.bf16.mxu0 %v1453
    %3081 = vmatpush2.bf16.msra.mxu0 %v1452
    %3082 = vmatprep.subr.bf16.mxu0 %v1449
    %3083 = vmatpush2.bf16.msra.mxu0 %v1448
    %3084 = vmatprep.subr.bf16.mxu0 %v1445
    %3085 = vmatpush2.bf16.msra.mxu0 %v1444
    %3086 = vmatprep.subr.bf16.mxu0 %v1441
    %3087 = vmatpush2.bf16.msra.mxu0 %v1440
    %3088 = vmatprep.subr.bf16.mxu0 %v1437
    %3089 = vmatpush2.bf16.msra.mxu0 %v1436
    %3090 = vmatprep.mubr.bf16.mxu0 %v3057
    %3091 = vmatmul.mubr.bf16.gmra.mxu0 %v3056
    %v3092 = vpop.f32.mrf.mxu0
    %v3093 = vadd.f32 %v341, %v3092
    %v3094 = vpop.f32.mrf.mxu0
    %v3095 = vadd.f32 %v345, %v3094
    %v3096 = vpop.f32.mrf.mxu0
    %v3097 = vpop.f32.mrf.mxu0
    %3098 = vdwg.mxu0
    %3099 = vmatprep.subr.bf16.mxu0 %v1435
    %3100 = vmatpush1.bf16.msra.mxu0 %v1434
    %3101 = vmatprep.subr.bf16.mxu0 %v1431
    %3102 = vmatpush1.bf16.msra.mxu0 %v1430
    %3103 = vmatprep.subr.bf16.mxu0 %v1427
    %3104 = vmatpush1.bf16.msra.mxu0 %v1426
    %3105 = vmatprep.subr.bf16.mxu0 %v1423
    %3106 = vmatpush1.bf16.msra.mxu0 %v1422
    %3107 = vmatprep.subr.bf16.mxu0 %v1419
    %3108 = vmatpush1.bf16.msra.mxu0 %v1418
    %3109 = vmatprep.subr.bf16.mxu0 %v1415
    %3110 = vmatpush1.bf16.msra.mxu0 %v1414
    %3111 = vmatprep.subr.bf16.mxu0 %v1411
    %3112 = vmatpush1.bf16.msra.mxu0 %v1410
    %3113 = vmatprep.subr.bf16.mxu0 %v1407
    %3114 = vmatpush1.bf16.msra.mxu0 %v1406
    %3115 = vmatprep.subr.bf16.mxu0 %v1467
    %3116 = vmatpush2.bf16.msra.mxu0 %v1466
    %3117 = vmatprep.subr.bf16.mxu0 %v1463
    %3118 = vmatpush2.bf16.msra.mxu0 %v1462
    %3119 = vmatprep.subr.bf16.mxu0 %v1459
    %3120 = vmatpush2.bf16.msra.mxu0 %v1458
    %3121 = vmatprep.subr.bf16.mxu0 %v1455
    %3122 = vmatpush2.bf16.msra.mxu0 %v1454
    %3123 = vmatprep.subr.bf16.mxu0 %v1451
    %3124 = vmatpush2.bf16.msra.mxu0 %v1450
    %3125 = vmatprep.subr.bf16.mxu0 %v1447
    %3126 = vmatpush2.bf16.msra.mxu0 %v1446
    %3127 = vmatprep.subr.bf16.mxu0 %v1443
    %3128 = vmatpush2.bf16.msra.mxu0 %v1442
    %3129 = vmatprep.subr.bf16.mxu0 %v1439
    %3130 = vmatpush2.bf16.msra.mxu0 %v1438
    %3131 = vmatprep.mubr.bf16.mxu0 %v3057
    %3132 = vmatmul.mubr.bf16.gmra.mxu0 %v3056
    %v3133 = vpop.f32.mrf.mxu0
    %v3134 = vadd.f32 %v349, %v3133
    %v3135 = vpop.f32.mrf.mxu0
    %v3136 = vadd.f32 %v353, %v3135
    %v3137 = vpop.f32.mrf.mxu0
    %v3138 = vpop.f32.mrf.mxu0
    %3139 = vdwg.mxu0
    %v3140 = vxor.u32 %v3093, 2147483648
    %v3141 = vmul.f32 %v3140, 1.442695
    %v3142 = vpow.pop %v3141
    %v3143 = vadd.f32 %v3142, 1.0
    %v3144 = vrcp.pop %v3143
    %v3145 = vmul.f32 1.0, %v3144
    %v3146 = vxor.u32 %v3095, 2147483648
    %v3147 = vmul.f32 %v3146, 1.442695
    %v3148 = vpow.pop %v3147
    %v3149 = vadd.f32 %v3148, 1.0
    %v3150 = vrcp.pop %v3149
    %v3151 = vmul.f32 1.0, %v3150
    %v3152 = vtanh.pop %v3134
    %v3153 = vxor.u32 %v3136, 2147483648
    %v3154 = vmul.f32 %v3153, 1.442695
    %v3155 = vpow.pop %v3154
    %v3156 = vadd.f32 %v3155, 1.0
    %v3157 = vrcp.pop %v3156
    %v3158 = vmul.f32 1.0, %v3157
    %v3159 = vmul.f32 %v3151, %v2943
    %v3160 = vmul.f32 %v3145, %v3152
    %v3161 = vadd.f32 %v3159, %v3160
    %v3162 = vtanh.pop %v3161
    %v3163 = vmul.f32 %v3158, %v3162
    %v3196 = vunpack.c.l.b16 %v224
    %v3197 = vunpack.c.h.b16 %v224
    %v3198 = vunpack.c.l.b16 %v225
    %v3199 = vunpack.c.h.b16 %v225
    %v3200 = vunpack.c.l.b16 %v226
    %v3201 = vunpack.c.h.b16 %v226
    %v3202 = vunpack.c.l.b16 %v227
    %v3203 = vunpack.c.h.b16 %v227
    %v3204 = vunpack.c.l.b16 %v228
    %v3205 = vunpack.c.h.b16 %v228
    %v3206 = vunpack.c.l.b16 %v229
    %v3207 = vunpack.c.h.b16 %v229
    %v3208 = vunpack.c.l.b16 %v230
    %v3209 = vunpack.c.h.b16 %v230
    %v3210 = vunpack.c.l.b16 %v231
    %v3211 = vunpack.c.h.b16 %v231
    %v3212 = vunpack.c.l.b16 %v232
    %v3213 = vunpack.c.h.b16 %v232
    %v3214 = vunpack.c.l.b16 %v233
    %v3215 = vunpack.c.h.b16 %v233
    %v3216 = vunpack.c.l.b16 %v234
    %v3217 = vunpack.c.h.b16 %v234
    %v3218 = vunpack.c.l.b16 %v235
    %v3219 = vunpack.c.h.b16 %v235
    %v3220 = vunpack.c.l.b16 %v236
    %v3221 = vunpack.c.h.b16 %v236
    %v3222 = vunpack.c.l.b16 %v237
    %v3223 = vunpack.c.h.b16 %v237
    %v3224 = vunpack.c.l.b16 %v238
    %v3225 = vunpack.c.h.b16 %v238
    %v3226 = vunpack.c.l.b16 %v239
    %v3227 = vunpack.c.h.b16 %v239
    %v3228 = vunpack.c.l.b16 %v240
    %v3229 = vunpack.c.h.b16 %v240
    %v3230 = vunpack.c.l.b16 %v241
    %v3231 = vunpack.c.h.b16 %v241
    %v3232 = vunpack.c.l.b16 %v242
    %v3233 = vunpack.c.h.b16 %v242
    %v3234 = vunpack.c.l.b16 %v243
    %v3235 = vunpack.c.h.b16 %v243
    %v3236 = vunpack.c.l.b16 %v244
    %v3237 = vunpack.c.h.b16 %v244
    %v3238 = vunpack.c.l.b16 %v245
    %v3239 = vunpack.c.h.b16 %v245
    %v3240 = vunpack.c.l.b16 %v246
    %v3241 = vunpack.c.h.b16 %v246
    %v3242 = vunpack.c.l.b16 %v247
    %v3243 = vunpack.c.h.b16 %v247
    %v3244 = vunpack.c.l.b16 %v248
    %v3245 = vunpack.c.h.b16 %v248
    %v3246 = vunpack.c.l.b16 %v249
    %v3247 = vunpack.c.h.b16 %v249
    %v3248 = vunpack.c.l.b16 %v250
    %v3249 = vunpack.c.h.b16 %v250
    %v3250 = vunpack.c.l.b16 %v251
    %v3251 = vunpack.c.h.b16 %v251
    %v3252 = vunpack.c.l.b16 %v252
    %v3253 = vunpack.c.h.b16 %v252
    %v3254 = vunpack.c.l.b16 %v253
    %v3255 = vunpack.c.h.b16 %v253
    %v3256 = vunpack.c.l.b16 %v254
    %v3257 = vunpack.c.h.b16 %v254
    %v3258 = vunpack.c.l.b16 %v255
    %v3259 = vunpack.c.h.b16 %v255
    %v3260 = vpack.c.b16 %v3200, %v3196
    %v3261 = vpack.c.b16 %v3201, %v3197
    %v3262 = vpack.c.b16 %v3202, %v3198
    %v3263 = vpack.c.b16 %v3203, %v3199
    %v3264 = vpack.c.b16 %v3208, %v3204
    %v3265 = vpack.c.b16 %v3209, %v3205
    %v3266 = vpack.c.b16 %v3210, %v3206
    %v3267 = vpack.c.b16 %v3211, %v3207
    %v3268 = vpack.c.b16 %v3216, %v3212
    %v3269 = vpack.c.b16 %v3217, %v3213
    %v3270 = vpack.c.b16 %v3218, %v3214
    %v3271 = vpack.c.b16 %v3219, %v3215
    %v3272 = vpack.c.b16 %v3224, %v3220
    %v3273 = vpack.c.b16 %v3225, %v3221
    %v3274 = vpack.c.b16 %v3226, %v3222
    %v3275 = vpack.c.b16 %v3227, %v3223
    %v3276 = vpack.c.b16 %v3232, %v3228
    %v3277 = vpack.c.b16 %v3233, %v3229
    %v3278 = vpack.c.b16 %v3234, %v3230
    %v3279 = vpack.c.b16 %v3235, %v3231
    %v3280 = vpack.c.b16 %v3240, %v3236
    %v3281 = vpack.c.b16 %v3241, %v3237
    %v3282 = vpack.c.b16 %v3242, %v3238
    %v3283 = vpack.c.b16 %v3243, %v3239
    %v3284 = vpack.c.b16 %v3248, %v3244
    %v3285 = vpack.c.b16 %v3249, %v3245
    %v3286 = vpack.c.b16 %v3250, %v3246
    %v3287 = vpack.c.b16 %v3251, %v3247
    %v3288 = vpack.c.b16 %v3256, %v3252
    %v3289 = vpack.c.b16 %v3257, %v3253
    %v3290 = vpack.c.b16 %v3258, %v3254
    %v3291 = vpack.c.b16 %v3259, %v3255
    %3324 = vmatprep.subr.bf16.mxu0 %v3289
    %3325 = vmatpush1.bf16.msra.mxu0 %v3288
    %3326 = vmatprep.subr.bf16.mxu0 %v3285
    %3327 = vmatpush1.bf16.msra.mxu0 %v3284
    %3328 = vmatprep.subr.bf16.mxu0 %v3281
    %3329 = vmatpush1.bf16.msra.mxu0 %v3280
    %3330 = vmatprep.subr.bf16.mxu0 %v3277
    %3331 = vmatpush1.bf16.msra.mxu0 %v3276
    %3332 = vmatprep.subr.bf16.mxu0 %v3273
    %3333 = vmatpush1.bf16.msra.mxu0 %v3272
    %3334 = vmatprep.subr.bf16.mxu0 %v3269
    %3335 = vmatpush1.bf16.msra.mxu0 %v3268
    %3336 = vmatprep.subr.bf16.mxu0 %v3265
    %3337 = vmatpush1.bf16.msra.mxu0 %v3264
    %3338 = vmatprep.subr.bf16.mxu0 %v3261
    %3339 = vmatpush1.bf16.msra.mxu0 %v3260
    %3340 = vmatprep.subr.bf16.mxu0 0
    %3341 = vmatpush2.bf16.msra.mxu0 0
    %3342 = vmatprep.subr.bf16.mxu0 0
    %3343 = vmatpush2.bf16.msra.mxu0 0
    %3344 = vmatprep.subr.bf16.mxu0 0
    %3345 = vmatpush2.bf16.msra.mxu0 0
    %3346 = vmatprep.subr.bf16.mxu0 0
    %3347 = vmatpush2.bf16.msra.mxu0 0
    %3348 = vmatprep.subr.bf16.mxu0 0
    %3349 = vmatpush2.bf16.msra.mxu0 0
    %3350 = vmatprep.subr.bf16.mxu0 0
    %3351 = vmatpush2.bf16.msra.mxu0 0
    %3352 = vmatprep.subr.bf16.mxu0 0
    %3353 = vmatpush2.bf16.msra.mxu0 0
    %3354 = vmatprep.subr.bf16.mxu0 0
    %3355 = vmatpush2.bf16.msra.mxu0 0
    %3356 = vmatprep.mubr.bf16.mxu0 0
    %3357 = vmatmul.mubr.bf16.gmra.mxu0 %v3056
    %v3358 = vpop.f32.mrf.mxu0
    %v3359 = vadd.f32 0.0, %v3358
    %v3360 = vpop.f32.mrf.mxu0
    %v3361 = vadd.f32 0.0, %v3360
    %v3362 = vpop.f32.mrf.mxu0
    %v3363 = vpop.f32.mrf.mxu0
    %3364 = vdwg.mxu0
    %3365 = vmatprep.subr.bf16.mxu0 %v3291
    %3366 = vmatpush1.bf16.msra.mxu0 %v3290
    %3367 = vmatprep.subr.bf16.mxu0 %v3287
    %3368 = vmatpush1.bf16.msra.mxu0 %v3286
    %3369 = vmatprep.subr.bf16.mxu0 %v3283
    %3370 = vmatpush1.bf16.msra.mxu0 %v3282
    %3371 = vmatprep.subr.bf16.mxu0 %v3279
    %3372 = vmatpush1.bf16.msra.mxu0 %v3278
    %3373 = vmatprep.subr.bf16.mxu0 %v3275
    %3374 = vmatpush1.bf16.msra.mxu0 %v3274
    %3375 = vmatprep.subr.bf16.mxu0 %v3271
    %3376 = vmatpush1.bf16.msra.mxu0 %v3270
    %3377 = vmatprep.subr.bf16.mxu0 %v3267
    %3378 = vmatpush1.bf16.msra.mxu0 %v3266
    %3379 = vmatprep.subr.bf16.mxu0 %v3263
    %3380 = vmatpush1.bf16.msra.mxu0 %v3262
    %3381 = vmatprep.subr.bf16.mxu0 0
    %3382 = vmatpush2.bf16.msra.mxu0 0
    %3383 = vmatprep.subr.bf16.mxu0 0
    %3384 = vmatpush2.bf16.msra.mxu0 0
    %3385 = vmatprep.subr.bf16.mxu0 0
    %3386 = vmatpush2.bf16.msra.mxu0 0
    %3387 = vmatprep.subr.bf16.mxu0 0
    %3388 = vmatpush2.bf16.msra.mxu0 0
    %3389 = vmatprep.subr.bf16.mxu0 0
    %3390 = vmatpush2.bf16.msra.mxu0 0
    %3391 = vmatprep.subr.bf16.mxu0 0
    %3392 = vmatpush2.bf16.msra.mxu0 0
    %3393 = vmatprep.subr.bf16.mxu0 0
    %3394 = vmatpush2.bf16.msra.mxu0 0
    %3395 = vmatprep.subr.bf16.mxu0 0
    %3396 = vmatpush2.bf16.msra.mxu0 0
    %3397 = vmatprep.mubr.bf16.mxu0 0
    %3398 = vmatmul.mubr.bf16.gmra.mxu0 %v3056
    %v3399 = vpop.f32.mrf.mxu0
    %v3400 = vadd.f32 0.0, %v3399
    %v3401 = vpop.f32.mrf.mxu0
    %v3402 = vadd.f32 0.0, %v3401
    %v3403 = vpop.f32.mrf.mxu0
    %v3404 = vpop.f32.mrf.mxu0
    %3405 = vdwg.mxu0
    %v3406 = vadd.f32 %v863, %v3359
    %v3407 = vadd.f32 %v865, %v3361
    %v3408 = vadd.f32 %v936, %v3400
    %v3409 = vadd.f32 %v938, %v3402
    %v3410 = vxor.u32 %v3406, 2147483648
    %v3411 = vmul.f32 %v3410, 1.442695
    %v3412 = vpow.pop %v3411
    %v3413 = vadd.f32 %v3412, 1.0
    %v3414 = vrcp.pop %v3413
    %v3415 = vmul.f32 1.0, %v3414
    %v3416 = vxor.u32 %v3407, 2147483648
    %v3417 = vmul.f32 %v3416, 1.442695
    %v3418 = vpow.pop %v3417
    %v3419 = vadd.f32 %v3418, 1.0
    %v3420 = vrcp.pop %v3419
    %v3421 = vmul.f32 1.0, %v3420
    %v3422 = vtanh.pop %v3408
    %v3423 = vxor.u32 %v3409, 2147483648
    %v3424 = vmul.f32 %v3423, 1.442695
    %v3425 = vpow.pop %v3424
    %v3426 = vadd.f32 %v3425, 1.0
    %v3427 = vrcp.pop %v3426
    %v3428 = vmul.f32 1.0, %v3427
    %v3429 = vmul.f32 %v3421, %v3053
    %v3430 = vmul.f32 %v3415, %v3422
    %v3431 = vadd.f32 %v3429, %v3430
    %v3432 = vtanh.pop %v3431
    %v3433 = vmul.f32 %v3428, %v3432
    %v3434 = vpack.c.bf16 %v3433, %v3433
    %v3435 = vpack.c.bf16 %v3163, %v3163
    %v3500 = vunpack.c.l.b16 %v256
    %v3501 = vunpack.c.h.b16 %v256
    %v3502 = vunpack.c.l.b16 %v257
    %v3503 = vunpack.c.h.b16 %v257
    %v3504 = vunpack.c.l.b16 %v258
    %v3505 = vunpack.c.h.b16 %v258
    %v3506 = vunpack.c.l.b16 %v259
    %v3507 = vunpack.c.h.b16 %v259
    %v3508 = vunpack.c.l.b16 %v260
    %v3509 = vunpack.c.h.b16 %v260
    %v3510 = vunpack.c.l.b16 %v261
    %v3511 = vunpack.c.h.b16 %v261
    %v3512 = vunpack.c.l.b16 %v262
    %v3513 = vunpack.c.h.b16 %v262
    %v3514 = vunpack.c.l.b16 %v263
    %v3515 = vunpack.c.h.b16 %v263
    %v3516 = vunpack.c.l.b16 %v264
    %v3517 = vunpack.c.h.b16 %v264
    %v3518 = vunpack.c.l.b16 %v265
    %v3519 = vunpack.c.h.b16 %v265
    %v3520 = vunpack.c.l.b16 %v266
    %v3521 = vunpack.c.h.b16 %v266
    %v3522 = vunpack.c.l.b16 %v267
    %v3523 = vunpack.c.h.b16 %v267
    %v3524 = vunpack.c.l.b16 %v268
    %v3525 = vunpack.c.h.b16 %v268
    %v3526 = vunpack.c.l.b16 %v269
    %v3527 = vunpack.c.h.b16 %v269
    %v3528 = vunpack.c.l.b16 %v270
    %v3529 = vunpack.c.h.b16 %v270
    %v3530 = vunpack.c.l.b16 %v271
    %v3531 = vunpack.c.h.b16 %v271
    %v3532 = vunpack.c.l.b16 %v272
    %v3533 = vunpack.c.h.b16 %v272
    %v3534 = vunpack.c.l.b16 %v273
    %v3535 = vunpack.c.h.b16 %v273
    %v3536 = vunpack.c.l.b16 %v274
    %v3537 = vunpack.c.h.b16 %v274
    %v3538 = vunpack.c.l.b16 %v275
    %v3539 = vunpack.c.h.b16 %v275
    %v3540 = vunpack.c.l.b16 %v276
    %v3541 = vunpack.c.h.b16 %v276
    %v3542 = vunpack.c.l.b16 %v277
    %v3543 = vunpack.c.h.b16 %v277
    %v3544 = vunpack.c.l.b16 %v278
    %v3545 = vunpack.c.h.b16 %v278
    %v3546 = vunpack.c.l.b16 %v279
    %v3547 = vunpack.c.h.b16 %v279
    %v3548 = vunpack.c.l.b16 %v280
    %v3549 = vunpack.c.h.b16 %v280
    %v3550 = vunpack.c.l.b16 %v281
    %v3551 = vunpack.c.h.b16 %v281
    %v3552 = vunpack.c.l.b16 %v282
    %v3553 = vunpack.c.h.b16 %v282
    %v3554 = vunpack.c.l.b16 %v283
    %v3555 = vunpack.c.h.b16 %v283
    %v3556 = vunpack.c.l.b16 %v284
    %v3557 = vunpack.c.h.b16 %v284
    %v3558 = vunpack.c.l.b16 %v285
    %v3559 = vunpack.c.h.b16 %v285
    %v3560 = vunpack.c.l.b16 %v286
    %v3561 = vunpack.c.h.b16 %v286
    %v3562 = vunpack.c.l.b16 %v287
    %v3563 = vunpack.c.h.b16 %v287
    %v3564 = vunpack.c.l.b16 %v288
    %v3565 = vunpack.c.h.b16 %v288
    %v3566 = vunpack.c.l.b16 %v289
    %v3567 = vunpack.c.h.b16 %v289
    %v3568 = vunpack.c.l.b16 %v290
    %v3569 = vunpack.c.h.b16 %v290
    %v3570 = vunpack.c.l.b16 %v291
    %v3571 = vunpack.c.h.b16 %v291
    %v3572 = vunpack.c.l.b16 %v292
    %v3573 = vunpack.c.h.b16 %v292
    %v3574 = vunpack.c.l.b16 %v293
    %v3575 = vunpack.c.h.b16 %v293
    %v3576 = vunpack.c.l.b16 %v294
    %v3577 = vunpack.c.h.b16 %v294
    %v3578 = vunpack.c.l.b16 %v295
    %v3579 = vunpack.c.h.b16 %v295
    %v3580 = vunpack.c.l.b16 %v296
    %v3581 = vunpack.c.h.b16 %v296
    %v3582 = vunpack.c.l.b16 %v297
    %v3583 = vunpack.c.h.b16 %v297
    %v3584 = vunpack.c.l.b16 %v298
    %v3585 = vunpack.c.h.b16 %v298
    %v3586 = vunpack.c.l.b16 %v299
    %v3587 = vunpack.c.h.b16 %v299
    %v3588 = vunpack.c.l.b16 %v300
    %v3589 = vunpack.c.h.b16 %v300
    %v3590 = vunpack.c.l.b16 %v301
    %v3591 = vunpack.c.h.b16 %v301
    %v3592 = vunpack.c.l.b16 %v302
    %v3593 = vunpack.c.h.b16 %v302
    %v3594 = vunpack.c.l.b16 %v303
    %v3595 = vunpack.c.h.b16 %v303
    %v3596 = vunpack.c.l.b16 %v304
    %v3597 = vunpack.c.h.b16 %v304
    %v3598 = vunpack.c.l.b16 %v305
    %v3599 = vunpack.c.h.b16 %v305
    %v3600 = vunpack.c.l.b16 %v306
    %v3601 = vunpack.c.h.b16 %v306
    %v3602 = vunpack.c.l.b16 %v307
    %v3603 = vunpack.c.h.b16 %v307
    %v3604 = vunpack.c.l.b16 %v308
    %v3605 = vunpack.c.h.b16 %v308
    %v3606 = vunpack.c.l.b16 %v309
    %v3607 = vunpack.c.h.b16 %v309
    %v3608 = vunpack.c.l.b16 %v310
    %v3609 = vunpack.c.h.b16 %v310
    %v3610 = vunpack.c.l.b16 %v311
    %v3611 = vunpack.c.h.b16 %v311
    %v3612 = vunpack.c.l.b16 %v312
    %v3613 = vunpack.c.h.b16 %v312
    %v3614 = vunpack.c.l.b16 %v313
    %v3615 = vunpack.c.h.b16 %v313
    %v3616 = vunpack.c.l.b16 %v314
    %v3617 = vunpack.c.h.b16 %v314
    %v3618 = vunpack.c.l.b16 %v315
    %v3619 = vunpack.c.h.b16 %v315
    %v3620 = vunpack.c.l.b16 %v316
    %v3621 = vunpack.c.h.b16 %v316
    %v3622 = vunpack.c.l.b16 %v317
    %v3623 = vunpack.c.h.b16 %v317
    %v3624 = vunpack.c.l.b16 %v318
    %v3625 = vunpack.c.h.b16 %v318
    %v3626 = vunpack.c.l.b16 %v319
    %v3627 = vunpack.c.h.b16 %v319
    %v3628 = vpack.c.b16 %v3504, %v3500
    %v3629 = vpack.c.b16 %v3505, %v3501
    %v3630 = vpack.c.b16 %v3506, %v3502
    %v3631 = vpack.c.b16 %v3507, %v3503
    %v3632 = vpack.c.b16 %v3512, %v3508
    %v3633 = vpack.c.b16 %v3513, %v3509
    %v3634 = vpack.c.b16 %v3514, %v3510
    %v3635 = vpack.c.b16 %v3515, %v3511
    %v3636 = vpack.c.b16 %v3520, %v3516
    %v3637 = vpack.c.b16 %v3521, %v3517
    %v3638 = vpack.c.b16 %v3522, %v3518
    %v3639 = vpack.c.b16 %v3523, %v3519
    %v3640 = vpack.c.b16 %v3528, %v3524
    %v3641 = vpack.c.b16 %v3529, %v3525
    %v3642 = vpack.c.b16 %v3530, %v3526
    %v3643 = vpack.c.b16 %v3531, %v3527
    %v3644 = vpack.c.b16 %v3536, %v3532
    %v3645 = vpack.c.b16 %v3537, %v3533
    %v3646 = vpack.c.b16 %v3538, %v3534
    %v3647 = vpack.c.b16 %v3539, %v3535
    %v3648 = vpack.c.b16 %v3544, %v3540
    %v3649 = vpack.c.b16 %v3545, %v3541
    %v3650 = vpack.c.b16 %v3546, %v3542
    %v3651 = vpack.c.b16 %v3547, %v3543
    %v3652 = vpack.c.b16 %v3552, %v3548
    %v3653 = vpack.c.b16 %v3553, %v3549
    %v3654 = vpack.c.b16 %v3554, %v3550
    %v3655 = vpack.c.b16 %v3555, %v3551
    %v3656 = vpack.c.b16 %v3560, %v3556
    %v3657 = vpack.c.b16 %v3561, %v3557
    %v3658 = vpack.c.b16 %v3562, %v3558
    %v3659 = vpack.c.b16 %v3563, %v3559
    %v3660 = vpack.c.b16 %v3568, %v3564
    %v3661 = vpack.c.b16 %v3569, %v3565
    %v3662 = vpack.c.b16 %v3570, %v3566
    %v3663 = vpack.c.b16 %v3571, %v3567
    %v3664 = vpack.c.b16 %v3576, %v3572
    %v3665 = vpack.c.b16 %v3577, %v3573
    %v3666 = vpack.c.b16 %v3578, %v3574
    %v3667 = vpack.c.b16 %v3579, %v3575
    %v3668 = vpack.c.b16 %v3584, %v3580
    %v3669 = vpack.c.b16 %v3585, %v3581
    %v3670 = vpack.c.b16 %v3586, %v3582
    %v3671 = vpack.c.b16 %v3587, %v3583
    %v3672 = vpack.c.b16 %v3592, %v3588
    %v3673 = vpack.c.b16 %v3593, %v3589
    %v3674 = vpack.c.b16 %v3594, %v3590
    %v3675 = vpack.c.b16 %v3595, %v3591
    %v3676 = vpack.c.b16 %v3600, %v3596
    %v3677 = vpack.c.b16 %v3601, %v3597
    %v3678 = vpack.c.b16 %v3602, %v3598
    %v3679 = vpack.c.b16 %v3603, %v3599
    %v3680 = vpack.c.b16 %v3608, %v3604
    %v3681 = vpack.c.b16 %v3609, %v3605
    %v3682 = vpack.c.b16 %v3610, %v3606
    %v3683 = vpack.c.b16 %v3611, %v3607
    %v3684 = vpack.c.b16 %v3616, %v3612
    %v3685 = vpack.c.b16 %v3617, %v3613
    %v3686 = vpack.c.b16 %v3618, %v3614
    %v3687 = vpack.c.b16 %v3619, %v3615
    %v3688 = vpack.c.b16 %v3624, %v3620
    %v3689 = vpack.c.b16 %v3625, %v3621
    %v3690 = vpack.c.b16 %v3626, %v3622
    %v3691 = vpack.c.b16 %v3627, %v3623
    %3756 = vmatprep.subr.bf16.mxu0 %v3657
    %3757 = vmatpush1.bf16.msra.mxu0 %v3656
    %3758 = vmatprep.subr.bf16.mxu0 %v3653
    %3759 = vmatpush1.bf16.msra.mxu0 %v3652
    %3760 = vmatprep.subr.bf16.mxu0 %v3649
    %3761 = vmatpush1.bf16.msra.mxu0 %v3648
    %3762 = vmatprep.subr.bf16.mxu0 %v3645
    %3763 = vmatpush1.bf16.msra.mxu0 %v3644
    %3764 = vmatprep.subr.bf16.mxu0 %v3641
    %3765 = vmatpush1.bf16.msra.mxu0 %v3640
    %3766 = vmatprep.subr.bf16.mxu0 %v3637
    %3767 = vmatpush1.bf16.msra.mxu0 %v3636
    %3768 = vmatprep.subr.bf16.mxu0 %v3633
    %3769 = vmatpush1.bf16.msra.mxu0 %v3632
    %3770 = vmatprep.subr.bf16.mxu0 %v3629
    %3771 = vmatpush1.bf16.msra.mxu0 %v3628
    %3772 = vmatprep.subr.bf16.mxu0 %v3689
    %3773 = vmatpush2.bf16.msra.mxu0 %v3688
    %3774 = vmatprep.subr.bf16.mxu0 %v3685
    %3775 = vmatpush2.bf16.msra.mxu0 %v3684
    %3776 = vmatprep.subr.bf16.mxu0 %v3681
    %3777 = vmatpush2.bf16.msra.mxu0 %v3680
    %3778 = vmatprep.subr.bf16.mxu0 %v3677
    %3779 = vmatpush2.bf16.msra.mxu0 %v3676
    %3780 = vmatprep.subr.bf16.mxu0 %v3673
    %3781 = vmatpush2.bf16.msra.mxu0 %v3672
    %3782 = vmatprep.subr.bf16.mxu0 %v3669
    %3783 = vmatpush2.bf16.msra.mxu0 %v3668
    %3784 = vmatprep.subr.bf16.mxu0 %v3665
    %3785 = vmatpush2.bf16.msra.mxu0 %v3664
    %3786 = vmatprep.subr.bf16.mxu0 %v3661
    %3787 = vmatpush2.bf16.msra.mxu0 %v3660
    %3788 = vmatprep.mubr.bf16.mxu0 %v3435
    %3789 = vmatmul.mubr.bf16.gmra.mxu0 %v3434
    %v3790 = vpop.f32.mrf.mxu0
    %v3791 = vadd.f32 %v363, %v3790
    %v3792 = vpop.f32.mrf.mxu0
    %v3793 = vadd.f32 %v367, %v3792
    %v3794 = vpop.f32.mrf.mxu0
    %v3795 = vpop.f32.mrf.mxu0
    %3796 = vdwg.mxu0
    %3797 = vmatprep.subr.bf16.mxu0 %v3659
    %3798 = vmatpush1.bf16.msra.mxu0 %v3658
    %3799 = vmatprep.subr.bf16.mxu0 %v3655
    %3800 = vmatpush1.bf16.msra.mxu0 %v3654
    %3801 = vmatprep.subr.bf16.mxu0 %v3651
    %3802 = vmatpush1.bf16.msra.mxu0 %v3650
    %3803 = vmatprep.subr.bf16.mxu0 %v3647
    %3804 = vmatpush1.bf16.msra.mxu0 %v3646
    %3805 = vmatprep.subr.bf16.mxu0 %v3643
    %3806 = vmatpush1.bf16.msra.mxu0 %v3642
    %3807 = vmatprep.subr.bf16.mxu0 %v3639
    %3808 = vmatpush1.bf16.msra.mxu0 %v3638
    %3809 = vmatprep.subr.bf16.mxu0 %v3635
    %3810 = vmatpush1.bf16.msra.mxu0 %v3634
    %3811 = vmatprep.subr.bf16.mxu0 %v3631
    %3812 = vmatpush1.bf16.msra.mxu0 %v3630
    %3813 = vmatprep.subr.bf16.mxu0 %v3691
    %3814 = vmatpush2.bf16.msra.mxu0 %v3690
    %3815 = vmatprep.subr.bf16.mxu0 %v3687
    %3816 = vmatpush2.bf16.msra.mxu0 %v3686
    %3817 = vmatprep.subr.bf16.mxu0 %v3683
    %3818 = vmatpush2.bf16.msra.mxu0 %v3682
    %3819 = vmatprep.subr.bf16.mxu0 %v3679
    %3820 = vmatpush2.bf16.msra.mxu0 %v3678
    %3821 = vmatprep.subr.bf16.mxu0 %v3675
    %3822 = vmatpush2.bf16.msra.mxu0 %v3674
    %3823 = vmatprep.subr.bf16.mxu0 %v3671
    %3824 = vmatpush2.bf16.msra.mxu0 %v3670
    %3825 = vmatprep.subr.bf16.mxu0 %v3667
    %3826 = vmatpush2.bf16.msra.mxu0 %v3666
    %3827 = vmatprep.subr.bf16.mxu0 %v3663
    %3828 = vmatpush2.bf16.msra.mxu0 %v3662
    %3829 = vmatprep.mubr.bf16.mxu0 %v3435
    %3830 = vmatmul.mubr.bf16.gmra.mxu0 %v3434
    %v3831 = vpop.f32.mrf.mxu0
    %v3832 = vadd.f32 %v371, %v3831
    %v3833 = vpop.f32.mrf.mxu0
    %v3834 = vadd.f32 %v375, %v3833
    %v3835 = vpop.f32.mrf.mxu0
    %v3836 = vpop.f32.mrf.mxu0
    %3837 = vdwg.mxu0
    %v3838 = vxor.u32 %v3791, 2147483648
    %v3839 = vmul.f32 %v3838, 1.442695
    %v3840 = vpow.pop %v3839
    %v3841 = vadd.f32 %v3840, 1.0
    %v3842 = vrcp.pop %v3841
    %v3843 = vmul.f32 1.0, %v3842
    %v3844 = vxor.u32 %v3793, 2147483648
    %v3845 = vmul.f32 %v3844, 1.442695
    %v3846 = vpow.pop %v3845
    %v3847 = vadd.f32 %v3846, 1.0
    %v3848 = vrcp.pop %v3847
    %v3849 = vmul.f32 1.0, %v3848
    %v3850 = vtanh.pop %v3832
    %v3851 = vxor.u32 %v3834, 2147483648
    %v3852 = vmul.f32 %v3851, 1.442695
    %v3853 = vpow.pop %v3852
    %v3854 = vadd.f32 %v3853, 1.0
    %v3855 = vrcp.pop %v3854
    %v3856 = vmul.f32 1.0, %v3855
    %v3857 = vmul.f32 %v3849, %v3161
    %v3858 = vmul.f32 %v3843, %v3850
    %v3859 = vadd.f32 %v3857, %v3858
    %v3860 = vtanh.pop %v3859
    %v3861 = vmul.f32 %v3856, %v3860
    %v3862 = vpack.c.bf16 %v3861, %v3861
    %v3879 = vunpack.c.l.b16 %v320
    %v3880 = vunpack.c.l.b16 %v321
    %v3881 = vunpack.c.l.b16 %v322
    %v3882 = vunpack.c.l.b16 %v323
    %v3883 = vunpack.c.l.b16 %v324
    %v3884 = vunpack.c.l.b16 %v325
    %v3885 = vunpack.c.l.b16 %v326
    %v3886 = vunpack.c.l.b16 %v327
    %v3887 = vunpack.c.l.b16 %v328
    %v3888 = vunpack.c.l.b16 %v329
    %v3889 = vunpack.c.l.b16 %v330
    %v3890 = vunpack.c.l.b16 %v331
    %v3891 = vunpack.c.l.b16 %v332
    %v3892 = vunpack.c.l.b16 %v333
    %v3893 = vunpack.c.l.b16 %v334
    %v3894 = vunpack.c.l.b16 %v335
    %v3895 = vpack.c.b16 %v3880, %v3879
    %v3896 = vpack.c.b16 %v3882, %v3881
    %v3897 = vpack.c.b16 %v3884, %v3883
    %v3898 = vpack.c.b16 %v3886, %v3885
    %v3899 = vpack.c.b16 %v3888, %v3887
    %v3900 = vpack.c.b16 %v3890, %v3889
    %v3901 = vpack.c.b16 %v3892, %v3891
    %v3902 = vpack.c.b16 %v3894, %v3893
    %3911 = vmatprep.subr.bf16.mxu0 0
    %3912 = vmatpush1.bf16.msra.mxu0 %v3902
    %3913 = vmatprep.subr.bf16.mxu0 0
    %3914 = vmatpush1.bf16.msra.mxu0 %v3901
    %3915 = vmatprep.subr.bf16.mxu0 0
    %3916 = vmatpush1.bf16.msra.mxu0 %v3900
    %3917 = vmatprep.subr.bf16.mxu0 0
    %3918 = vmatpush1.bf16.msra.mxu0 %v3899
    %3919 = vmatprep.subr.bf16.mxu0 0
    %3920 = vmatpush1.bf16.msra.mxu0 %v3898
    %3921 = vmatprep.subr.bf16.mxu0 0
    %3922 = vmatpush1.bf16.msra.mxu0 %v3897
    %3923 = vmatprep.subr.bf16.mxu0 0
    %3924 = vmatpush1.bf16.msra.mxu0 %v3896
    %3925 = vmatprep.subr.bf16.mxu0 0
    %3926 = vmatpush1.bf16.msra.mxu0 %v3895
    %3927 = vmatprep.subr.bf16.mxu0 0
    %3928 = vmatpush2.bf16.msra.mxu0 0
    %3929 = vmatprep.subr.bf16.mxu0 0
    %3930 = vmatpush2.bf16.msra.mxu0 0
    %3931 = vmatprep.subr.bf16.mxu0 0
    %3932 = vmatpush2.bf16.msra.mxu0 0
    %3933 = vmatprep.subr.bf16.mxu0 0
    %3934 = vmatpush2.bf16.msra.mxu0 0
    %3935 = vmatprep.subr.bf16.mxu0 0
    %3936 = vmatpush2.bf16.msra.mxu0 0
    %3937 = vmatprep.subr.bf16.mxu0 0
    %3938 = vmatpush2.bf16.msra.mxu0 0
    %3939 = vmatprep.subr.bf16.mxu0 0
    %3940 = vmatpush2.bf16.msra.mxu0 0
    %3941 = vmatprep.subr.bf16.mxu0 0
    %3942 = vmatpush2.bf16.msra.mxu0 0
    %3943 = vmatprep.mubr.bf16.mxu0 0
    %3944 = vmatmul.mubr.bf16.gmra.mxu0 %v3862
    %v3945 = vpop.f32.mrf.mxu0
    %v3946 = vadd.f32 %v385, %v3945
    %v3947 = vpop.f32.mrf.mxu0
    %v3948 = vpop.f32.mrf.mxu0
    %v3949 = vpop.f32.mrf.mxu0
    %3950 = vdwg.mxu0
    %3951 = vmatprep.subr.bf16.mxu0 %v3289
    %3952 = vmatpush1.bf16.msra.mxu0 %v3288
    %3953 = vmatprep.subr.bf16.mxu0 %v3285
    %3954 = vmatpush1.bf16.msra.mxu0 %v3284
    %3955 = vmatprep.subr.bf16.mxu0 %v3281
    %3956 = vmatpush1.bf16.msra.mxu0 %v3280
    %3957 = vmatprep.subr.bf16.mxu0 %v3277
    %3958 = vmatpush1.bf16.msra.mxu0 %v3276
    %3959 = vmatprep.subr.bf16.mxu0 %v3273
    %3960 = vmatpush1.bf16.msra.mxu0 %v3272
    %3961 = vmatprep.subr.bf16.mxu0 %v3269
    %3962 = vmatpush1.bf16.msra.mxu0 %v3268
    %3963 = vmatprep.subr.bf16.mxu0 %v3265
    %3964 = vmatpush1.bf16.msra.mxu0 %v3264
    %3965 = vmatprep.subr.bf16.mxu0 %v3261
    %3966 = vmatpush1.bf16.msra.mxu0 %v3260
    %3967 = vmatprep.subr.bf16.mxu0 0
    %3968 = vmatpush2.bf16.msra.mxu0 0
    %3969 = vmatprep.subr.bf16.mxu0 0
    %3970 = vmatpush2.bf16.msra.mxu0 0
    %3971 = vmatprep.subr.bf16.mxu0 0
    %3972 = vmatpush2.bf16.msra.mxu0 0
    %3973 = vmatprep.subr.bf16.mxu0 0
    %3974 = vmatpush2.bf16.msra.mxu0 0
    %3975 = vmatprep.subr.bf16.mxu0 0
    %3976 = vmatpush2.bf16.msra.mxu0 0
    %3977 = vmatprep.subr.bf16.mxu0 0
    %3978 = vmatpush2.bf16.msra.mxu0 0
    %3979 = vmatprep.subr.bf16.mxu0 0
    %3980 = vmatpush2.bf16.msra.mxu0 0
    %3981 = vmatprep.subr.bf16.mxu0 0
    %3982 = vmatpush2.bf16.msra.mxu0 0
    %3983 = vmatprep.mubr.bf16.mxu0 0
    %3984 = vmatmul.mubr.bf16.gmra.mxu0 %v3434
    %v3985 = vpop.f32.mrf.mxu0
    %v3986 = vadd.f32 0.0, %v3985
    %v3987 = vpop.f32.mrf.mxu0
    %v3988 = vadd.f32 0.0, %v3987
    %v3989 = vpop.f32.mrf.mxu0
    %v3990 = vpop.f32.mrf.mxu0
    %3991 = vdwg.mxu0
    %3992 = vmatprep.subr.bf16.mxu0 %v3291
    %3993 = vmatpush1.bf16.msra.mxu0 %v3290
    %3994 = vmatprep.subr.bf16.mxu0 %v3287
    %3995 = vmatpush1.bf16.msra.mxu0 %v3286
    %3996 = vmatprep.subr.bf16.mxu0 %v3283
    %3997 = vmatpush1.bf16.msra.mxu0 %v3282
    %3998 = vmatprep.subr.bf16.mxu0 %v3279
    %3999 = vmatpush1.bf16.msra.mxu0 %v3278
    %4000 = vmatprep.subr.bf16.mxu0 %v3275
    %4001 = vmatpush1.bf16.msra.mxu0 %v3274
    %4002 = vmatprep.subr.bf16.mxu0 %v3271
    %4003 = vmatpush1.bf16.msra.mxu0 %v3270
    %4004 = vmatprep.subr.bf16.mxu0 %v3267
    %4005 = vmatpush1.bf16.msra.mxu0 %v3266
    %4006 = vmatprep.subr.bf16.mxu0 %v3263
    %4007 = vmatpush1.bf16.msra.mxu0 %v3262
    %4008 = vmatprep.subr.bf16.mxu0 0
    %4009 = vmatpush2.bf16.msra.mxu0 0
    %4010 = vmatprep.subr.bf16.mxu0 0
    %4011 = vmatpush2.bf16.msra.mxu0 0
    %4012 = vmatprep.subr.bf16.mxu0 0
    %4013 = vmatpush2.bf16.msra.mxu0 0
    %4014 = vmatprep.subr.bf16.mxu0 0
    %4015 = vmatpush2.bf16.msra.mxu0 0
    %4016 = vmatprep.subr.bf16.mxu0 0
    %4017 = vmatpush2.bf16.msra.mxu0 0
    %4018 = vmatprep.subr.bf16.mxu0 0
    %4019 = vmatpush2.bf16.msra.mxu0 0
    %4020 = vmatprep.subr.bf16.mxu0 0
    %4021 = vmatpush2.bf16.msra.mxu0 0
    %4022 = vmatprep.subr.bf16.mxu0 0
    %4023 = vmatpush2.bf16.msra.mxu0 0
    %4024 = vmatprep.mubr.bf16.mxu0 0
    %4025 = vmatmul.mubr.bf16.gmra.mxu0 %v3434
    %v4026 = vpop.f32.mrf.mxu0
    %v4027 = vadd.f32 0.0, %v4026
    %v4028 = vpop.f32.mrf.mxu0
    %v4029 = vadd.f32 0.0, %v4028
    %v4030 = vpop.f32.mrf.mxu0
    %v4031 = vpop.f32.mrf.mxu0
    %4032 = vdwg.mxu0
    %v4033 = vadd.f32 %v829, %v3986
    %v4034 = vadd.f32 %v831, %v3988
    %v4035 = vadd.f32 %v902, %v4027
    %v4036 = vadd.f32 %v904, %v4029
    %v4037 = vxor.u32 %v4033, 2147483648
    %v4038 = vmul.f32 %v4037, 1.442695
    %v4039 = vpow.pop %v4038
    %v4040 = vadd.f32 %v4039, 1.0
    %v4041 = vrcp.pop %v4040
    %v4042 = vmul.f32 1.0, %v4041
    %v4043 = vxor.u32 %v4034, 2147483648
    %v4044 = vmul.f32 %v4043, 1.442695
    %v4045 = vpow.pop %v4044
    %v4046 = vadd.f32 %v4045, 1.0
    %v4047 = vrcp.pop %v4046
    %v4048 = vmul.f32 1.0, %v4047
    %v4049 = vtanh.pop %v4035
    %v4050 = vxor.u32 %v4036, 2147483648
    %v4051 = vmul.f32 %v4050, 1.442695
    %v4052 = vpow.pop %v4051
    %v4053 = vadd.f32 %v4052, 1.0
    %v4054 = vrcp.pop %v4053
    %v4055 = vmul.f32 1.0, %v4054
    %v4056 = vmul.f32 %v4048, %v3431
    %v4057 = vmul.f32 %v4042, %v4049
    %v4058 = vadd.f32 %v4056, %v4057
    %v4059 = vtanh.pop %v4058
    %v4060 = vmul.f32 %v4055, %v4059
    %v4061 = vpack.c.bf16 %v4060, %v4060
    %4062 = vmatprep.subr.bf16.mxu0 %v3657
    %4063 = vmatpush1.bf16.msra.mxu0 %v3656
    %4064 = vmatprep.subr.bf16.mxu0 %v3653
    %4065 = vmatpush1.bf16.msra.mxu0 %v3652
    %4066 = vmatprep.subr.bf16.mxu0 %v3649
    %4067 = vmatpush1.bf16.msra.mxu0 %v3648
    %4068 = vmatprep.subr.bf16.mxu0 %v3645
    %4069 = vmatpush1.bf16.msra.mxu0 %v3644
    %4070 = vmatprep.subr.bf16.mxu0 %v3641
    %4071 = vmatpush1.bf16.msra.mxu0 %v3640
    %4072 = vmatprep.subr.bf16.mxu0 %v3637
    %4073 = vmatpush1.bf16.msra.mxu0 %v3636
    %4074 = vmatprep.subr.bf16.mxu0 %v3633
    %4075 = vmatpush1.bf16.msra.mxu0 %v3632
    %4076 = vmatprep.subr.bf16.mxu0 %v3629
    %4077 = vmatpush1.bf16.msra.mxu0 %v3628
    %4078 = vmatprep.subr.bf16.mxu0 %v3689
    %4079 = vmatpush2.bf16.msra.mxu0 %v3688
    %4080 = vmatprep.subr.bf16.mxu0 %v3685
    %4081 = vmatpush2.bf16.msra.mxu0 %v3684
    %4082 = vmatprep.subr.bf16.mxu0 %v3681
    %4083 = vmatpush2.bf16.msra.mxu0 %v3680
    %4084 = vmatprep.subr.bf16.mxu0 %v3677
    %4085 = vmatpush2.bf16.msra.mxu0 %v3676
    %4086 = vmatprep.subr.bf16.mxu0 %v3673
    %4087 = vmatpush2.bf16.msra.mxu0 %v3672
    %4088 = vmatprep.subr.bf16.mxu0 %v3669
    %4089 = vmatpush2.bf16.msra.mxu0 %v3668
    %4090 = vmatprep.subr.bf16.mxu0 %v3665
    %4091 = vmatpush2.bf16.msra.mxu0 %v3664
    %4092 = vmatprep.subr.bf16.mxu0 %v3661
    %4093 = vmatpush2.bf16.msra.mxu0 %v3660
    %4094 = vmatprep.mubr.bf16.mxu0 %v3862
    %4095 = vmatmul.mubr.bf16.gmra.mxu0 %v4061
    %v4096 = vpop.f32.mrf.mxu0
    %v4097 = vadd.f32 %v363, %v4096
    %v4098 = vpop.f32.mrf.mxu0
    %v4099 = vadd.f32 %v367, %v4098
    %v4100 = vpop.f32.mrf.mxu0
    %v4101 = vpop.f32.mrf.mxu0
    %4102 = vdwg.mxu0
    %4103 = vmatprep.subr.bf16.mxu0 %v3659
    %4104 = vmatpush1.bf16.msra.mxu0 %v3658
    %4105 = vmatprep.subr.bf16.mxu0 %v3655
    %4106 = vmatpush1.bf16.msra.mxu0 %v3654
    %4107 = vmatprep.subr.bf16.mxu0 %v3651
    %4108 = vmatpush1.bf16.msra.mxu0 %v3650
    %4109 = vmatprep.subr.bf16.mxu0 %v3647
    %4110 = vmatpush1.bf16.msra.mxu0 %v3646
    %4111 = vmatprep.subr.bf16.mxu0 %v3643
    %4112 = vmatpush1.bf16.msra.mxu0 %v3642
    %4113 = vmatprep.subr.bf16.mxu0 %v3639
    %4114 = vmatpush1.bf16.msra.mxu0 %v3638
    %4115 = vmatprep.subr.bf16.mxu0 %v3635
    %4116 = vmatpush1.bf16.msra.mxu0 %v3634
    %4117 = vmatprep.subr.bf16.mxu0 %v3631
    %4118 = vmatpush1.bf16.msra.mxu0 %v3630
    %4119 = vmatprep.subr.bf16.mxu0 %v3691
    %4120 = vmatpush2.bf16.msra.mxu0 %v3690
    %4121 = vmatprep.subr.bf16.mxu0 %v3687
    %4122 = vmatpush2.bf16.msra.mxu0 %v3686
    %4123 = vmatprep.subr.bf16.mxu0 %v3683
    %4124 = vmatpush2.bf16.msra.mxu0 %v3682
    %4125 = vmatprep.subr.bf16.mxu0 %v3679
    %4126 = vmatpush2.bf16.msra.mxu0 %v3678
    %4127 = vmatprep.subr.bf16.mxu0 %v3675
    %4128 = vmatpush2.bf16.msra.mxu0 %v3674
    %4129 = vmatprep.subr.bf16.mxu0 %v3671
    %4130 = vmatpush2.bf16.msra.mxu0 %v3670
    %4131 = vmatprep.subr.bf16.mxu0 %v3667
    %4132 = vmatpush2.bf16.msra.mxu0 %v3666
    %4133 = vmatprep.subr.bf16.mxu0 %v3663
    %4134 = vmatpush2.bf16.msra.mxu0 %v3662
    %4135 = vmatprep.mubr.bf16.mxu0 %v3862
    %4136 = vmatmul.mubr.bf16.gmra.mxu0 %v4061
    %v4137 = vpop.f32.mrf.mxu0
    %v4138 = vadd.f32 %v371, %v4137
    %v4139 = vpop.f32.mrf.mxu0
    %v4140 = vadd.f32 %v375, %v4139
    %v4141 = vpop.f32.mrf.mxu0
    %v4142 = vpop.f32.mrf.mxu0
    %4143 = vdwg.mxu0
    %v4144 = vxor.u32 %v4097, 2147483648
    %v4145 = vmul.f32 %v4144, 1.442695
    %v4146 = vpow.pop %v4145
    %v4147 = vadd.f32 %v4146, 1.0
    %v4148 = vrcp.pop %v4147
    %v4149 = vmul.f32 1.0, %v4148
    %v4150 = vxor.u32 %v4099, 2147483648
    %v4151 = vmul.f32 %v4150, 1.442695
    %v4152 = vpow.pop %v4151
    %v4153 = vadd.f32 %v4152, 1.0
    %v4154 = vrcp.pop %v4153
    %v4155 = vmul.f32 1.0, %v4154
    %v4156 = vtanh.pop %v4138
    %v4157 = vxor.u32 %v4140, 2147483648
    %v4158 = vmul.f32 %v4157, 1.442695
    %v4159 = vpow.pop %v4158
    %v4160 = vadd.f32 %v4159, 1.0
    %v4161 = vrcp.pop %v4160
    %v4162 = vmul.f32 1.0, %v4161
    %v4163 = vmul.f32 %v4155, %v3859
    %v4164 = vmul.f32 %v4149, %v4156
    %v4165 = vadd.f32 %v4163, %v4164
    %v4166 = vtanh.pop %v4165
    %v4167 = vmul.f32 %v4162, %v4166
    %v4168 = vpack.c.bf16 %v4167, %v4167
    %4169 = vmatprep.subr.bf16.mxu0 0
    %4170 = vmatpush1.bf16.msra.mxu0 %v3902
    %4171 = vmatprep.subr.bf16.mxu0 0
    %4172 = vmatpush1.bf16.msra.mxu0 %v3901
    %4173 = vmatprep.subr.bf16.mxu0 0
    %4174 = vmatpush1.bf16.msra.mxu0 %v3900
    %4175 = vmatprep.subr.bf16.mxu0 0
    %4176 = vmatpush1.bf16.msra.mxu0 %v3899
    %4177 = vmatprep.subr.bf16.mxu0 0
    %4178 = vmatpush1.bf16.msra.mxu0 %v3898
    %4179 = vmatprep.subr.bf16.mxu0 0
    %4180 = vmatpush1.bf16.msra.mxu0 %v3897
    %4181 = vmatprep.subr.bf16.mxu0 0
    %4182 = vmatpush1.bf16.msra.mxu0 %v3896
    %4183 = vmatprep.subr.bf16.mxu0 0
    %4184 = vmatpush1.bf16.msra.mxu0 %v3895
    %4185 = vmatprep.subr.bf16.mxu0 0
    %4186 = vmatpush2.bf16.msra.mxu0 0
    %4187 = vmatprep.subr.bf16.mxu0 0
    %4188 = vmatpush2.bf16.msra.mxu0 0
    %4189 = vmatprep.subr.bf16.mxu0 0
    %4190 = vmatpush2.bf16.msra.mxu0 0
    %4191 = vmatprep.subr.bf16.mxu0 0
    %4192 = vmatpush2.bf16.msra.mxu0 0
    %4193 = vmatprep.subr.bf16.mxu0 0
    %4194 = vmatpush2.bf16.msra.mxu0 0
    %4195 = vmatprep.subr.bf16.mxu0 0
    %4196 = vmatpush2.bf16.msra.mxu0 0
    %4197 = vmatprep.subr.bf16.mxu0 0
    %4198 = vmatpush2.bf16.msra.mxu0 0
    %4199 = vmatprep.subr.bf16.mxu0 0
    %4200 = vmatpush2.bf16.msra.mxu0 0
    %4201 = vmatprep.mubr.bf16.mxu0 0
    %4202 = vmatmul.mubr.bf16.gmra.mxu0 %v4168
    %v4203 = vpop.f32.mrf.mxu0
    %v4204 = vadd.f32 %v385, %v4203
    %v4205 = vpop.f32.mrf.mxu0
    %v4206 = vpop.f32.mrf.mxu0
    %v4207 = vpop.f32.mrf.mxu0
    %4208 = vdwg.mxu0
    %4209 = vmatprep.subr.bf16.mxu0 %v3289
    %4210 = vmatpush1.bf16.msra.mxu0 %v3288
    %4211 = vmatprep.subr.bf16.mxu0 %v3285
    %4212 = vmatpush1.bf16.msra.mxu0 %v3284
    %4213 = vmatprep.subr.bf16.mxu0 %v3281
    %4214 = vmatpush1.bf16.msra.mxu0 %v3280
    %4215 = vmatprep.subr.bf16.mxu0 %v3277
    %4216 = vmatpush1.bf16.msra.mxu0 %v3276
    %4217 = vmatprep.subr.bf16.mxu0 %v3273
    %4218 = vmatpush1.bf16.msra.mxu0 %v3272
    %4219 = vmatprep.subr.bf16.mxu0 %v3269
    %4220 = vmatpush1.bf16.msra.mxu0 %v3268
    %4221 = vmatprep.subr.bf16.mxu0 %v3265
    %4222 = vmatpush1.bf16.msra.mxu0 %v3264
    %4223 = vmatprep.subr.bf16.mxu0 %v3261
    %4224 = vmatpush1.bf16.msra.mxu0 %v3260
    %4225 = vmatprep.subr.bf16.mxu0 0
    %4226 = vmatpush2.bf16.msra.mxu0 0
    %4227 = vmatprep.subr.bf16.mxu0 0
    %4228 = vmatpush2.bf16.msra.mxu0 0
    %4229 = vmatprep.subr.bf16.mxu0 0
    %4230 = vmatpush2.bf16.msra.mxu0 0
    %4231 = vmatprep.subr.bf16.mxu0 0
    %4232 = vmatpush2.bf16.msra.mxu0 0
    %4233 = vmatprep.subr.bf16.mxu0 0
    %4234 = vmatpush2.bf16.msra.mxu0 0
    %4235 = vmatprep.subr.bf16.mxu0 0
    %4236 = vmatpush2.bf16.msra.mxu0 0
    %4237 = vmatprep.subr.bf16.mxu0 0
    %4238 = vmatpush2.bf16.msra.mxu0 0
    %4239 = vmatprep.subr.bf16.mxu0 0
    %4240 = vmatpush2.bf16.msra.mxu0 0
    %4241 = vmatprep.mubr.bf16.mxu0 0
    %4242 = vmatmul.mubr.bf16.gmra.mxu0 %v4061
    %v4243 = vpop.f32.mrf.mxu0
    %v4244 = vadd.f32 0.0, %v4243
    %v4245 = vpop.f32.mrf.mxu0
    %v4246 = vadd.f32 0.0, %v4245
    %v4247 = vpop.f32.mrf.mxu0
    %v4248 = vpop.f32.mrf.mxu0
    %4249 = vdwg.mxu0
    %4250 = vmatprep.subr.bf16.mxu0 %v3291
    %4251 = vmatpush1.bf16.msra.mxu0 %v3290
    %4252 = vmatprep.subr.bf16.mxu0 %v3287
    %4253 = vmatpush1.bf16.msra.mxu0 %v3286
    %4254 = vmatprep.subr.bf16.mxu0 %v3283
    %4255 = vmatpush1.bf16.msra.mxu0 %v3282
    %4256 = vmatprep.subr.bf16.mxu0 %v3279
    %4257 = vmatpush1.bf16.msra.mxu0 %v3278
    %4258 = vmatprep.subr.bf16.mxu0 %v3275
    %4259 = vmatpush1.bf16.msra.mxu0 %v3274
    %4260 = vmatprep.subr.bf16.mxu0 %v3271
    %4261 = vmatpush1.bf16.msra.mxu0 %v3270
    %4262 = vmatprep.subr.bf16.mxu0 %v3267
    %4263 = vmatpush1.bf16.msra.mxu0 %v3266
    %4264 = vmatprep.subr.bf16.mxu0 %v3263
    %4265 = vmatpush1.bf16.msra.mxu0 %v3262
    %4266 = vmatprep.subr.bf16.mxu0 0
    %4267 = vmatpush2.bf16.msra.mxu0 0
    %4268 = vmatprep.subr.bf16.mxu0 0
    %4269 = vmatpush2.bf16.msra.mxu0 0
    %4270 = vmatprep.subr.bf16.mxu0 0
    %4271 = vmatpush2.bf16.msra.mxu0 0
    %4272 = vmatprep.subr.bf16.mxu0 0
    %4273 = vmatpush2.bf16.msra.mxu0 0
    %4274 = vmatprep.subr.bf16.mxu0 0
    %4275 = vmatpush2.bf16.msra.mxu0 0
    %4276 = vmatprep.subr.bf16.mxu0 0
    %4277 = vmatpush2.bf16.msra.mxu0 0
    %4278 = vmatprep.subr.bf16.mxu0 0
    %4279 = vmatpush2.bf16.msra.mxu0 0
    %4280 = vmatprep.subr.bf16.mxu0 0
    %4281 = vmatpush2.bf16.msra.mxu0 0
    %4282 = vmatprep.mubr.bf16.mxu0 0
    %4283 = vmatmul.mubr.bf16.gmra.mxu0 %v4061
    %v4284 = vpop.f32.mrf.mxu0
    %v4285 = vadd.f32 0.0, %v4284
    %v4286 = vpop.f32.mrf.mxu0
    %v4287 = vadd.f32 0.0, %v4286
    %v4288 = vpop.f32.mrf.mxu0
    %v4289 = vpop.f32.mrf.mxu0
    %4290 = vdwg.mxu0
    %v4291 = vadd.f32 %v833, %v4244
    %v4292 = vadd.f32 %v835, %v4246
    %v4293 = vadd.f32 %v906, %v4285
    %v4294 = vadd.f32 %v908, %v4287
    %v4295 = vxor.u32 %v4291, 2147483648
    %v4296 = vmul.f32 %v4295, 1.442695
    %v4297 = vpow.pop %v4296
    %v4298 = vadd.f32 %v4297, 1.0
    %v4299 = vrcp.pop %v4298
    %v4300 = vmul.f32 1.0, %v4299
    %v4301 = vxor.u32 %v4292, 2147483648
    %v4302 = vmul.f32 %v4301, 1.442695
    %v4303 = vpow.pop %v4302
    %v4304 = vadd.f32 %v4303, 1.0
    %v4305 = vrcp.pop %v4304
    %v4306 = vmul.f32 1.0, %v4305
    %v4307 = vtanh.pop %v4293
    %v4308 = vxor.u32 %v4294, 2147483648
    %v4309 = vmul.f32 %v4308, 1.442695
    %v4310 = vpow.pop %v4309
    %v4311 = vadd.f32 %v4310, 1.0
    %v4312 = vrcp.pop %v4311
    %v4313 = vmul.f32 1.0, %v4312
    %v4314 = vmul.f32 %v4306, %v4058
    %v4315 = vmul.f32 %v4300, %v4307
    %v4316 = vadd.f32 %v4314, %v4315
    %v4317 = vtanh.pop %v4316
    %v4318 = vmul.f32 %v4313, %v4317
    %v4319 = vpack.c.bf16 %v4318, %v4318
    %4320 = vmatprep.subr.bf16.mxu0 %v3657
    %4321 = vmatpush1.bf16.msra.mxu0 %v3656
    %4322 = vmatprep.subr.bf16.mxu0 %v3653
    %4323 = vmatpush1.bf16.msra.mxu0 %v3652
    %4324 = vmatprep.subr.bf16.mxu0 %v3649
    %4325 = vmatpush1.bf16.msra.mxu0 %v3648
    %4326 = vmatprep.subr.bf16.mxu0 %v3645
    %4327 = vmatpush1.bf16.msra.mxu0 %v3644
    %4328 = vmatprep.subr.bf16.mxu0 %v3641
    %4329 = vmatpush1.bf16.msra.mxu0 %v3640
    %4330 = vmatprep.subr.bf16.mxu0 %v3637
    %4331 = vmatpush1.bf16.msra.mxu0 %v3636
    %4332 = vmatprep.subr.bf16.mxu0 %v3633
    %4333 = vmatpush1.bf16.msra.mxu0 %v3632
    %4334 = vmatprep.subr.bf16.mxu0 %v3629
    %4335 = vmatpush1.bf16.msra.mxu0 %v3628
    %4336 = vmatprep.subr.bf16.mxu0 %v3689
    %4337 = vmatpush2.bf16.msra.mxu0 %v3688
    %4338 = vmatprep.subr.bf16.mxu0 %v3685
    %4339 = vmatpush2.bf16.msra.mxu0 %v3684
    %4340 = vmatprep.subr.bf16.mxu0 %v3681
    %4341 = vmatpush2.bf16.msra.mxu0 %v3680
    %4342 = vmatprep.subr.bf16.mxu0 %v3677
    %4343 = vmatpush2.bf16.msra.mxu0 %v3676
    %4344 = vmatprep.subr.bf16.mxu0 %v3673
    %4345 = vmatpush2.bf16.msra.mxu0 %v3672
    %4346 = vmatprep.subr.bf16.mxu0 %v3669
    %4347 = vmatpush2.bf16.msra.mxu0 %v3668
    %4348 = vmatprep.subr.bf16.mxu0 %v3665
    %4349 = vmatpush2.bf16.msra.mxu0 %v3664
    %4350 = vmatprep.subr.bf16.mxu0 %v3661
    %4351 = vmatpush2.bf16.msra.mxu0 %v3660
    %4352 = vmatprep.mubr.bf16.mxu0 %v4168
    %4353 = vmatmul.mubr.bf16.gmra.mxu0 %v4319
    %v4354 = vpop.f32.mrf.mxu0
    %v4355 = vadd.f32 %v363, %v4354
    %v4356 = vpop.f32.mrf.mxu0
    %v4357 = vadd.f32 %v367, %v4356
    %v4358 = vpop.f32.mrf.mxu0
    %v4359 = vpop.f32.mrf.mxu0
    %4360 = vdwg.mxu0
    %4361 = vmatprep.subr.bf16.mxu0 %v3659
    %4362 = vmatpush1.bf16.msra.mxu0 %v3658
    %4363 = vmatprep.subr.bf16.mxu0 %v3655
    %4364 = vmatpush1.bf16.msra.mxu0 %v3654
    %4365 = vmatprep.subr.bf16.mxu0 %v3651
    %4366 = vmatpush1.bf16.msra.mxu0 %v3650
    %4367 = vmatprep.subr.bf16.mxu0 %v3647
    %4368 = vmatpush1.bf16.msra.mxu0 %v3646
    %4369 = vmatprep.subr.bf16.mxu0 %v3643
    %4370 = vmatpush1.bf16.msra.mxu0 %v3642
    %4371 = vmatprep.subr.bf16.mxu0 %v3639
    %4372 = vmatpush1.bf16.msra.mxu0 %v3638
    %4373 = vmatprep.subr.bf16.mxu0 %v3635
    %4374 = vmatpush1.bf16.msra.mxu0 %v3634
    %4375 = vmatprep.subr.bf16.mxu0 %v3631
    %4376 = vmatpush1.bf16.msra.mxu0 %v3630
    %4377 = vmatprep.subr.bf16.mxu0 %v3691
    %4378 = vmatpush2.bf16.msra.mxu0 %v3690
    %4379 = vmatprep.subr.bf16.mxu0 %v3687
    %4380 = vmatpush2.bf16.msra.mxu0 %v3686
    %4381 = vmatprep.subr.bf16.mxu0 %v3683
    %4382 = vmatpush2.bf16.msra.mxu0 %v3682
    %4383 = vmatprep.subr.bf16.mxu0 %v3679
    %4384 = vmatpush2.bf16.msra.mxu0 %v3678
    %4385 = vmatprep.subr.bf16.mxu0 %v3675
    %4386 = vmatpush2.bf16.msra.mxu0 %v3674
    %4387 = vmatprep.subr.bf16.mxu0 %v3671
    %4388 = vmatpush2.bf16.msra.mxu0 %v3670
    %4389 = vmatprep.subr.bf16.mxu0 %v3667
    %4390 = vmatpush2.bf16.msra.mxu0 %v3666
    %4391 = vmatprep.subr.bf16.mxu0 %v3663
    %4392 = vmatpush2.bf16.msra.mxu0 %v3662
    %4393 = vmatprep.mubr.bf16.mxu0 %v4168
    %4394 = vmatmul.mubr.bf16.gmra.mxu0 %v4319
    %v4395 = vpop.f32.mrf.mxu0
    %v4396 = vadd.f32 %v371, %v4395
    %v4397 = vpop.f32.mrf.mxu0
    %v4398 = vadd.f32 %v375, %v4397
    %v4399 = vpop.f32.mrf.mxu0
    %v4400 = vpop.f32.mrf.mxu0
    %4401 = vdwg.mxu0
    %v4402 = vxor.u32 %v4355, 2147483648
    %v4403 = vmul.f32 %v4402, 1.442695
    %v4404 = vpow.pop %v4403
    %v4405 = vadd.f32 %v4404, 1.0
    %v4406 = vrcp.pop %v4405
    %v4407 = vmul.f32 1.0, %v4406
    %v4408 = vxor.u32 %v4357, 2147483648
    %v4409 = vmul.f32 %v4408, 1.442695
    %v4410 = vpow.pop %v4409
    %v4411 = vadd.f32 %v4410, 1.0
    %v4412 = vrcp.pop %v4411
    %v4413 = vmul.f32 1.0, %v4412
    %v4414 = vtanh.pop %v4396
    %v4415 = vxor.u32 %v4398, 2147483648
    %v4416 = vmul.f32 %v4415, 1.442695
    %v4417 = vpow.pop %v4416
    %v4418 = vadd.f32 %v4417, 1.0
    %v4419 = vrcp.pop %v4418
    %v4420 = vmul.f32 1.0, %v4419
    %v4421 = vmul.f32 %v4413, %v4165
    %v4422 = vmul.f32 %v4407, %v4414
    %v4423 = vadd.f32 %v4421, %v4422
    %v4424 = vtanh.pop %v4423
    %v4425 = vmul.f32 %v4420, %v4424
    %v4426 = vpack.c.bf16 %v4425, %v4425
    %4427 = vmatprep.subr.bf16.mxu0 0
    %4428 = vmatpush1.bf16.msra.mxu0 %v3902
    %4429 = vmatprep.subr.bf16.mxu0 0
    %4430 = vmatpush1.bf16.msra.mxu0 %v3901
    %4431 = vmatprep.subr.bf16.mxu0 0
    %4432 = vmatpush1.bf16.msra.mxu0 %v3900
    %4433 = vmatprep.subr.bf16.mxu0 0
    %4434 = vmatpush1.bf16.msra.mxu0 %v3899
    %4435 = vmatprep.subr.bf16.mxu0 0
    %4436 = vmatpush1.bf16.msra.mxu0 %v3898
    %4437 = vmatprep.subr.bf16.mxu0 0
    %4438 = vmatpush1.bf16.msra.mxu0 %v3897
    %4439 = vmatprep.subr.bf16.mxu0 0
    %4440 = vmatpush1.bf16.msra.mxu0 %v3896
    %4441 = vmatprep.subr.bf16.mxu0 0
    %4442 = vmatpush1.bf16.msra.mxu0 %v3895
    %4443 = vmatprep.subr.bf16.mxu0 0
    %4444 = vmatpush2.bf16.msra.mxu0 0
    %4445 = vmatprep.subr.bf16.mxu0 0
    %4446 = vmatpush2.bf16.msra.mxu0 0
    %4447 = vmatprep.subr.bf16.mxu0 0
    %4448 = vmatpush2.bf16.msra.mxu0 0
    %4449 = vmatprep.subr.bf16.mxu0 0
    %4450 = vmatpush2.bf16.msra.mxu0 0
    %4451 = vmatprep.subr.bf16.mxu0 0
    %4452 = vmatpush2.bf16.msra.mxu0 0
    %4453 = vmatprep.subr.bf16.mxu0 0
    %4454 = vmatpush2.bf16.msra.mxu0 0
    %4455 = vmatprep.subr.bf16.mxu0 0
    %4456 = vmatpush2.bf16.msra.mxu0 0
    %4457 = vmatprep.subr.bf16.mxu0 0
    %4458 = vmatpush2.bf16.msra.mxu0 0
    %4459 = vmatprep.mubr.bf16.mxu0 0
    %4460 = vmatmul.mubr.bf16.gmra.mxu0 %v4426
    %v4461 = vpop.f32.mrf.mxu0
    %v4462 = vadd.f32 %v385, %v4461
    %v4463 = vpop.f32.mrf.mxu0
    %v4464 = vpop.f32.mrf.mxu0
    %v4465 = vpop.f32.mrf.mxu0
    %4466 = vdwg.mxu0
    %4467 = vmatprep.subr.bf16.mxu0 %v3289
    %4468 = vmatpush1.bf16.msra.mxu0 %v3288
    %4469 = vmatprep.subr.bf16.mxu0 %v3285
    %4470 = vmatpush1.bf16.msra.mxu0 %v3284
    %4471 = vmatprep.subr.bf16.mxu0 %v3281
    %4472 = vmatpush1.bf16.msra.mxu0 %v3280
    %4473 = vmatprep.subr.bf16.mxu0 %v3277
    %4474 = vmatpush1.bf16.msra.mxu0 %v3276
    %4475 = vmatprep.subr.bf16.mxu0 %v3273
    %4476 = vmatpush1.bf16.msra.mxu0 %v3272
    %4477 = vmatprep.subr.bf16.mxu0 %v3269
    %4478 = vmatpush1.bf16.msra.mxu0 %v3268
    %4479 = vmatprep.subr.bf16.mxu0 %v3265
    %4480 = vmatpush1.bf16.msra.mxu0 %v3264
    %4481 = vmatprep.subr.bf16.mxu0 %v3261
    %4482 = vmatpush1.bf16.msra.mxu0 %v3260
    %4483 = vmatprep.subr.bf16.mxu0 0
    %4484 = vmatpush2.bf16.msra.mxu0 0
    %4485 = vmatprep.subr.bf16.mxu0 0
    %4486 = vmatpush2.bf16.msra.mxu0 0
    %4487 = vmatprep.subr.bf16.mxu0 0
    %4488 = vmatpush2.bf16.msra.mxu0 0
    %4489 = vmatprep.subr.bf16.mxu0 0
    %4490 = vmatpush2.bf16.msra.mxu0 0
    %4491 = vmatprep.subr.bf16.mxu0 0
    %4492 = vmatpush2.bf16.msra.mxu0 0
    %4493 = vmatprep.subr.bf16.mxu0 0
    %4494 = vmatpush2.bf16.msra.mxu0 0
    %4495 = vmatprep.subr.bf16.mxu0 0
    %4496 = vmatpush2.bf16.msra.mxu0 0
    %4497 = vmatprep.subr.bf16.mxu0 0
    %4498 = vmatpush2.bf16.msra.mxu0 0
    %4499 = vmatprep.mubr.bf16.mxu0 0
    %4500 = vmatmul.mubr.bf16.gmra.mxu0 %v4319
    %v4501 = vpop.f32.mrf.mxu0
    %v4502 = vadd.f32 0.0, %v4501
    %v4503 = vpop.f32.mrf.mxu0
    %v4504 = vadd.f32 0.0, %v4503
    %v4505 = vpop.f32.mrf.mxu0
    %v4506 = vpop.f32.mrf.mxu0
    %4507 = vdwg.mxu0
    %4508 = vmatprep.subr.bf16.mxu0 %v3291
    %4509 = vmatpush1.bf16.msra.mxu0 %v3290
    %4510 = vmatprep.subr.bf16.mxu0 %v3287
    %4511 = vmatpush1.bf16.msra.mxu0 %v3286
    %4512 = vmatprep.subr.bf16.mxu0 %v3283
    %4513 = vmatpush1.bf16.msra.mxu0 %v3282
    %4514 = vmatprep.subr.bf16.mxu0 %v3279
    %4515 = vmatpush1.bf16.msra.mxu0 %v3278
    %4516 = vmatprep.subr.bf16.mxu0 %v3275
    %4517 = vmatpush1.bf16.msra.mxu0 %v3274
    %4518 = vmatprep.subr.bf16.mxu0 %v3271
    %4519 = vmatpush1.bf16.msra.mxu0 %v3270
    %4520 = vmatprep.subr.bf16.mxu0 %v3267
    %4521 = vmatpush1.bf16.msra.mxu0 %v3266
    %4522 = vmatprep.subr.bf16.mxu0 %v3263
    %4523 = vmatpush1.bf16.msra.mxu0 %v3262
    %4524 = vmatprep.subr.bf16.mxu0 0
    %4525 = vmatpush2.bf16.msra.mxu0 0
    %4526 = vmatprep.subr.bf16.mxu0 0
    %4527 = vmatpush2.bf16.msra.mxu0 0
    %4528 = vmatprep.subr.bf16.mxu0 0
    %4529 = vmatpush2.bf16.msra.mxu0 0
    %4530 = vmatprep.subr.bf16.mxu0 0
    %4531 = vmatpush2.bf16.msra.mxu0 0
    %4532 = vmatprep.subr.bf16.mxu0 0
    %4533 = vmatpush2.bf16.msra.mxu0 0
    %4534 = vmatprep.subr.bf16.mxu0 0
    %4535 = vmatpush2.bf16.msra.mxu0 0
    %4536 = vmatprep.subr.bf16.mxu0 0
    %4537 = vmatpush2.bf16.msra.mxu0 0
    %4538 = vmatprep.subr.bf16.mxu0 0
    %4539 = vmatpush2.bf16.msra.mxu0 0
    %4540 = vmatprep.mubr.bf16.mxu0 0
    %4541 = vmatmul.mubr.bf16.gmra.mxu0 %v4319
    %v4542 = vpop.f32.mrf.mxu0
    %v4543 = vadd.f32 0.0, %v4542
    %v4544 = vpop.f32.mrf.mxu0
    %v4545 = vadd.f32 0.0, %v4544
    %v4546 = vpop.f32.mrf.mxu0
    %v4547 = vpop.f32.mrf.mxu0
    %4548 = vdwg.mxu0
    %v4549 = vadd.f32 %v839, %v4502
    %v4550 = vadd.f32 %v841, %v4504
    %v4551 = vadd.f32 %v912, %v4543
    %v4552 = vadd.f32 %v914, %v4545
    %v4553 = vxor.u32 %v4549, 2147483648
    %v4554 = vmul.f32 %v4553, 1.442695
    %v4555 = vpow.pop %v4554
    %v4556 = vadd.f32 %v4555, 1.0
    %v4557 = vrcp.pop %v4556
    %v4558 = vmul.f32 1.0, %v4557
    %v4559 = vxor.u32 %v4550, 2147483648
    %v4560 = vmul.f32 %v4559, 1.442695
    %v4561 = vpow.pop %v4560
    %v4562 = vadd.f32 %v4561, 1.0
    %v4563 = vrcp.pop %v4562
    %v4564 = vmul.f32 1.0, %v4563
    %v4565 = vtanh.pop %v4551
    %v4566 = vxor.u32 %v4552, 2147483648
    %v4567 = vmul.f32 %v4566, 1.442695
    %v4568 = vpow.pop %v4567
    %v4569 = vadd.f32 %v4568, 1.0
    %v4570 = vrcp.pop %v4569
    %v4571 = vmul.f32 1.0, %v4570
    %v4572 = vmul.f32 %v4564, %v4316
    %v4573 = vmul.f32 %v4558, %v4565
    %v4574 = vadd.f32 %v4572, %v4573
    %v4575 = vtanh.pop %v4574
    %v4576 = vmul.f32 %v4571, %v4575
    %v4577 = vpack.c.bf16 %v4576, %v4576
    %4578 = vmatprep.subr.bf16.mxu0 %v3657
    %4579 = vmatpush1.bf16.msra.mxu0 %v3656
    %4580 = vmatprep.subr.bf16.mxu0 %v3653
    %4581 = vmatpush1.bf16.msra.mxu0 %v3652
    %4582 = vmatprep.subr.bf16.mxu0 %v3649
    %4583 = vmatpush1.bf16.msra.mxu0 %v3648
    %4584 = vmatprep.subr.bf16.mxu0 %v3645
    %4585 = vmatpush1.bf16.msra.mxu0 %v3644
    %4586 = vmatprep.subr.bf16.mxu0 %v3641
    %4587 = vmatpush1.bf16.msra.mxu0 %v3640
    %4588 = vmatprep.subr.bf16.mxu0 %v3637
    %4589 = vmatpush1.bf16.msra.mxu0 %v3636
    %4590 = vmatprep.subr.bf16.mxu0 %v3633
    %4591 = vmatpush1.bf16.msra.mxu0 %v3632
    %4592 = vmatprep.subr.bf16.mxu0 %v3629
    %4593 = vmatpush1.bf16.msra.mxu0 %v3628
    %4594 = vmatprep.subr.bf16.mxu0 %v3689
    %4595 = vmatpush2.bf16.msra.mxu0 %v3688
    %4596 = vmatprep.subr.bf16.mxu0 %v3685
    %4597 = vmatpush2.bf16.msra.mxu0 %v3684
    %4598 = vmatprep.subr.bf16.mxu0 %v3681
    %4599 = vmatpush2.bf16.msra.mxu0 %v3680
    %4600 = vmatprep.subr.bf16.mxu0 %v3677
    %4601 = vmatpush2.bf16.msra.mxu0 %v3676
    %4602 = vmatprep.subr.bf16.mxu0 %v3673
    %4603 = vmatpush2.bf16.msra.mxu0 %v3672
    %4604 = vmatprep.subr.bf16.mxu0 %v3669
    %4605 = vmatpush2.bf16.msra.mxu0 %v3668
    %4606 = vmatprep.subr.bf16.mxu0 %v3665
    %4607 = vmatpush2.bf16.msra.mxu0 %v3664
    %4608 = vmatprep.subr.bf16.mxu0 %v3661
    %4609 = vmatpush2.bf16.msra.mxu0 %v3660
    %4610 = vmatprep.mubr.bf16.mxu0 %v4426
    %4611 = vmatmul.mubr.bf16.gmra.mxu0 %v4577
    %v4612 = vpop.f32.mrf.mxu0
    %v4613 = vadd.f32 %v363, %v4612
    %v4614 = vpop.f32.mrf.mxu0
    %v4615 = vadd.f32 %v367, %v4614
    %v4616 = vpop.f32.mrf.mxu0
    %v4617 = vpop.f32.mrf.mxu0
    %4618 = vdwg.mxu0
    %4619 = vmatprep.subr.bf16.mxu0 %v3659
    %4620 = vmatpush1.bf16.msra.mxu0 %v3658
    %4621 = vmatprep.subr.bf16.mxu0 %v3655
    %4622 = vmatpush1.bf16.msra.mxu0 %v3654
    %4623 = vmatprep.subr.bf16.mxu0 %v3651
    %4624 = vmatpush1.bf16.msra.mxu0 %v3650
    %4625 = vmatprep.subr.bf16.mxu0 %v3647
    %4626 = vmatpush1.bf16.msra.mxu0 %v3646
    %4627 = vmatprep.subr.bf16.mxu0 %v3643
    %4628 = vmatpush1.bf16.msra.mxu0 %v3642
    %4629 = vmatprep.subr.bf16.mxu0 %v3639
    %4630 = vmatpush1.bf16.msra.mxu0 %v3638
    %4631 = vmatprep.subr.bf16.mxu0 %v3635
    %4632 = vmatpush1.bf16.msra.mxu0 %v3634
    %4633 = vmatprep.subr.bf16.mxu0 %v3631
    %4634 = vmatpush1.bf16.msra.mxu0 %v3630
    %4635 = vmatprep.subr.bf16.mxu0 %v3691
    %4636 = vmatpush2.bf16.msra.mxu0 %v3690
    %4637 = vmatprep.subr.bf16.mxu0 %v3687
    %4638 = vmatpush2.bf16.msra.mxu0 %v3686
    %4639 = vmatprep.subr.bf16.mxu0 %v3683
    %4640 = vmatpush2.bf16.msra.mxu0 %v3682
    %4641 = vmatprep.subr.bf16.mxu0 %v3679
    %4642 = vmatpush2.bf16.msra.mxu0 %v3678
    %4643 = vmatprep.subr.bf16.mxu0 %v3675
    %4644 = vmatpush2.bf16.msra.mxu0 %v3674
    %4645 = vmatprep.subr.bf16.mxu0 %v3671
    %4646 = vmatpush2.bf16.msra.mxu0 %v3670
    %4647 = vmatprep.subr.bf16.mxu0 %v3667
    %4648 = vmatpush2.bf16.msra.mxu0 %v3666
    %4649 = vmatprep.subr.bf16.mxu0 %v3663
    %4650 = vmatpush2.bf16.msra.mxu0 %v3662
    %4651 = vmatprep.mubr.bf16.mxu0 %v4426
    %4652 = vmatmul.mubr.bf16.gmra.mxu0 %v4577
    %v4653 = vpop.f32.mrf.mxu0
    %v4654 = vadd.f32 %v371, %v4653
    %v4655 = vpop.f32.mrf.mxu0
    %v4656 = vadd.f32 %v375, %v4655
    %v4657 = vpop.f32.mrf.mxu0
    %v4658 = vpop.f32.mrf.mxu0
    %4659 = vdwg.mxu0
    %v4660 = vxor.u32 %v4613, 2147483648
    %v4661 = vmul.f32 %v4660, 1.442695
    %v4662 = vpow.pop %v4661
    %v4663 = vadd.f32 %v4662, 1.0
    %v4664 = vrcp.pop %v4663
    %v4665 = vmul.f32 1.0, %v4664
    %v4666 = vxor.u32 %v4615, 2147483648
    %v4667 = vmul.f32 %v4666, 1.442695
    %v4668 = vpow.pop %v4667
    %v4669 = vadd.f32 %v4668, 1.0
    %v4670 = vrcp.pop %v4669
    %v4671 = vmul.f32 1.0, %v4670
    %v4672 = vtanh.pop %v4654
    %v4673 = vxor.u32 %v4656, 2147483648
    %v4674 = vmul.f32 %v4673, 1.442695
    %v4675 = vpow.pop %v4674
    %v4676 = vadd.f32 %v4675, 1.0
    %v4677 = vrcp.pop %v4676
    %v4678 = vmul.f32 1.0, %v4677
    %v4679 = vmul.f32 %v4671, %v4423
    %v4680 = vmul.f32 %v4665, %v4672
    %v4681 = vadd.f32 %v4679, %v4680
    %v4682 = vtanh.pop %v4681
    %v4683 = vmul.f32 %v4678, %v4682
    %v4684 = vpack.c.bf16 %v4683, %v4683
    %4685 = vmatprep.subr.bf16.mxu0 0
    %4686 = vmatpush1.bf16.msra.mxu0 %v3902
    %4687 = vmatprep.subr.bf16.mxu0 0
    %4688 = vmatpush1.bf16.msra.mxu0 %v3901
    %4689 = vmatprep.subr.bf16.mxu0 0
    %4690 = vmatpush1.bf16.msra.mxu0 %v3900
    %4691 = vmatprep.subr.bf16.mxu0 0
    %4692 = vmatpush1.bf16.msra.mxu0 %v3899
    %4693 = vmatprep.subr.bf16.mxu0 0
    %4694 = vmatpush1.bf16.msra.mxu0 %v3898
    %4695 = vmatprep.subr.bf16.mxu0 0
    %4696 = vmatpush1.bf16.msra.mxu0 %v3897
    %4697 = vmatprep.subr.bf16.mxu0 0
    %4698 = vmatpush1.bf16.msra.mxu0 %v3896
    %4699 = vmatprep.subr.bf16.mxu0 0
    %4700 = vmatpush1.bf16.msra.mxu0 %v3895
    %4701 = vmatprep.subr.bf16.mxu0 0
    %4702 = vmatpush2.bf16.msra.mxu0 0
    %4703 = vmatprep.subr.bf16.mxu0 0
    %4704 = vmatpush2.bf16.msra.mxu0 0
    %4705 = vmatprep.subr.bf16.mxu0 0
    %4706 = vmatpush2.bf16.msra.mxu0 0
    %4707 = vmatprep.subr.bf16.mxu0 0
    %4708 = vmatpush2.bf16.msra.mxu0 0
    %4709 = vmatprep.subr.bf16.mxu0 0
    %4710 = vmatpush2.bf16.msra.mxu0 0
    %4711 = vmatprep.subr.bf16.mxu0 0
    %4712 = vmatpush2.bf16.msra.mxu0 0
    %4713 = vmatprep.subr.bf16.mxu0 0
    %4714 = vmatpush2.bf16.msra.mxu0 0
    %4715 = vmatprep.subr.bf16.mxu0 0
    %4716 = vmatpush2.bf16.msra.mxu0 0
    %4717 = vmatprep.mubr.bf16.mxu0 0
    %4718 = vmatmul.mubr.bf16.gmra.mxu0 %v4684
    %v4719 = vpop.f32.mrf.mxu0
    %v4720 = vadd.f32 %v385, %v4719
    %v4721 = vpop.f32.mrf.mxu0
    %v4722 = vpop.f32.mrf.mxu0
    %v4723 = vpop.f32.mrf.mxu0
    %4724 = vdwg.mxu0
    %4725 = vmatprep.subr.bf16.mxu0 %v3289
    %4726 = vmatpush1.bf16.msra.mxu0 %v3288
    %4727 = vmatprep.subr.bf16.mxu0 %v3285
    %4728 = vmatpush1.bf16.msra.mxu0 %v3284
    %4729 = vmatprep.subr.bf16.mxu0 %v3281
    %4730 = vmatpush1.bf16.msra.mxu0 %v3280
    %4731 = vmatprep.subr.bf16.mxu0 %v3277
    %4732 = vmatpush1.bf16.msra.mxu0 %v3276
    %4733 = vmatprep.subr.bf16.mxu0 %v3273
    %4734 = vmatpush1.bf16.msra.mxu0 %v3272
    %4735 = vmatprep.subr.bf16.mxu0 %v3269
    %4736 = vmatpush1.bf16.msra.mxu0 %v3268
    %4737 = vmatprep.subr.bf16.mxu0 %v3265
    %4738 = vmatpush1.bf16.msra.mxu0 %v3264
    %4739 = vmatprep.subr.bf16.mxu0 %v3261
    %4740 = vmatpush1.bf16.msra.mxu0 %v3260
    %4741 = vmatprep.subr.bf16.mxu0 0
    %4742 = vmatpush2.bf16.msra.mxu0 0
    %4743 = vmatprep.subr.bf16.mxu0 0
    %4744 = vmatpush2.bf16.msra.mxu0 0
    %4745 = vmatprep.subr.bf16.mxu0 0
    %4746 = vmatpush2.bf16.msra.mxu0 0
    %4747 = vmatprep.subr.bf16.mxu0 0
    %4748 = vmatpush2.bf16.msra.mxu0 0
    %4749 = vmatprep.subr.bf16.mxu0 0
    %4750 = vmatpush2.bf16.msra.mxu0 0
    %4751 = vmatprep.subr.bf16.mxu0 0
    %4752 = vmatpush2.bf16.msra.mxu0 0
    %4753 = vmatprep.subr.bf16.mxu0 0
    %4754 = vmatpush2.bf16.msra.mxu0 0
    %4755 = vmatprep.subr.bf16.mxu0 0
    %4756 = vmatpush2.bf16.msra.mxu0 0
    %4757 = vmatprep.mubr.bf16.mxu0 0
    %4758 = vmatmul.mubr.bf16.gmra.mxu0 %v4577
    %v4759 = vpop.f32.mrf.mxu0
    %v4760 = vadd.f32 0.0, %v4759
    %v4761 = vpop.f32.mrf.mxu0
    %v4762 = vadd.f32 0.0, %v4761
    %v4763 = vpop.f32.mrf.mxu0
    %v4764 = vpop.f32.mrf.mxu0
    %4765 = vdwg.mxu0
    %4766 = vmatprep.subr.bf16.mxu0 %v3291
    %4767 = vmatpush1.bf16.msra.mxu0 %v3290
    %4768 = vmatprep.subr.bf16.mxu0 %v3287
    %4769 = vmatpush1.bf16.msra.mxu0 %v3286
    %4770 = vmatprep.subr.bf16.mxu0 %v3283
    %4771 = vmatpush1.bf16.msra.mxu0 %v3282
    %4772 = vmatprep.subr.bf16.mxu0 %v3279
    %4773 = vmatpush1.bf16.msra.mxu0 %v3278
    %4774 = vmatprep.subr.bf16.mxu0 %v3275
    %4775 = vmatpush1.bf16.msra.mxu0 %v3274
    %4776 = vmatprep.subr.bf16.mxu0 %v3271
    %4777 = vmatpush1.bf16.msra.mxu0 %v3270
    %4778 = vmatprep.subr.bf16.mxu0 %v3267
    %4779 = vmatpush1.bf16.msra.mxu0 %v3266
    %4780 = vmatprep.subr.bf16.mxu0 %v3263
    %4781 = vmatpush1.bf16.msra.mxu0 %v3262
    %4782 = vmatprep.subr.bf16.mxu0 0
    %4783 = vmatpush2.bf16.msra.mxu0 0
    %4784 = vmatprep.subr.bf16.mxu0 0
    %4785 = vmatpush2.bf16.msra.mxu0 0
    %4786 = vmatprep.subr.bf16.mxu0 0
    %4787 = vmatpush2.bf16.msra.mxu0 0
    %4788 = vmatprep.subr.bf16.mxu0 0
    %4789 = vmatpush2.bf16.msra.mxu0 0
    %4790 = vmatprep.subr.bf16.mxu0 0
    %4791 = vmatpush2.bf16.msra.mxu0 0
    %4792 = vmatprep.subr.bf16.mxu0 0
    %4793 = vmatpush2.bf16.msra.mxu0 0
    %4794 = vmatprep.subr.bf16.mxu0 0
    %4795 = vmatpush2.bf16.msra.mxu0 0
    %4796 = vmatprep.subr.bf16.mxu0 0
    %4797 = vmatpush2.bf16.msra.mxu0 0
    %4798 = vmatprep.mubr.bf16.mxu0 0
    %4799 = vmatmul.mubr.bf16.gmra.mxu0 %v4577
    %v4800 = vpop.f32.mrf.mxu0
    %v4801 = vadd.f32 0.0, %v4800
    %v4802 = vpop.f32.mrf.mxu0
    %v4803 = vadd.f32 0.0, %v4802
    %v4804 = vpop.f32.mrf.mxu0
    %v4805 = vpop.f32.mrf.mxu0
    %4806 = vdwg.mxu0
    %v4807 = vadd.f32 %v843, %v4760
    %v4808 = vadd.f32 %v845, %v4762
    %v4809 = vadd.f32 %v916, %v4801
    %v4810 = vadd.f32 %v918, %v4803
    %v4811 = vxor.u32 %v4807, 2147483648
    %v4812 = vmul.f32 %v4811, 1.442695
    %v4813 = vpow.pop %v4812
    %v4814 = vadd.f32 %v4813, 1.0
    %v4815 = vrcp.pop %v4814
    %v4816 = vmul.f32 1.0, %v4815
    %v4817 = vxor.u32 %v4808, 2147483648
    %v4818 = vmul.f32 %v4817, 1.442695
    %v4819 = vpow.pop %v4818
    %v4820 = vadd.f32 %v4819, 1.0
    %v4821 = vrcp.pop %v4820
    %v4822 = vmul.f32 1.0, %v4821
    %v4823 = vtanh.pop %v4809
    %v4824 = vxor.u32 %v4810, 2147483648
    %v4825 = vmul.f32 %v4824, 1.442695
    %v4826 = vpow.pop %v4825
    %v4827 = vadd.f32 %v4826, 1.0
    %v4828 = vrcp.pop %v4827
    %v4829 = vmul.f32 1.0, %v4828
    %v4830 = vmul.f32 %v4822, %v4574
    %v4831 = vmul.f32 %v4816, %v4823
    %v4832 = vadd.f32 %v4830, %v4831
    %v4833 = vtanh.pop %v4832
    %v4834 = vmul.f32 %v4829, %v4833
    %v4835 = vpack.c.bf16 %v4834, %v4834
    %4836 = vmatprep.subr.bf16.mxu0 %v3657
    %4837 = vmatpush1.bf16.msra.mxu0 %v3656
    %4838 = vmatprep.subr.bf16.mxu0 %v3653
    %4839 = vmatpush1.bf16.msra.mxu0 %v3652
    %4840 = vmatprep.subr.bf16.mxu0 %v3649
    %4841 = vmatpush1.bf16.msra.mxu0 %v3648
    %4842 = vmatprep.subr.bf16.mxu0 %v3645
    %4843 = vmatpush1.bf16.msra.mxu0 %v3644
    %4844 = vmatprep.subr.bf16.mxu0 %v3641
    %4845 = vmatpush1.bf16.msra.mxu0 %v3640
    %4846 = vmatprep.subr.bf16.mxu0 %v3637
    %4847 = vmatpush1.bf16.msra.mxu0 %v3636
    %4848 = vmatprep.subr.bf16.mxu0 %v3633
    %4849 = vmatpush1.bf16.msra.mxu0 %v3632
    %4850 = vmatprep.subr.bf16.mxu0 %v3629
    %4851 = vmatpush1.bf16.msra.mxu0 %v3628
    %4852 = vmatprep.subr.bf16.mxu0 %v3689
    %4853 = vmatpush2.bf16.msra.mxu0 %v3688
    %4854 = vmatprep.subr.bf16.mxu0 %v3685
    %4855 = vmatpush2.bf16.msra.mxu0 %v3684
    %4856 = vmatprep.subr.bf16.mxu0 %v3681
    %4857 = vmatpush2.bf16.msra.mxu0 %v3680
    %4858 = vmatprep.subr.bf16.mxu0 %v3677
    %4859 = vmatpush2.bf16.msra.mxu0 %v3676
    %4860 = vmatprep.subr.bf16.mxu0 %v3673
    %4861 = vmatpush2.bf16.msra.mxu0 %v3672
    %4862 = vmatprep.subr.bf16.mxu0 %v3669
    %4863 = vmatpush2.bf16.msra.mxu0 %v3668
    %4864 = vmatprep.subr.bf16.mxu0 %v3665
    %4865 = vmatpush2.bf16.msra.mxu0 %v3664
    %4866 = vmatprep.subr.bf16.mxu0 %v3661
    %4867 = vmatpush2.bf16.msra.mxu0 %v3660
    %4868 = vmatprep.mubr.bf16.mxu0 %v4684
    %4869 = vmatmul.mubr.bf16.gmra.mxu0 %v4835
    %v4870 = vpop.f32.mrf.mxu0
    %v4871 = vadd.f32 %v363, %v4870
    %v4872 = vpop.f32.mrf.mxu0
    %v4873 = vadd.f32 %v367, %v4872
    %v4874 = vpop.f32.mrf.mxu0
    %v4875 = vpop.f32.mrf.mxu0
    %4876 = vdwg.mxu0
    %4877 = vmatprep.subr.bf16.mxu0 %v3659
    %4878 = vmatpush1.bf16.msra.mxu0 %v3658
    %4879 = vmatprep.subr.bf16.mxu0 %v3655
    %4880 = vmatpush1.bf16.msra.mxu0 %v3654
    %4881 = vmatprep.subr.bf16.mxu0 %v3651
    %4882 = vmatpush1.bf16.msra.mxu0 %v3650
    %4883 = vmatprep.subr.bf16.mxu0 %v3647
    %4884 = vmatpush1.bf16.msra.mxu0 %v3646
    %4885 = vmatprep.subr.bf16.mxu0 %v3643
    %4886 = vmatpush1.bf16.msra.mxu0 %v3642
    %4887 = vmatprep.subr.bf16.mxu0 %v3639
    %4888 = vmatpush1.bf16.msra.mxu0 %v3638
    %4889 = vmatprep.subr.bf16.mxu0 %v3635
    %4890 = vmatpush1.bf16.msra.mxu0 %v3634
    %4891 = vmatprep.subr.bf16.mxu0 %v3631
    %4892 = vmatpush1.bf16.msra.mxu0 %v3630
    %4893 = vmatprep.subr.bf16.mxu0 %v3691
    %4894 = vmatpush2.bf16.msra.mxu0 %v3690
    %4895 = vmatprep.subr.bf16.mxu0 %v3687
    %4896 = vmatpush2.bf16.msra.mxu0 %v3686
    %4897 = vmatprep.subr.bf16.mxu0 %v3683
    %4898 = vmatpush2.bf16.msra.mxu0 %v3682
    %4899 = vmatprep.subr.bf16.mxu0 %v3679
    %4900 = vmatpush2.bf16.msra.mxu0 %v3678
    %4901 = vmatprep.subr.bf16.mxu0 %v3675
    %4902 = vmatpush2.bf16.msra.mxu0 %v3674
    %4903 = vmatprep.subr.bf16.mxu0 %v3671
    %4904 = vmatpush2.bf16.msra.mxu0 %v3670
    %4905 = vmatprep.subr.bf16.mxu0 %v3667
    %4906 = vmatpush2.bf16.msra.mxu0 %v3666
    %4907 = vmatprep.subr.bf16.mxu0 %v3663
    %4908 = vmatpush2.bf16.msra.mxu0 %v3662
    %4909 = vmatprep.mubr.bf16.mxu0 %v4684
    %4910 = vmatmul.mubr.bf16.gmra.mxu0 %v4835
    %v4911 = vpop.f32.mrf.mxu0
    %v4912 = vadd.f32 %v371, %v4911
    %v4913 = vpop.f32.mrf.mxu0
    %v4914 = vadd.f32 %v375, %v4913
    %v4915 = vpop.f32.mrf.mxu0
    %v4916 = vpop.f32.mrf.mxu0
    %4917 = vdwg.mxu0
    %v4918 = vxor.u32 %v4871, 2147483648
    %v4919 = vmul.f32 %v4918, 1.442695
    %v4920 = vpow.pop %v4919
    %v4921 = vadd.f32 %v4920, 1.0
    %v4922 = vrcp.pop %v4921
    %v4923 = vmul.f32 1.0, %v4922
    %v4924 = vxor.u32 %v4873, 2147483648
    %v4925 = vmul.f32 %v4924, 1.442695
    %v4926 = vpow.pop %v4925
    %v4927 = vadd.f32 %v4926, 1.0
    %v4928 = vrcp.pop %v4927
    %v4929 = vmul.f32 1.0, %v4928
    %v4930 = vtanh.pop %v4912
    %v4931 = vxor.u32 %v4914, 2147483648
    %v4932 = vmul.f32 %v4931, 1.442695
    %v4933 = vpow.pop %v4932
    %v4934 = vadd.f32 %v4933, 1.0
    %v4935 = vrcp.pop %v4934
    %v4936 = vmul.f32 1.0, %v4935
    %v4937 = vmul.f32 %v4929, %v4681
    %v4938 = vmul.f32 %v4923, %v4930
    %v4939 = vadd.f32 %v4937, %v4938
    %v4940 = vtanh.pop %v4939
    %v4941 = vmul.f32 %v4936, %v4940
    %v4942 = vpack.c.bf16 %v4941, %v4941
    %4943 = vmatprep.subr.bf16.mxu0 0
    %4944 = vmatpush1.bf16.msra.mxu0 %v3902
    %4945 = vmatprep.subr.bf16.mxu0 0
    %4946 = vmatpush1.bf16.msra.mxu0 %v3901
    %4947 = vmatprep.subr.bf16.mxu0 0
    %4948 = vmatpush1.bf16.msra.mxu0 %v3900
    %4949 = vmatprep.subr.bf16.mxu0 0
    %4950 = vmatpush1.bf16.msra.mxu0 %v3899
    %4951 = vmatprep.subr.bf16.mxu0 0
    %4952 = vmatpush1.bf16.msra.mxu0 %v3898
    %4953 = vmatprep.subr.bf16.mxu0 0
    %4954 = vmatpush1.bf16.msra.mxu0 %v3897
    %4955 = vmatprep.subr.bf16.mxu0 0
    %4956 = vmatpush1.bf16.msra.mxu0 %v3896
    %4957 = vmatprep.subr.bf16.mxu0 0
    %4958 = vmatpush1.bf16.msra.mxu0 %v3895
    %4959 = vmatprep.subr.bf16.mxu0 0
    %4960 = vmatpush2.bf16.msra.mxu0 0
    %4961 = vmatprep.subr.bf16.mxu0 0
    %4962 = vmatpush2.bf16.msra.mxu0 0
    %4963 = vmatprep.subr.bf16.mxu0 0
    %4964 = vmatpush2.bf16.msra.mxu0 0
    %4965 = vmatprep.subr.bf16.mxu0 0
    %4966 = vmatpush2.bf16.msra.mxu0 0
    %4967 = vmatprep.subr.bf16.mxu0 0
    %4968 = vmatpush2.bf16.msra.mxu0 0
    %4969 = vmatprep.subr.bf16.mxu0 0
    %4970 = vmatpush2.bf16.msra.mxu0 0
    %4971 = vmatprep.subr.bf16.mxu0 0
    %4972 = vmatpush2.bf16.msra.mxu0 0
    %4973 = vmatprep.subr.bf16.mxu0 0
    %4974 = vmatpush2.bf16.msra.mxu0 0
    %4975 = vmatprep.mubr.bf16.mxu0 0
    %4976 = vmatmul.mubr.bf16.gmra.mxu0 %v4942
    %v4977 = vpop.f32.mrf.mxu0
    %v4978 = vadd.f32 %v385, %v4977
    %v4979 = vpop.f32.mrf.mxu0
    %v4980 = vpop.f32.mrf.mxu0
    %v4981 = vpop.f32.mrf.mxu0
    %4982 = vdwg.mxu0
    %4983 = vmatprep.subr.bf16.mxu0 %v3289
    %4984 = vmatpush1.bf16.msra.mxu0 %v3288
    %4985 = vmatprep.subr.bf16.mxu0 %v3285
    %4986 = vmatpush1.bf16.msra.mxu0 %v3284
    %4987 = vmatprep.subr.bf16.mxu0 %v3281
    %4988 = vmatpush1.bf16.msra.mxu0 %v3280
    %4989 = vmatprep.subr.bf16.mxu0 %v3277
    %4990 = vmatpush1.bf16.msra.mxu0 %v3276
    %4991 = vmatprep.subr.bf16.mxu0 %v3273
    %4992 = vmatpush1.bf16.msra.mxu0 %v3272
    %4993 = vmatprep.subr.bf16.mxu0 %v3269
    %4994 = vmatpush1.bf16.msra.mxu0 %v3268
    %4995 = vmatprep.subr.bf16.mxu0 %v3265
    %4996 = vmatpush1.bf16.msra.mxu0 %v3264
    %4997 = vmatprep.subr.bf16.mxu0 %v3261
    %4998 = vmatpush1.bf16.msra.mxu0 %v3260
    %4999 = vmatprep.subr.bf16.mxu0 0
    %5000 = vmatpush2.bf16.msra.mxu0 0
    %5001 = vmatprep.subr.bf16.mxu0 0
    %5002 = vmatpush2.bf16.msra.mxu0 0
    %5003 = vmatprep.subr.bf16.mxu0 0
    %5004 = vmatpush2.bf16.msra.mxu0 0
    %5005 = vmatprep.subr.bf16.mxu0 0
    %5006 = vmatpush2.bf16.msra.mxu0 0
    %5007 = vmatprep.subr.bf16.mxu0 0
    %5008 = vmatpush2.bf16.msra.mxu0 0
    %5009 = vmatprep.subr.bf16.mxu0 0
    %5010 = vmatpush2.bf16.msra.mxu0 0
    %5011 = vmatprep.subr.bf16.mxu0 0
    %5012 = vmatpush2.bf16.msra.mxu0 0
    %5013 = vmatprep.subr.bf16.mxu0 0
    %5014 = vmatpush2.bf16.msra.mxu0 0
    %5015 = vmatprep.mubr.bf16.mxu0 0
    %5016 = vmatmul.mubr.bf16.gmra.mxu0 %v4835
    %v5017 = vpop.f32.mrf.mxu0
    %v5018 = vadd.f32 0.0, %v5017
    %v5019 = vpop.f32.mrf.mxu0
    %v5020 = vadd.f32 0.0, %v5019
    %v5021 = vpop.f32.mrf.mxu0
    %v5022 = vpop.f32.mrf.mxu0
    %5023 = vdwg.mxu0
    %5024 = vmatprep.subr.bf16.mxu0 %v3291
    %5025 = vmatpush1.bf16.msra.mxu0 %v3290
    %5026 = vmatprep.subr.bf16.mxu0 %v3287
    %5027 = vmatpush1.bf16.msra.mxu0 %v3286
    %5028 = vmatprep.subr.bf16.mxu0 %v3283
    %5029 = vmatpush1.bf16.msra.mxu0 %v3282
    %5030 = vmatprep.subr.bf16.mxu0 %v3279
    %5031 = vmatpush1.bf16.msra.mxu0 %v3278
    %5032 = vmatprep.subr.bf16.mxu0 %v3275
    %5033 = vmatpush1.bf16.msra.mxu0 %v3274
    %5034 = vmatprep.subr.bf16.mxu0 %v3271
    %5035 = vmatpush1.bf16.msra.mxu0 %v3270
    %5036 = vmatprep.subr.bf16.mxu0 %v3267
    %5037 = vmatpush1.bf16.msra.mxu0 %v3266
    %5038 = vmatprep.subr.bf16.mxu0 %v3263
    %5039 = vmatpush1.bf16.msra.mxu0 %v3262
    %5040 = vmatprep.subr.bf16.mxu0 0
    %5041 = vmatpush2.bf16.msra.mxu0 0
    %5042 = vmatprep.subr.bf16.mxu0 0
    %5043 = vmatpush2.bf16.msra.mxu0 0
    %5044 = vmatprep.subr.bf16.mxu0 0
    %5045 = vmatpush2.bf16.msra.mxu0 0
    %5046 = vmatprep.subr.bf16.mxu0 0
    %5047 = vmatpush2.bf16.msra.mxu0 0
    %5048 = vmatprep.subr.bf16.mxu0 0
    %5049 = vmatpush2.bf16.msra.mxu0 0
    %5050 = vmatprep.subr.bf16.mxu0 0
    %5051 = vmatpush2.bf16.msra.mxu0 0
    %5052 = vmatprep.subr.bf16.mxu0 0
    %5053 = vmatpush2.bf16.msra.mxu0 0
    %5054 = vmatprep.subr.bf16.mxu0 0
    %5055 = vmatpush2.bf16.msra.mxu0 0
    %5056 = vmatprep.mubr.bf16.mxu0 0
    %5057 = vmatmul.mubr.bf16.gmra.mxu0 %v4835
    %v5058 = vpop.f32.mrf.mxu0
    %v5059 = vadd.f32 0.0, %v5058
    %v5060 = vpop.f32.mrf.mxu0
    %v5061 = vadd.f32 0.0, %v5060
    %v5062 = vpop.f32.mrf.mxu0
    %v5063 = vpop.f32.mrf.mxu0
    %5064 = vdwg.mxu0
    %v5065 = vadd.f32 %v849, %v5018
    %v5066 = vadd.f32 %v851, %v5020
    %v5067 = vadd.f32 %v922, %v5059
    %v5068 = vadd.f32 %v924, %v5061
    %v5069 = vxor.u32 %v5065, 2147483648
    %v5070 = vmul.f32 %v5069, 1.442695
    %v5071 = vpow.pop %v5070
    %v5072 = vadd.f32 %v5071, 1.0
    %v5073 = vrcp.pop %v5072
    %v5074 = vmul.f32 1.0, %v5073
    %v5075 = vxor.u32 %v5066, 2147483648
    %v5076 = vmul.f32 %v5075, 1.442695
    %v5077 = vpow.pop %v5076
    %v5078 = vadd.f32 %v5077, 1.0
    %v5079 = vrcp.pop %v5078
    %v5080 = vmul.f32 1.0, %v5079
    %v5081 = vtanh.pop %v5067
    %v5082 = vxor.u32 %v5068, 2147483648
    %v5083 = vmul.f32 %v5082, 1.442695
    %v5084 = vpow.pop %v5083
    %v5085 = vadd.f32 %v5084, 1.0
    %v5086 = vrcp.pop %v5085
    %v5087 = vmul.f32 1.0, %v5086
    %v5088 = vmul.f32 %v5080, %v4832
    %v5089 = vmul.f32 %v5074, %v5081
    %v5090 = vadd.f32 %v5088, %v5089
    %v5091 = vtanh.pop %v5090
    %v5092 = vmul.f32 %v5087, %v5091
    %v5093 = vpack.c.bf16 %v5092, %v5092
    %5094 = vmatprep.subr.bf16.mxu0 %v3657
    %5095 = vmatpush1.bf16.msra.mxu0 %v3656
    %5096 = vmatprep.subr.bf16.mxu0 %v3653
    %5097 = vmatpush1.bf16.msra.mxu0 %v3652
    %5098 = vmatprep.subr.bf16.mxu0 %v3649
    %5099 = vmatpush1.bf16.msra.mxu0 %v3648
    %5100 = vmatprep.subr.bf16.mxu0 %v3645
    %5101 = vmatpush1.bf16.msra.mxu0 %v3644
    %5102 = vmatprep.subr.bf16.mxu0 %v3641
    %5103 = vmatpush1.bf16.msra.mxu0 %v3640
    %5104 = vmatprep.subr.bf16.mxu0 %v3637
    %5105 = vmatpush1.bf16.msra.mxu0 %v3636
    %5106 = vmatprep.subr.bf16.mxu0 %v3633
    %5107 = vmatpush1.bf16.msra.mxu0 %v3632
    %5108 = vmatprep.subr.bf16.mxu0 %v3629
    %5109 = vmatpush1.bf16.msra.mxu0 %v3628
    %5110 = vmatprep.subr.bf16.mxu0 %v3689
    %5111 = vmatpush2.bf16.msra.mxu0 %v3688
    %5112 = vmatprep.subr.bf16.mxu0 %v3685
    %5113 = vmatpush2.bf16.msra.mxu0 %v3684
    %5114 = vmatprep.subr.bf16.mxu0 %v3681
    %5115 = vmatpush2.bf16.msra.mxu0 %v3680
    %5116 = vmatprep.subr.bf16.mxu0 %v3677
    %5117 = vmatpush2.bf16.msra.mxu0 %v3676
    %5118 = vmatprep.subr.bf16.mxu0 %v3673
    %5119 = vmatpush2.bf16.msra.mxu0 %v3672
    %5120 = vmatprep.subr.bf16.mxu0 %v3669
    %5121 = vmatpush2.bf16.msra.mxu0 %v3668
    %5122 = vmatprep.subr.bf16.mxu0 %v3665
    %5123 = vmatpush2.bf16.msra.mxu0 %v3664
    %5124 = vmatprep.subr.bf16.mxu0 %v3661
    %5125 = vmatpush2.bf16.msra.mxu0 %v3660
    %5126 = vmatprep.mubr.bf16.mxu0 %v4942
    %5127 = vmatmul.mubr.bf16.gmra.mxu0 %v5093
    %v5128 = vpop.f32.mrf.mxu0
    %v5129 = vadd.f32 %v363, %v5128
    %v5130 = vpop.f32.mrf.mxu0
    %v5131 = vadd.f32 %v367, %v5130
    %v5132 = vpop.f32.mrf.mxu0
    %v5133 = vpop.f32.mrf.mxu0
    %5134 = vdwg.mxu0
    %5135 = vmatprep.subr.bf16.mxu0 %v3659
    %5136 = vmatpush1.bf16.msra.mxu0 %v3658
    %5137 = vmatprep.subr.bf16.mxu0 %v3655
    %5138 = vmatpush1.bf16.msra.mxu0 %v3654
    %5139 = vmatprep.subr.bf16.mxu0 %v3651
    %5140 = vmatpush1.bf16.msra.mxu0 %v3650
    %5141 = vmatprep.subr.bf16.mxu0 %v3647
    %5142 = vmatpush1.bf16.msra.mxu0 %v3646
    %5143 = vmatprep.subr.bf16.mxu0 %v3643
    %5144 = vmatpush1.bf16.msra.mxu0 %v3642
    %5145 = vmatprep.subr.bf16.mxu0 %v3639
    %5146 = vmatpush1.bf16.msra.mxu0 %v3638
    %5147 = vmatprep.subr.bf16.mxu0 %v3635
    %5148 = vmatpush1.bf16.msra.mxu0 %v3634
    %5149 = vmatprep.subr.bf16.mxu0 %v3631
    %5150 = vmatpush1.bf16.msra.mxu0 %v3630
    %5151 = vmatprep.subr.bf16.mxu0 %v3691
    %5152 = vmatpush2.bf16.msra.mxu0 %v3690
    %5153 = vmatprep.subr.bf16.mxu0 %v3687
    %5154 = vmatpush2.bf16.msra.mxu0 %v3686
    %5155 = vmatprep.subr.bf16.mxu0 %v3683
    %5156 = vmatpush2.bf16.msra.mxu0 %v3682
    %5157 = vmatprep.subr.bf16.mxu0 %v3679
    %5158 = vmatpush2.bf16.msra.mxu0 %v3678
    %5159 = vmatprep.subr.bf16.mxu0 %v3675
    %5160 = vmatpush2.bf16.msra.mxu0 %v3674
    %5161 = vmatprep.subr.bf16.mxu0 %v3671
    %5162 = vmatpush2.bf16.msra.mxu0 %v3670
    %5163 = vmatprep.subr.bf16.mxu0 %v3667
    %5164 = vmatpush2.bf16.msra.mxu0 %v3666
    %5165 = vmatprep.subr.bf16.mxu0 %v3663
    %5166 = vmatpush2.bf16.msra.mxu0 %v3662
    %5167 = vmatprep.mubr.bf16.mxu0 %v4942
    %5168 = vmatmul.mubr.bf16.gmra.mxu0 %v5093
    %v5169 = vpop.f32.mrf.mxu0
    %v5170 = vadd.f32 %v371, %v5169
    %v5171 = vpop.f32.mrf.mxu0
    %v5172 = vadd.f32 %v375, %v5171
    %v5173 = vpop.f32.mrf.mxu0
    %v5174 = vpop.f32.mrf.mxu0
    %5175 = vdwg.mxu0
    %v5176 = vxor.u32 %v5129, 2147483648
    %v5177 = vmul.f32 %v5176, 1.442695
    %v5178 = vpow.pop %v5177
    %v5179 = vadd.f32 %v5178, 1.0
    %v5180 = vrcp.pop %v5179
    %v5181 = vmul.f32 1.0, %v5180
    %v5182 = vxor.u32 %v5131, 2147483648
    %v5183 = vmul.f32 %v5182, 1.442695
    %v5184 = vpow.pop %v5183
    %v5185 = vadd.f32 %v5184, 1.0
    %v5186 = vrcp.pop %v5185
    %v5187 = vmul.f32 1.0, %v5186
    %v5188 = vtanh.pop %v5170
    %v5189 = vxor.u32 %v5172, 2147483648
    %v5190 = vmul.f32 %v5189, 1.442695
    %v5191 = vpow.pop %v5190
    %v5192 = vadd.f32 %v5191, 1.0
    %v5193 = vrcp.pop %v5192
    %v5194 = vmul.f32 1.0, %v5193
    %v5195 = vmul.f32 %v5187, %v4939
    %v5196 = vmul.f32 %v5181, %v5188
    %v5197 = vadd.f32 %v5195, %v5196
    %v5198 = vtanh.pop %v5197
    %v5199 = vmul.f32 %v5194, %v5198
    %v5200 = vpack.c.bf16 %v5199, %v5199
    %5201 = vmatprep.subr.bf16.mxu0 0
    %5202 = vmatpush1.bf16.msra.mxu0 %v3902
    %5203 = vmatprep.subr.bf16.mxu0 0
    %5204 = vmatpush1.bf16.msra.mxu0 %v3901
    %5205 = vmatprep.subr.bf16.mxu0 0
    %5206 = vmatpush1.bf16.msra.mxu0 %v3900
    %5207 = vmatprep.subr.bf16.mxu0 0
    %5208 = vmatpush1.bf16.msra.mxu0 %v3899
    %5209 = vmatprep.subr.bf16.mxu0 0
    %5210 = vmatpush1.bf16.msra.mxu0 %v3898
    %5211 = vmatprep.subr.bf16.mxu0 0
    %5212 = vmatpush1.bf16.msra.mxu0 %v3897
    %5213 = vmatprep.subr.bf16.mxu0 0
    %5214 = vmatpush1.bf16.msra.mxu0 %v3896
    %5215 = vmatprep.subr.bf16.mxu0 0
    %5216 = vmatpush1.bf16.msra.mxu0 %v3895
    %5217 = vmatprep.subr.bf16.mxu0 0
    %5218 = vmatpush2.bf16.msra.mxu0 0
    %5219 = vmatprep.subr.bf16.mxu0 0
    %5220 = vmatpush2.bf16.msra.mxu0 0
    %5221 = vmatprep.subr.bf16.mxu0 0
    %5222 = vmatpush2.bf16.msra.mxu0 0
    %5223 = vmatprep.subr.bf16.mxu0 0
    %5224 = vmatpush2.bf16.msra.mxu0 0
    %5225 = vmatprep.subr.bf16.mxu0 0
    %5226 = vmatpush2.bf16.msra.mxu0 0
    %5227 = vmatprep.subr.bf16.mxu0 0
    %5228 = vmatpush2.bf16.msra.mxu0 0
    %5229 = vmatprep.subr.bf16.mxu0 0
    %5230 = vmatpush2.bf16.msra.mxu0 0
    %5231 = vmatprep.subr.bf16.mxu0 0
    %5232 = vmatpush2.bf16.msra.mxu0 0
    %5233 = vmatprep.mubr.bf16.mxu0 0
    %5234 = vmatmul.mubr.bf16.gmra.mxu0 %v5200
    %v5235 = vpop.f32.mrf.mxu0
    %v5236 = vadd.f32 %v385, %v5235
    %v5237 = vpop.f32.mrf.mxu0
    %v5238 = vpop.f32.mrf.mxu0
    %v5239 = vpop.f32.mrf.mxu0
    %5240 = vdwg.mxu0
    %5241 = vmatprep.subr.bf16.mxu0 %v3289
    %5242 = vmatpush1.bf16.msra.mxu0 %v3288
    %5243 = vmatprep.subr.bf16.mxu0 %v3285
    %5244 = vmatpush1.bf16.msra.mxu0 %v3284
    %5245 = vmatprep.subr.bf16.mxu0 %v3281
    %5246 = vmatpush1.bf16.msra.mxu0 %v3280
    %5247 = vmatprep.subr.bf16.mxu0 %v3277
    %5248 = vmatpush1.bf16.msra.mxu0 %v3276
    %5249 = vmatprep.subr.bf16.mxu0 %v3273
    %5250 = vmatpush1.bf16.msra.mxu0 %v3272
    %5251 = vmatprep.subr.bf16.mxu0 %v3269
    %5252 = vmatpush1.bf16.msra.mxu0 %v3268
    %5253 = vmatprep.subr.bf16.mxu0 %v3265
    %5254 = vmatpush1.bf16.msra.mxu0 %v3264
    %5255 = vmatprep.subr.bf16.mxu0 %v3261
    %5256 = vmatpush1.bf16.msra.mxu0 %v3260
    %5257 = vmatprep.subr.bf16.mxu0 0
    %5258 = vmatpush2.bf16.msra.mxu0 0
    %5259 = vmatprep.subr.bf16.mxu0 0
    %5260 = vmatpush2.bf16.msra.mxu0 0
    %5261 = vmatprep.subr.bf16.mxu0 0
    %5262 = vmatpush2.bf16.msra.mxu0 0
    %5263 = vmatprep.subr.bf16.mxu0 0
    %5264 = vmatpush2.bf16.msra.mxu0 0
    %5265 = vmatprep.subr.bf16.mxu0 0
    %5266 = vmatpush2.bf16.msra.mxu0 0
    %5267 = vmatprep.subr.bf16.mxu0 0
    %5268 = vmatpush2.bf16.msra.mxu0 0
    %5269 = vmatprep.subr.bf16.mxu0 0
    %5270 = vmatpush2.bf16.msra.mxu0 0
    %5271 = vmatprep.subr.bf16.mxu0 0
    %5272 = vmatpush2.bf16.msra.mxu0 0
    %5273 = vmatprep.mubr.bf16.mxu0 0
    %5274 = vmatmul.mubr.bf16.gmra.mxu0 %v5093
    %v5275 = vpop.f32.mrf.mxu0
    %v5276 = vadd.f32 0.0, %v5275
    %v5277 = vpop.f32.mrf.mxu0
    %v5278 = vadd.f32 0.0, %v5277
    %v5279 = vpop.f32.mrf.mxu0
    %v5280 = vpop.f32.mrf.mxu0
    %5281 = vdwg.mxu0
    %5282 = vmatprep.subr.bf16.mxu0 %v3291
    %5283 = vmatpush1.bf16.msra.mxu0 %v3290
    %5284 = vmatprep.subr.bf16.mxu0 %v3287
    %5285 = vmatpush1.bf16.msra.mxu0 %v3286
    %5286 = vmatprep.subr.bf16.mxu0 %v3283
    %5287 = vmatpush1.bf16.msra.mxu0 %v3282
    %5288 = vmatprep.subr.bf16.mxu0 %v3279
    %5289 = vmatpush1.bf16.msra.mxu0 %v3278
    %5290 = vmatprep.subr.bf16.mxu0 %v3275
    %5291 = vmatpush1.bf16.msra.mxu0 %v3274
    %5292 = vmatprep.subr.bf16.mxu0 %v3271
    %5293 = vmatpush1.bf16.msra.mxu0 %v3270
    %5294 = vmatprep.subr.bf16.mxu0 %v3267
    %5295 = vmatpush1.bf16.msra.mxu0 %v3266
    %5296 = vmatprep.subr.bf16.mxu0 %v3263
    %5297 = vmatpush1.bf16.msra.mxu0 %v3262
    %5298 = vmatprep.subr.bf16.mxu0 0
    %5299 = vmatpush2.bf16.msra.mxu0 0
    %5300 = vmatprep.subr.bf16.mxu0 0
    %5301 = vmatpush2.bf16.msra.mxu0 0
    %5302 = vmatprep.subr.bf16.mxu0 0
    %5303 = vmatpush2.bf16.msra.mxu0 0
    %5304 = vmatprep.subr.bf16.mxu0 0
    %5305 = vmatpush2.bf16.msra.mxu0 0
    %5306 = vmatprep.subr.bf16.mxu0 0
    %5307 = vmatpush2.bf16.msra.mxu0 0
    %5308 = vmatprep.subr.bf16.mxu0 0
    %5309 = vmatpush2.bf16.msra.mxu0 0
    %5310 = vmatprep.subr.bf16.mxu0 0
    %5311 = vmatpush2.bf16.msra.mxu0 0
    %5312 = vmatprep.subr.bf16.mxu0 0
    %5313 = vmatpush2.bf16.msra.mxu0 0
    %5314 = vmatprep.mubr.bf16.mxu0 0
    %5315 = vmatmul.mubr.bf16.gmra.mxu0 %v5093
    %v5316 = vpop.f32.mrf.mxu0
    %v5317 = vadd.f32 0.0, %v5316
    %v5318 = vpop.f32.mrf.mxu0
    %v5319 = vadd.f32 0.0, %v5318
    %v5320 = vpop.f32.mrf.mxu0
    %v5321 = vpop.f32.mrf.mxu0
    %5322 = vdwg.mxu0
    %v5323 = vadd.f32 %v853, %v5276
    %v5324 = vadd.f32 %v855, %v5278
    %v5325 = vadd.f32 %v926, %v5317
    %v5326 = vadd.f32 %v928, %v5319
    %v5327 = vxor.u32 %v5323, 2147483648
    %v5328 = vmul.f32 %v5327, 1.442695
    %v5329 = vpow.pop %v5328
    %v5330 = vadd.f32 %v5329, 1.0
    %v5331 = vrcp.pop %v5330
    %v5332 = vmul.f32 1.0, %v5331
    %v5333 = vxor.u32 %v5324, 2147483648
    %v5334 = vmul.f32 %v5333, 1.442695
    %v5335 = vpow.pop %v5334
    %v5336 = vadd.f32 %v5335, 1.0
    %v5337 = vrcp.pop %v5336
    %v5338 = vmul.f32 1.0, %v5337
    %v5339 = vtanh.pop %v5325
    %v5340 = vxor.u32 %v5326, 2147483648
    %v5341 = vmul.f32 %v5340, 1.442695
    %v5342 = vpow.pop %v5341
    %v5343 = vadd.f32 %v5342, 1.0
    %v5344 = vrcp.pop %v5343
    %v5345 = vmul.f32 1.0, %v5344
    %v5346 = vmul.f32 %v5338, %v5090
    %v5347 = vmul.f32 %v5332, %v5339
    %v5348 = vadd.f32 %v5346, %v5347
    %v5349 = vtanh.pop %v5348
    %v5350 = vmul.f32 %v5345, %v5349
    %v5351 = vpack.c.bf16 %v5350, %v5350
    %5352 = vmatprep.subr.bf16.mxu0 %v3657
    %5353 = vmatpush1.bf16.msra.mxu0 %v3656
    %5354 = vmatprep.subr.bf16.mxu0 %v3653
    %5355 = vmatpush1.bf16.msra.mxu0 %v3652
    %5356 = vmatprep.subr.bf16.mxu0 %v3649
    %5357 = vmatpush1.bf16.msra.mxu0 %v3648
    %5358 = vmatprep.subr.bf16.mxu0 %v3645
    %5359 = vmatpush1.bf16.msra.mxu0 %v3644
    %5360 = vmatprep.subr.bf16.mxu0 %v3641
    %5361 = vmatpush1.bf16.msra.mxu0 %v3640
    %5362 = vmatprep.subr.bf16.mxu0 %v3637
    %5363 = vmatpush1.bf16.msra.mxu0 %v3636
    %5364 = vmatprep.subr.bf16.mxu0 %v3633
    %5365 = vmatpush1.bf16.msra.mxu0 %v3632
    %5366 = vmatprep.subr.bf16.mxu0 %v3629
    %5367 = vmatpush1.bf16.msra.mxu0 %v3628
    %5368 = vmatprep.subr.bf16.mxu0 %v3689
    %5369 = vmatpush2.bf16.msra.mxu0 %v3688
    %5370 = vmatprep.subr.bf16.mxu0 %v3685
    %5371 = vmatpush2.bf16.msra.mxu0 %v3684
    %5372 = vmatprep.subr.bf16.mxu0 %v3681
    %5373 = vmatpush2.bf16.msra.mxu0 %v3680
    %5374 = vmatprep.subr.bf16.mxu0 %v3677
    %5375 = vmatpush2.bf16.msra.mxu0 %v3676
    %5376 = vmatprep.subr.bf16.mxu0 %v3673
    %5377 = vmatpush2.bf16.msra.mxu0 %v3672
    %5378 = vmatprep.subr.bf16.mxu0 %v3669
    %5379 = vmatpush2.bf16.msra.mxu0 %v3668
    %5380 = vmatprep.subr.bf16.mxu0 %v3665
    %5381 = vmatpush2.bf16.msra.mxu0 %v3664
    %5382 = vmatprep.subr.bf16.mxu0 %v3661
    %5383 = vmatpush2.bf16.msra.mxu0 %v3660
    %5384 = vmatprep.mubr.bf16.mxu0 %v5200
    %5385 = vmatmul.mubr.bf16.gmra.mxu0 %v5351
    %v5386 = vpop.f32.mrf.mxu0
    %v5387 = vadd.f32 %v363, %v5386
    %v5388 = vpop.f32.mrf.mxu0
    %v5389 = vadd.f32 %v367, %v5388
    %v5390 = vpop.f32.mrf.mxu0
    %v5391 = vpop.f32.mrf.mxu0
    %5392 = vdwg.mxu0
    %5393 = vmatprep.subr.bf16.mxu0 %v3659
    %5394 = vmatpush1.bf16.msra.mxu0 %v3658
    %5395 = vmatprep.subr.bf16.mxu0 %v3655
    %5396 = vmatpush1.bf16.msra.mxu0 %v3654
    %5397 = vmatprep.subr.bf16.mxu0 %v3651
    %5398 = vmatpush1.bf16.msra.mxu0 %v3650
    %5399 = vmatprep.subr.bf16.mxu0 %v3647
    %5400 = vmatpush1.bf16.msra.mxu0 %v3646
    %5401 = vmatprep.subr.bf16.mxu0 %v3643
    %5402 = vmatpush1.bf16.msra.mxu0 %v3642
    %5403 = vmatprep.subr.bf16.mxu0 %v3639
    %5404 = vmatpush1.bf16.msra.mxu0 %v3638
    %5405 = vmatprep.subr.bf16.mxu0 %v3635
    %5406 = vmatpush1.bf16.msra.mxu0 %v3634
    %5407 = vmatprep.subr.bf16.mxu0 %v3631
    %5408 = vmatpush1.bf16.msra.mxu0 %v3630
    %5409 = vmatprep.subr.bf16.mxu0 %v3691
    %5410 = vmatpush2.bf16.msra.mxu0 %v3690
    %5411 = vmatprep.subr.bf16.mxu0 %v3687
    %5412 = vmatpush2.bf16.msra.mxu0 %v3686
    %5413 = vmatprep.subr.bf16.mxu0 %v3683
    %5414 = vmatpush2.bf16.msra.mxu0 %v3682
    %5415 = vmatprep.subr.bf16.mxu0 %v3679
    %5416 = vmatpush2.bf16.msra.mxu0 %v3678
    %5417 = vmatprep.subr.bf16.mxu0 %v3675
    %5418 = vmatpush2.bf16.msra.mxu0 %v3674
    %5419 = vmatprep.subr.bf16.mxu0 %v3671
    %5420 = vmatpush2.bf16.msra.mxu0 %v3670
    %5421 = vmatprep.subr.bf16.mxu0 %v3667
    %5422 = vmatpush2.bf16.msra.mxu0 %v3666
    %5423 = vmatprep.subr.bf16.mxu0 %v3663
    %5424 = vmatpush2.bf16.msra.mxu0 %v3662
    %5425 = vmatprep.mubr.bf16.mxu0 %v5200
    %5426 = vmatmul.mubr.bf16.gmra.mxu0 %v5351
    %v5427 = vpop.f32.mrf.mxu0
    %v5428 = vadd.f32 %v371, %v5427
    %v5429 = vpop.f32.mrf.mxu0
    %v5430 = vadd.f32 %v375, %v5429
    %v5431 = vpop.f32.mrf.mxu0
    %v5432 = vpop.f32.mrf.mxu0
    %5433 = vdwg.mxu0
    %v5434 = vxor.u32 %v5387, 2147483648
    %v5435 = vmul.f32 %v5434, 1.442695
    %v5436 = vpow.pop %v5435
    %v5437 = vadd.f32 %v5436, 1.0
    %v5438 = vrcp.pop %v5437
    %v5439 = vmul.f32 1.0, %v5438
    %v5440 = vxor.u32 %v5389, 2147483648
    %v5441 = vmul.f32 %v5440, 1.442695
    %v5442 = vpow.pop %v5441
    %v5443 = vadd.f32 %v5442, 1.0
    %v5444 = vrcp.pop %v5443
    %v5445 = vmul.f32 1.0, %v5444
    %v5446 = vtanh.pop %v5428
    %v5447 = vxor.u32 %v5430, 2147483648
    %v5448 = vmul.f32 %v5447, 1.442695
    %v5449 = vpow.pop %v5448
    %v5450 = vadd.f32 %v5449, 1.0
    %v5451 = vrcp.pop %v5450
    %v5452 = vmul.f32 1.0, %v5451
    %v5453 = vmul.f32 %v5445, %v5197
    %v5454 = vmul.f32 %v5439, %v5446
    %v5455 = vadd.f32 %v5453, %v5454
    %v5456 = vtanh.pop %v5455
    %v5457 = vmul.f32 %v5452, %v5456
    %v5458 = vpack.c.bf16 %v5457, %v5457
    %5459 = vmatprep.subr.bf16.mxu0 0
    %5460 = vmatpush1.bf16.msra.mxu0 %v3902
    %5461 = vmatprep.subr.bf16.mxu0 0
    %5462 = vmatpush1.bf16.msra.mxu0 %v3901
    %5463 = vmatprep.subr.bf16.mxu0 0
    %5464 = vmatpush1.bf16.msra.mxu0 %v3900
    %5465 = vmatprep.subr.bf16.mxu0 0
    %5466 = vmatpush1.bf16.msra.mxu0 %v3899
    %5467 = vmatprep.subr.bf16.mxu0 0
    %5468 = vmatpush1.bf16.msra.mxu0 %v3898
    %5469 = vmatprep.subr.bf16.mxu0 0
    %5470 = vmatpush1.bf16.msra.mxu0 %v3897
    %5471 = vmatprep.subr.bf16.mxu0 0
    %5472 = vmatpush1.bf16.msra.mxu0 %v3896
    %5473 = vmatprep.subr.bf16.mxu0 0
    %5474 = vmatpush1.bf16.msra.mxu0 %v3895
    %5475 = vmatprep.subr.bf16.mxu0 0
    %5476 = vmatpush2.bf16.msra.mxu0 0
    %5477 = vmatprep.subr.bf16.mxu0 0
    %5478 = vmatpush2.bf16.msra.mxu0 0
    %5479 = vmatprep.subr.bf16.mxu0 0
    %5480 = vmatpush2.bf16.msra.mxu0 0
    %5481 = vmatprep.subr.bf16.mxu0 0
    %5482 = vmatpush2.bf16.msra.mxu0 0
    %5483 = vmatprep.subr.bf16.mxu0 0
    %5484 = vmatpush2.bf16.msra.mxu0 0
    %5485 = vmatprep.subr.bf16.mxu0 0
    %5486 = vmatpush2.bf16.msra.mxu0 0
    %5487 = vmatprep.subr.bf16.mxu0 0
    %5488 = vmatpush2.bf16.msra.mxu0 0
    %5489 = vmatprep.subr.bf16.mxu0 0
    %5490 = vmatpush2.bf16.msra.mxu0 0
    %5491 = vmatprep.mubr.bf16.mxu0 0
    %5492 = vmatmul.mubr.bf16.gmra.mxu0 %v5458
    %v5493 = vpop.f32.mrf.mxu0
    %v5494 = vadd.f32 %v385, %v5493
    %v5495 = vpop.f32.mrf.mxu0
    %v5496 = vpop.f32.mrf.mxu0
    %v5497 = vpop.f32.mrf.mxu0
    %5498 = vdwg.mxu0
    %5499 = vmatprep.subr.bf16.mxu0 %v3289
    %5500 = vmatpush1.bf16.msra.mxu0 %v3288
    %5501 = vmatprep.subr.bf16.mxu0 %v3285
    %5502 = vmatpush1.bf16.msra.mxu0 %v3284
    %5503 = vmatprep.subr.bf16.mxu0 %v3281
    %5504 = vmatpush1.bf16.msra.mxu0 %v3280
    %5505 = vmatprep.subr.bf16.mxu0 %v3277
    %5506 = vmatpush1.bf16.msra.mxu0 %v3276
    %5507 = vmatprep.subr.bf16.mxu0 %v3273
    %5508 = vmatpush1.bf16.msra.mxu0 %v3272
    %5509 = vmatprep.subr.bf16.mxu0 %v3269
    %5510 = vmatpush1.bf16.msra.mxu0 %v3268
    %5511 = vmatprep.subr.bf16.mxu0 %v3265
    %5512 = vmatpush1.bf16.msra.mxu0 %v3264
    %5513 = vmatprep.subr.bf16.mxu0 %v3261
    %5514 = vmatpush1.bf16.msra.mxu0 %v3260
    %5515 = vmatprep.subr.bf16.mxu0 0
    %5516 = vmatpush2.bf16.msra.mxu0 0
    %5517 = vmatprep.subr.bf16.mxu0 0
    %5518 = vmatpush2.bf16.msra.mxu0 0
    %5519 = vmatprep.subr.bf16.mxu0 0
    %5520 = vmatpush2.bf16.msra.mxu0 0
    %5521 = vmatprep.subr.bf16.mxu0 0
    %5522 = vmatpush2.bf16.msra.mxu0 0
    %5523 = vmatprep.subr.bf16.mxu0 0
    %5524 = vmatpush2.bf16.msra.mxu0 0
    %5525 = vmatprep.subr.bf16.mxu0 0
    %5526 = vmatpush2.bf16.msra.mxu0 0
    %5527 = vmatprep.subr.bf16.mxu0 0
    %5528 = vmatpush2.bf16.msra.mxu0 0
    %5529 = vmatprep.subr.bf16.mxu0 0
    %5530 = vmatpush2.bf16.msra.mxu0 0
    %5531 = vmatprep.mubr.bf16.mxu0 0
    %5532 = vmatmul.mubr.bf16.gmra.mxu0 %v5351
    %v5533 = vpop.f32.mrf.mxu0
    %v5534 = vadd.f32 0.0, %v5533
    %v5535 = vpop.f32.mrf.mxu0
    %v5536 = vadd.f32 0.0, %v5535
    %v5537 = vpop.f32.mrf.mxu0
    %v5538 = vpop.f32.mrf.mxu0
    %5539 = vdwg.mxu0
    %5540 = vmatprep.subr.bf16.mxu0 %v3291
    %5541 = vmatpush1.bf16.msra.mxu0 %v3290
    %5542 = vmatprep.subr.bf16.mxu0 %v3287
    %5543 = vmatpush1.bf16.msra.mxu0 %v3286
    %5544 = vmatprep.subr.bf16.mxu0 %v3283
    %5545 = vmatpush1.bf16.msra.mxu0 %v3282
    %5546 = vmatprep.subr.bf16.mxu0 %v3279
    %5547 = vmatpush1.bf16.msra.mxu0 %v3278
    %5548 = vmatprep.subr.bf16.mxu0 %v3275
    %5549 = vmatpush1.bf16.msra.mxu0 %v3274
    %5550 = vmatprep.subr.bf16.mxu0 %v3271
    %5551 = vmatpush1.bf16.msra.mxu0 %v3270
    %5552 = vmatprep.subr.bf16.mxu0 %v3267
    %5553 = vmatpush1.bf16.msra.mxu0 %v3266
    %5554 = vmatprep.subr.bf16.mxu0 %v3263
    %5555 = vmatpush1.bf16.msra.mxu0 %v3262
    %5556 = vmatprep.subr.bf16.mxu0 0
    %5557 = vmatpush2.bf16.msra.mxu0 0
    %5558 = vmatprep.subr.bf16.mxu0 0
    %5559 = vmatpush2.bf16.msra.mxu0 0
    %5560 = vmatprep.subr.bf16.mxu0 0
    %5561 = vmatpush2.bf16.msra.mxu0 0
    %5562 = vmatprep.subr.bf16.mxu0 0
    %5563 = vmatpush2.bf16.msra.mxu0 0
    %5564 = vmatprep.subr.bf16.mxu0 0
    %5565 = vmatpush2.bf16.msra.mxu0 0
    %5566 = vmatprep.subr.bf16.mxu0 0
    %5567 = vmatpush2.bf16.msra.mxu0 0
    %5568 = vmatprep.subr.bf16.mxu0 0
    %5569 = vmatpush2.bf16.msra.mxu0 0
    %5570 = vmatprep.subr.bf16.mxu0 0
    %5571 = vmatpush2.bf16.msra.mxu0 0
    %5572 = vmatprep.mubr.bf16.mxu0 0
    %5573 = vmatmul.mubr.bf16.gmra.mxu0 %v5351
    %v5574 = vpop.f32.mrf.mxu0
    %v5575 = vadd.f32 0.0, %v5574
    %v5576 = vpop.f32.mrf.mxu0
    %v5577 = vadd.f32 0.0, %v5576
    %v5578 = vpop.f32.mrf.mxu0
    %v5579 = vpop.f32.mrf.mxu0
    %5580 = vdwg.mxu0
    %v5581 = vadd.f32 %v859, %v5534
    %v5582 = vadd.f32 %v861, %v5536
    %v5583 = vadd.f32 %v932, %v5575
    %v5584 = vadd.f32 %v934, %v5577
    %v5585 = vxor.u32 %v5581, 2147483648
    %v5586 = vmul.f32 %v5585, 1.442695
    %v5587 = vpow.pop %v5586
    %v5588 = vadd.f32 %v5587, 1.0
    %v5589 = vrcp.pop %v5588
    %v5590 = vmul.f32 1.0, %v5589
    %v5591 = vxor.u32 %v5582, 2147483648
    %v5592 = vmul.f32 %v5591, 1.442695
    %v5593 = vpow.pop %v5592
    %v5594 = vadd.f32 %v5593, 1.0
    %v5595 = vrcp.pop %v5594
    %v5596 = vmul.f32 1.0, %v5595
    %v5597 = vtanh.pop %v5583
    %v5598 = vxor.u32 %v5584, 2147483648
    %v5599 = vmul.f32 %v5598, 1.442695
    %v5600 = vpow.pop %v5599
    %v5601 = vadd.f32 %v5600, 1.0
    %v5602 = vrcp.pop %v5601
    %v5603 = vmul.f32 1.0, %v5602
    %v5604 = vmul.f32 %v5596, %v5348
    %v5605 = vmul.f32 %v5590, %v5597
    %v5606 = vadd.f32 %v5604, %v5605
    %v5607 = vtanh.pop %v5606
    %v5608 = vmul.f32 %v5603, %v5607
    %v5609 = vpack.c.bf16 %v5608, %v5608
    %5610 = vmatprep.subr.bf16.mxu0 %v3657
    %5611 = vmatpush1.bf16.msra.mxu0 %v3656
    %5612 = vmatprep.subr.bf16.mxu0 %v3653
    %5613 = vmatpush1.bf16.msra.mxu0 %v3652
    %5614 = vmatprep.subr.bf16.mxu0 %v3649
    %5615 = vmatpush1.bf16.msra.mxu0 %v3648
    %5616 = vmatprep.subr.bf16.mxu0 %v3645
    %5617 = vmatpush1.bf16.msra.mxu0 %v3644
    %5618 = vmatprep.subr.bf16.mxu0 %v3641
    %5619 = vmatpush1.bf16.msra.mxu0 %v3640
    %5620 = vmatprep.subr.bf16.mxu0 %v3637
    %5621 = vmatpush1.bf16.msra.mxu0 %v3636
    %5622 = vmatprep.subr.bf16.mxu0 %v3633
    %5623 = vmatpush1.bf16.msra.mxu0 %v3632
    %5624 = vmatprep.subr.bf16.mxu0 %v3629
    %5625 = vmatpush1.bf16.msra.mxu0 %v3628
    %5626 = vmatprep.subr.bf16.mxu0 %v3689
    %5627 = vmatpush2.bf16.msra.mxu0 %v3688
    %5628 = vmatprep.subr.bf16.mxu0 %v3685
    %5629 = vmatpush2.bf16.msra.mxu0 %v3684
    %5630 = vmatprep.subr.bf16.mxu0 %v3681
    %5631 = vmatpush2.bf16.msra.mxu0 %v3680
    %5632 = vmatprep.subr.bf16.mxu0 %v3677
    %5633 = vmatpush2.bf16.msra.mxu0 %v3676
    %5634 = vmatprep.subr.bf16.mxu0 %v3673
    %5635 = vmatpush2.bf16.msra.mxu0 %v3672
    %5636 = vmatprep.subr.bf16.mxu0 %v3669
    %5637 = vmatpush2.bf16.msra.mxu0 %v3668
    %5638 = vmatprep.subr.bf16.mxu0 %v3665
    %5639 = vmatpush2.bf16.msra.mxu0 %v3664
    %5640 = vmatprep.subr.bf16.mxu0 %v3661
    %5641 = vmatpush2.bf16.msra.mxu0 %v3660
    %5642 = vmatprep.mubr.bf16.mxu0 %v5458
    %5643 = vmatmul.mubr.bf16.gmra.mxu0 %v5609
    %v5644 = vpop.f32.mrf.mxu0
    %v5645 = vadd.f32 %v363, %v5644
    %v5646 = vpop.f32.mrf.mxu0
    %v5647 = vadd.f32 %v367, %v5646
    %v5648 = vpop.f32.mrf.mxu0
    %v5649 = vpop.f32.mrf.mxu0
    %5650 = vdwg.mxu0
    %5651 = vmatprep.subr.bf16.mxu0 %v3659
    %5652 = vmatpush1.bf16.msra.mxu0 %v3658
    %5653 = vmatprep.subr.bf16.mxu0 %v3655
    %5654 = vmatpush1.bf16.msra.mxu0 %v3654
    %5655 = vmatprep.subr.bf16.mxu0 %v3651
    %5656 = vmatpush1.bf16.msra.mxu0 %v3650
    %5657 = vmatprep.subr.bf16.mxu0 %v3647
    %5658 = vmatpush1.bf16.msra.mxu0 %v3646
    %5659 = vmatprep.subr.bf16.mxu0 %v3643
    %5660 = vmatpush1.bf16.msra.mxu0 %v3642
    %5661 = vmatprep.subr.bf16.mxu0 %v3639
    %5662 = vmatpush1.bf16.msra.mxu0 %v3638
    %5663 = vmatprep.subr.bf16.mxu0 %v3635
    %5664 = vmatpush1.bf16.msra.mxu0 %v3634
    %5665 = vmatprep.subr.bf16.mxu0 %v3631
    %5666 = vmatpush1.bf16.msra.mxu0 %v3630
    %5667 = vmatprep.subr.bf16.mxu0 %v3691
    %5668 = vmatpush2.bf16.msra.mxu0 %v3690
    %5669 = vmatprep.subr.bf16.mxu0 %v3687
    %5670 = vmatpush2.bf16.msra.mxu0 %v3686
    %5671 = vmatprep.subr.bf16.mxu0 %v3683
    %5672 = vmatpush2.bf16.msra.mxu0 %v3682
    %5673 = vmatprep.subr.bf16.mxu0 %v3679
    %5674 = vmatpush2.bf16.msra.mxu0 %v3678
    %5675 = vmatprep.subr.bf16.mxu0 %v3675
    %5676 = vmatpush2.bf16.msra.mxu0 %v3674
    %5677 = vmatprep.subr.bf16.mxu0 %v3671
    %5678 = vmatpush2.bf16.msra.mxu0 %v3670
    %5679 = vmatprep.subr.bf16.mxu0 %v3667
    %5680 = vmatpush2.bf16.msra.mxu0 %v3666
    %5681 = vmatprep.subr.bf16.mxu0 %v3663
    %5682 = vmatpush2.bf16.msra.mxu0 %v3662
    %5683 = vmatprep.mubr.bf16.mxu0 %v5458
    %5684 = vmatmul.mubr.bf16.gmra.mxu0 %v5609
    %v5685 = vpop.f32.mrf.mxu0
    %v5686 = vadd.f32 %v371, %v5685
    %v5687 = vpop.f32.mrf.mxu0
    %v5688 = vadd.f32 %v375, %v5687
    %v5689 = vpop.f32.mrf.mxu0
    %v5690 = vpop.f32.mrf.mxu0
    %5691 = vdwg.mxu0
    %v5692 = vxor.u32 %v5645, 2147483648
    %v5693 = vmul.f32 %v5692, 1.442695
    %v5694 = vpow.pop %v5693
    %v5695 = vadd.f32 %v5694, 1.0
    %v5696 = vrcp.pop %v5695
    %v5697 = vmul.f32 1.0, %v5696
    %v5698 = vxor.u32 %v5647, 2147483648
    %v5699 = vmul.f32 %v5698, 1.442695
    %v5700 = vpow.pop %v5699
    %v5701 = vadd.f32 %v5700, 1.0
    %v5702 = vrcp.pop %v5701
    %v5703 = vmul.f32 1.0, %v5702
    %v5704 = vtanh.pop %v5686
    %v5705 = vxor.u32 %v5688, 2147483648
    %v5706 = vmul.f32 %v5705, 1.442695
    %v5707 = vpow.pop %v5706
    %v5708 = vadd.f32 %v5707, 1.0
    %v5709 = vrcp.pop %v5708
    %v5710 = vmul.f32 1.0, %v5709
    %v5711 = vmul.f32 %v5703, %v5455
    %v5712 = vmul.f32 %v5697, %v5704
    %v5713 = vadd.f32 %v5711, %v5712
    %v5714 = vtanh.pop %v5713
    %v5715 = vmul.f32 %v5710, %v5714
    %v5716 = vpack.c.bf16 %v5715, %v5715
    %5717 = vmatprep.subr.bf16.mxu0 0
    %5718 = vmatpush1.bf16.msra.mxu0 %v3902
    %5719 = vmatprep.subr.bf16.mxu0 0
    %5720 = vmatpush1.bf16.msra.mxu0 %v3901
    %5721 = vmatprep.subr.bf16.mxu0 0
    %5722 = vmatpush1.bf16.msra.mxu0 %v3900
    %5723 = vmatprep.subr.bf16.mxu0 0
    %5724 = vmatpush1.bf16.msra.mxu0 %v3899
    %5725 = vmatprep.subr.bf16.mxu0 0
    %5726 = vmatpush1.bf16.msra.mxu0 %v3898
    %5727 = vmatprep.subr.bf16.mxu0 0
    %5728 = vmatpush1.bf16.msra.mxu0 %v3897
    %5729 = vmatprep.subr.bf16.mxu0 0
    %5730 = vmatpush1.bf16.msra.mxu0 %v3896
    %5731 = vmatprep.subr.bf16.mxu0 0
    %5732 = vmatpush1.bf16.msra.mxu0 %v3895
    %5733 = vmatprep.subr.bf16.mxu0 0
    %5734 = vmatpush2.bf16.msra.mxu0 0
    %5735 = vmatprep.subr.bf16.mxu0 0
    %5736 = vmatpush2.bf16.msra.mxu0 0
    %5737 = vmatprep.subr.bf16.mxu0 0
    %5738 = vmatpush2.bf16.msra.mxu0 0
    %5739 = vmatprep.subr.bf16.mxu0 0
    %5740 = vmatpush2.bf16.msra.mxu0 0
    %5741 = vmatprep.subr.bf16.mxu0 0
    %5742 = vmatpush2.bf16.msra.mxu0 0
    %5743 = vmatprep.subr.bf16.mxu0 0
    %5744 = vmatpush2.bf16.msra.mxu0 0
    %5745 = vmatprep.subr.bf16.mxu0 0
    %5746 = vmatpush2.bf16.msra.mxu0 0
    %5747 = vmatprep.subr.bf16.mxu0 0
    %5748 = vmatpush2.bf16.msra.mxu0 0
    %5749 = vmatprep.mubr.bf16.mxu0 0
    %5750 = vmatmul.mubr.bf16.gmra.mxu0 %v5716
    %v5751 = vpop.f32.mrf.mxu0
    %v5752 = vadd.f32 %v385, %v5751
    %v5753 = vpop.f32.mrf.mxu0
    %v5754 = vpop.f32.mrf.mxu0
    %v5755 = vpop.f32.mrf.mxu0
    %5756 = vdwg.mxu0
    %5757 = vst.msk [vmem:[#allocation13] sm:$0xff] %vm517, %v3946
    %5758 = vst.msk [vmem:[#allocation13 + $0x8] sm:$0xff] %vm517, %v4204
    %5759 = vst.msk [vmem:[#allocation13 + $0x10] sm:$0xff] %vm517, %v4462
    %5760 = vst.msk [vmem:[#allocation13 + $0x18] sm:$0xff] %vm517, %v4720
    %5761 = vst.msk [vmem:[#allocation13 + $0x20] sm:$0xff] %vm517, %v4978
    %5762 = vst.msk [vmem:[#allocation13 + $0x28] sm:$0xff] %vm517, %v5236
    %5763 = vst.msk [vmem:[#allocation13 + $0x30] sm:$0xff] %vm517, %v5494
    %5764 = vst.msk [vmem:[#allocation13 + $0x38] sm:$0xff] %vm517, %v5752
    // Predicated region
    $region78: #{tpu_custom_call.1} parent=1 // pred_check
      _
    $region79: #{tpu_custom_call.1} parent=1 // pred_check_branch
      %5766 = sbr.rel (0) target = $region81
    $region80: #{tpu_custom_call.1} parent=1 // pred_region
      %s5768 = ssub.s32 1024, 1024
      %5769 = vsyncadd [#allocation4], %s5768
      %s5770 = sshll.u32 [#allocation13], 4
      %s5771 = int_to_ptr.vmem [resolvable:$true] %s5770
      %5776 = dma.vmem_to_hbm [thread:$0]  %s5771, 1024, %s13, [#allocation4], 128, 128, 8
    $region81: #{tpu_custom_call.1} parent=1 // pred_fallthru
      _
    // Predicated region
    $region82: #{tpu_custom_call.1} parent=1 // pred_check
      _
    $region83: #{tpu_custom_call.1} parent=1 // pred_check_branch
      %5778 = sbr.rel (0) target = $region85
    $region84: #{tpu_custom_call.1} parent=1 // pred_region
      %5779 = dma.done [#allocation4], 1024
    $region85: #{tpu_custom_call.1} parent=1 // pred_fallthru
      _
    %5780 = vsyncpa [#allocation3], 1
    %5781 = vsyncpa [#allocation6], 1
    %5782 = vsyncpa [#allocation9], 1
    %5783 = vsyncpa [#allocation12], 1
    %5784 = vsyncpa [#allocation4], 1

</llo_original>
